<compile_context>
chip_gen: v6e
topology: v6e:2x2x1
jax: 0.10.0
libtpu: 0.0.40
codegen_flags: <defaults>
</compile_context>

<pallas_src>
import functools

import jax
import jax.numpy as jnp
from jax.experimental import pallas as pl
from jax.experimental.pallas import tpu as pltpu

DINO_CHANNELS = 384
PATCH = 14
DEPTH = 12
NUM_HEADS = 6
HEAD_DIM = DINO_CHANNELS // NUM_HEADS        # 64
MLP_HIDDEN = 4 * DINO_CHANNELS               # 1536
LN_EPS = 1e-6
PATCH_K = 3 * PATCH * PATCH                  # 588
PATCH_K_PAD = 640                            # 588 -> 640 (multiple of 128)

_CP = pltpu.CompilerParams(
    dimension_semantics=("parallel",),
    vmem_limit_bytes=48 * 1024 * 1024,
)


# ----------------------------------------------------------------------------
# Helpers
# ----------------------------------------------------------------------------
def _round_up(v, m):
    return (v + m - 1) // m * m


def _row_tile(m):
    for tm in (256, 128, 64, 32, 16):
        if m % tm == 0:
            return tm
    return m


def _layernorm_f32(x, g, b):
    mu = jnp.mean(x, axis=-1, keepdims=True)
    xc = x - mu
    var = jnp.mean(xc * xc, axis=-1, keepdims=True)
    return xc * jax.lax.rsqrt(var + LN_EPS) * g + b


# ----------------------------------------------------------------------------
# Kernels
# ----------------------------------------------------------------------------
def _patch_embed_kernel(x_ref, w_ref, b_ref, o_ref):
    # x (tm, 640) bf16, w (640, 384) bf16  ->  f32 accumulate + bias
    acc = jnp.dot(x_ref[...], w_ref[...], preferred_element_type=jnp.float32)
    o_ref[...] = (acc + b_ref[...]).astype(o_ref.dtype)


def _block_kernel(x_ref, n1g_ref, n1b_ref, qkvw_ref, qkvb_ref,
                  projw_ref, projb_ref, ls1_ref,
                  n2g_ref, n2b_ref, fc1w_ref, fc1b_ref,
                  fc2w_ref, fc2b_ref, ls2_ref,
                  o_ref, qkv_s, attn_s, *, t_real, t_pad, d, num_heads, head_dim):
    """One full DINOv2 block for a single batch element; everything stays in VMEM."""
    bf16 = jnp.bfloat16
    x = x_ref[0]                                                    # (T_pad, D) f32

    # ---- attention branch: LN1 -> fused qkv matmul -> per-head SDPA -> proj + LS + res
    xn = _layernorm_f32(x, n1g_ref[...], n1b_ref[...])
    qkv_s[...] = jnp.dot(xn.astype(bf16), qkvw_ref[...],
                         preferred_element_type=jnp.float32) + qkvb_ref[...]

    if t_pad > t_real:                       # mask padded key tokens out of the softmax
        key_idx = jax.lax.broadcasted_iota(jnp.int32, (1, t_pad), 1)
        key_bias = jnp.where(key_idx < t_real, 0.0, -1e30).astype(jnp.float32)
    else:
        key_bias = None

    scale = head_dim ** -0.5
    for h in range(num_heads):               # static, fully-unrolled head loop
        q = qkv_s[:, h * head_dim:(h + 1) * head_dim].astype(bf16)
        k = qkv_s[:, d + h * head_dim:d + (h + 1) * head_dim].astype(bf16)
        v = qkv_s[:, 2 * d + h * head_dim:2 * d + (h + 1) * head_dim].astype(bf16)
        s = jax.lax.dot_general(q, k, (((1,), (1,)), ((), ())),
                                preferred_element_type=jnp.float32) * scale
        if key_bias is not None:
            s = s + key_bias
        m = jnp.max(s, axis=-1, keepdims=True)
        p = jnp.exp(s - m)
        l = jnp.sum(p, axis=-1, keepdims=True)
        o = jnp.dot(p.astype(bf16), v, preferred_element_type=jnp.float32)
        attn_s[:, h * head_dim:(h + 1) * head_dim] = o * pl.reciprocal(l, approx=True)

    y = jnp.dot(attn_s[...].astype(bf16), projw_ref[...],
                preferred_element_type=jnp.float32) + projb_ref[...]
    x = x + ls1_ref[...] * y

    # ---- MLP branch: LN2 -> fc1 + GELU -> fc2 (+ LS + res); hidden never leaves VMEM
    # TODO(synk): real DINOv2 uses exact (erf) GELU; tanh approximation used here.
    xn2 = _layernorm_f32(x, n2g_ref[...], n2b_ref[...])
    hid = jnp.dot(xn2.astype(bf16), fc1w_ref[...],
                  preferred_element_type=jnp.float32) + fc1b_ref[...]
    hid = jax.nn.gelu(hid, approximate=True).astype(bf16)
    y2 = jnp.dot(hid, fc2w_ref[...], preferred_element_type=jnp.float32) + fc2b_ref[...]
    o_ref[0] = (x + ls2_ref[...] * y2).astype(o_ref.dtype)


def _final_ln_kernel(x_ref, g_ref, b_ref, o_ref):
    o_ref[0] = _layernorm_f32(x_ref[0], g_ref[...], b_ref[...]).astype(o_ref.dtype)


# ----------------------------------------------------------------------------
# pallas_call wrappers
# ----------------------------------------------------------------------------
def patch_embed(x, w_mat, b):
    bsz, c, h, w_img = x.shape
    nh, nw = h // PATCH, w_img // PATCH
    d = DINO_CHANNELS
    xp = x.reshape(bsz, c, nh, PATCH, nw, PATCH)
    xp = jnp.transpose(xp, (0, 2, 4, 1, 3, 5)).reshape(bsz * nh * nw, c * PATCH * PATCH)
    xp = jnp.pad(xp, ((0, 0), (0, PATCH_K_PAD - xp.shape[1]))).astype(jnp.bfloat16)
    m = xp.shape[0]
    m_pad = _round_up(m, 16)
    if m_pad != m:
        xp = jnp.pad(xp, ((0, m_pad - m), (0, 0)))
    tm = _row_tile(m_pad)
    tok = pl.pallas_call(
        _patch_embed_kernel,
        out_shape=jax.ShapeDtypeStruct((m_pad, d), jnp.float32),
        grid_spec=pltpu.PrefetchScalarGridSpec(
            num_scalar_prefetch=0,
            grid=(m_pad // tm,),
            in_specs=[pl.BlockSpec((tm, PATCH_K_PAD), lambda i: (i, 0)),
                      pl.BlockSpec((PATCH_K_PAD, d), lambda i: (0, 0)),
                      pl.BlockSpec((1, d), lambda i: (0, 0))],
            out_specs=pl.BlockSpec((tm, d), lambda i: (i, 0))),
        compiler_params=_CP,
    )(xp, w_mat, b.reshape(1, d))
    return tok[:m].reshape(bsz, nh * nw, d), nh, nw


def transformer_block(xtok, p, *, t_real):
    bsz, t_pad, d = xtok.shape
    hidden = p["fc1_w"].shape[1]

    tok_spec = pl.BlockSpec((1, t_pad, d), lambda b: (b, 0, 0))

    def const_spec(shape):
        nd = len(shape)
        return pl.BlockSpec(shape, lambda b: (0,) * nd)

    vec = lambda a: a.reshape(1, -1)

    flops = bsz * (2 * t_pad * d * 3 * d                          # qkv
                   + NUM_HEADS * 4 * t_pad * t_pad * HEAD_DIM     # scores + pv
                   + 2 * t_pad * d * d                            # proj
                   + 4 * t_pad * d * hidden)                      # fc1 + fc2
    transc = bsz * (NUM_HEADS * t_pad * t_pad + t_pad * hidden)
    bytes_acc = (2 * (3 * d * d + d * d + 2 * d * hidden)         # bf16 weights
                 + 2 * bsz * t_pad * d * 4)                       # tokens in + out (f32)

    kernel = functools.partial(_block_kernel, t_real=t_real, t_pad=t_pad,
                               d=d, num_heads=NUM_HEADS, head_dim=HEAD_DIM)
    return pl.pallas_call(
        kernel,
        out_shape=jax.ShapeDtypeStruct((bsz, t_pad, d), jnp.float32),
        grid_spec=pltpu.PrefetchScalarGridSpec(
            num_scalar_prefetch=0,
            grid=(bsz,),
            in_specs=[
                tok_spec,
                const_spec((1, d)), const_spec((1, d)),           # n1_g, n1_b
                const_spec((d, 3 * d)), const_spec((1, 3 * d)),   # qkv_w, qkv_b
                const_spec((d, d)), const_spec((1, d)),           # proj_w, proj_b
                const_spec((1, d)),                               # ls1
                const_spec((1, d)), const_spec((1, d)),           # n2_g, n2_b
                const_spec((d, hidden)), const_spec((1, hidden)), # fc1_w, fc1_b
                const_spec((hidden, d)), const_spec((1, d)),      # fc2_w, fc2_b
                const_spec((1, d)),                               # ls2
            ],
            out_specs=tok_spec,
            scratch_shapes=[pltpu.VMEM((t_pad, 3 * d), jnp.float32),   # qkv
                            pltpu.VMEM((t_pad, d), jnp.float32)]),     # attention out
        compiler_params=_CP,
        cost_estimate=pl.CostEstimate(flops=int(flops), transcendentals=int(transc),
                                      bytes_accessed=int(bytes_acc)),
    )(xtok,
      vec(p["n1_g"]), vec(p["n1_b"]),
      p["qkv_w"], vec(p["qkv_b"]),
      p["proj_w"], vec(p["proj_b"]), vec(p["ls1"]),
      vec(p["n2_g"]), vec(p["n2_b"]),
      p["fc1_w"], vec(p["fc1_b"]),
      p["fc2_w"], vec(p["fc2_b"]), vec(p["ls2"]))


def final_layernorm(xtok, g, b):
    bsz, t_pad, d = xtok.shape
    spec = pl.BlockSpec((1, t_pad, d), lambda i: (i, 0, 0))
    return pl.pallas_call(
        _final_ln_kernel,
        out_shape=jax.ShapeDtypeStruct((bsz, t_pad, d), jnp.float32),
        grid_spec=pltpu.PrefetchScalarGridSpec(
            num_scalar_prefetch=0,
            grid=(bsz,),
            in_specs=[spec,
                      pl.BlockSpec((1, d), lambda i: (0, 0)),
                      pl.BlockSpec((1, d), lambda i: (0, 0))],
            out_specs=spec),
        compiler_params=_CP,
    )(xtok, g.reshape(1, d), b.reshape(1, d))


# ----------------------------------------------------------------------------
# DINOv2 ViT-S/14 forward (Encoder.forward semantics)
# ----------------------------------------------------------------------------
def encoder_forward(x, params):
    bsz = x.shape[0]
    d = DINO_CHANNELS
    patches, nh, nw = patch_embed(x, params["patch_w_mat"], params["patch_b"])
    cls = jnp.broadcast_to(params["cls_token"], (bsz, 1, d))
    tok = jnp.concatenate([cls, patches], axis=1) + params["pos_embed"]   # [B, T, D]
    t = tok.shape[1]
    t_pad = _round_up(t, 8)
    if t_pad != t:
        tok = jnp.pad(tok, ((0, 0), (0, t_pad - t), (0, 0)))              # zero pad rows
    for p in params["blocks"]:
        tok = transformer_block(tok, p, t_real=t)
    tok = final_layernorm(tok, params["norm_g"], params["norm_b"])
    patch_tok = tok[:, 1:t, :]                                            # x_norm_patchtokens
    out = patch_tok.reshape(bsz, nh, nw, d)
    return jnp.transpose(out, (0, 3, 1, 2))                               # (B, 384, H//14, W//14)


# ----------------------------------------------------------------------------
# Pure-JAX reference (same math & precision choices) for the correctness check
# ----------------------------------------------------------------------------
def _reference_forward(x, params):
    bf, f32 = jnp.bfloat16, jnp.float32

    def ln(v, g, b):
        mu = jnp.mean(v, axis=-1, keepdims=True)
        vc = v - mu
        var = jnp.mean(vc * vc, axis=-1, keepdims=True)
        return vc * jax.lax.rsqrt(var + LN_EPS) * g + b

    def bdot(a, w):
        return jnp.dot(a.astype(bf), w, preferred_element_type=f32)

    bsz, c, h, w_img = x.shape
    nh, nw = h // PATCH, w_img // PATCH
    d, dh = DINO_CHANNELS, HEAD_DIM
    xp = x.reshape(bsz, c, nh, PATCH, nw, PATCH)
    xp = jnp.transpose(xp, (0, 2, 4, 1, 3, 5)).reshape(bsz, nh * nw, c * PATCH * PATCH)
    xp = jnp.pad(xp, ((0, 0), (0, 0), (0, PATCH_K_PAD - xp.shape[-1])))
    tok = bdot(xp, params["patch_w_mat"]) + params["patch_b"]
    cls = jnp.broadcast_to(params["cls_token"], (bsz, 1, d))
    xf = jnp.concatenate([cls, tok], axis=1) + params["pos_embed"]
    t = xf.shape[1]
    scale = dh ** -0.5
    for p in params["blocks"]:
        y = ln(xf, p["n1_g"], p["n1_b"])
        qkv = bdot(y, p["qkv_w"]) + p["qkv_b"]
        qkv = qkv.reshape(bsz, t, 3, NUM_HEADS, dh).transpose(2, 0, 3, 1, 4).astype(bf)
        q, k, v = qkv[0], qkv[1], qkv[2]
        s = jnp.einsum("bhqd,bhkd->bhqk", q, k, preferred_element_type=f32) * scale
        m = jnp.max(s, axis=-1, keepdims=True)
        pr = jnp.exp(s - m)
        l = jnp.sum(pr, axis=-1, keepdims=True)
        o = jnp.einsum("bhqk,bhkd->bhqd", pr.astype(bf), v, preferred_element_type=f32) / l
        o = o.transpose(0, 2, 1, 3).reshape(bsz, t, d)
        xf = xf + p["ls1"] * (bdot(o, p["proj_w"]) + p["proj_b"])
        y = ln(xf, p["n2_g"], p["n2_b"])
        hdn = jax.nn.gelu(bdot(y, p["fc1_w"]) + p["fc1_b"], approximate=True)
        xf = xf + p["ls2"] * (bdot(hdn, p["fc2_w"]) + p["fc2_b"])
    xf = ln(xf, params["norm_g"], params["norm_b"])
    return xf[:, 1:, :].reshape(bsz, nh, nw, d).transpose(0, 3, 1, 2)


# ----------------------------------------------------------------------------
# Deterministic parameter construction (same shapes / semantics as the PyTorch model)
# ----------------------------------------------------------------------------
def init_params(key, num_tokens):
    d = DINO_CHANNELS
    hidden = MLP_HIDDEN
    keys = jax.random.split(key, 4 + DEPTH)
    std = 0.02

    def normal(k, shape):
        return std * jax.random.normal(k, shape, dtype=jnp.float32)

    # PyTorch Conv2d(3, 384, 14, stride=14) weight [D, C, 14, 14] flattened to a
    # [C*14*14, D] matmul weight, zero-padded along K to 640 and stored in bf16.
    conv_w = normal(keys[0], (d, 3, PATCH, PATCH))
    w_mat = conv_w.reshape(d, -1).T
    w_mat = jnp.pad(w_mat, ((0, PATCH_K_PAD - w_mat.shape[0]), (0, 0))).astype(jnp.bfloat16)

    params = {
        "patch_w_mat": w_mat,
        "patch_b": jnp.zeros((d,), jnp.float32),
        "cls_token": normal(keys[1], (1, 1, d)),
        # TODO(synk): the real model bicubically interpolates its pretrained 37x37 pos_embed;
        # with random parameters we generate it directly at the target token count.
        "pos_embed": normal(keys[2], (1, num_tokens, d)),
        "norm_g": jnp.ones((d,), jnp.float32),
        "norm_b": jnp.zeros((d,), jnp.float32),
        "blocks": [],
    }
    for i in range(DEPTH):
        bk = jax.random.split(keys[4 + i], 8)
        params["blocks"].append({
            "n1_g": jnp.ones((d,), jnp.float32),
            "n1_b": jnp.zeros((d,), jnp.float32),
            # (in, out) layouts (transposed PyTorch nn.Linear weights), bf16 for the MXU.
            "qkv_w": normal(bk[0], (d, 3 * d)).astype(jnp.bfloat16),
            "qkv_b": normal(bk[1], (3 * d,)),
            "proj_w": normal(bk[2], (d, d)).astype(jnp.bfloat16),
            "proj_b": normal(bk[3], (d,)),
            "ls1": jnp.full((d,), 1.0, jnp.float32),   # DINOv2 LayerScale init_values=1.0
            "n2_g": jnp.ones((d,), jnp.float32),
            "n2_b": jnp.zeros((d,), jnp.float32),
            "fc1_w": normal(bk[4], (d, hidden)).astype(jnp.bfloat16),
            "fc1_b": normal(bk[5], (hidden,)),
            "fc2_w": normal(bk[6], (hidden, d)).astype(jnp.bfloat16),
            "fc2_b": normal(bk[7], (d,)),
            "ls2": jnp.full((d,), 1.0, jnp.float32),
        })
    return params


if __name__ == "__main__":
    key = jax.random.PRNGKey(0)
    k_x, k_p = jax.random.split(key)

    B, C, H, W = 2, 3, 28, 28                     # H, W multiples of the 14-pixel patch size
    num_tokens = 1 + (H // PATCH) * (W // PATCH)  # cls + patch tokens

    x = jax.random.normal(k_x, (B, C, H, W), dtype=jnp.float32)
    params = init_params(k_p, num_tokens)

    out = jax.jit(encoder_forward)(x, params)
    out = jax.block_until_ready(out)

    assert out.shape == (B, DINO_CHANNELS, H // PATCH, W // PATCH), out.shape
    assert bool(jnp.all(jnp.isfinite(out)))
    # Only numeric deltas vs. the reference: MXU accumulation order and the EUP
    # approximate reciprocal in the softmax denominator.
    ref = _reference_forward(x, params)
    assert jnp.allclose(out, ref, atol=3e-2, rtol=3e-2), float(jnp.max(jnp.abs(out - ref)))

    print("KERNEL_OK")
</pallas_src>

<mosaic_0001>
module attributes {stable_mosaic.version = 11 : i64} {
  func.func @_patch_embed_kernel(%arg0: i32, %arg1: memref<16x640xbf16, #tpu.memory_space<vmem>>, %arg2: memref<640x384xbf16, #tpu.memory_space<vmem>>, %arg3: memref<1x384xf32, #tpu.memory_space<vmem>>, %arg4: memref<16x384xf32, #tpu.memory_space<vmem>>) attributes {dimension_semantics = [#tpu.dimension_semantics<parallel>], iteration_bounds = array<i64: 1>, scalar_prefetch = 0 : i64, scratch_operands = 0 : i64, tpu.core_type = #tpu.core_type<tc>, window_params = [{transform_indices = @transform_0, window_bounds = array<i64: 16, 640>}, {pipeline_mode = #tpu.pipeline_mode<synchronous>, transform_indices = @transform_1, window_bounds = array<i64: 640, 384>}, {pipeline_mode = #tpu.pipeline_mode<synchronous>, transform_indices = @transform_2, window_bounds = array<i64: 1, 384>}, {transform_indices = @transform_3, window_bounds = array<i64: 16, 384>}]} {
    %c0 = arith.constant 0 : index
    %c0_0 = arith.constant 0 : index
    %0 = vector.load %arg1[%c0, %c0_0] : memref<16x640xbf16, #tpu.memory_space<vmem>>, vector<16x640xbf16>
    %c0_1 = arith.constant 0 : index
    %c0_2 = arith.constant 0 : index
    %1 = vector.load %arg2[%c0_1, %c0_2] : memref<640x384xbf16, #tpu.memory_space<vmem>>, vector<640x384xbf16>
    %cst = arith.constant dense<0.000000e+00> : vector<16x384xf32>
    %2 = tpu.matmul %0, %1, %cst {dimension_numbers = #tpu.dot_dimension_numbers<[1], [0], [0], [1], [0, 0, 1, 1], [], []>} : vector<16x640xbf16>, vector<640x384xbf16>, vector<16x384xf32> -> vector<16x384xf32>
    %c0_3 = arith.constant 0 : index
    %c0_4 = arith.constant 0 : index
    %3 = vector.load %arg3[%c0_3, %c0_4] : memref<1x384xf32, #tpu.memory_space<vmem>>, vector<1x384xf32>
    %4 = vector.broadcast %3 : vector<1x384xf32> to vector<16x384xf32>
    %5 = arith.addf %2, %4 : vector<16x384xf32>
    %c0_5 = arith.constant 0 : index
    %c0_6 = arith.constant 0 : index
    %6 = vector.load %arg4[%c0_5, %c0_6] : memref<16x384xf32, #tpu.memory_space<vmem>>, vector<16x384xf32>
    tpu.vector_store %arg4[%c0_5, %c0_6], %5 {strides = array<i32>} : memref<16x384xf32, #tpu.memory_space<vmem>>, vector<16x384xf32>,
    return
  }
  func.func @transform_0(%arg0: i32) -> (i32, i32) {
    %c0_i32 = arith.constant 0 : i32
    %c0_i32_0 = arith.constant 0 : i32
    return %arg0, %c0_i32 : i32, i32
  }
  func.func @transform_1(%arg0: i32) -> (i32, i32) {
    %c0_i32 = arith.constant 0 : i32
    %c0_i32_0 = arith.constant 0 : i32
    %c0_i32_1 = arith.constant 0 : i32
    return %c0_i32, %c0_i32_0 : i32, i32
  }
  func.func @transform_2(%arg0: i32) -> (i32, i32) {
    %c0_i32 = arith.constant 0 : i32
    %c0_i32_0 = arith.constant 0 : i32
    %c0_i32_1 = arith.constant 0 : i32
    return %c0_i32, %c0_i32_0 : i32, i32
  }
  func.func @transform_3(%arg0: i32) -> (i32, i32) {
    %c0_i32 = arith.constant 0 : i32
    %c0_i32_0 = arith.constant 0 : i32
    return %arg0, %c0_i32 : i32, i32
  }
}

module attributes {stable_mosaic.version = 11 : i64} {
  func.func @_block_kernel(%arg0: i32, %arg1: memref<1x8x384xf32, #tpu.memory_space<vmem>>, %arg2: memref<1x384xf32, #tpu.memory_space<vmem>>, %arg3: memref<1x384xf32, #tpu.memory_space<vmem>>, %arg4: memref<384x1152xbf16, #tpu.memory_space<vmem>>, %arg5: memref<1x1152xf32, #tpu.memory_space<vmem>>, %arg6: memref<384x384xbf16, #tpu.memory_space<vmem>>, %arg7: memref<1x384xf32, #tpu.memory_space<vmem>>, %arg8: memref<1x384xf32, #tpu.memory_space<vmem>>, %arg9: memref<1x384xf32, #tpu.memory_space<vmem>>, %arg10: memref<1x384xf32, #tpu.memory_space<vmem>>, %arg11: memref<384x1536xbf16, #tpu.memory_space<vmem>>, %arg12: memref<1x1536xf32, #tpu.memory_space<vmem>>, %arg13: memref<1536x384xbf16, #tpu.memory_space<vmem>>, %arg14: memref<1x384xf32, #tpu.memory_space<vmem>>, %arg15: memref<1x384xf32, #tpu.memory_space<vmem>>, %arg16: memref<1x8x384xf32, #tpu.memory_space<vmem>>, %arg17: memref<8x1152xf32, #tpu.memory_space<vmem>>, %arg18: memref<8x384xf32, #tpu.memory_space<vmem>>) attributes {dimension_semantics = [#tpu.dimension_semantics<parallel>], iteration_bounds = array<i64: 2>, scalar_prefetch = 0 : i64, scratch_operands = 2 : i64, tpu.core_type = #tpu.core_type<tc>, window_params = [{transform_indices = @transform_0, window_bounds = array<i64: 1, 8, 384>}, {pipeline_mode = #tpu.pipeline_mode<synchronous>, transform_indices = @transform_1, window_bounds = array<i64: 1, 384>}, {pipeline_mode = #tpu.pipeline_mode<synchronous>, transform_indices = @transform_2, window_bounds = array<i64: 1, 384>}, {pipeline_mode = #tpu.pipeline_mode<synchronous>, transform_indices = @transform_3, window_bounds = array<i64: 384, 1152>}, {pipeline_mode = #tpu.pipeline_mode<synchronous>, transform_indices = @transform_4, window_bounds = array<i64: 1, 1152>}, {pipeline_mode = #tpu.pipeline_mode<synchronous>, transform_indices = @transform_5, window_bounds = array<i64: 384, 384>}, {pipeline_mode = #tpu.pipeline_mode<synchronous>, transform_indices = @transform_6, window_bounds = array<i64: 1, 384>}, {pipeline_mode = #tpu.pipeline_mode<synchronous>, transform_indices = @transform_7, window_bounds = array<i64: 1, 384>}, {pipeline_mode = #tpu.pipeline_mode<synchronous>, transform_indices = @transform_8, window_bounds = array<i64: 1, 384>}, {pipeline_mode = #tpu.pipeline_mode<synchronous>, transform_indices = @transform_9, window_bounds = array<i64: 1, 384>}, {pipeline_mode = #tpu.pipeline_mode<synchronous>, transform_indices = @transform_10, window_bounds = array<i64: 384, 1536>}, {pipeline_mode = #tpu.pipeline_mode<synchronous>, transform_indices = @transform_11, window_bounds = array<i64: 1, 1536>}, {pipeline_mode = #tpu.pipeline_mode<synchronous>, transform_indices = @transform_12, window_bounds = array<i64: 1536, 384>}, {pipeline_mode = #tpu.pipeline_mode<synchronous>, transform_indices = @transform_13, window_bounds = array<i64: 1, 384>}, {pipeline_mode = #tpu.pipeline_mode<synchronous>, transform_indices = @transform_14, window_bounds = array<i64: 1, 384>}, {transform_indices = @transform_15, window_bounds = array<i64: 1, 8, 384>}]} {
    %c0 = arith.constant 0 : index
    %c0_0 = arith.constant 0 : index
    %c0_1 = arith.constant 0 : index
    %0 = vector.load %arg1[%c0, %c0_0, %c0_1] : memref<1x8x384xf32, #tpu.memory_space<vmem>>, vector<1x8x384xf32>
    %1 = vector.shape_cast %0 : vector<1x8x384xf32> to vector<8x384xf32>
    %c0_2 = arith.constant 0 : index
    %c0_3 = arith.constant 0 : index
    %2 = vector.load %arg2[%c0_2, %c0_3] : memref<1x384xf32, #tpu.memory_space<vmem>>, vector<1x384xf32>
    %c0_4 = arith.constant 0 : index
    %c0_5 = arith.constant 0 : index
    %3 = vector.load %arg3[%c0_4, %c0_5] : memref<1x384xf32, #tpu.memory_space<vmem>>, vector<1x384xf32>
    %cst = arith.constant dense<0.000000e+00> : vector<8xf32>
    %4 = vector.multi_reduction <add>, %1, %cst [1] : vector<8x384xf32> to vector<8xf32>
    %5 = vector.shape_cast %4 : vector<8xf32> to vector<8x1xf32>
    %cst_6 = arith.constant 3.840000e+02 : f32
    %6 = vector.broadcast %cst_6 : f32 to vector<8x1xf32>
    %7 = arith.divf %5, %6 : vector<8x1xf32>
    %8 = vector.broadcast %7 : vector<8x1xf32> to vector<8x384xf32>
    %9 = arith.subf %1, %8 : vector<8x384xf32>
    %10 = arith.mulf %9, %9 : vector<8x384xf32>
    %cst_7 = arith.constant dense<0.000000e+00> : vector<8xf32>
    %11 = vector.multi_reduction <add>, %10, %cst_7 [1] : vector<8x384xf32> to vector<8xf32>
    %12 = vector.shape_cast %11 : vector<8xf32> to vector<8x1xf32>
    %cst_8 = arith.constant 3.840000e+02 : f32
    %13 = vector.broadcast %cst_8 : f32 to vector<8x1xf32>
    %14 = arith.divf %12, %13 : vector<8x1xf32>
    %cst_9 = arith.constant 9.99999997E-7 : f32
    %15 = vector.broadcast %cst_9 : f32 to vector<8x1xf32>
    %16 = arith.addf %14, %15 : vector<8x1xf32>
    %17 = math.rsqrt %16 : vector<8x1xf32>
    %18 = vector.broadcast %17 : vector<8x1xf32> to vector<8x384xf32>
    %19 = arith.mulf %9, %18 : vector<8x384xf32>
    %20 = vector.broadcast %2 : vector<1x384xf32> to vector<8x384xf32>
    %21 = arith.mulf %19, %20 : vector<8x384xf32>
    %22 = vector.broadcast %3 : vector<1x384xf32> to vector<8x384xf32>
    %23 = arith.addf %21, %22 : vector<8x384xf32>
    %24 = arith.truncf %23 : vector<8x384xf32> to vector<8x384xbf16>
    %c0_10 = arith.constant 0 : index
    %c0_11 = arith.constant 0 : index
    %25 = vector.load %arg4[%c0_10, %c0_11] : memref<384x1152xbf16, #tpu.memory_space<vmem>>, vector<384x1152xbf16>
    %cst_12 = arith.constant dense<0.000000e+00> : vector<8x1152xf32>
    %26 = tpu.matmul %24, %25, %cst_12 {dimension_numbers = #tpu.dot_dimension_numbers<[1], [0], [0], [1], [0, 0, 1, 1], [], []>} : vector<8x384xbf16>, vector<384x1152xbf16>, vector<8x1152xf32> -> vector<8x1152xf32>
    %c0_13 = arith.constant 0 : index
    %c0_14 = arith.constant 0 : index
    %27 = vector.load %arg5[%c0_13, %c0_14] : memref<1x1152xf32, #tpu.memory_space<vmem>>, vector<1x1152xf32>
    %28 = vector.broadcast %27 : vector<1x1152xf32> to vector<8x1152xf32>
    %29 = arith.addf %26, %28 : vector<8x1152xf32>
    %c0_15 = arith.constant 0 : index
    %c0_16 = arith.constant 0 : index
    %30 = vector.load %arg17[%c0_15, %c0_16] : memref<8x1152xf32, #tpu.memory_space<vmem>>, vector<8x1152xf32>
    tpu.vector_store %arg17[%c0_15, %c0_16], %29 {strides = array<i32>} : memref<8x1152xf32, #tpu.memory_space<vmem>>, vector<8x1152xf32>,
    %31 = tpu.iota {dimensions = array<i32: 1>} : vector<1x8xi32>
    %c5_i32 = arith.constant 5 : i32
    %32 = vector.broadcast %c5_i32 : i32 to vector<1x8xi32>
    %33 = arith.cmpi slt, %31, %32 : vector<1x8xi32>
    %cst_17 = arith.constant 0.000000e+00 : f32
    %cst_18 = arith.constant -1.000000e+30 : f32
    %34 = vector.broadcast %cst_17 : f32 to vector<1x8xf32>
    %35 = vector.broadcast %cst_18 : f32 to vector<1x8xf32>
    %36 = arith.select %33, %34, %35 : vector<1x8xi1>, vector<1x8xf32>
    %c0_19 = arith.constant 0 : index
    %c0_20 = arith.constant 0 : index
    %37 = vector.load %arg17[%c0_19, %c0_20] : memref<8x1152xf32, #tpu.memory_space<vmem>>, vector<8x64xf32>
    %38 = arith.truncf %37 : vector<8x64xf32> to vector<8x64xbf16>
    %c0_21 = arith.constant 0 : index
    %c384 = arith.constant 384 : index
    %39 = vector.load %arg17[%c0_21, %c384] : memref<8x1152xf32, #tpu.memory_space<vmem>>, vector<8x64xf32>
    %40 = arith.truncf %39 : vector<8x64xf32> to vector<8x64xbf16>
    %c0_22 = arith.constant 0 : index
    %c768 = arith.constant 768 : index
    %41 = vector.load %arg17[%c0_22, %c768] : memref<8x1152xf32, #tpu.memory_space<vmem>>, vector<8x64xf32>
    %42 = arith.truncf %41 : vector<8x64xf32> to vector<8x64xbf16>
    %cst_23 = arith.constant dense<0.000000e+00> : vector<8x8xf32>
    %43 = tpu.matmul %38, %40, %cst_23 {dimension_numbers = #tpu.dot_dimension_numbers<[1], [1], [0], [0], [0, 0, 1, 0], [], []>} : vector<8x64xbf16>, vector<8x64xbf16>, vector<8x8xf32> -> vector<8x8xf32>
    %cst_24 = arith.constant 1.250000e-01 : f32
    %44 = vector.broadcast %cst_24 : f32 to vector<8x8xf32>
    %45 = arith.mulf %43, %44 : vector<8x8xf32>
    %46 = vector.broadcast %36 : vector<1x8xf32> to vector<8x8xf32>
    %47 = arith.addf %45, %46 : vector<8x8xf32>
    %cst_25 = arith.constant dense<0xFF800000> : vector<8xf32>
    %48 = vector.multi_reduction <maximumf>, %47, %cst_25 [1] : vector<8x8xf32> to vector<8xf32>
    %49 = vector.shape_cast %48 : vector<8xf32> to vector<8x1xf32>
    %50 = vector.broadcast %49 : vector<8x1xf32> to vector<8x8xf32>
    %51 = arith.subf %47, %50 : vector<8x8xf32>
    %52 = math.exp %51 : vector<8x8xf32>
    %cst_26 = arith.constant dense<0.000000e+00> : vector<8xf32>
    %53 = vector.multi_reduction <add>, %52, %cst_26 [1] : vector<8x8xf32> to vector<8xf32>
    %54 = vector.shape_cast %53 : vector<8xf32> to vector<8x1xf32>
    %55 = arith.truncf %52 : vector<8x8xf32> to vector<8x8xbf16>
    %cst_27 = arith.constant dense<0.000000e+00> : vector<8x64xf32>
    %56 = tpu.matmul %55, %42, %cst_27 {dimension_numbers = #tpu.dot_dimension_numbers<[1], [0], [0], [1], [0, 0, 1, 1], [], []>} : vector<8x8xbf16>, vector<8x64xbf16>, vector<8x64xf32> -> vector<8x64xf32>
    %57 = tpu.reciprocal %54 {approx = true} : vector<8x1xf32> -> vector<8x1xf32>
    %58 = vector.broadcast %57 : vector<8x1xf32> to vector<8x64xf32>
    %59 = arith.mulf %56, %58 : vector<8x64xf32>
    %c0_28 = arith.constant 0 : index
    %c0_29 = arith.constant 0 : index
    %60 = vector.load %arg18[%c0_28, %c0_29] : memref<8x384xf32, #tpu.memory_space<vmem>>, vector<8x64xf32>
    tpu.vector_store %arg18[%c0_28, %c0_29], %59 {strides = array<i32>} : memref<8x384xf32, #tpu.memory_space<vmem>>, vector<8x64xf32>,
    %c0_30 = arith.constant 0 : index
    %c64 = arith.constant 64 : index
    %61 = vector.load %arg17[%c0_30, %c64] : memref<8x1152xf32, #tpu.memory_space<vmem>>, vector<8x64xf32>
    %62 = arith.truncf %61 : vector<8x64xf32> to vector<8x64xbf16>
    %c0_31 = arith.constant 0 : index
    %c448 = arith.constant 448 : index
    %63 = vector.load %arg17[%c0_31, %c448] : memref<8x1152xf32, #tpu.memory_space<vmem>>, vector<8x64xf32>
    %64 = arith.truncf %63 : vector<8x64xf32> to vector<8x64xbf16>
    %c0_32 = arith.constant 0 : index
    %c832 = arith.constant 832 : index
    %65 = vector.load %arg17[%c0_32, %c832] : memref<8x1152xf32, #tpu.memory_space<vmem>>, vector<8x64xf32>
    %66 = arith.truncf %65 : vector<8x64xf32> to vector<8x64xbf16>
    %cst_33 = arith.constant dense<0.000000e+00> : vector<8x8xf32>
    %67 = tpu.matmul %62, %64, %cst_33 {dimension_numbers = #tpu.dot_dimension_numbers<[1], [1], [0], [0], [0, 0, 1, 0], [], []>} : vector<8x64xbf16>, vector<8x64xbf16>, vector<8x8xf32> -> vector<8x8xf32>
    %cst_34 = arith.constant 1.250000e-01 : f32
    %68 = vector.broadcast %cst_34 : f32 to vector<8x8xf32>
    %69 = arith.mulf %67, %68 : vector<8x8xf32>
    %70 = vector.broadcast %36 : vector<1x8xf32> to vector<8x8xf32>
    %71 = arith.addf %69, %70 : vector<8x8xf32>
    %cst_35 = arith.constant dense<0xFF800000> : vector<8xf32>
    %72 = vector.multi_reduction <maximumf>, %71, %cst_35 [1] : vector<8x8xf32> to vector<8xf32>
    %73 = vector.shape_cast %72 : vector<8xf32> to vector<8x1xf32>
    %74 = vector.broadcast %73 : vector<8x1xf32> to vector<8x8xf32>
    %75 = arith.subf %71, %74 : vector<8x8xf32>
    %76 = math.exp %75 : vector<8x8xf32>
    %cst_36 = arith.constant dense<0.000000e+00> : vector<8xf32>
    %77 = vector.multi_reduction <add>, %76, %cst_36 [1] : vector<8x8xf32> to vector<8xf32>
    %78 = vector.shape_cast %77 : vector<8xf32> to vector<8x1xf32>
    %79 = arith.truncf %76 : vector<8x8xf32> to vector<8x8xbf16>
    %cst_37 = arith.constant dense<0.000000e+00> : vector<8x64xf32>
    %80 = tpu.matmul %79, %66, %cst_37 {dimension_numbers = #tpu.dot_dimension_numbers<[1], [0], [0], [1], [0, 0, 1, 1], [], []>} : vector<8x8xbf16>, vector<8x64xbf16>, vector<8x64xf32> -> vector<8x64xf32>
    %81 = tpu.reciprocal %78 {approx = true} : vector<8x1xf32> -> vector<8x1xf32>
    %82 = vector.broadcast %81 : vector<8x1xf32> to vector<8x64xf32>
    %83 = arith.mulf %80, %82 : vector<8x64xf32>
    %c0_38 = arith.constant 0 : index
    %c64_39 = arith.constant 64 : index
    %84 = vector.load %arg18[%c0_38, %c64_39] : memref<8x384xf32, #tpu.memory_space<vmem>>, vector<8x64xf32>
    tpu.vector_store %arg18[%c0_38, %c64_39], %83 {strides = array<i32>} : memref<8x384xf32, #tpu.memory_space<vmem>>, vector<8x64xf32>,
    %c0_40 = arith.constant 0 : index
    %c128 = arith.constant 128 : index
    %85 = vector.load %arg17[%c0_40, %c128] : memref<8x1152xf32, #tpu.memory_space<vmem>>, vector<8x64xf32>
    %86 = arith.truncf %85 : vector<8x64xf32> to vector<8x64xbf16>
    %c0_41 = arith.constant 0 : index
    %c512 = arith.constant 512 : index
    %87 = vector.load %arg17[%c0_41, %c512] : memref<8x1152xf32, #tpu.memory_space<vmem>>, vector<8x64xf32>
    %88 = arith.truncf %87 : vector<8x64xf32> to vector<8x64xbf16>
    %c0_42 = arith.constant 0 : index
    %c896 = arith.constant 896 : index
    %89 = vector.load %arg17[%c0_42, %c896] : memref<8x1152xf32, #tpu.memory_space<vmem>>, vector<8x64xf32>
    %90 = arith.truncf %89 : vector<8x64xf32> to vector<8x64xbf16>
    %cst_43 = arith.constant dense<0.000000e+00> : vector<8x8xf32>
    %91 = tpu.matmul %86, %88, %cst_43 {dimension_numbers = #tpu.dot_dimension_numbers<[1], [1], [0], [0], [0, 0, 1, 0], [], []>} : vector<8x64xbf16>, vector<8x64xbf16>, vector<8x8xf32> -> vector<8x8xf32>
    %cst_44 = arith.constant 1.250000e-01 : f32
    %92 = vector.broadcast %cst_44 : f32 to vector<8x8xf32>
    %93 = arith.mulf %91, %92 : vector<8x8xf32>
    %94 = vector.broadcast %36 : vector<1x8xf32> to vector<8x8xf32>
    %95 = arith.addf %93, %94 : vector<8x8xf32>
    %cst_45 = arith.constant dense<0xFF800000> : vector<8xf32>
    %96 = vector.multi_reduction <maximumf>, %95, %cst_45 [1] : vector<8x8xf32> to vector<8xf32>
    %97 = vector.shape_cast %96 : vector<8xf32> to vector<8x1xf32>
    %98 = vector.broadcast %97 : vector<8x1xf32> to vector<8x8xf32>
    %99 = arith.subf %95, %98 : vector<8x8xf32>
    %100 = math.exp %99 : vector<8x8xf32>
    %cst_46 = arith.constant dense<0.000000e+00> : vector<8xf32>
    %101 = vector.multi_reduction <add>, %100, %cst_46 [1] : vector<8x8xf32> to vector<8xf32>
    %102 = vector.shape_cast %101 : vector<8xf32> to vector<8x1xf32>
    %103 = arith.truncf %100 : vector<8x8xf32> to vector<8x8xbf16>
    %cst_47 = arith.constant dense<0.000000e+00> : vector<8x64xf32>
    %104 = tpu.matmul %103, %90, %cst_47 {dimension_numbers = #tpu.dot_dimension_numbers<[1], [0], [0], [1], [0, 0, 1, 1], [], []>} : vector<8x8xbf16>, vector<8x64xbf16>, vector<8x64xf32> -> vector<8x64xf32>
    %105 = tpu.reciprocal %102 {approx = true} : vector<8x1xf32> -> vector<8x1xf32>
    %106 = vector.broadcast %105 : vector<8x1xf32> to vector<8x64xf32>
    %107 = arith.mulf %104, %106 : vector<8x64xf32>
    %c0_48 = arith.constant 0 : index
    %c128_49 = arith.constant 128 : index
    %108 = vector.load %arg18[%c0_48, %c128_49] : memref<8x384xf32, #tpu.memory_space<vmem>>, vector<8x64xf32>
    tpu.vector_store %arg18[%c0_48, %c128_49], %107 {strides = array<i32>} : memref<8x384xf32, #tpu.memory_space<vmem>>, vector<8x64xf32>,
    %c0_50 = arith.constant 0 : index
    %c192 = arith.constant 192 : index
    %109 = vector.load %arg17[%c0_50, %c192] : memref<8x1152xf32, #tpu.memory_space<vmem>>, vector<8x64xf32>
    %110 = arith.truncf %109 : vector<8x64xf32> to vector<8x64xbf16>
    %c0_51 = arith.constant 0 : index
    %c576 = arith.constant 576 : index
    %111 = vector.load %arg17[%c0_51, %c576] : memref<8x1152xf32, #tpu.memory_space<vmem>>, vector<8x64xf32>
    %112 = arith.truncf %111 : vector<8x64xf32> to vector<8x64xbf16>
    %c0_52 = arith.constant 0 : index
    %c960 = arith.constant 960 : index
    %113 = vector.load %arg17[%c0_52, %c960] : memref<8x1152xf32, #tpu.memory_space<vmem>>, vector<8x64xf32>
    %114 = arith.truncf %113 : vector<8x64xf32> to vector<8x64xbf16>
    %cst_53 = arith.constant dense<0.000000e+00> : vector<8x8xf32>
    %115 = tpu.matmul %110, %112, %cst_53 {dimension_numbers = #tpu.dot_dimension_numbers<[1], [1], [0], [0], [0, 0, 1, 0], [], []>} : vector<8x64xbf16>, vector<8x64xbf16>, vector<8x8xf32> -> vector<8x8xf32>
    %cst_54 = arith.constant 1.250000e-01 : f32
    %116 = vector.broadcast %cst_54 : f32 to vector<8x8xf32>
    %117 = arith.mulf %115, %116 : vector<8x8xf32>
    %118 = vector.broadcast %36 : vector<1x8xf32> to vector<8x8xf32>
    %119 = arith.addf %117, %118 : vector<8x8xf32>
    %cst_55 = arith.constant dense<0xFF800000> : vector<8xf32>
    %120 = vector.multi_reduction <maximumf>, %119, %cst_55 [1] : vector<8x8xf32> to vector<8xf32>
    %121 = vector.shape_cast %120 : vector<8xf32> to vector<8x1xf32>
    %122 = vector.broadcast %121 : vector<8x1xf32> to vector<8x8xf32>
    %123 = arith.subf %119, %122 : vector<8x8xf32>
    %124 = math.exp %123 : vector<8x8xf32>
    %cst_56 = arith.constant dense<0.000000e+00> : vector<8xf32>
    %125 = vector.multi_reduction <add>, %124, %cst_56 [1] : vector<8x8xf32> to vector<8xf32>
    %126 = vector.shape_cast %125 : vector<8xf32> to vector<8x1xf32>
    %127 = arith.truncf %124 : vector<8x8xf32> to vector<8x8xbf16>
    %cst_57 = arith.constant dense<0.000000e+00> : vector<8x64xf32>
    %128 = tpu.matmul %127, %114, %cst_57 {dimension_numbers = #tpu.dot_dimension_numbers<[1], [0], [0], [1], [0, 0, 1, 1], [], []>} : vector<8x8xbf16>, vector<8x64xbf16>, vector<8x64xf32> -> vector<8x64xf32>
    %129 = tpu.reciprocal %126 {approx = true} : vector<8x1xf32> -> vector<8x1xf32>
    %130 = vector.broadcast %129 : vector<8x1xf32> to vector<8x64xf32>
    %131 = arith.mulf %128, %130 : vector<8x64xf32>
    %c0_58 = arith.constant 0 : index
    %c192_59 = arith.constant 192 : index
    %132 = vector.load %arg18[%c0_58, %c192_59] : memref<8x384xf32, #tpu.memory_space<vmem>>, vector<8x64xf32>
    tpu.vector_store %arg18[%c0_58, %c192_59], %131 {strides = array<i32>} : memref<8x384xf32, #tpu.memory_space<vmem>>, vector<8x64xf32>,
    %c0_60 = arith.constant 0 : index
    %c256 = arith.constant 256 : index
    %133 = vector.load %arg17[%c0_60, %c256] : memref<8x1152xf32, #tpu.memory_space<vmem>>, vector<8x64xf32>
    %134 = arith.truncf %133 : vector<8x64xf32> to vector<8x64xbf16>
    %c0_61 = arith.constant 0 : index
    %c640 = arith.constant 640 : index
    %135 = vector.load %arg17[%c0_61, %c640] : memref<8x1152xf32, #tpu.memory_space<vmem>>, vector<8x64xf32>
    %136 = arith.truncf %135 : vector<8x64xf32> to vector<8x64xbf16>
    %c0_62 = arith.constant 0 : index
    %c1024 = arith.constant 1024 : index
    %137 = vector.load %arg17[%c0_62, %c1024] : memref<8x1152xf32, #tpu.memory_space<vmem>>, vector<8x64xf32>
    %138 = arith.truncf %137 : vector<8x64xf32> to vector<8x64xbf16>
    %cst_63 = arith.constant dense<0.000000e+00> : vector<8x8xf32>
    %139 = tpu.matmul %134, %136, %cst_63 {dimension_numbers = #tpu.dot_dimension_numbers<[1], [1], [0], [0], [0, 0, 1, 0], [], []>} : vector<8x64xbf16>, vector<8x64xbf16>, vector<8x8xf32> -> vector<8x8xf32>
    %cst_64 = arith.constant 1.250000e-01 : f32
    %140 = vector.broadcast %cst_64 : f32 to vector<8x8xf32>
    %141 = arith.mulf %139, %140 : vector<8x8xf32>
    %142 = vector.broadcast %36 : vector<1x8xf32> to vector<8x8xf32>
    %143 = arith.addf %141, %142 : vector<8x8xf32>
    %cst_65 = arith.constant dense<0xFF800000> : vector<8xf32>
    %144 = vector.multi_reduction <maximumf>, %143, %cst_65 [1] : vector<8x8xf32> to vector<8xf32>
    %145 = vector.shape_cast %144 : vector<8xf32> to vector<8x1xf32>
    %146 = vector.broadcast %145 : vector<8x1xf32> to vector<8x8xf32>
    %147 = arith.subf %143, %146 : vector<8x8xf32>
    %148 = math.exp %147 : vector<8x8xf32>
    %cst_66 = arith.constant dense<0.000000e+00> : vector<8xf32>
    %149 = vector.multi_reduction <add>, %148, %cst_66 [1] : vector<8x8xf32> to vector<8xf32>
    %150 = vector.shape_cast %149 : vector<8xf32> to vector<8x1xf32>
    %151 = arith.truncf %148 : vector<8x8xf32> to vector<8x8xbf16>
    %cst_67 = arith.constant dense<0.000000e+00> : vector<8x64xf32>
    %152 = tpu.matmul %151, %138, %cst_67 {dimension_numbers = #tpu.dot_dimension_numbers<[1], [0], [0], [1], [0, 0, 1, 1], [], []>} : vector<8x8xbf16>, vector<8x64xbf16>, vector<8x64xf32> -> vector<8x64xf32>
    %153 = tpu.reciprocal %150 {approx = true} : vector<8x1xf32> -> vector<8x1xf32>
    %154 = vector.broadcast %153 : vector<8x1xf32> to vector<8x64xf32>
    %155 = arith.mulf %152, %154 : vector<8x64xf32>
    %c0_68 = arith.constant 0 : index
    %c256_69 = arith.constant 256 : index
    %156 = vector.load %arg18[%c0_68, %c256_69] : memref<8x384xf32, #tpu.memory_space<vmem>>, vector<8x64xf32>
    tpu.vector_store %arg18[%c0_68, %c256_69], %155 {strides = array<i32>} : memref<8x384xf32, #tpu.memory_space<vmem>>, vector<8x64xf32>,
    %c0_70 = arith.constant 0 : index
    %c320 = arith.constant 320 : index
    %157 = vector.load %arg17[%c0_70, %c320] : memref<8x1152xf32, #tpu.memory_space<vmem>>, vector<8x64xf32>
    %158 = arith.truncf %157 : vector<8x64xf32> to vector<8x64xbf16>
    %c0_71 = arith.constant 0 : index
    %c704 = arith.constant 704 : index
    %159 = vector.load %arg17[%c0_71, %c704] : memref<8x1152xf32, #tpu.memory_space<vmem>>, vector<8x64xf32>
    %160 = arith.truncf %159 : vector<8x64xf32> to vector<8x64xbf16>
    %c0_72 = arith.constant 0 : index
    %c1088 = arith.constant 1088 : index
    %161 = vector.load %arg17[%c0_72, %c1088] : memref<8x1152xf32, #tpu.memory_space<vmem>>, vector<8x64xf32>
    %162 = arith.truncf %161 : vector<8x64xf32> to vector<8x64xbf16>
    %cst_73 = arith.constant dense<0.000000e+00> : vector<8x8xf32>
    %163 = tpu.matmul %158, %160, %cst_73 {dimension_numbers = #tpu.dot_dimension_numbers<[1], [1], [0], [0], [0, 0, 1, 0], [], []>} : vector<8x64xbf16>, vector<8x64xbf16>, vector<8x8xf32> -> vector<8x8xf32>
    %cst_74 = arith.constant 1.250000e-01 : f32
    %164 = vector.broadcast %cst_74 : f32 to vector<8x8xf32>
    %165 = arith.mulf %163, %164 : vector<8x8xf32>
    %166 = vector.broadcast %36 : vector<1x8xf32> to vector<8x8xf32>
    %167 = arith.addf %165, %166 : vector<8x8xf32>
    %cst_75 = arith.constant dense<0xFF800000> : vector<8xf32>
    %168 = vector.multi_reduction <maximumf>, %167, %cst_75 [1] : vector<8x8xf32> to vector<8xf32>
    %169 = vector.shape_cast %168 : vector<8xf32> to vector<8x1xf32>
    %170 = vector.broadcast %169 : vector<8x1xf32> to vector<8x8xf32>
    %171 = arith.subf %167, %170 : vector<8x8xf32>
    %172 = math.exp %171 : vector<8x8xf32>
    %cst_76 = arith.constant dense<0.000000e+00> : vector<8xf32>
    %173 = vector.multi_reduction <add>, %172, %cst_76 [1] : vector<8x8xf32> to vector<8xf32>
    %174 = vector.shape_cast %173 : vector<8xf32> to vector<8x1xf32>
    %175 = arith.truncf %172 : vector<8x8xf32> to vector<8x8xbf16>
    %cst_77 = arith.constant dense<0.000000e+00> : vector<8x64xf32>
    %176 = tpu.matmul %175, %162, %cst_77 {dimension_numbers = #tpu.dot_dimension_numbers<[1], [0], [0], [1], [0, 0, 1, 1], [], []>} : vector<8x8xbf16>, vector<8x64xbf16>, vector<8x64xf32> -> vector<8x64xf32>
    %177 = tpu.reciprocal %174 {approx = true} : vector<8x1xf32> -> vector<8x1xf32>
    %178 = vector.broadcast %177 : vector<8x1xf32> to vector<8x64xf32>
    %179 = arith.mulf %176, %178 : vector<8x64xf32>
    %c0_78 = arith.constant 0 : index
    %c320_79 = arith.constant 320 : index
    %180 = vector.load %arg18[%c0_78, %c320_79] : memref<8x384xf32, #tpu.memory_space<vmem>>, vector<8x64xf32>
    tpu.vector_store %arg18[%c0_78, %c320_79], %179 {strides = array<i32>} : memref<8x384xf32, #tpu.memory_space<vmem>>, vector<8x64xf32>,
    %c0_80 = arith.constant 0 : index
    %c0_81 = arith.constant 0 : index
    %181 = vector.load %arg18[%c0_80, %c0_81] : memref<8x384xf32, #tpu.memory_space<vmem>>, vector<8x384xf32>
    %182 = arith.truncf %181 : vector<8x384xf32> to vector<8x384xbf16>
    %c0_82 = arith.constant 0 : index
    %c0_83 = arith.constant 0 : index
    %183 = vector.load %arg6[%c0_82, %c0_83] : memref<384x384xbf16, #tpu.memory_space<vmem>>, vector<384x384xbf16>
    %cst_84 = arith.constant dense<0.000000e+00> : vector<8x384xf32>
    %184 = tpu.matmul %182, %183, %cst_84 {dimension_numbers = #tpu.dot_dimension_numbers<[1], [0], [0], [1], [0, 0, 1, 1], [], []>} : vector<8x384xbf16>, vector<384x384xbf16>, vector<8x384xf32> -> vector<8x384xf32>
    %c0_85 = arith.constant 0 : index
    %c0_86 = arith.constant 0 : index
    %185 = vector.load %arg7[%c0_85, %c0_86] : memref<1x384xf32, #tpu.memory_space<vmem>>, vector<1x384xf32>
    %186 = vector.broadcast %185 : vector<1x384xf32> to vector<8x384xf32>
    %187 = arith.addf %184, %186 : vector<8x384xf32>
    %c0_87 = arith.constant 0 : index
    %c0_88 = arith.constant 0 : index
    %188 = vector.load %arg8[%c0_87, %c0_88] : memref<1x384xf32, #tpu.memory_space<vmem>>, vector<1x384xf32>
    %189 = vector.broadcast %188 : vector<1x384xf32> to vector<8x384xf32>
    %190 = arith.mulf %189, %187 : vector<8x384xf32>
    %191 = arith.addf %1, %190 : vector<8x384xf32>
    %c0_89 = arith.constant 0 : index
    %c0_90 = arith.constant 0 : index
    %192 = vector.load %arg9[%c0_89, %c0_90] : memref<1x384xf32, #tpu.memory_space<vmem>>, vector<1x384xf32>
    %c0_91 = arith.constant 0 : index
    %c0_92 = arith.constant 0 : index
    %193 = vector.load %arg10[%c0_91, %c0_92] : memref<1x384xf32, #tpu.memory_space<vmem>>, vector<1x384xf32>
    %cst_93 = arith.constant dense<0.000000e+00> : vector<8xf32>
    %194 = vector.multi_reduction <add>, %191, %cst_93 [1] : vector<8x384xf32> to vector<8xf32>
    %195 = vector.shape_cast %194 : vector<8xf32> to vector<8x1xf32>
    %cst_94 = arith.constant 3.840000e+02 : f32
    %196 = vector.broadcast %cst_94 : f32 to vector<8x1xf32>
    %197 = arith.divf %195, %196 : vector<8x1xf32>
    %198 = vector.broadcast %197 : vector<8x1xf32> to vector<8x384xf32>
    %199 = arith.subf %191, %198 : vector<8x384xf32>
    %200 = arith.mulf %199, %199 : vector<8x384xf32>
    %cst_95 = arith.constant dense<0.000000e+00> : vector<8xf32>
    %201 = vector.multi_reduction <add>, %200, %cst_95 [1] : vector<8x384xf32> to vector<8xf32>
    %202 = vector.shape_cast %201 : vector<8xf32> to vector<8x1xf32>
    %cst_96 = arith.constant 3.840000e+02 : f32
    %203 = vector.broadcast %cst_96 : f32 to vector<8x1xf32>
    %204 = arith.divf %202, %203 : vector<8x1xf32>
    %cst_97 = arith.constant 9.99999997E-7 : f32
    %205 = vector.broadcast %cst_97 : f32 to vector<8x1xf32>
    %206 = arith.addf %204, %205 : vector<8x1xf32>
    %207 = math.rsqrt %206 : vector<8x1xf32>
    %208 = vector.broadcast %207 : vector<8x1xf32> to vector<8x384xf32>
    %209 = arith.mulf %199, %208 : vector<8x384xf32>
    %210 = vector.broadcast %192 : vector<1x384xf32> to vector<8x384xf32>
    %211 = arith.mulf %209, %210 : vector<8x384xf32>
    %212 = vector.broadcast %193 : vector<1x384xf32> to vector<8x384xf32>
    %213 = arith.addf %211, %212 : vector<8x384xf32>
    %214 = arith.truncf %213 : vector<8x384xf32> to vector<8x384xbf16>
    %c0_98 = arith.constant 0 : index
    %c0_99 = arith.constant 0 : index
    %215 = vector.load %arg11[%c0_98, %c0_99] : memref<384x1536xbf16, #tpu.memory_space<vmem>>, vector<384x1536xbf16>
    %cst_100 = arith.constant dense<0.000000e+00> : vector<8x1536xf32>
    %216 = tpu.matmul %214, %215, %cst_100 {dimension_numbers = #tpu.dot_dimension_numbers<[1], [0], [0], [1], [0, 0, 1, 1], [], []>} : vector<8x384xbf16>, vector<384x1536xbf16>, vector<8x1536xf32> -> vector<8x1536xf32>
    %c0_101 = arith.constant 0 : index
    %c0_102 = arith.constant 0 : index
    %217 = vector.load %arg12[%c0_101, %c0_102] : memref<1x1536xf32, #tpu.memory_space<vmem>>, vector<1x1536xf32>
    %218 = vector.broadcast %217 : vector<1x1536xf32> to vector<8x1536xf32>
    %219 = arith.addf %216, %218 : vector<8x1536xf32>
    %220 = arith.mulf %219, %219 : vector<8x1536xf32>
    %221 = arith.mulf %219, %220 : vector<8x1536xf32>
    %cst_103 = arith.constant 4.471500e-02 : f32
    %222 = vector.broadcast %cst_103 : f32 to vector<8x1536xf32>
    %223 = arith.mulf %222, %221 : vector<8x1536xf32>
    %224 = arith.addf %219, %223 : vector<8x1536xf32>
    %cst_104 = arith.constant 0.797884583 : f32
    %225 = vector.broadcast %cst_104 : f32 to vector<8x1536xf32>
    %226 = arith.mulf %225, %224 : vector<8x1536xf32>
    %227 = math.tanh %226 : vector<8x1536xf32>
    %cst_105 = arith.constant 1.000000e+00 : f32
    %228 = vector.broadcast %cst_105 : f32 to vector<8x1536xf32>
    %229 = arith.addf %228, %227 : vector<8x1536xf32>
    %cst_106 = arith.constant 5.000000e-01 : f32
    %230 = vector.broadcast %cst_106 : f32 to vector<8x1536xf32>
    %231 = arith.mulf %230, %229 : vector<8x1536xf32>
    %232 = arith.mulf %219, %231 : vector<8x1536xf32>
    %233 = arith.truncf %232 : vector<8x1536xf32> to vector<8x1536xbf16>
    %c0_107 = arith.constant 0 : index
    %c0_108 = arith.constant 0 : index
    %234 = vector.load %arg13[%c0_107, %c0_108] : memref<1536x384xbf16, #tpu.memory_space<vmem>>, vector<1536x384xbf16>
    %cst_109 = arith.constant dense<0.000000e+00> : vector<8x384xf32>
    %235 = tpu.matmul %233, %234, %cst_109 {dimension_numbers = #tpu.dot_dimension_numbers<[1], [0], [0], [1], [0, 0, 1, 1], [], []>} : vector<8x1536xbf16>, vector<1536x384xbf16>, vector<8x384xf32> -> vector<8x384xf32>
    %c0_110 = arith.constant 0 : index
    %c0_111 = arith.constant 0 : index
    %236 = vector.load %arg14[%c0_110, %c0_111] : memref<1x384xf32, #tpu.memory_space<vmem>>, vector<1x384xf32>
    %237 = vector.broadcast %236 : vector<1x384xf32> to vector<8x384xf32>
    %238 = arith.addf %235, %237 : vector<8x384xf32>
    %c0_112 = arith.constant 0 : index
    %c0_113 = arith.constant 0 : index
    %239 = vector.load %arg15[%c0_112, %c0_113] : memref<1x384xf32, #tpu.memory_space<vmem>>, vector<1x384xf32>
    %240 = vector.broadcast %239 : vector<1x384xf32> to vector<8x384xf32>
    %241 = arith.mulf %240, %238 : vector<8x384xf32>
    %242 = arith.addf %191, %241 : vector<8x384xf32>
    %c0_114 = arith.constant 0 : index
    %c0_115 = arith.constant 0 : index
    %c0_116 = arith.constant 0 : index
    %243 = vector.load %arg16[%c0_114, %c0_115, %c0_116] : memref<1x8x384xf32, #tpu.memory_space<vmem>>, vector<1x8x384xf32>
    %244 = vector.shape_cast %243 : vector<1x8x384xf32> to vector<8x384xf32>
    %245 = vector.shape_cast %242 : vector<8x384xf32> to vector<1x8x384xf32>
    tpu.vector_store %arg16[%c0_114, %c0_115, %c0_116], %245 {strides = array<i32>} : memref<1x8x384xf32, #tpu.memory_space<vmem>>, vector<1x8x384xf32>,
    return
  }
  func.func @transform_0(%arg0: i32) -> (i32, i32, i32) {
    %c0_i32 = arith.constant 0 : i32
    %c0_i32_0 = arith.constant 0 : i32
    %c0_i32_1 = arith.constant 0 : i32
    return %arg0, %c0_i32, %c0_i32_0 : i32, i32, i32
  }
  func.func @transform_1(%arg0: i32) -> (i32, i32) {
    %c0_i32 = arith.constant 0 : i32
    %c0_i32_0 = arith.constant 0 : i32
    %c0_i32_1 = arith.constant 0 : i32
    return %c0_i32, %c0_i32_0 : i32, i32
  }
  func.func @transform_2(%arg0: i32) -> (i32, i32) {
    %c0_i32 = arith.constant 0 : i32
    %c0_i32_0 = arith.constant 0 : i32
    %c0_i32_1 = arith.constant 0 : i32
    return %c0_i32, %c0_i32_0 : i32, i32
  }
  func.func @transform_3(%arg0: i32) -> (i32, i32) {
    %c0_i32 = arith.constant 0 : i32
    %c0_i32_0 = arith.constant 0 : i32
    %c0_i32_1 = arith.constant 0 : i32
    return %c0_i32, %c0_i32_0 : i32, i32
  }
  func.func @transform_4(%arg0: i32) -> (i32, i32) {
    %c0_i32 = arith.constant 0 : i32
    %c0_i32_0 = arith.constant 0 : i32
    %c0_i32_1 = arith.constant 0 : i32
    return %c0_i32, %c0_i32_0 : i32, i32
  }
  func.func @transform_5(%arg0: i32) -> (i32, i32) {
    %c0_i32 = arith.constant 0 : i32
    %c0_i32_0 = arith.constant 0 : i32
    %c0_i32_1 = arith.constant 0 : i32
    return %c0_i32, %c0_i32_0 : i32, i32
  }
  func.func @transform_6(%arg0: i32) -> (i32, i32) {
    %c0_i32 = arith.constant 0 : i32
    %c0_i32_0 = arith.constant 0 : i32
    %c0_i32_1 = arith.constant 0 : i32
    return %c0_i32, %c0_i32_0 : i32, i32
  }
  func.func @transform_7(%arg0: i32) -> (i32, i32) {
    %c0_i32 = arith.constant 0 : i32
    %c0_i32_0 = arith.constant 0 : i32
    %c0_i32_1 = arith.constant 0 : i32
    return %c0_i32, %c0_i32_0 : i32, i32
  }
  func.func @transform_8(%arg0: i32) -> (i32, i32) {
    %c0_i32 = arith.constant 0 : i32
    %c0_i32_0 = arith.constant 0 : i32
    %c0_i32_1 = arith.constant 0 : i32
    return %c0_i32, %c0_i32_0 : i32, i32
  }
  func.func @transform_9(%arg0: i32) -> (i32, i32) {
    %c0_i32 = arith.constant 0 : i32
    %c0_i32_0 = arith.constant 0 : i32
    %c0_i32_1 = arith.constant 0 : i32
    return %c0_i32, %c0_i32_0 : i32, i32
  }
  func.func @transform_10(%arg0: i32) -> (i32, i32) {
    %c0_i32 = arith.constant 0 : i32
    %c0_i32_0 = arith.constant 0 : i32
    %c0_i32_1 = arith.constant 0 : i32
    return %c0_i32, %c0_i32_0 : i32, i32
  }
  func.func @transform_11(%arg0: i32) -> (i32, i32) {
    %c0_i32 = arith.constant 0 : i32
    %c0_i32_0 = arith.constant 0 : i32
    %c0_i32_1 = arith.constant 0 : i32
    return %c0_i32, %c0_i32_0 : i32, i32
  }
  func.func @transform_12(%arg0: i32) -> (i32, i32) {
    %c0_i32 = arith.constant 0 : i32
    %c0_i32_0 = arith.constant 0 : i32
    %c0_i32_1 = arith.constant 0 : i32
    return %c0_i32, %c0_i32_0 : i32, i32
  }
  func.func @transform_13(%arg0: i32) -> (i32, i32) {
    %c0_i32 = arith.constant 0 : i32
    %c0_i32_0 = arith.constant 0 : i32
    %c0_i32_1 = arith.constant 0 : i32
    return %c0_i32, %c0_i32_0 : i32, i32
  }
  func.func @transform_14(%arg0: i32) -> (i32, i32) {
    %c0_i32 = arith.constant 0 : i32
    %c0_i32_0 = arith.constant 0 : i32
    %c0_i32_1 = arith.constant 0 : i32
    return %c0_i32, %c0_i32_0 : i32, i32
  }
  func.func @transform_15(%arg0: i32) -> (i32, i32, i32) {
    %c0_i32 = arith.constant 0 : i32
    %c0_i32_0 = arith.constant 0 : i32
    %c0_i32_1 = arith.constant 0 : i32
    return %arg0, %c0_i32, %c0_i32_0 : i32, i32, i32
  }
}

module attributes {stable_mosaic.version = 11 : i64} {
  func.func @_final_ln_kernel(%arg0: i32, %arg1: memref<1x8x384xf32, #tpu.memory_space<vmem>>, %arg2: memref<1x384xf32, #tpu.memory_space<vmem>>, %arg3: memref<1x384xf32, #tpu.memory_space<vmem>>, %arg4: memref<1x8x384xf32, #tpu.memory_space<vmem>>) attributes {dimension_semantics = [#tpu.dimension_semantics<parallel>], iteration_bounds = array<i64: 2>, scalar_prefetch = 0 : i64, scratch_operands = 0 : i64, tpu.core_type = #tpu.core_type<tc>, window_params = [{transform_indices = @transform_0, window_bounds = array<i64: 1, 8, 384>}, {pipeline_mode = #tpu.pipeline_mode<synchronous>, transform_indices = @transform_1, window_bounds = array<i64: 1, 384>}, {pipeline_mode = #tpu.pipeline_mode<synchronous>, transform_indices = @transform_2, window_bounds = array<i64: 1, 384>}, {transform_indices = @transform_3, window_bounds = array<i64: 1, 8, 384>}]} {
    %c0 = arith.constant 0 : index
    %c0_0 = arith.constant 0 : index
    %c0_1 = arith.constant 0 : index
    %0 = vector.load %arg1[%c0, %c0_0, %c0_1] : memref<1x8x384xf32, #tpu.memory_space<vmem>>, vector<1x8x384xf32>
    %1 = vector.shape_cast %0 : vector<1x8x384xf32> to vector<8x384xf32>
    %c0_2 = arith.constant 0 : index
    %c0_3 = arith.constant 0 : index
    %2 = vector.load %arg2[%c0_2, %c0_3] : memref<1x384xf32, #tpu.memory_space<vmem>>, vector<1x384xf32>
    %c0_4 = arith.constant 0 : index
    %c0_5 = arith.constant 0 : index
    %3 = vector.load %arg3[%c0_4, %c0_5] : memref<1x384xf32, #tpu.memory_space<vmem>>, vector<1x384xf32>
    %cst = arith.constant dense<0.000000e+00> : vector<8xf32>
    %4 = vector.multi_reduction <add>, %1, %cst [1] : vector<8x384xf32> to vector<8xf32>
    %5 = vector.shape_cast %4 : vector<8xf32> to vector<8x1xf32>
    %cst_6 = arith.constant 3.840000e+02 : f32
    %6 = vector.broadcast %cst_6 : f32 to vector<8x1xf32>
    %7 = arith.divf %5, %6 : vector<8x1xf32>
    %8 = vector.broadcast %7 : vector<8x1xf32> to vector<8x384xf32>
    %9 = arith.subf %1, %8 : vector<8x384xf32>
    %10 = arith.mulf %9, %9 : vector<8x384xf32>
    %cst_7 = arith.constant dense<0.000000e+00> : vector<8xf32>
    %11 = vector.multi_reduction <add>, %10, %cst_7 [1] : vector<8x384xf32> to vector<8xf32>
    %12 = vector.shape_cast %11 : vector<8xf32> to vector<8x1xf32>
    %cst_8 = arith.constant 3.840000e+02 : f32
    %13 = vector.broadcast %cst_8 : f32 to vector<8x1xf32>
    %14 = arith.divf %12, %13 : vector<8x1xf32>
    %cst_9 = arith.constant 9.99999997E-7 : f32
    %15 = vector.broadcast %cst_9 : f32 to vector<8x1xf32>
    %16 = arith.addf %14, %15 : vector<8x1xf32>
    %17 = math.rsqrt %16 : vector<8x1xf32>
    %18 = vector.broadcast %17 : vector<8x1xf32> to vector<8x384xf32>
    %19 = arith.mulf %9, %18 : vector<8x384xf32>
    %20 = vector.broadcast %2 : vector<1x384xf32> to vector<8x384xf32>
    %21 = arith.mulf %19, %20 : vector<8x384xf32>
    %22 = vector.broadcast %3 : vector<1x384xf32> to vector<8x384xf32>
    %23 = arith.addf %21, %22 : vector<8x384xf32>
    %c0_10 = arith.constant 0 : index
    %c0_11 = arith.constant 0 : index
    %c0_12 = arith.constant 0 : index
    %24 = vector.load %arg4[%c0_10, %c0_11, %c0_12] : memref<1x8x384xf32, #tpu.memory_space<vmem>>, vector<1x8x384xf32>
    %25 = vector.shape_cast %24 : vector<1x8x384xf32> to vector<8x384xf32>
    %26 = vector.shape_cast %23 : vector<8x384xf32> to vector<1x8x384xf32>
    tpu.vector_store %arg4[%c0_10, %c0_11, %c0_12], %26 {strides = array<i32>} : memref<1x8x384xf32, #tpu.memory_space<vmem>>, vector<1x8x384xf32>,
    return
  }
  func.func @transform_0(%arg0: i32) -> (i32, i32, i32) {
    %c0_i32 = arith.constant 0 : i32
    %c0_i32_0 = arith.constant 0 : i32
    %c0_i32_1 = arith.constant 0 : i32
    return %arg0, %c0_i32, %c0_i32_0 : i32, i32, i32
  }
  func.func @transform_1(%arg0: i32) -> (i32, i32) {
    %c0_i32 = arith.constant 0 : i32
    %c0_i32_0 = arith.constant 0 : i32
    %c0_i32_1 = arith.constant 0 : i32
    return %c0_i32, %c0_i32_0 : i32, i32
  }
  func.func @transform_2(%arg0: i32) -> (i32, i32) {
    %c0_i32 = arith.constant 0 : i32
    %c0_i32_0 = arith.constant 0 : i32
    %c0_i32_1 = arith.constant 0 : i32
    return %c0_i32, %c0_i32_0 : i32, i32
  }
  func.func @transform_3(%arg0: i32) -> (i32, i32, i32) {
    %c0_i32 = arith.constant 0 : i32
    %c0_i32_0 = arith.constant 0 : i32
    %c0_i32_1 = arith.constant 0 : i32
    return %arg0, %c0_i32, %c0_i32_0 : i32, i32, i32
  }
}

</mosaic_0001>

<llo_original>
// kernel: encoder_forward.27
$region0: #{encoder_forward.27}
  #allocation0 [shape = 'u32[]', space=smem, size = 0x4, offset = 0x4, fixed_abs, tag = 'smem constant byte address 0x4 - core index']
  #allocation1 [shape = 'u32[144,128]{1,0:T(1,128)}', space=vmem, size = 0x12000, scoped, tag = 'internal scratch']
  %s0 = inlined_call_operand.vmem [shape: f32[2,8,384], index: 0, kind: input, shape index: {}]
  %s1 = inlined_call_operand.vmem [shape: f32[1,384], index: 1, kind: input, shape index: {}]
  %s2 = inlined_call_operand.vmem [shape: f32[1,384], index: 2, kind: input, shape index: {}]
  %s3 = inlined_call_operand.vmem [shape: f32[2,8,384], index: 3, kind: output, shape index: {}]
  %s4 = sld [smem:[#allocation0]]
  $region45: #{encoder_forward.27} parent=0
    _
  %s6 = ssub.s32 1, %s4
  %s7 = scalar_select 0, %s6, %s4
  loop: start=0, step=1, limit=4
  $region2: #{encoder_forward.27} parent=0 // loop_pre_header
    _
  $region3: #{encoder_forward.27} parent=0 // loop_header
    %s9 = sphi 0, %s13
    %p10 = scmp.ge.s32.totalorder %s9, 4
    %s19 = sphi 0, %s21
    %s22 = sphi 0, %s19
    %s23 = sphi 0, %s22
    %s39 = sphi 0, %s23
    %s43 = sphi 0, %s43
    %s45 = sphi 0, %s43
    %s46 = sphi 0, %s45
    %s60 = sphi 0, %s46
    %s64 = sphi 0, %s64
    %s66 = sphi 0, %s64
    %s67 = sphi 0, %s66
    %s81 = sphi 0, %s67
    %s87 = sphi 0, %s89
    %s90 = sphi 0, %s87
    %s91 = sphi 0, %s90
    %s107 = sphi 0, %s91
  $region4: #{encoder_forward.27} parent=0 // loop_header_branch
    %12 = sbr.rel (%p10) target = $region8
  $region5: #{encoder_forward.27} parent=0 // loop_body
    %s14 = ssub.s32 %s9, 1
    %s15 = ssub.s32 %s9, 2
    %s16 = sadd.s32 %s9, 1
    %s17 = ssub.s32 %s9, %s16
    %p18 = scmp.eq.s32.totalorder %s17, 0
    %s20 = sadd.s32 %s19, 1
    %s21 = scalar_select %p18, %s19, %s20
    %p24 = pneg %p18
    %p25 = scmp.eq.s32.totalorder %s9, 1
    %p26 = por %p24, %p25
    %p27 = scmp.ne.s32.totalorder %s19, %s22
    %p28 = scmp.eq.s32.totalorder %s9, 0
    %p29 = por %p27, %p28
    %p30 = scmp.ne.s32.totalorder %s19, %s22
    %p31 = scmp.eq.s32.totalorder %s14, 1
    %p32 = por %p30, %p31
    %p33 = scmp.ne.s32.totalorder %s22, %s23
    %p34 = scmp.eq.s32.totalorder %s14, 0
    %p35 = por %p33, %p34
    %p36 = scmp.ne.s32.totalorder %s22, %s23
    %p37 = scmp.eq.s32.totalorder %s15, 1
    %p38 = por %p36, %p37
    %p40 = scmp.ne.s32.totalorder %s23, %s39
    %p41 = scmp.eq.s32.totalorder %s15, 0
    %p42 = por %p40, %p41
    %s44 = sadd.s32 %s43, 1
    %p47 = scmp.eq.s32.totalorder %s9, 1
    %p48 = scmp.ne.s32.totalorder %s43, %s45
    %p49 = scmp.eq.s32.totalorder %s9, 0
    %p50 = por %p48, %p49
    %p51 = scmp.ne.s32.totalorder %s43, %s45
    %p52 = scmp.eq.s32.totalorder %s14, 1
    %p53 = por %p51, %p52
    %p54 = scmp.ne.s32.totalorder %s45, %s46
    %p55 = scmp.eq.s32.totalorder %s14, 0
    %p56 = por %p54, %p55
    %p57 = scmp.ne.s32.totalorder %s45, %s46
    %p58 = scmp.eq.s32.totalorder %s15, 1
    %p59 = por %p57, %p58
    %p61 = scmp.ne.s32.totalorder %s46, %s60
    %p62 = scmp.eq.s32.totalorder %s15, 0
    %p63 = por %p61, %p62
    %s65 = sadd.s32 %s64, 1
    %p68 = scmp.eq.s32.totalorder %s9, 1
    %p69 = scmp.ne.s32.totalorder %s64, %s66
    %p70 = scmp.eq.s32.totalorder %s9, 0
    %p71 = por %p69, %p70
    %p72 = scmp.ne.s32.totalorder %s64, %s66
    %p73 = scmp.eq.s32.totalorder %s14, 1
    %p74 = por %p72, %p73
    %p75 = scmp.ne.s32.totalorder %s66, %s67
    %p76 = scmp.eq.s32.totalorder %s14, 0
    %p77 = por %p75, %p76
    %p78 = scmp.ne.s32.totalorder %s66, %s67
    %p79 = scmp.eq.s32.totalorder %s15, 1
    %p80 = por %p78, %p79
    %p82 = scmp.ne.s32.totalorder %s67, %s81
    %p83 = scmp.eq.s32.totalorder %s15, 0
    %p84 = por %p82, %p83
    %s85 = ssub.s32 %s9, %s16
    %p86 = scmp.eq.s32.totalorder %s85, 0
    %s88 = sadd.s32 %s87, 1
    %s89 = scalar_select %p86, %s87, %s88
    %p92 = pneg %p86
    %p93 = scmp.eq.s32.totalorder %s9, 1
    %p94 = por %p92, %p93
    %p95 = scmp.ne.s32.totalorder %s87, %s90
    %p96 = scmp.eq.s32.totalorder %s9, 0
    %p97 = por %p95, %p96
    %p98 = scmp.ne.s32.totalorder %s87, %s90
    %p99 = scmp.eq.s32.totalorder %s14, 1
    %p100 = por %p98, %p99
    %p101 = scmp.ne.s32.totalorder %s90, %s91
    %p102 = scmp.eq.s32.totalorder %s14, 0
    %p103 = por %p101, %p102
    %p104 = scmp.ne.s32.totalorder %s90, %s91
    %p105 = scmp.eq.s32.totalorder %s15, 1
    %p106 = por %p104, %p105
    %p108 = scmp.ne.s32.totalorder %s91, %s107
    %p109 = scmp.eq.s32.totalorder %s15, 0
    %p110 = por %p108, %p109
    %p111 = scmp.le.s32.totalorder 1, %s9
    %p112 = scmp.lt.s32.totalorder %s9, 3
    %p113 = pnand %p111, %p112
    %p114 = pneg %p113
    // Predicated region
    $region9: #{encoder_forward.27} parent=5 // pred_check
      _
    $region10: #{encoder_forward.27} parent=5 // pred_check_branch
      %116 = sbr.rel (%p113) target = $region12
    $region11: #{encoder_forward.27} parent=5 // pred_region
      %s117 = ssub.s32 %s9, 1
      // Predicated region
      $region13: #{encoder_forward.27} parent=11 // pred_check
        %p118 = pneg %p56
      $region14: #{encoder_forward.27} parent=11 // pred_check_branch
        %120 = sbr.rel (%p118) target = $region16
      $region15: #{encoder_forward.27} parent=11 // pred_region
        _
      $region16: #{encoder_forward.27} parent=11 // pred_fallthru
        _
      // Predicated region
      $region17: #{encoder_forward.27} parent=11 // pred_check
        %p121 = pneg %p77
      $region18: #{encoder_forward.27} parent=11 // pred_check_branch
        %123 = sbr.rel (%p121) target = $region20
      $region19: #{encoder_forward.27} parent=11 // pred_region
        _
      $region20: #{encoder_forward.27} parent=11 // pred_fallthru
        _
    $region12: #{encoder_forward.27} parent=5 // pred_fallthru
      _
    %p124 = scmp.lt.s32.totalorder %s9, 2
    // Predicated region
    $region21: #{encoder_forward.27} parent=5 // pred_check
      %p125 = pneg %p124
    $region22: #{encoder_forward.27} parent=5 // pred_check_branch
      %127 = sbr.rel (%p125) target = $region24
    $region23: #{encoder_forward.27} parent=5 // pred_region
      // Predicated region
      $region25: #{encoder_forward.27} parent=23 // pred_check
        %p128 = pneg %p29
      $region26: #{encoder_forward.27} parent=23 // pred_check_branch
        %130 = sbr.rel (%p128) target = $region28
      $region27: #{encoder_forward.27} parent=23 // pred_region
        %p131 = scmp.lt.s32.totalorder %s9, 1
        %s132 = scalar_select %p131, %s9, 1
        %s133 = smul.addr %s132, 3
        %s134 = smul.addr %s133, 8
        %s135 = scalar_lea.vmem %s0, %s134
      $region28: #{encoder_forward.27} parent=23 // pred_fallthru
        _
    $region24: #{encoder_forward.27} parent=5 // pred_fallthru
      _
    %p136 = scmp.le.s32.totalorder 1, %s9
    %p137 = scmp.lt.s32.totalorder %s9, 3
    %p138 = pnand %p136, %p137
    %p139 = pneg %p138
    // Predicated region
    $region29: #{encoder_forward.27} parent=5 // pred_check
      _
    $region30: #{encoder_forward.27} parent=5 // pred_check_branch
      %141 = sbr.rel (%p138) target = $region32
    $region31: #{encoder_forward.27} parent=5 // pred_region
      %s142 = ssub.s32 %s9, 1
      %p143 = scmp.lt.s32.totalorder %s14, 1
      %s144 = scalar_select %p143, %s14, 1
      %s145 = smul.addr %s144, 3
      %s146 = smul.addr %s145, 8
      %s147 = scalar_lea.vmem %s0, %s146
      %p148 = pneg %p35
      %p149 = pneg %p32
      %p150 = pneg %p56
      %p151 = pneg %p53
      %p152 = pneg %p77
      %p153 = pneg %p74
      %p154 = pneg %p103
      %p155 = pneg %p100
      %p156 = scmp.lt.s32.totalorder %s14, 1
      %s157 = scalar_select %p156, %s14, 1
      %s158 = smul.addr %s157, 3
      %s159 = smul.addr %s158, 8
      %s160 = scalar_lea.vmem %s3, %s159
      %p161 = scmp.lt.s32.totalorder %s14, 1
      %s162 = scalar_select %p161, %s14, 1
      %s163 = smul.addr %s162, 3
      %s164 = smul.addr %s163, 8
      %s165 = scalar_lea.vmem %s0, %s164
      %p166 = scmp.lt.s32.totalorder %s14, 1
      %s167 = scalar_select %p166, %s14, 1
      %s168 = smul.addr %s167, 3
      %s169 = smul.addr %s168, 8
      %s170 = scalar_lea.vmem %s3, %s169
      %v171 = vld [vmem:[%s165] sm:$0xff]
      %v172 = vld [vmem:[%s165 + $0x8] sm:$0xff]
      %v173 = vld [vmem:[%s165 + $0x10] sm:$0xff]
      %v174 = vld [vmem:[%s1] sm:$0x7]
      %v175 = vld [vmem:[%s2] sm:$0x7]
      %v176 = vadd.f32 %v171, %v172
      %v177 = vadd.f32 %v176, %v173
      %178 = vadd.xlane.f32.xlu0 %v177
      %v179 = vpop.xlane.xlu0 %178
      %v180 = vrcp.pop 384.0
      %v181 = vmul.f32 %v179, %v180
      %v182 = vsub.f32 %v171, %v181
      %v183 = vsub.f32 %v172, %v181
      %v184 = vsub.f32 %v173, %v181
      %v185 = vmul.f32 %v182, %v182
      %v186 = vmul.f32 %v183, %v183
      %v187 = vmul.f32 %v184, %v184
      %v188 = vadd.f32 %v185, %v186
      %v189 = vadd.f32 %v188, %v187
      %190 = vadd.xlane.f32.xlu0 %v189
      %v191 = vpop.xlane.xlu0 %190
      %v192 = vmul.f32 %v191, %v180
      %v193 = vadd.f32 %v192, 1e-06
      %v194 = vrsqrt.pop %v193
      %v195 = vmul.f32 %v182, %v194
      %v196 = vmul.f32 %v183, %v194
      %v197 = vmul.f32 %v184, %v194
      %v199 = vlaneseq
      %v200 = vshrl.u32 %v199, 7
      %v201 = vsub.s32 0, %v200
      %v202 = vrot.slane %v174, %v201
      %v203 = vlaneseq
      %v204 = vshrl.u32 %v203, 7
      %v205 = vsub.s32 1, %v204
      %v206 = vrot.slane %v174, %v205
      %v207 = vlaneseq
      %v208 = vshrl.u32 %v207, 7
      %v209 = vsub.s32 2, %v208
      %v210 = vrot.slane %v174, %v209
      %v214 = vmul.f32 %v195, %v202
      %v215 = vmul.f32 %v196, %v206
      %v216 = vmul.f32 %v197, %v210
      %v218 = vlaneseq
      %v219 = vshrl.u32 %v218, 7
      %v220 = vsub.s32 0, %v219
      %v221 = vrot.slane %v175, %v220
      %v222 = vlaneseq
      %v223 = vshrl.u32 %v222, 7
      %v224 = vsub.s32 1, %v223
      %v225 = vrot.slane %v175, %v224
      %v226 = vlaneseq
      %v227 = vshrl.u32 %v226, 7
      %v228 = vsub.s32 2, %v227
      %v229 = vrot.slane %v175, %v228
      %v233 = vadd.f32 %v214, %v221
      %v234 = vadd.f32 %v215, %v225
      %v235 = vadd.f32 %v216, %v229
      %236 = vst [vmem:[%s170] sm:$0xff] %v233
      %237 = vst [vmem:[%s170 + $0x8] sm:$0xff] %v234
      %238 = vst [vmem:[%s170 + $0x10] sm:$0xff] %v235
      %p239 = scmp.lt.s32.totalorder %s14, 1
      %s240 = scalar_select %p239, %s14, 1
      %s241 = smul.addr %s240, 3
      %s242 = smul.addr %s241, 8
      %s243 = scalar_lea.vmem %s3, %s242
      // Predicated region
      $region33: #{encoder_forward.27} parent=31 // pred_check
        %p244 = pneg %p100
      $region34: #{encoder_forward.27} parent=31 // pred_check_branch
        %246 = sbr.rel (%p244) target = $region36
      $region35: #{encoder_forward.27} parent=31 // pred_region
        _
      $region36: #{encoder_forward.27} parent=31 // pred_fallthru
        _
    $region32: #{encoder_forward.27} parent=5 // pred_fallthru
      _
    %p247 = scmp.le.s32.totalorder 2, %s9
    // Predicated region
    $region37: #{encoder_forward.27} parent=5 // pred_check
      %p248 = pneg %p247
    $region38: #{encoder_forward.27} parent=5 // pred_check_branch
      %250 = sbr.rel (%p248) target = $region40
    $region39: #{encoder_forward.27} parent=5 // pred_region
      %s251 = ssub.s32 %s9, 2
      // Predicated region
      $region41: #{encoder_forward.27} parent=39 // pred_check
        %p252 = pneg %p106
      $region42: #{encoder_forward.27} parent=39 // pred_check_branch
        %254 = sbr.rel (%p252) target = $region44
      $region43: #{encoder_forward.27} parent=39 // pred_region
        %p255 = scmp.lt.s32.totalorder %s15, 1
        %s256 = scalar_select %p255, %s15, 1
        %s257 = smul.addr %s256, 3
        %s258 = smul.addr %s257, 8
        %s259 = scalar_lea.vmem %s3, %s258
      $region44: #{encoder_forward.27} parent=39 // pred_fallthru
        _
    $region40: #{encoder_forward.27} parent=5 // pred_fallthru
      _
  $region6: #{encoder_forward.27} parent=0 // loop_footer
    %s13 = sadd.s32 1, %s9
  $region7: #{encoder_forward.27} parent=0 // loop_footer_branch
    %8 = sbr.rel target = $region3
  $region8: #{encoder_forward.27} parent=0 // loop_exit
    _

// kernel: encoder_forward.14
$region0: #{encoder_forward.14}
  #allocation0 [shape = 'u32[]', space=smem, size = 0x4, offset = 0x4, fixed_abs, tag = 'smem constant byte address 0x4 - core index']
  #allocation1 [shape = 'u32[144,128]{1,0:T(1,128)}', space=vmem, size = 0x12000, scoped, tag = 'internal scratch']
  %s0 = inlined_call_operand.vmem [shape: bf16[16,640], index: 0, kind: input, shape index: {}]
  %s1 = inlined_call_operand.vmem [shape: bf16[640,384], index: 1, kind: input, shape index: {}]
  %s2 = inlined_call_operand.vmem [shape: f32[1,384], index: 2, kind: input, shape index: {}]
  %s3 = inlined_call_operand.vmem [shape: f32[16,384], index: 3, kind: output, shape index: {}]
  %s4 = sld [smem:[#allocation0]]
  $region22: #{encoder_forward.14} parent=0
    _
  %s6 = ssub.s32 1, %s4
  %s7 = scalar_select 0, %s6, %s4
  // Predicated region
  $region2: #{encoder_forward.14} parent=0 // pred_check
    _
  $region3: #{encoder_forward.14} parent=0 // pred_check_branch
    %9 = sbr.rel (0) target = $region5
  $region4: #{encoder_forward.14} parent=0 // pred_region
    _
  $region5: #{encoder_forward.14} parent=0 // pred_fallthru
    _
  // Predicated region
  $region6: #{encoder_forward.14} parent=0 // pred_check
    _
  $region7: #{encoder_forward.14} parent=0 // pred_check_branch
    %11 = sbr.rel (0) target = $region9
  $region8: #{encoder_forward.14} parent=0 // pred_region
    _
  $region9: #{encoder_forward.14} parent=0 // pred_fallthru
    _
  // Predicated region
  $region10: #{encoder_forward.14} parent=0 // pred_check
    _
  $region11: #{encoder_forward.14} parent=0 // pred_check_branch
    %13 = sbr.rel (0) target = $region13
  $region12: #{encoder_forward.14} parent=0 // pred_region
    _
  $region13: #{encoder_forward.14} parent=0 // pred_fallthru
    _
  %v15 = vld [vmem:[%s0] sm:$0xff]
  %v16 = vld [vmem:[%s0 + $0x8] sm:$0xff]
  %v17 = vld [vmem:[%s0 + $0x10] sm:$0xf]
  %v18 = vld [vmem:[%s0 + $0x14] sm:$0xff]
  %v19 = vld [vmem:[%s0 + $0x1c] sm:$0xff]
  %v20 = vld [vmem:[%s0 + $0x24] sm:$0xf]
  %v21 = vld [vmem:[%s1] sm:$0xff]
  %v22 = vld [vmem:[%s1 + $0x8] sm:$0xf]
  %v23 = vld [vmem:[%s1 + $0xc] sm:$0xff]
  %v24 = vld [vmem:[%s1 + $0x14] sm:$0xf]
  %v25 = vld [vmem:[%s1 + $0x18] sm:$0xff]
  %v26 = vld [vmem:[%s1 + $0x20] sm:$0xf]
  %v27 = vld [vmem:[%s1 + $0x24] sm:$0xff]
  %v28 = vld [vmem:[%s1 + $0x2c] sm:$0xf]
  %v29 = vld [vmem:[%s1 + $0x30] sm:$0xff]
  %v30 = vld [vmem:[%s1 + $0x38] sm:$0xf]
  %v31 = vld [vmem:[%s1 + $0x3c] sm:$0xff]
  %v32 = vld [vmem:[%s1 + $0x44] sm:$0xf]
  %v33 = vld [vmem:[%s1 + $0x48] sm:$0xff]
  %v34 = vld [vmem:[%s1 + $0x50] sm:$0xf]
  %v35 = vld [vmem:[%s1 + $0x54] sm:$0xff]
  %v36 = vld [vmem:[%s1 + $0x5c] sm:$0xf]
  %v37 = vld [vmem:[%s1 + $0x60] sm:$0xff]
  %v38 = vld [vmem:[%s1 + $0x68] sm:$0xf]
  %v39 = vld [vmem:[%s1 + $0x6c] sm:$0xff]
  %v40 = vld [vmem:[%s1 + $0x74] sm:$0xf]
  %v41 = vld [vmem:[%s1 + $0x78] sm:$0xff]
  %v42 = vld [vmem:[%s1 + $0x80] sm:$0xf]
  %v43 = vld [vmem:[%s1 + $0x84] sm:$0xff]
  %v44 = vld [vmem:[%s1 + $0x8c] sm:$0xf]
  %v45 = vld [vmem:[%s1 + $0x90] sm:$0xff]
  %v46 = vld [vmem:[%s1 + $0x98] sm:$0xf]
  %v47 = vld [vmem:[%s1 + $0x9c] sm:$0xff]
  %v48 = vld [vmem:[%s1 + $0xa4] sm:$0xf]
  %v49 = vld [vmem:[%s1 + $0xa8] sm:$0xff]
  %v50 = vld [vmem:[%s1 + $0xb0] sm:$0xf]
  %v51 = vld [vmem:[%s1 + $0xb4] sm:$0xff]
  %v52 = vld [vmem:[%s1 + $0xbc] sm:$0xf]
  %v53 = vld [vmem:[%s1 + $0xc0] sm:$0xff]
  %v54 = vld [vmem:[%s1 + $0xc8] sm:$0xf]
  %v55 = vld [vmem:[%s1 + $0xcc] sm:$0xff]
  %v56 = vld [vmem:[%s1 + $0xd4] sm:$0xf]
  %v57 = vld [vmem:[%s1 + $0xd8] sm:$0xff]
  %v58 = vld [vmem:[%s1 + $0xe0] sm:$0xf]
  %v59 = vld [vmem:[%s1 + $0xe4] sm:$0xff]
  %v60 = vld [vmem:[%s1 + $0xec] sm:$0xf]
  %v61 = vld [vmem:[%s1 + $0xf0] sm:$0xff]
  %v62 = vld [vmem:[%s1 + $0xf8] sm:$0xf]
  %v63 = vld [vmem:[%s1 + $0xfc] sm:$0xff]
  %v64 = vld [vmem:[%s1 + $0x104] sm:$0xf]
  %v65 = vld [vmem:[%s1 + $0x108] sm:$0xff]
  %v66 = vld [vmem:[%s1 + $0x110] sm:$0xf]
  %v67 = vld [vmem:[%s1 + $0x114] sm:$0xff]
  %v68 = vld [vmem:[%s1 + $0x11c] sm:$0xf]
  %v69 = vld [vmem:[%s1 + $0x120] sm:$0xff]
  %v70 = vld [vmem:[%s1 + $0x128] sm:$0xf]
  %v71 = vld [vmem:[%s1 + $0x12c] sm:$0xff]
  %v72 = vld [vmem:[%s1 + $0x134] sm:$0xf]
  %v73 = vld [vmem:[%s1 + $0x138] sm:$0xff]
  %v74 = vld [vmem:[%s1 + $0x140] sm:$0xf]
  %v75 = vld [vmem:[%s1 + $0x144] sm:$0xff]
  %v76 = vld [vmem:[%s1 + $0x14c] sm:$0xf]
  %v77 = vld [vmem:[%s1 + $0x150] sm:$0xff]
  %v78 = vld [vmem:[%s1 + $0x158] sm:$0xf]
  %v79 = vld [vmem:[%s1 + $0x15c] sm:$0xff]
  %v80 = vld [vmem:[%s1 + $0x164] sm:$0xf]
  %v81 = vld [vmem:[%s1 + $0x168] sm:$0xff]
  %v82 = vld [vmem:[%s1 + $0x170] sm:$0xf]
  %v83 = vld [vmem:[%s1 + $0x174] sm:$0xff]
  %v84 = vld [vmem:[%s1 + $0x17c] sm:$0xf]
  %v85 = vld [vmem:[%s1 + $0x180] sm:$0xff]
  %v86 = vld [vmem:[%s1 + $0x188] sm:$0xf]
  %v87 = vld [vmem:[%s1 + $0x18c] sm:$0xff]
  %v88 = vld [vmem:[%s1 + $0x194] sm:$0xf]
  %v89 = vld [vmem:[%s1 + $0x198] sm:$0xff]
  %v90 = vld [vmem:[%s1 + $0x1a0] sm:$0xf]
  %v91 = vld [vmem:[%s1 + $0x1a4] sm:$0xff]
  %v92 = vld [vmem:[%s1 + $0x1ac] sm:$0xf]
  %v93 = vld [vmem:[%s1 + $0x1b0] sm:$0xff]
  %v94 = vld [vmem:[%s1 + $0x1b8] sm:$0xf]
  %v95 = vld [vmem:[%s1 + $0x1bc] sm:$0xff]
  %v96 = vld [vmem:[%s1 + $0x1c4] sm:$0xf]
  %v97 = vld [vmem:[%s1 + $0x1c8] sm:$0xff]
  %v98 = vld [vmem:[%s1 + $0x1d0] sm:$0xf]
  %v99 = vld [vmem:[%s1 + $0x1d4] sm:$0xff]
  %v100 = vld [vmem:[%s1 + $0x1dc] sm:$0xf]
  %v101 = vld [vmem:[%s1 + $0x1e0] sm:$0xff]
  %v102 = vld [vmem:[%s1 + $0x1e8] sm:$0xf]
  %v103 = vld [vmem:[%s1 + $0x1ec] sm:$0xff]
  %v104 = vld [vmem:[%s1 + $0x1f4] sm:$0xf]
  %v105 = vld [vmem:[%s1 + $0x1f8] sm:$0xff]
  %v106 = vld [vmem:[%s1 + $0x200] sm:$0xf]
  %v107 = vld [vmem:[%s1 + $0x204] sm:$0xff]
  %v108 = vld [vmem:[%s1 + $0x20c] sm:$0xf]
  %v109 = vld [vmem:[%s1 + $0x210] sm:$0xff]
  %v110 = vld [vmem:[%s1 + $0x218] sm:$0xf]
  %v111 = vld [vmem:[%s1 + $0x21c] sm:$0xff]
  %v112 = vld [vmem:[%s1 + $0x224] sm:$0xf]
  %v113 = vld [vmem:[%s1 + $0x228] sm:$0xff]
  %v114 = vld [vmem:[%s1 + $0x230] sm:$0xf]
  %v115 = vld [vmem:[%s1 + $0x234] sm:$0xff]
  %v116 = vld [vmem:[%s1 + $0x23c] sm:$0xf]
  %v117 = vld [vmem:[%s1 + $0x240] sm:$0xff]
  %v118 = vld [vmem:[%s1 + $0x248] sm:$0xf]
  %v119 = vld [vmem:[%s1 + $0x24c] sm:$0xff]
  %v120 = vld [vmem:[%s1 + $0x254] sm:$0xf]
  %v121 = vld [vmem:[%s1 + $0x258] sm:$0xff]
  %v122 = vld [vmem:[%s1 + $0x260] sm:$0xf]
  %v123 = vld [vmem:[%s1 + $0x264] sm:$0xff]
  %v124 = vld [vmem:[%s1 + $0x26c] sm:$0xf]
  %v125 = vld [vmem:[%s1 + $0x270] sm:$0xff]
  %v126 = vld [vmem:[%s1 + $0x278] sm:$0xf]
  %v127 = vld [vmem:[%s1 + $0x27c] sm:$0xff]
  %v128 = vld [vmem:[%s1 + $0x284] sm:$0xf]
  %v129 = vld [vmem:[%s1 + $0x288] sm:$0xff]
  %v130 = vld [vmem:[%s1 + $0x290] sm:$0xf]
  %v131 = vld [vmem:[%s1 + $0x294] sm:$0xff]
  %v132 = vld [vmem:[%s1 + $0x29c] sm:$0xf]
  %v133 = vld [vmem:[%s1 + $0x2a0] sm:$0xff]
  %v134 = vld [vmem:[%s1 + $0x2a8] sm:$0xf]
  %v135 = vld [vmem:[%s1 + $0x2ac] sm:$0xff]
  %v136 = vld [vmem:[%s1 + $0x2b4] sm:$0xf]
  %v137 = vld [vmem:[%s1 + $0x2b8] sm:$0xff]
  %v138 = vld [vmem:[%s1 + $0x2c0] sm:$0xf]
  %v139 = vld [vmem:[%s1 + $0x2c4] sm:$0xff]
  %v140 = vld [vmem:[%s1 + $0x2cc] sm:$0xf]
  %v141 = vld [vmem:[%s1 + $0x2d0] sm:$0xff]
  %v142 = vld [vmem:[%s1 + $0x2d8] sm:$0xf]
  %v143 = vld [vmem:[%s1 + $0x2dc] sm:$0xff]
  %v144 = vld [vmem:[%s1 + $0x2e4] sm:$0xf]
  %v145 = vld [vmem:[%s1 + $0x2e8] sm:$0xff]
  %v146 = vld [vmem:[%s1 + $0x2f0] sm:$0xf]
  %v147 = vld [vmem:[%s1 + $0x2f4] sm:$0xff]
  %v148 = vld [vmem:[%s1 + $0x2fc] sm:$0xf]
  %v149 = vld [vmem:[%s1 + $0x300] sm:$0xff]
  %v150 = vld [vmem:[%s1 + $0x308] sm:$0xf]
  %v151 = vld [vmem:[%s1 + $0x30c] sm:$0xff]
  %v152 = vld [vmem:[%s1 + $0x314] sm:$0xf]
  %v153 = vld [vmem:[%s1 + $0x318] sm:$0xff]
  %v154 = vld [vmem:[%s1 + $0x320] sm:$0xf]
  %v155 = vld [vmem:[%s1 + $0x324] sm:$0xff]
  %v156 = vld [vmem:[%s1 + $0x32c] sm:$0xf]
  %v157 = vld [vmem:[%s1 + $0x330] sm:$0xff]
  %v158 = vld [vmem:[%s1 + $0x338] sm:$0xf]
  %v159 = vld [vmem:[%s1 + $0x33c] sm:$0xff]
  %v160 = vld [vmem:[%s1 + $0x344] sm:$0xf]
  %v161 = vld [vmem:[%s1 + $0x348] sm:$0xff]
  %v162 = vld [vmem:[%s1 + $0x350] sm:$0xf]
  %v163 = vld [vmem:[%s1 + $0x354] sm:$0xff]
  %v164 = vld [vmem:[%s1 + $0x35c] sm:$0xf]
  %v165 = vld [vmem:[%s1 + $0x360] sm:$0xff]
  %v166 = vld [vmem:[%s1 + $0x368] sm:$0xf]
  %v167 = vld [vmem:[%s1 + $0x36c] sm:$0xff]
  %v168 = vld [vmem:[%s1 + $0x374] sm:$0xf]
  %v169 = vld [vmem:[%s1 + $0x378] sm:$0xff]
  %v170 = vld [vmem:[%s1 + $0x380] sm:$0xf]
  %v171 = vld [vmem:[%s1 + $0x384] sm:$0xff]
  %v172 = vld [vmem:[%s1 + $0x38c] sm:$0xf]
  %v173 = vld [vmem:[%s1 + $0x390] sm:$0xff]
  %v174 = vld [vmem:[%s1 + $0x398] sm:$0xf]
  %v175 = vld [vmem:[%s1 + $0x39c] sm:$0xff]
  %v176 = vld [vmem:[%s1 + $0x3a4] sm:$0xf]
  %v177 = vld [vmem:[%s1 + $0x3a8] sm:$0xff]
  %v178 = vld [vmem:[%s1 + $0x3b0] sm:$0xf]
  %v179 = vld [vmem:[%s1 + $0x3b4] sm:$0xff]
  %v180 = vld [vmem:[%s1 + $0x3bc] sm:$0xf]
  %v181 = vld [vmem:[%s2] sm:$0x7]
  %v183 = vlaneseq
  %v184 = vshrl.u32 %v183, 7
  %v185 = vsub.s32 0, %v184
  %v186 = vrot.slane %v181, %v185
  %v187 = vlaneseq
  %v188 = vshrl.u32 %v187, 7
  %v189 = vsub.s32 1, %v188
  %v190 = vrot.slane %v181, %v189
  %v191 = vlaneseq
  %v192 = vshrl.u32 %v191, 7
  %v193 = vsub.s32 2, %v192
  %v194 = vrot.slane %v181, %v193
  %v204 = vunpack.c.l.b16 %v15
  %v205 = vunpack.c.h.b16 %v15
  %v206 = vunpack.c.l.b16 %v16
  %v207 = vunpack.c.h.b16 %v16
  %v208 = vunpack.c.l.b16 %v17
  %v209 = vunpack.c.l.b16 %v18
  %v210 = vunpack.c.h.b16 %v18
  %v211 = vunpack.c.l.b16 %v19
  %v212 = vunpack.c.h.b16 %v19
  %v213 = vunpack.c.l.b16 %v20
  %v214 = vpack.c.b16 %v209, %v204
  %v215 = vpack.c.b16 %v210, %v205
  %v216 = vpack.c.b16 %v211, %v206
  %v217 = vpack.c.b16 %v212, %v207
  %v218 = vpack.c.b16 %v213, %v208
  %v384 = vunpack.c.l.b16 %v21
  %v385 = vunpack.c.h.b16 %v21
  %v386 = vunpack.c.l.b16 %v22
  %v387 = vunpack.c.l.b16 %v23
  %v388 = vunpack.c.h.b16 %v23
  %v389 = vunpack.c.l.b16 %v24
  %v390 = vunpack.c.l.b16 %v25
  %v391 = vunpack.c.h.b16 %v25
  %v392 = vunpack.c.l.b16 %v26
  %v393 = vunpack.c.l.b16 %v27
  %v394 = vunpack.c.h.b16 %v27
  %v395 = vunpack.c.l.b16 %v28
  %v396 = vunpack.c.l.b16 %v29
  %v397 = vunpack.c.h.b16 %v29
  %v398 = vunpack.c.l.b16 %v30
  %v399 = vunpack.c.l.b16 %v31
  %v400 = vunpack.c.h.b16 %v31
  %v401 = vunpack.c.l.b16 %v32
  %v402 = vunpack.c.l.b16 %v33
  %v403 = vunpack.c.h.b16 %v33
  %v404 = vunpack.c.l.b16 %v34
  %v405 = vunpack.c.l.b16 %v35
  %v406 = vunpack.c.h.b16 %v35
  %v407 = vunpack.c.l.b16 %v36
  %v408 = vunpack.c.l.b16 %v37
  %v409 = vunpack.c.h.b16 %v37
  %v410 = vunpack.c.l.b16 %v38
  %v411 = vunpack.c.l.b16 %v39
  %v412 = vunpack.c.h.b16 %v39
  %v413 = vunpack.c.l.b16 %v40
  %v414 = vunpack.c.l.b16 %v41
  %v415 = vunpack.c.h.b16 %v41
  %v416 = vunpack.c.l.b16 %v42
  %v417 = vunpack.c.l.b16 %v43
  %v418 = vunpack.c.h.b16 %v43
  %v419 = vunpack.c.l.b16 %v44
  %v420 = vunpack.c.l.b16 %v45
  %v421 = vunpack.c.h.b16 %v45
  %v422 = vunpack.c.l.b16 %v46
  %v423 = vunpack.c.l.b16 %v47
  %v424 = vunpack.c.h.b16 %v47
  %v425 = vunpack.c.l.b16 %v48
  %v426 = vunpack.c.l.b16 %v49
  %v427 = vunpack.c.h.b16 %v49
  %v428 = vunpack.c.l.b16 %v50
  %v429 = vunpack.c.l.b16 %v51
  %v430 = vunpack.c.h.b16 %v51
  %v431 = vunpack.c.l.b16 %v52
  %v432 = vunpack.c.l.b16 %v53
  %v433 = vunpack.c.h.b16 %v53
  %v434 = vunpack.c.l.b16 %v54
  %v435 = vunpack.c.l.b16 %v55
  %v436 = vunpack.c.h.b16 %v55
  %v437 = vunpack.c.l.b16 %v56
  %v438 = vunpack.c.l.b16 %v57
  %v439 = vunpack.c.h.b16 %v57
  %v440 = vunpack.c.l.b16 %v58
  %v441 = vunpack.c.l.b16 %v59
  %v442 = vunpack.c.h.b16 %v59
  %v443 = vunpack.c.l.b16 %v60
  %v444 = vunpack.c.l.b16 %v61
  %v445 = vunpack.c.h.b16 %v61
  %v446 = vunpack.c.l.b16 %v62
  %v447 = vunpack.c.l.b16 %v63
  %v448 = vunpack.c.h.b16 %v63
  %v449 = vunpack.c.l.b16 %v64
  %v450 = vunpack.c.l.b16 %v65
  %v451 = vunpack.c.h.b16 %v65
  %v452 = vunpack.c.l.b16 %v66
  %v453 = vunpack.c.l.b16 %v67
  %v454 = vunpack.c.h.b16 %v67
  %v455 = vunpack.c.l.b16 %v68
  %v456 = vunpack.c.l.b16 %v69
  %v457 = vunpack.c.h.b16 %v69
  %v458 = vunpack.c.l.b16 %v70
  %v459 = vunpack.c.l.b16 %v71
  %v460 = vunpack.c.h.b16 %v71
  %v461 = vunpack.c.l.b16 %v72
  %v462 = vunpack.c.l.b16 %v73
  %v463 = vunpack.c.h.b16 %v73
  %v464 = vunpack.c.l.b16 %v74
  %v465 = vunpack.c.l.b16 %v75
  %v466 = vunpack.c.h.b16 %v75
  %v467 = vunpack.c.l.b16 %v76
  %v468 = vunpack.c.l.b16 %v77
  %v469 = vunpack.c.h.b16 %v77
  %v470 = vunpack.c.l.b16 %v78
  %v471 = vunpack.c.l.b16 %v79
  %v472 = vunpack.c.h.b16 %v79
  %v473 = vunpack.c.l.b16 %v80
  %v474 = vunpack.c.l.b16 %v81
  %v475 = vunpack.c.h.b16 %v81
  %v476 = vunpack.c.l.b16 %v82
  %v477 = vunpack.c.l.b16 %v83
  %v478 = vunpack.c.h.b16 %v83
  %v479 = vunpack.c.l.b16 %v84
  %v480 = vunpack.c.l.b16 %v85
  %v481 = vunpack.c.h.b16 %v85
  %v482 = vunpack.c.l.b16 %v86
  %v483 = vunpack.c.l.b16 %v87
  %v484 = vunpack.c.h.b16 %v87
  %v485 = vunpack.c.l.b16 %v88
  %v486 = vunpack.c.l.b16 %v89
  %v487 = vunpack.c.h.b16 %v89
  %v488 = vunpack.c.l.b16 %v90
  %v489 = vunpack.c.l.b16 %v91
  %v490 = vunpack.c.h.b16 %v91
  %v491 = vunpack.c.l.b16 %v92
  %v492 = vunpack.c.l.b16 %v93
  %v493 = vunpack.c.h.b16 %v93
  %v494 = vunpack.c.l.b16 %v94
  %v495 = vunpack.c.l.b16 %v95
  %v496 = vunpack.c.h.b16 %v95
  %v497 = vunpack.c.l.b16 %v96
  %v498 = vunpack.c.l.b16 %v97
  %v499 = vunpack.c.h.b16 %v97
  %v500 = vunpack.c.l.b16 %v98
  %v501 = vunpack.c.l.b16 %v99
  %v502 = vunpack.c.h.b16 %v99
  %v503 = vunpack.c.l.b16 %v100
  %v504 = vunpack.c.l.b16 %v101
  %v505 = vunpack.c.h.b16 %v101
  %v506 = vunpack.c.l.b16 %v102
  %v507 = vunpack.c.l.b16 %v103
  %v508 = vunpack.c.h.b16 %v103
  %v509 = vunpack.c.l.b16 %v104
  %v510 = vunpack.c.l.b16 %v105
  %v511 = vunpack.c.h.b16 %v105
  %v512 = vunpack.c.l.b16 %v106
  %v513 = vunpack.c.l.b16 %v107
  %v514 = vunpack.c.h.b16 %v107
  %v515 = vunpack.c.l.b16 %v108
  %v516 = vunpack.c.l.b16 %v109
  %v517 = vunpack.c.h.b16 %v109
  %v518 = vunpack.c.l.b16 %v110
  %v519 = vunpack.c.l.b16 %v111
  %v520 = vunpack.c.h.b16 %v111
  %v521 = vunpack.c.l.b16 %v112
  %v522 = vunpack.c.l.b16 %v113
  %v523 = vunpack.c.h.b16 %v113
  %v524 = vunpack.c.l.b16 %v114
  %v525 = vunpack.c.l.b16 %v115
  %v526 = vunpack.c.h.b16 %v115
  %v527 = vunpack.c.l.b16 %v116
  %v528 = vunpack.c.l.b16 %v117
  %v529 = vunpack.c.h.b16 %v117
  %v530 = vunpack.c.l.b16 %v118
  %v531 = vunpack.c.l.b16 %v119
  %v532 = vunpack.c.h.b16 %v119
  %v533 = vunpack.c.l.b16 %v120
  %v534 = vunpack.c.l.b16 %v121
  %v535 = vunpack.c.h.b16 %v121
  %v536 = vunpack.c.l.b16 %v122
  %v537 = vunpack.c.l.b16 %v123
  %v538 = vunpack.c.h.b16 %v123
  %v539 = vunpack.c.l.b16 %v124
  %v540 = vunpack.c.l.b16 %v125
  %v541 = vunpack.c.h.b16 %v125
  %v542 = vunpack.c.l.b16 %v126
  %v543 = vunpack.c.l.b16 %v127
  %v544 = vunpack.c.h.b16 %v127
  %v545 = vunpack.c.l.b16 %v128
  %v546 = vunpack.c.l.b16 %v129
  %v547 = vunpack.c.h.b16 %v129
  %v548 = vunpack.c.l.b16 %v130
  %v549 = vunpack.c.l.b16 %v131
  %v550 = vunpack.c.h.b16 %v131
  %v551 = vunpack.c.l.b16 %v132
  %v552 = vunpack.c.l.b16 %v133
  %v553 = vunpack.c.h.b16 %v133
  %v554 = vunpack.c.l.b16 %v134
  %v555 = vunpack.c.l.b16 %v135
  %v556 = vunpack.c.h.b16 %v135
  %v557 = vunpack.c.l.b16 %v136
  %v558 = vunpack.c.l.b16 %v137
  %v559 = vunpack.c.h.b16 %v137
  %v560 = vunpack.c.l.b16 %v138
  %v561 = vunpack.c.l.b16 %v139
  %v562 = vunpack.c.h.b16 %v139
  %v563 = vunpack.c.l.b16 %v140
  %v564 = vunpack.c.l.b16 %v141
  %v565 = vunpack.c.h.b16 %v141
  %v566 = vunpack.c.l.b16 %v142
  %v567 = vunpack.c.l.b16 %v143
  %v568 = vunpack.c.h.b16 %v143
  %v569 = vunpack.c.l.b16 %v144
  %v570 = vunpack.c.l.b16 %v145
  %v571 = vunpack.c.h.b16 %v145
  %v572 = vunpack.c.l.b16 %v146
  %v573 = vunpack.c.l.b16 %v147
  %v574 = vunpack.c.h.b16 %v147
  %v575 = vunpack.c.l.b16 %v148
  %v576 = vunpack.c.l.b16 %v149
  %v577 = vunpack.c.h.b16 %v149
  %v578 = vunpack.c.l.b16 %v150
  %v579 = vunpack.c.l.b16 %v151
  %v580 = vunpack.c.h.b16 %v151
  %v581 = vunpack.c.l.b16 %v152
  %v582 = vunpack.c.l.b16 %v153
  %v583 = vunpack.c.h.b16 %v153
  %v584 = vunpack.c.l.b16 %v154
  %v585 = vunpack.c.l.b16 %v155
  %v586 = vunpack.c.h.b16 %v155
  %v587 = vunpack.c.l.b16 %v156
  %v588 = vunpack.c.l.b16 %v157
  %v589 = vunpack.c.h.b16 %v157
  %v590 = vunpack.c.l.b16 %v158
  %v591 = vunpack.c.l.b16 %v159
  %v592 = vunpack.c.h.b16 %v159
  %v593 = vunpack.c.l.b16 %v160
  %v594 = vunpack.c.l.b16 %v161
  %v595 = vunpack.c.h.b16 %v161
  %v596 = vunpack.c.l.b16 %v162
  %v597 = vunpack.c.l.b16 %v163
  %v598 = vunpack.c.h.b16 %v163
  %v599 = vunpack.c.l.b16 %v164
  %v600 = vunpack.c.l.b16 %v165
  %v601 = vunpack.c.h.b16 %v165
  %v602 = vunpack.c.l.b16 %v166
  %v603 = vunpack.c.l.b16 %v167
  %v604 = vunpack.c.h.b16 %v167
  %v605 = vunpack.c.l.b16 %v168
  %v606 = vunpack.c.l.b16 %v169
  %v607 = vunpack.c.h.b16 %v169
  %v608 = vunpack.c.l.b16 %v170
  %v609 = vunpack.c.l.b16 %v171
  %v610 = vunpack.c.h.b16 %v171
  %v611 = vunpack.c.l.b16 %v172
  %v612 = vunpack.c.l.b16 %v173
  %v613 = vunpack.c.h.b16 %v173
  %v614 = vunpack.c.l.b16 %v174
  %v615 = vunpack.c.l.b16 %v175
  %v616 = vunpack.c.h.b16 %v175
  %v617 = vunpack.c.l.b16 %v176
  %v618 = vunpack.c.l.b16 %v177
  %v619 = vunpack.c.h.b16 %v177
  %v620 = vunpack.c.l.b16 %v178
  %v621 = vunpack.c.l.b16 %v179
  %v622 = vunpack.c.h.b16 %v179
  %v623 = vunpack.c.l.b16 %v180
  %v624 = vpack.c.b16 %v387, %v384
  %v625 = vpack.c.b16 %v388, %v385
  %v626 = vpack.c.b16 %v389, %v386
  %v627 = vpack.c.b16 %v393, %v390
  %v628 = vpack.c.b16 %v394, %v391
  %v629 = vpack.c.b16 %v395, %v392
  %v630 = vpack.c.b16 %v399, %v396
  %v631 = vpack.c.b16 %v400, %v397
  %v632 = vpack.c.b16 %v401, %v398
  %v633 = vpack.c.b16 %v405, %v402
  %v634 = vpack.c.b16 %v406, %v403
  %v635 = vpack.c.b16 %v407, %v404
  %v636 = vpack.c.b16 %v411, %v408
  %v637 = vpack.c.b16 %v412, %v409
  %v638 = vpack.c.b16 %v413, %v410
  %v639 = vpack.c.b16 %v417, %v414
  %v640 = vpack.c.b16 %v418, %v415
  %v641 = vpack.c.b16 %v419, %v416
  %v642 = vpack.c.b16 %v423, %v420
  %v643 = vpack.c.b16 %v424, %v421
  %v644 = vpack.c.b16 %v425, %v422
  %v645 = vpack.c.b16 %v429, %v426
  %v646 = vpack.c.b16 %v430, %v427
  %v647 = vpack.c.b16 %v431, %v428
  %v648 = vpack.c.b16 %v435, %v432
  %v649 = vpack.c.b16 %v436, %v433
  %v650 = vpack.c.b16 %v437, %v434
  %v651 = vpack.c.b16 %v441, %v438
  %v652 = vpack.c.b16 %v442, %v439
  %v653 = vpack.c.b16 %v443, %v440
  %v654 = vpack.c.b16 %v447, %v444
  %v655 = vpack.c.b16 %v448, %v445
  %v656 = vpack.c.b16 %v449, %v446
  %v657 = vpack.c.b16 %v453, %v450
  %v658 = vpack.c.b16 %v454, %v451
  %v659 = vpack.c.b16 %v455, %v452
  %v660 = vpack.c.b16 %v459, %v456
  %v661 = vpack.c.b16 %v460, %v457
  %v662 = vpack.c.b16 %v461, %v458
  %v663 = vpack.c.b16 %v465, %v462
  %v664 = vpack.c.b16 %v466, %v463
  %v665 = vpack.c.b16 %v467, %v464
  %v666 = vpack.c.b16 %v471, %v468
  %v667 = vpack.c.b16 %v472, %v469
  %v668 = vpack.c.b16 %v473, %v470
  %v669 = vpack.c.b16 %v477, %v474
  %v670 = vpack.c.b16 %v478, %v475
  %v671 = vpack.c.b16 %v479, %v476
  %v672 = vpack.c.b16 %v483, %v480
  %v673 = vpack.c.b16 %v484, %v481
  %v674 = vpack.c.b16 %v485, %v482
  %v675 = vpack.c.b16 %v489, %v486
  %v676 = vpack.c.b16 %v490, %v487
  %v677 = vpack.c.b16 %v491, %v488
  %v678 = vpack.c.b16 %v495, %v492
  %v679 = vpack.c.b16 %v496, %v493
  %v680 = vpack.c.b16 %v497, %v494
  %v681 = vpack.c.b16 %v501, %v498
  %v682 = vpack.c.b16 %v502, %v499
  %v683 = vpack.c.b16 %v503, %v500
  %v684 = vpack.c.b16 %v507, %v504
  %v685 = vpack.c.b16 %v508, %v505
  %v686 = vpack.c.b16 %v509, %v506
  %v687 = vpack.c.b16 %v513, %v510
  %v688 = vpack.c.b16 %v514, %v511
  %v689 = vpack.c.b16 %v515, %v512
  %v690 = vpack.c.b16 %v519, %v516
  %v691 = vpack.c.b16 %v520, %v517
  %v692 = vpack.c.b16 %v521, %v518
  %v693 = vpack.c.b16 %v525, %v522
  %v694 = vpack.c.b16 %v526, %v523
  %v695 = vpack.c.b16 %v527, %v524
  %v696 = vpack.c.b16 %v531, %v528
  %v697 = vpack.c.b16 %v532, %v529
  %v698 = vpack.c.b16 %v533, %v530
  %v699 = vpack.c.b16 %v537, %v534
  %v700 = vpack.c.b16 %v538, %v535
  %v701 = vpack.c.b16 %v539, %v536
  %v702 = vpack.c.b16 %v543, %v540
  %v703 = vpack.c.b16 %v544, %v541
  %v704 = vpack.c.b16 %v545, %v542
  %v705 = vpack.c.b16 %v549, %v546
  %v706 = vpack.c.b16 %v550, %v547
  %v707 = vpack.c.b16 %v551, %v548
  %v708 = vpack.c.b16 %v555, %v552
  %v709 = vpack.c.b16 %v556, %v553
  %v710 = vpack.c.b16 %v557, %v554
  %v711 = vpack.c.b16 %v561, %v558
  %v712 = vpack.c.b16 %v562, %v559
  %v713 = vpack.c.b16 %v563, %v560
  %v714 = vpack.c.b16 %v567, %v564
  %v715 = vpack.c.b16 %v568, %v565
  %v716 = vpack.c.b16 %v569, %v566
  %v717 = vpack.c.b16 %v573, %v570
  %v718 = vpack.c.b16 %v574, %v571
  %v719 = vpack.c.b16 %v575, %v572
  %v720 = vpack.c.b16 %v579, %v576
  %v721 = vpack.c.b16 %v580, %v577
  %v722 = vpack.c.b16 %v581, %v578
  %v723 = vpack.c.b16 %v585, %v582
  %v724 = vpack.c.b16 %v586, %v583
  %v725 = vpack.c.b16 %v587, %v584
  %v726 = vpack.c.b16 %v591, %v588
  %v727 = vpack.c.b16 %v592, %v589
  %v728 = vpack.c.b16 %v593, %v590
  %v729 = vpack.c.b16 %v597, %v594
  %v730 = vpack.c.b16 %v598, %v595
  %v731 = vpack.c.b16 %v599, %v596
  %v732 = vpack.c.b16 %v603, %v600
  %v733 = vpack.c.b16 %v604, %v601
  %v734 = vpack.c.b16 %v605, %v602
  %v735 = vpack.c.b16 %v609, %v606
  %v736 = vpack.c.b16 %v610, %v607
  %v737 = vpack.c.b16 %v611, %v608
  %v738 = vpack.c.b16 %v615, %v612
  %v739 = vpack.c.b16 %v616, %v613
  %v740 = vpack.c.b16 %v617, %v614
  %v741 = vpack.c.b16 %v621, %v618
  %v742 = vpack.c.b16 %v622, %v619
  %v743 = vpack.c.b16 %v623, %v620
  %864 = vmatprep.subr.bf16.mxu0 %v646
  %865 = vmatpush1.bf16.msra.mxu0 %v645
  %866 = vmatprep.subr.bf16.mxu0 %v643
  %867 = vmatpush1.bf16.msra.mxu0 %v642
  %868 = vmatprep.subr.bf16.mxu0 %v640
  %869 = vmatpush1.bf16.msra.mxu0 %v639
  %870 = vmatprep.subr.bf16.mxu0 %v637
  %871 = vmatpush1.bf16.msra.mxu0 %v636
  %872 = vmatprep.subr.bf16.mxu0 %v634
  %873 = vmatpush1.bf16.msra.mxu0 %v633
  %874 = vmatprep.subr.bf16.mxu0 %v631
  %875 = vmatpush1.bf16.msra.mxu0 %v630
  %876 = vmatprep.subr.bf16.mxu0 %v628
  %877 = vmatpush1.bf16.msra.mxu0 %v627
  %878 = vmatprep.subr.bf16.mxu0 %v625
  %879 = vmatpush1.bf16.msra.mxu0 %v624
  %880 = vmatprep.subr.bf16.mxu0 %v670
  %881 = vmatpush2.bf16.msra.mxu0 %v669
  %882 = vmatprep.subr.bf16.mxu0 %v667
  %883 = vmatpush2.bf16.msra.mxu0 %v666
  %884 = vmatprep.subr.bf16.mxu0 %v664
  %885 = vmatpush2.bf16.msra.mxu0 %v663
  %886 = vmatprep.subr.bf16.mxu0 %v661
  %887 = vmatpush2.bf16.msra.mxu0 %v660
  %888 = vmatprep.subr.bf16.mxu0 %v658
  %889 = vmatpush2.bf16.msra.mxu0 %v657
  %890 = vmatprep.subr.bf16.mxu0 %v655
  %891 = vmatpush2.bf16.msra.mxu0 %v654
  %892 = vmatprep.subr.bf16.mxu0 %v652
  %893 = vmatpush2.bf16.msra.mxu0 %v651
  %894 = vmatprep.subr.bf16.mxu0 %v649
  %895 = vmatpush2.bf16.msra.mxu0 %v648
  %896 = vmatprep.mubr.bf16.mxu0 %v215
  %897 = vmatmul.mubr.bf16.gmra.mxu0 %v214
  %v898 = vpop.f32.mrf.mxu0
  %v899 = vadd.f32 %v186, %v898
  %v900 = vpop.f32.mrf.mxu0
  %v901 = vadd.f32 %v190, %v900
  %v902 = vpop.f32.mrf.mxu0
  %v903 = vadd.f32 %v186, %v902
  %v904 = vpop.f32.mrf.mxu0
  %v905 = vadd.f32 %v190, %v904
  %906 = vdwg.mxu0
  %907 = vmatprep.subr.bf16.mxu0 %v694
  %908 = vmatpush1.bf16.msra.mxu0 %v693
  %909 = vmatprep.subr.bf16.mxu0 %v691
  %910 = vmatpush1.bf16.msra.mxu0 %v690
  %911 = vmatprep.subr.bf16.mxu0 %v688
  %912 = vmatpush1.bf16.msra.mxu0 %v687
  %913 = vmatprep.subr.bf16.mxu0 %v685
  %914 = vmatpush1.bf16.msra.mxu0 %v684
  %915 = vmatprep.subr.bf16.mxu0 %v682
  %916 = vmatpush1.bf16.msra.mxu0 %v681
  %917 = vmatprep.subr.bf16.mxu0 %v679
  %918 = vmatpush1.bf16.msra.mxu0 %v678
  %919 = vmatprep.subr.bf16.mxu0 %v676
  %920 = vmatpush1.bf16.msra.mxu0 %v675
  %921 = vmatprep.subr.bf16.mxu0 %v673
  %922 = vmatpush1.bf16.msra.mxu0 %v672
  %923 = vmatprep.subr.bf16.mxu0 %v718
  %924 = vmatpush2.bf16.msra.mxu0 %v717
  %925 = vmatprep.subr.bf16.mxu0 %v715
  %926 = vmatpush2.bf16.msra.mxu0 %v714
  %927 = vmatprep.subr.bf16.mxu0 %v712
  %928 = vmatpush2.bf16.msra.mxu0 %v711
  %929 = vmatprep.subr.bf16.mxu0 %v709
  %930 = vmatpush2.bf16.msra.mxu0 %v708
  %931 = vmatprep.subr.bf16.mxu0 %v706
  %932 = vmatpush2.bf16.msra.mxu0 %v705
  %933 = vmatprep.subr.bf16.mxu0 %v703
  %934 = vmatpush2.bf16.msra.mxu0 %v702
  %935 = vmatprep.subr.bf16.mxu0 %v700
  %936 = vmatpush2.bf16.msra.mxu0 %v699
  %937 = vmatprep.subr.bf16.mxu0 %v697
  %938 = vmatpush2.bf16.msra.mxu0 %v696
  %939 = vmatprep.mubr.bf16.mxu0 %v217
  %940 = vmatmul.mubr.bf16.gmra.mxu0 %v216
  %v941 = vpop.f32.mrf.mxu0
  %v942 = vadd.f32 %v899, %v941
  %v943 = vpop.f32.mrf.mxu0
  %v944 = vadd.f32 %v901, %v943
  %v945 = vpop.f32.mrf.mxu0
  %v946 = vadd.f32 %v903, %v945
  %v947 = vpop.f32.mrf.mxu0
  %v948 = vadd.f32 %v905, %v947
  %949 = vdwg.mxu0
  %950 = vmatprep.subr.bf16.mxu0 %v742
  %951 = vmatpush1.bf16.msra.mxu0 %v741
  %952 = vmatprep.subr.bf16.mxu0 %v739
  %953 = vmatpush1.bf16.msra.mxu0 %v738
  %954 = vmatprep.subr.bf16.mxu0 %v736
  %955 = vmatpush1.bf16.msra.mxu0 %v735
  %956 = vmatprep.subr.bf16.mxu0 %v733
  %957 = vmatpush1.bf16.msra.mxu0 %v732
  %958 = vmatprep.subr.bf16.mxu0 %v730
  %959 = vmatpush1.bf16.msra.mxu0 %v729
  %960 = vmatprep.subr.bf16.mxu0 %v727
  %961 = vmatpush1.bf16.msra.mxu0 %v726
  %962 = vmatprep.subr.bf16.mxu0 %v724
  %963 = vmatpush1.bf16.msra.mxu0 %v723
  %964 = vmatprep.subr.bf16.mxu0 %v721
  %965 = vmatpush1.bf16.msra.mxu0 %v720
  %966 = vmatprep.subr.bf16.mxu0 0
  %967 = vmatpush2.bf16.msra.mxu0 0
  %968 = vmatprep.subr.bf16.mxu0 0
  %969 = vmatpush2.bf16.msra.mxu0 0
  %970 = vmatprep.subr.bf16.mxu0 0
  %971 = vmatpush2.bf16.msra.mxu0 0
  %972 = vmatprep.subr.bf16.mxu0 0
  %973 = vmatpush2.bf16.msra.mxu0 0
  %974 = vmatprep.subr.bf16.mxu0 0
  %975 = vmatpush2.bf16.msra.mxu0 0
  %976 = vmatprep.subr.bf16.mxu0 0
  %977 = vmatpush2.bf16.msra.mxu0 0
  %978 = vmatprep.subr.bf16.mxu0 0
  %979 = vmatpush2.bf16.msra.mxu0 0
  %980 = vmatprep.subr.bf16.mxu0 0
  %981 = vmatpush2.bf16.msra.mxu0 0
  %982 = vmatprep.mubr.bf16.mxu0 0
  %983 = vmatmul.mubr.bf16.gmra.mxu0 %v218
  %v984 = vpop.f32.mrf.mxu0
  %v985 = vadd.f32 %v942, %v984
  %v986 = vpop.f32.mrf.mxu0
  %v987 = vadd.f32 %v944, %v986
  %v988 = vpop.f32.mrf.mxu0
  %v989 = vadd.f32 %v946, %v988
  %v990 = vpop.f32.mrf.mxu0
  %v991 = vadd.f32 %v948, %v990
  %992 = vdwg.mxu0
  %993 = vmatprep.subr.bf16.mxu0 0
  %994 = vmatpush1.bf16.msra.mxu0 %v647
  %995 = vmatprep.subr.bf16.mxu0 0
  %996 = vmatpush1.bf16.msra.mxu0 %v644
  %997 = vmatprep.subr.bf16.mxu0 0
  %998 = vmatpush1.bf16.msra.mxu0 %v641
  %999 = vmatprep.subr.bf16.mxu0 0
  %1000 = vmatpush1.bf16.msra.mxu0 %v638
  %1001 = vmatprep.subr.bf16.mxu0 0
  %1002 = vmatpush1.bf16.msra.mxu0 %v635
  %1003 = vmatprep.subr.bf16.mxu0 0
  %1004 = vmatpush1.bf16.msra.mxu0 %v632
  %1005 = vmatprep.subr.bf16.mxu0 0
  %1006 = vmatpush1.bf16.msra.mxu0 %v629
  %1007 = vmatprep.subr.bf16.mxu0 0
  %1008 = vmatpush1.bf16.msra.mxu0 %v626
  %1009 = vmatprep.subr.bf16.mxu0 0
  %1010 = vmatpush2.bf16.msra.mxu0 %v671
  %1011 = vmatprep.subr.bf16.mxu0 0
  %1012 = vmatpush2.bf16.msra.mxu0 %v668
  %1013 = vmatprep.subr.bf16.mxu0 0
  %1014 = vmatpush2.bf16.msra.mxu0 %v665
  %1015 = vmatprep.subr.bf16.mxu0 0
  %1016 = vmatpush2.bf16.msra.mxu0 %v662
  %1017 = vmatprep.subr.bf16.mxu0 0
  %1018 = vmatpush2.bf16.msra.mxu0 %v659
  %1019 = vmatprep.subr.bf16.mxu0 0
  %1020 = vmatpush2.bf16.msra.mxu0 %v656
  %1021 = vmatprep.subr.bf16.mxu0 0
  %1022 = vmatpush2.bf16.msra.mxu0 %v653
  %1023 = vmatprep.subr.bf16.mxu0 0
  %1024 = vmatpush2.bf16.msra.mxu0 %v650
  %1025 = vmatprep.mubr.bf16.mxu0 %v215
  %1026 = vmatmul.mubr.bf16.gmra.mxu0 %v214
  %v1027 = vpop.f32.mrf.mxu0
  %v1028 = vadd.f32 %v194, %v1027
  %v1029 = vpop.f32.mrf.mxu0
  %v1030 = vpop.f32.mrf.mxu0
  %v1031 = vadd.f32 %v194, %v1030
  %v1032 = vpop.f32.mrf.mxu0
  %1033 = vdwg.mxu0
  %1034 = vmatprep.subr.bf16.mxu0 0
  %1035 = vmatpush1.bf16.msra.mxu0 %v695
  %1036 = vmatprep.subr.bf16.mxu0 0
  %1037 = vmatpush1.bf16.msra.mxu0 %v692
  %1038 = vmatprep.subr.bf16.mxu0 0
  %1039 = vmatpush1.bf16.msra.mxu0 %v689
  %1040 = vmatprep.subr.bf16.mxu0 0
  %1041 = vmatpush1.bf16.msra.mxu0 %v686
  %1042 = vmatprep.subr.bf16.mxu0 0
  %1043 = vmatpush1.bf16.msra.mxu0 %v683
  %1044 = vmatprep.subr.bf16.mxu0 0
  %1045 = vmatpush1.bf16.msra.mxu0 %v680
  %1046 = vmatprep.subr.bf16.mxu0 0
  %1047 = vmatpush1.bf16.msra.mxu0 %v677
  %1048 = vmatprep.subr.bf16.mxu0 0
  %1049 = vmatpush1.bf16.msra.mxu0 %v674
  %1050 = vmatprep.subr.bf16.mxu0 0
  %1051 = vmatpush2.bf16.msra.mxu0 %v719
  %1052 = vmatprep.subr.bf16.mxu0 0
  %1053 = vmatpush2.bf16.msra.mxu0 %v716
  %1054 = vmatprep.subr.bf16.mxu0 0
  %1055 = vmatpush2.bf16.msra.mxu0 %v713
  %1056 = vmatprep.subr.bf16.mxu0 0
  %1057 = vmatpush2.bf16.msra.mxu0 %v710
  %1058 = vmatprep.subr.bf16.mxu0 0
  %1059 = vmatpush2.bf16.msra.mxu0 %v707
  %1060 = vmatprep.subr.bf16.mxu0 0
  %1061 = vmatpush2.bf16.msra.mxu0 %v704
  %1062 = vmatprep.subr.bf16.mxu0 0
  %1063 = vmatpush2.bf16.msra.mxu0 %v701
  %1064 = vmatprep.subr.bf16.mxu0 0
  %1065 = vmatpush2.bf16.msra.mxu0 %v698
  %1066 = vmatprep.mubr.bf16.mxu0 %v217
  %1067 = vmatmul.mubr.bf16.gmra.mxu0 %v216
  %v1068 = vpop.f32.mrf.mxu0
  %v1069 = vadd.f32 %v1028, %v1068
  %v1070 = vpop.f32.mrf.mxu0
  %v1071 = vpop.f32.mrf.mxu0
  %v1072 = vadd.f32 %v1031, %v1071
  %v1073 = vpop.f32.mrf.mxu0
  %1074 = vdwg.mxu0
  %1075 = vmatprep.subr.bf16.mxu0 0
  %1076 = vmatpush1.bf16.msra.mxu0 %v743
  %1077 = vmatprep.subr.bf16.mxu0 0
  %1078 = vmatpush1.bf16.msra.mxu0 %v740
  %1079 = vmatprep.subr.bf16.mxu0 0
  %1080 = vmatpush1.bf16.msra.mxu0 %v737
  %1081 = vmatprep.subr.bf16.mxu0 0
  %1082 = vmatpush1.bf16.msra.mxu0 %v734
  %1083 = vmatprep.subr.bf16.mxu0 0
  %1084 = vmatpush1.bf16.msra.mxu0 %v731
  %1085 = vmatprep.subr.bf16.mxu0 0
  %1086 = vmatpush1.bf16.msra.mxu0 %v728
  %1087 = vmatprep.subr.bf16.mxu0 0
  %1088 = vmatpush1.bf16.msra.mxu0 %v725
  %1089 = vmatprep.subr.bf16.mxu0 0
  %1090 = vmatpush1.bf16.msra.mxu0 %v722
  %1091 = vmatprep.subr.bf16.mxu0 0
  %1092 = vmatpush2.bf16.msra.mxu0 0
  %1093 = vmatprep.subr.bf16.mxu0 0
  %1094 = vmatpush2.bf16.msra.mxu0 0
  %1095 = vmatprep.subr.bf16.mxu0 0
  %1096 = vmatpush2.bf16.msra.mxu0 0
  %1097 = vmatprep.subr.bf16.mxu0 0
  %1098 = vmatpush2.bf16.msra.mxu0 0
  %1099 = vmatprep.subr.bf16.mxu0 0
  %1100 = vmatpush2.bf16.msra.mxu0 0
  %1101 = vmatprep.subr.bf16.mxu0 0
  %1102 = vmatpush2.bf16.msra.mxu0 0
  %1103 = vmatprep.subr.bf16.mxu0 0
  %1104 = vmatpush2.bf16.msra.mxu0 0
  %1105 = vmatprep.subr.bf16.mxu0 0
  %1106 = vmatpush2.bf16.msra.mxu0 0
  %1107 = vmatprep.mubr.bf16.mxu0 0
  %1108 = vmatmul.mubr.bf16.gmra.mxu0 %v218
  %v1109 = vpop.f32.mrf.mxu0
  %v1110 = vadd.f32 %v1069, %v1109
  %v1111 = vpop.f32.mrf.mxu0
  %v1112 = vpop.f32.mrf.mxu0
  %v1113 = vadd.f32 %v1072, %v1112
  %v1114 = vpop.f32.mrf.mxu0
  %1115 = vdwg.mxu0
  %1116 = vst [vmem:[%s3] sm:$0xff] %v985
  %1117 = vst [vmem:[%s3 + $0x8] sm:$0xff] %v987
  %1118 = vst [vmem:[%s3 + $0x10] sm:$0xff] %v1110
  %1119 = vst [vmem:[%s3 + $0x18] sm:$0xff] %v989
  %1120 = vst [vmem:[%s3 + $0x20] sm:$0xff] %v991
  %1121 = vst [vmem:[%s3 + $0x28] sm:$0xff] %v1113
  // Predicated region
  $region14: #{encoder_forward.14} parent=0 // pred_check
    _
  $region15: #{encoder_forward.14} parent=0 // pred_check_branch
    %1123 = sbr.rel (0) target = $region17
  $region16: #{encoder_forward.14} parent=0 // pred_region
    _
  $region17: #{encoder_forward.14} parent=0 // pred_fallthru
    _
  // Predicated region
  $region18: #{encoder_forward.14} parent=0 // pred_check
    _
  $region19: #{encoder_forward.14} parent=0 // pred_check_branch
    %1125 = sbr.rel (0) target = $region21
  $region20: #{encoder_forward.14} parent=0 // pred_region
    _
  $region21: #{encoder_forward.14} parent=0 // pred_fallthru
    _

// kernel: encoder_forward.15
$region0: #{encoder_forward.15}
  #allocation0 [shape = 'u32[]', space=smem, size = 0x4, offset = 0x4, fixed_abs, tag = 'smem constant byte address 0x4 - core index']
  #allocation1 [shape = 'u32[144,128]{1,0:T(1,128)}', space=vmem, size = 0x12000, scoped, tag = 'internal scratch']
  #allocation2 [shape = 'f32[8,1152]{1,0:T(8,128)}', space=vmem, size = 0x9000, scoped, tag = 'scratch operand']
  #allocation3 [shape = 'f32[8,384]{1,0:T(8,128)}', space=vmem, size = 0x3000, scoped, tag = 'scratch operand']
  %s0 = inlined_call_operand.vmem [shape: f32[2,8,384], index: 0, kind: input, shape index: {}]
  %s1 = inlined_call_operand.vmem [shape: f32[1,384], index: 1, kind: input, shape index: {}]
  %s2 = inlined_call_operand.vmem [shape: f32[1,384], index: 2, kind: input, shape index: {}]
  %s3 = inlined_call_operand.vmem [shape: bf16[384,1152], index: 3, kind: input, shape index: {}]
  %s4 = inlined_call_operand.vmem [shape: f32[1,1152], index: 4, kind: input, shape index: {}]
  %s5 = inlined_call_operand.vmem [shape: bf16[384,384], index: 5, kind: input, shape index: {}]
  %s6 = inlined_call_operand.vmem [shape: f32[1,384], index: 6, kind: input, shape index: {}]
  %s7 = inlined_call_operand.vmem [shape: f32[1,384], index: 7, kind: input, shape index: {}]
  %s8 = inlined_call_operand.vmem [shape: f32[1,384], index: 8, kind: input, shape index: {}]
  %s9 = inlined_call_operand.vmem [shape: f32[1,384], index: 9, kind: input, shape index: {}]
  %s10 = inlined_call_operand.vmem [shape: bf16[384,1536], index: 10, kind: input, shape index: {}]
  %s11 = inlined_call_operand.vmem [shape: f32[1,1536], index: 11, kind: input, shape index: {}]
  %s12 = inlined_call_operand.vmem [shape: bf16[1536,384], index: 12, kind: input, shape index: {}]
  %s13 = inlined_call_operand.vmem [shape: f32[1,384], index: 13, kind: input, shape index: {}]
  %s14 = inlined_call_operand.vmem [shape: f32[1,384], index: 14, kind: input, shape index: {}]
  %s15 = inlined_call_operand.vmem [shape: f32[2,8,384], index: 15, kind: output, shape index: {}]
  %s16 = sld [smem:[#allocation0]]
  $region93: #{encoder_forward.15} parent=0
    _
  %s18 = ssub.s32 1, %s16
  %s19 = scalar_select 0, %s18, %s16
  loop: start=0, step=1, limit=4
  $region2: #{encoder_forward.15} parent=0 // loop_pre_header
    _
  $region3: #{encoder_forward.15} parent=0 // loop_header
    %s21 = sphi 0, %s25
    %p22 = scmp.ge.s32.totalorder %s21, 4
    %s31 = sphi 0, %s33
    %s34 = sphi 0, %s31
    %s35 = sphi 0, %s34
    %s51 = sphi 0, %s35
    %s55 = sphi 0, %s55
    %s57 = sphi 0, %s55
    %s58 = sphi 0, %s57
    %s72 = sphi 0, %s58
    %s76 = sphi 0, %s76
    %s78 = sphi 0, %s76
    %s79 = sphi 0, %s78
    %s93 = sphi 0, %s79
    %s97 = sphi 0, %s97
    %s99 = sphi 0, %s97
    %s100 = sphi 0, %s99
    %s114 = sphi 0, %s100
    %s118 = sphi 0, %s118
    %s120 = sphi 0, %s118
    %s121 = sphi 0, %s120
    %s135 = sphi 0, %s121
    %s139 = sphi 0, %s139
    %s141 = sphi 0, %s139
    %s142 = sphi 0, %s141
    %s156 = sphi 0, %s142
    %s160 = sphi 0, %s160
    %s162 = sphi 0, %s160
    %s163 = sphi 0, %s162
    %s177 = sphi 0, %s163
    %s181 = sphi 0, %s181
    %s183 = sphi 0, %s181
    %s184 = sphi 0, %s183
    %s198 = sphi 0, %s184
    %s202 = sphi 0, %s202
    %s204 = sphi 0, %s202
    %s205 = sphi 0, %s204
    %s219 = sphi 0, %s205
    %s223 = sphi 0, %s223
    %s225 = sphi 0, %s223
    %s226 = sphi 0, %s225
    %s240 = sphi 0, %s226
    %s244 = sphi 0, %s244
    %s246 = sphi 0, %s244
    %s247 = sphi 0, %s246
    %s261 = sphi 0, %s247
    %s265 = sphi 0, %s265
    %s267 = sphi 0, %s265
    %s268 = sphi 0, %s267
    %s282 = sphi 0, %s268
    %s286 = sphi 0, %s286
    %s288 = sphi 0, %s286
    %s289 = sphi 0, %s288
    %s303 = sphi 0, %s289
    %s307 = sphi 0, %s307
    %s309 = sphi 0, %s307
    %s310 = sphi 0, %s309
    %s324 = sphi 0, %s310
    %s328 = sphi 0, %s328
    %s330 = sphi 0, %s328
    %s331 = sphi 0, %s330
    %s345 = sphi 0, %s331
    %s351 = sphi 0, %s353
    %s354 = sphi 0, %s351
    %s355 = sphi 0, %s354
    %s371 = sphi 0, %s355
  $region4: #{encoder_forward.15} parent=0 // loop_header_branch
    %24 = sbr.rel (%p22) target = $region8
  $region5: #{encoder_forward.15} parent=0 // loop_body
    %s26 = ssub.s32 %s21, 1
    %s27 = ssub.s32 %s21, 2
    %s28 = sadd.s32 %s21, 1
    %s29 = ssub.s32 %s21, %s28
    %p30 = scmp.eq.s32.totalorder %s29, 0
    %s32 = sadd.s32 %s31, 1
    %s33 = scalar_select %p30, %s31, %s32
    %p36 = pneg %p30
    %p37 = scmp.eq.s32.totalorder %s21, 1
    %p38 = por %p36, %p37
    %p39 = scmp.ne.s32.totalorder %s31, %s34
    %p40 = scmp.eq.s32.totalorder %s21, 0
    %p41 = por %p39, %p40
    %p42 = scmp.ne.s32.totalorder %s31, %s34
    %p43 = scmp.eq.s32.totalorder %s26, 1
    %p44 = por %p42, %p43
    %p45 = scmp.ne.s32.totalorder %s34, %s35
    %p46 = scmp.eq.s32.totalorder %s26, 0
    %p47 = por %p45, %p46
    %p48 = scmp.ne.s32.totalorder %s34, %s35
    %p49 = scmp.eq.s32.totalorder %s27, 1
    %p50 = por %p48, %p49
    %p52 = scmp.ne.s32.totalorder %s35, %s51
    %p53 = scmp.eq.s32.totalorder %s27, 0
    %p54 = por %p52, %p53
    %s56 = sadd.s32 %s55, 1
    %p59 = scmp.eq.s32.totalorder %s21, 1
    %p60 = scmp.ne.s32.totalorder %s55, %s57
    %p61 = scmp.eq.s32.totalorder %s21, 0
    %p62 = por %p60, %p61
    %p63 = scmp.ne.s32.totalorder %s55, %s57
    %p64 = scmp.eq.s32.totalorder %s26, 1
    %p65 = por %p63, %p64
    %p66 = scmp.ne.s32.totalorder %s57, %s58
    %p67 = scmp.eq.s32.totalorder %s26, 0
    %p68 = por %p66, %p67
    %p69 = scmp.ne.s32.totalorder %s57, %s58
    %p70 = scmp.eq.s32.totalorder %s27, 1
    %p71 = por %p69, %p70
    %p73 = scmp.ne.s32.totalorder %s58, %s72
    %p74 = scmp.eq.s32.totalorder %s27, 0
    %p75 = por %p73, %p74
    %s77 = sadd.s32 %s76, 1
    %p80 = scmp.eq.s32.totalorder %s21, 1
    %p81 = scmp.ne.s32.totalorder %s76, %s78
    %p82 = scmp.eq.s32.totalorder %s21, 0
    %p83 = por %p81, %p82
    %p84 = scmp.ne.s32.totalorder %s76, %s78
    %p85 = scmp.eq.s32.totalorder %s26, 1
    %p86 = por %p84, %p85
    %p87 = scmp.ne.s32.totalorder %s78, %s79
    %p88 = scmp.eq.s32.totalorder %s26, 0
    %p89 = por %p87, %p88
    %p90 = scmp.ne.s32.totalorder %s78, %s79
    %p91 = scmp.eq.s32.totalorder %s27, 1
    %p92 = por %p90, %p91
    %p94 = scmp.ne.s32.totalorder %s79, %s93
    %p95 = scmp.eq.s32.totalorder %s27, 0
    %p96 = por %p94, %p95
    %s98 = sadd.s32 %s97, 1
    %p101 = scmp.eq.s32.totalorder %s21, 1
    %p102 = scmp.ne.s32.totalorder %s97, %s99
    %p103 = scmp.eq.s32.totalorder %s21, 0
    %p104 = por %p102, %p103
    %p105 = scmp.ne.s32.totalorder %s97, %s99
    %p106 = scmp.eq.s32.totalorder %s26, 1
    %p107 = por %p105, %p106
    %p108 = scmp.ne.s32.totalorder %s99, %s100
    %p109 = scmp.eq.s32.totalorder %s26, 0
    %p110 = por %p108, %p109
    %p111 = scmp.ne.s32.totalorder %s99, %s100
    %p112 = scmp.eq.s32.totalorder %s27, 1
    %p113 = por %p111, %p112
    %p115 = scmp.ne.s32.totalorder %s100, %s114
    %p116 = scmp.eq.s32.totalorder %s27, 0
    %p117 = por %p115, %p116
    %s119 = sadd.s32 %s118, 1
    %p122 = scmp.eq.s32.totalorder %s21, 1
    %p123 = scmp.ne.s32.totalorder %s118, %s120
    %p124 = scmp.eq.s32.totalorder %s21, 0
    %p125 = por %p123, %p124
    %p126 = scmp.ne.s32.totalorder %s118, %s120
    %p127 = scmp.eq.s32.totalorder %s26, 1
    %p128 = por %p126, %p127
    %p129 = scmp.ne.s32.totalorder %s120, %s121
    %p130 = scmp.eq.s32.totalorder %s26, 0
    %p131 = por %p129, %p130
    %p132 = scmp.ne.s32.totalorder %s120, %s121
    %p133 = scmp.eq.s32.totalorder %s27, 1
    %p134 = por %p132, %p133
    %p136 = scmp.ne.s32.totalorder %s121, %s135
    %p137 = scmp.eq.s32.totalorder %s27, 0
    %p138 = por %p136, %p137
    %s140 = sadd.s32 %s139, 1
    %p143 = scmp.eq.s32.totalorder %s21, 1
    %p144 = scmp.ne.s32.totalorder %s139, %s141
    %p145 = scmp.eq.s32.totalorder %s21, 0
    %p146 = por %p144, %p145
    %p147 = scmp.ne.s32.totalorder %s139, %s141
    %p148 = scmp.eq.s32.totalorder %s26, 1
    %p149 = por %p147, %p148
    %p150 = scmp.ne.s32.totalorder %s141, %s142
    %p151 = scmp.eq.s32.totalorder %s26, 0
    %p152 = por %p150, %p151
    %p153 = scmp.ne.s32.totalorder %s141, %s142
    %p154 = scmp.eq.s32.totalorder %s27, 1
    %p155 = por %p153, %p154
    %p157 = scmp.ne.s32.totalorder %s142, %s156
    %p158 = scmp.eq.s32.totalorder %s27, 0
    %p159 = por %p157, %p158
    %s161 = sadd.s32 %s160, 1
    %p164 = scmp.eq.s32.totalorder %s21, 1
    %p165 = scmp.ne.s32.totalorder %s160, %s162
    %p166 = scmp.eq.s32.totalorder %s21, 0
    %p167 = por %p165, %p166
    %p168 = scmp.ne.s32.totalorder %s160, %s162
    %p169 = scmp.eq.s32.totalorder %s26, 1
    %p170 = por %p168, %p169
    %p171 = scmp.ne.s32.totalorder %s162, %s163
    %p172 = scmp.eq.s32.totalorder %s26, 0
    %p173 = por %p171, %p172
    %p174 = scmp.ne.s32.totalorder %s162, %s163
    %p175 = scmp.eq.s32.totalorder %s27, 1
    %p176 = por %p174, %p175
    %p178 = scmp.ne.s32.totalorder %s163, %s177
    %p179 = scmp.eq.s32.totalorder %s27, 0
    %p180 = por %p178, %p179
    %s182 = sadd.s32 %s181, 1
    %p185 = scmp.eq.s32.totalorder %s21, 1
    %p186 = scmp.ne.s32.totalorder %s181, %s183
    %p187 = scmp.eq.s32.totalorder %s21, 0
    %p188 = por %p186, %p187
    %p189 = scmp.ne.s32.totalorder %s181, %s183
    %p190 = scmp.eq.s32.totalorder %s26, 1
    %p191 = por %p189, %p190
    %p192 = scmp.ne.s32.totalorder %s183, %s184
    %p193 = scmp.eq.s32.totalorder %s26, 0
    %p194 = por %p192, %p193
    %p195 = scmp.ne.s32.totalorder %s183, %s184
    %p196 = scmp.eq.s32.totalorder %s27, 1
    %p197 = por %p195, %p196
    %p199 = scmp.ne.s32.totalorder %s184, %s198
    %p200 = scmp.eq.s32.totalorder %s27, 0
    %p201 = por %p199, %p200
    %s203 = sadd.s32 %s202, 1
    %p206 = scmp.eq.s32.totalorder %s21, 1
    %p207 = scmp.ne.s32.totalorder %s202, %s204
    %p208 = scmp.eq.s32.totalorder %s21, 0
    %p209 = por %p207, %p208
    %p210 = scmp.ne.s32.totalorder %s202, %s204
    %p211 = scmp.eq.s32.totalorder %s26, 1
    %p212 = por %p210, %p211
    %p213 = scmp.ne.s32.totalorder %s204, %s205
    %p214 = scmp.eq.s32.totalorder %s26, 0
    %p215 = por %p213, %p214
    %p216 = scmp.ne.s32.totalorder %s204, %s205
    %p217 = scmp.eq.s32.totalorder %s27, 1
    %p218 = por %p216, %p217
    %p220 = scmp.ne.s32.totalorder %s205, %s219
    %p221 = scmp.eq.s32.totalorder %s27, 0
    %p222 = por %p220, %p221
    %s224 = sadd.s32 %s223, 1
    %p227 = scmp.eq.s32.totalorder %s21, 1
    %p228 = scmp.ne.s32.totalorder %s223, %s225
    %p229 = scmp.eq.s32.totalorder %s21, 0
    %p230 = por %p228, %p229
    %p231 = scmp.ne.s32.totalorder %s223, %s225
    %p232 = scmp.eq.s32.totalorder %s26, 1
    %p233 = por %p231, %p232
    %p234 = scmp.ne.s32.totalorder %s225, %s226
    %p235 = scmp.eq.s32.totalorder %s26, 0
    %p236 = por %p234, %p235
    %p237 = scmp.ne.s32.totalorder %s225, %s226
    %p238 = scmp.eq.s32.totalorder %s27, 1
    %p239 = por %p237, %p238
    %p241 = scmp.ne.s32.totalorder %s226, %s240
    %p242 = scmp.eq.s32.totalorder %s27, 0
    %p243 = por %p241, %p242
    %s245 = sadd.s32 %s244, 1
    %p248 = scmp.eq.s32.totalorder %s21, 1
    %p249 = scmp.ne.s32.totalorder %s244, %s246
    %p250 = scmp.eq.s32.totalorder %s21, 0
    %p251 = por %p249, %p250
    %p252 = scmp.ne.s32.totalorder %s244, %s246
    %p253 = scmp.eq.s32.totalorder %s26, 1
    %p254 = por %p252, %p253
    %p255 = scmp.ne.s32.totalorder %s246, %s247
    %p256 = scmp.eq.s32.totalorder %s26, 0
    %p257 = por %p255, %p256
    %p258 = scmp.ne.s32.totalorder %s246, %s247
    %p259 = scmp.eq.s32.totalorder %s27, 1
    %p260 = por %p258, %p259
    %p262 = scmp.ne.s32.totalorder %s247, %s261
    %p263 = scmp.eq.s32.totalorder %s27, 0
    %p264 = por %p262, %p263
    %s266 = sadd.s32 %s265, 1
    %p269 = scmp.eq.s32.totalorder %s21, 1
    %p270 = scmp.ne.s32.totalorder %s265, %s267
    %p271 = scmp.eq.s32.totalorder %s21, 0
    %p272 = por %p270, %p271
    %p273 = scmp.ne.s32.totalorder %s265, %s267
    %p274 = scmp.eq.s32.totalorder %s26, 1
    %p275 = por %p273, %p274
    %p276 = scmp.ne.s32.totalorder %s267, %s268
    %p277 = scmp.eq.s32.totalorder %s26, 0
    %p278 = por %p276, %p277
    %p279 = scmp.ne.s32.totalorder %s267, %s268
    %p280 = scmp.eq.s32.totalorder %s27, 1
    %p281 = por %p279, %p280
    %p283 = scmp.ne.s32.totalorder %s268, %s282
    %p284 = scmp.eq.s32.totalorder %s27, 0
    %p285 = por %p283, %p284
    %s287 = sadd.s32 %s286, 1
    %p290 = scmp.eq.s32.totalorder %s21, 1
    %p291 = scmp.ne.s32.totalorder %s286, %s288
    %p292 = scmp.eq.s32.totalorder %s21, 0
    %p293 = por %p291, %p292
    %p294 = scmp.ne.s32.totalorder %s286, %s288
    %p295 = scmp.eq.s32.totalorder %s26, 1
    %p296 = por %p294, %p295
    %p297 = scmp.ne.s32.totalorder %s288, %s289
    %p298 = scmp.eq.s32.totalorder %s26, 0
    %p299 = por %p297, %p298
    %p300 = scmp.ne.s32.totalorder %s288, %s289
    %p301 = scmp.eq.s32.totalorder %s27, 1
    %p302 = por %p300, %p301
    %p304 = scmp.ne.s32.totalorder %s289, %s303
    %p305 = scmp.eq.s32.totalorder %s27, 0
    %p306 = por %p304, %p305
    %s308 = sadd.s32 %s307, 1
    %p311 = scmp.eq.s32.totalorder %s21, 1
    %p312 = scmp.ne.s32.totalorder %s307, %s309
    %p313 = scmp.eq.s32.totalorder %s21, 0
    %p314 = por %p312, %p313
    %p315 = scmp.ne.s32.totalorder %s307, %s309
    %p316 = scmp.eq.s32.totalorder %s26, 1
    %p317 = por %p315, %p316
    %p318 = scmp.ne.s32.totalorder %s309, %s310
    %p319 = scmp.eq.s32.totalorder %s26, 0
    %p320 = por %p318, %p319
    %p321 = scmp.ne.s32.totalorder %s309, %s310
    %p322 = scmp.eq.s32.totalorder %s27, 1
    %p323 = por %p321, %p322
    %p325 = scmp.ne.s32.totalorder %s310, %s324
    %p326 = scmp.eq.s32.totalorder %s27, 0
    %p327 = por %p325, %p326
    %s329 = sadd.s32 %s328, 1
    %p332 = scmp.eq.s32.totalorder %s21, 1
    %p333 = scmp.ne.s32.totalorder %s328, %s330
    %p334 = scmp.eq.s32.totalorder %s21, 0
    %p335 = por %p333, %p334
    %p336 = scmp.ne.s32.totalorder %s328, %s330
    %p337 = scmp.eq.s32.totalorder %s26, 1
    %p338 = por %p336, %p337
    %p339 = scmp.ne.s32.totalorder %s330, %s331
    %p340 = scmp.eq.s32.totalorder %s26, 0
    %p341 = por %p339, %p340
    %p342 = scmp.ne.s32.totalorder %s330, %s331
    %p343 = scmp.eq.s32.totalorder %s27, 1
    %p344 = por %p342, %p343
    %p346 = scmp.ne.s32.totalorder %s331, %s345
    %p347 = scmp.eq.s32.totalorder %s27, 0
    %p348 = por %p346, %p347
    %s349 = ssub.s32 %s21, %s28
    %p350 = scmp.eq.s32.totalorder %s349, 0
    %s352 = sadd.s32 %s351, 1
    %s353 = scalar_select %p350, %s351, %s352
    %p356 = pneg %p350
    %p357 = scmp.eq.s32.totalorder %s21, 1
    %p358 = por %p356, %p357
    %p359 = scmp.ne.s32.totalorder %s351, %s354
    %p360 = scmp.eq.s32.totalorder %s21, 0
    %p361 = por %p359, %p360
    %p362 = scmp.ne.s32.totalorder %s351, %s354
    %p363 = scmp.eq.s32.totalorder %s26, 1
    %p364 = por %p362, %p363
    %p365 = scmp.ne.s32.totalorder %s354, %s355
    %p366 = scmp.eq.s32.totalorder %s26, 0
    %p367 = por %p365, %p366
    %p368 = scmp.ne.s32.totalorder %s354, %s355
    %p369 = scmp.eq.s32.totalorder %s27, 1
    %p370 = por %p368, %p369
    %p372 = scmp.ne.s32.totalorder %s355, %s371
    %p373 = scmp.eq.s32.totalorder %s27, 0
    %p374 = por %p372, %p373
    %p375 = scmp.le.s32.totalorder 1, %s21
    %p376 = scmp.lt.s32.totalorder %s21, 3
    %p377 = pnand %p375, %p376
    %p378 = pneg %p377
    // Predicated region
    $region9: #{encoder_forward.15} parent=5 // pred_check
      _
    $region10: #{encoder_forward.15} parent=5 // pred_check_branch
      %380 = sbr.rel (%p377) target = $region12
    $region11: #{encoder_forward.15} parent=5 // pred_region
      %s381 = ssub.s32 %s21, 1
      // Predicated region
      $region13: #{encoder_forward.15} parent=11 // pred_check
        %p382 = pneg %p68
      $region14: #{encoder_forward.15} parent=11 // pred_check_branch
        %384 = sbr.rel (%p382) target = $region16
      $region15: #{encoder_forward.15} parent=11 // pred_region
        _
      $region16: #{encoder_forward.15} parent=11 // pred_fallthru
        _
      // Predicated region
      $region17: #{encoder_forward.15} parent=11 // pred_check
        %p385 = pneg %p89
      $region18: #{encoder_forward.15} parent=11 // pred_check_branch
        %387 = sbr.rel (%p385) target = $region20
      $region19: #{encoder_forward.15} parent=11 // pred_region
        _
      $region20: #{encoder_forward.15} parent=11 // pred_fallthru
        _
      // Predicated region
      $region21: #{encoder_forward.15} parent=11 // pred_check
        %p388 = pneg %p110
      $region22: #{encoder_forward.15} parent=11 // pred_check_branch
        %390 = sbr.rel (%p388) target = $region24
      $region23: #{encoder_forward.15} parent=11 // pred_region
        _
      $region24: #{encoder_forward.15} parent=11 // pred_fallthru
        _
      // Predicated region
      $region25: #{encoder_forward.15} parent=11 // pred_check
        %p391 = pneg %p131
      $region26: #{encoder_forward.15} parent=11 // pred_check_branch
        %393 = sbr.rel (%p391) target = $region28
      $region27: #{encoder_forward.15} parent=11 // pred_region
        _
      $region28: #{encoder_forward.15} parent=11 // pred_fallthru
        _
      // Predicated region
      $region29: #{encoder_forward.15} parent=11 // pred_check
        %p394 = pneg %p152
      $region30: #{encoder_forward.15} parent=11 // pred_check_branch
        %396 = sbr.rel (%p394) target = $region32
      $region31: #{encoder_forward.15} parent=11 // pred_region
        _
      $region32: #{encoder_forward.15} parent=11 // pred_fallthru
        _
      // Predicated region
      $region33: #{encoder_forward.15} parent=11 // pred_check
        %p397 = pneg %p173
      $region34: #{encoder_forward.15} parent=11 // pred_check_branch
        %399 = sbr.rel (%p397) target = $region36
      $region35: #{encoder_forward.15} parent=11 // pred_region
        _
      $region36: #{encoder_forward.15} parent=11 // pred_fallthru
        _
      // Predicated region
      $region37: #{encoder_forward.15} parent=11 // pred_check
        %p400 = pneg %p194
      $region38: #{encoder_forward.15} parent=11 // pred_check_branch
        %402 = sbr.rel (%p400) target = $region40
      $region39: #{encoder_forward.15} parent=11 // pred_region
        _
      $region40: #{encoder_forward.15} parent=11 // pred_fallthru
        _
      // Predicated region
      $region41: #{encoder_forward.15} parent=11 // pred_check
        %p403 = pneg %p215
      $region42: #{encoder_forward.15} parent=11 // pred_check_branch
        %405 = sbr.rel (%p403) target = $region44
      $region43: #{encoder_forward.15} parent=11 // pred_region
        _
      $region44: #{encoder_forward.15} parent=11 // pred_fallthru
        _
      // Predicated region
      $region45: #{encoder_forward.15} parent=11 // pred_check
        %p406 = pneg %p236
      $region46: #{encoder_forward.15} parent=11 // pred_check_branch
        %408 = sbr.rel (%p406) target = $region48
      $region47: #{encoder_forward.15} parent=11 // pred_region
        _
      $region48: #{encoder_forward.15} parent=11 // pred_fallthru
        _
      // Predicated region
      $region49: #{encoder_forward.15} parent=11 // pred_check
        %p409 = pneg %p257
      $region50: #{encoder_forward.15} parent=11 // pred_check_branch
        %411 = sbr.rel (%p409) target = $region52
      $region51: #{encoder_forward.15} parent=11 // pred_region
        _
      $region52: #{encoder_forward.15} parent=11 // pred_fallthru
        _
      // Predicated region
      $region53: #{encoder_forward.15} parent=11 // pred_check
        %p412 = pneg %p278
      $region54: #{encoder_forward.15} parent=11 // pred_check_branch
        %414 = sbr.rel (%p412) target = $region56
      $region55: #{encoder_forward.15} parent=11 // pred_region
        _
      $region56: #{encoder_forward.15} parent=11 // pred_fallthru
        _
      // Predicated region
      $region57: #{encoder_forward.15} parent=11 // pred_check
        %p415 = pneg %p299
      $region58: #{encoder_forward.15} parent=11 // pred_check_branch
        %417 = sbr.rel (%p415) target = $region60
      $region59: #{encoder_forward.15} parent=11 // pred_region
        _
      $region60: #{encoder_forward.15} parent=11 // pred_fallthru
        _
      // Predicated region
      $region61: #{encoder_forward.15} parent=11 // pred_check
        %p418 = pneg %p320
      $region62: #{encoder_forward.15} parent=11 // pred_check_branch
        %420 = sbr.rel (%p418) target = $region64
      $region63: #{encoder_forward.15} parent=11 // pred_region
        _
      $region64: #{encoder_forward.15} parent=11 // pred_fallthru
        _
      // Predicated region
      $region65: #{encoder_forward.15} parent=11 // pred_check
        %p421 = pneg %p341
      $region66: #{encoder_forward.15} parent=11 // pred_check_branch
        %423 = sbr.rel (%p421) target = $region68
      $region67: #{encoder_forward.15} parent=11 // pred_region
        _
      $region68: #{encoder_forward.15} parent=11 // pred_fallthru
        _
    $region12: #{encoder_forward.15} parent=5 // pred_fallthru
      _
    %p424 = scmp.lt.s32.totalorder %s21, 2
    // Predicated region
    $region69: #{encoder_forward.15} parent=5 // pred_check
      %p425 = pneg %p424
    $region70: #{encoder_forward.15} parent=5 // pred_check_branch
      %427 = sbr.rel (%p425) target = $region72
    $region71: #{encoder_forward.15} parent=5 // pred_region
      // Predicated region
      $region73: #{encoder_forward.15} parent=71 // pred_check
        %p428 = pneg %p41
      $region74: #{encoder_forward.15} parent=71 // pred_check_branch
        %430 = sbr.rel (%p428) target = $region76
      $region75: #{encoder_forward.15} parent=71 // pred_region
        %p431 = scmp.lt.s32.totalorder %s21, 1
        %s432 = scalar_select %p431, %s21, 1
        %s433 = smul.addr %s432, 3
        %s434 = smul.addr %s433, 8
        %s435 = scalar_lea.vmem %s0, %s434
      $region76: #{encoder_forward.15} parent=71 // pred_fallthru
        _
    $region72: #{encoder_forward.15} parent=5 // pred_fallthru
      _
    %p436 = scmp.le.s32.totalorder 1, %s21
    %p437 = scmp.lt.s32.totalorder %s21, 3
    %p438 = pnand %p436, %p437
    %p439 = pneg %p438
    // Predicated region
    $region77: #{encoder_forward.15} parent=5 // pred_check
      _
    $region78: #{encoder_forward.15} parent=5 // pred_check_branch
      %441 = sbr.rel (%p438) target = $region80
    $region79: #{encoder_forward.15} parent=5 // pred_region
      %s442 = ssub.s32 %s21, 1
      %p443 = scmp.lt.s32.totalorder %s26, 1
      %s444 = scalar_select %p443, %s26, 1
      %s445 = smul.addr %s444, 3
      %s446 = smul.addr %s445, 8
      %s447 = scalar_lea.vmem %s0, %s446
      %p448 = pneg %p47
      %p449 = pneg %p44
      %p450 = pneg %p68
      %p451 = pneg %p65
      %p452 = pneg %p89
      %p453 = pneg %p86
      %p454 = pneg %p110
      %p455 = pneg %p107
      %p456 = pneg %p131
      %p457 = pneg %p128
      %p458 = pneg %p152
      %p459 = pneg %p149
      %p460 = pneg %p173
      %p461 = pneg %p170
      %p462 = pneg %p194
      %p463 = pneg %p191
      %p464 = pneg %p215
      %p465 = pneg %p212
      %p466 = pneg %p236
      %p467 = pneg %p233
      %p468 = pneg %p257
      %p469 = pneg %p254
      %p470 = pneg %p278
      %p471 = pneg %p275
      %p472 = pneg %p299
      %p473 = pneg %p296
      %p474 = pneg %p320
      %p475 = pneg %p317
      %p476 = pneg %p341
      %p477 = pneg %p338
      %p478 = pneg %p367
      %p479 = pneg %p364
      %p480 = scmp.lt.s32.totalorder %s26, 1
      %s481 = scalar_select %p480, %s26, 1
      %s482 = smul.addr %s481, 3
      %s483 = smul.addr %s482, 8
      %s484 = scalar_lea.vmem %s15, %s483
      %p485 = scmp.lt.s32.totalorder %s26, 1
      %s486 = scalar_select %p485, %s26, 1
      %s487 = smul.addr %s486, 3
      %s488 = smul.addr %s487, 8
      %s489 = scalar_lea.vmem %s0, %s488
      %p490 = scmp.lt.s32.totalorder %s26, 1
      %s491 = scalar_select %p490, %s26, 1
      %s492 = smul.addr %s491, 3
      %s493 = smul.addr %s492, 8
      %s494 = scalar_lea.vmem %s15, %s493
      %v496 = vld [vmem:[%s489] sm:$0xff]
      %v497 = vld [vmem:[%s489 + $0x8] sm:$0xff]
      %v498 = vld [vmem:[%s489 + $0x10] sm:$0xff]
      %v499 = vld [vmem:[%s1] sm:$0x7]
      %v500 = vld [vmem:[%s2] sm:$0x7]
      %v501 = vadd.f32 %v496, %v497
      %v502 = vadd.f32 %v501, %v498
      %503 = vadd.xlane.f32.xlu0 %v502
      %v504 = vpop.xlane.xlu0 %503
      %v505 = vrcp.pop 384.0
      %v506 = vmul.f32 %v504, %v505
      %v507 = vsub.f32 %v496, %v506
      %v508 = vsub.f32 %v497, %v506
      %v509 = vsub.f32 %v498, %v506
      %v510 = vmul.f32 %v507, %v507
      %v511 = vmul.f32 %v508, %v508
      %v512 = vmul.f32 %v509, %v509
      %v513 = vadd.f32 %v510, %v511
      %v514 = vadd.f32 %v513, %v512
      %515 = vadd.xlane.f32.xlu0 %v514
      %v516 = vpop.xlane.xlu0 %515
      %v517 = vmul.f32 %v516, %v505
      %v518 = vadd.f32 %v517, 1e-06
      %v519 = vrsqrt.pop %v518
      %v520 = vmul.f32 %v507, %v519
      %v521 = vmul.f32 %v508, %v519
      %v522 = vmul.f32 %v509, %v519
      %v524 = vlaneseq
      %v525 = vshrl.u32 %v524, 7
      %v526 = vsub.s32 0, %v525
      %v527 = vrot.slane %v499, %v526
      %v528 = vlaneseq
      %v529 = vshrl.u32 %v528, 7
      %v530 = vsub.s32 1, %v529
      %v531 = vrot.slane %v499, %v530
      %v532 = vlaneseq
      %v533 = vshrl.u32 %v532, 7
      %v534 = vsub.s32 2, %v533
      %v535 = vrot.slane %v499, %v534
      %v539 = vmul.f32 %v520, %v527
      %v540 = vmul.f32 %v521, %v531
      %v541 = vmul.f32 %v522, %v535
      %v543 = vlaneseq
      %v544 = vshrl.u32 %v543, 7
      %v545 = vsub.s32 0, %v544
      %v546 = vrot.slane %v500, %v545
      %v547 = vlaneseq
      %v548 = vshrl.u32 %v547, 7
      %v549 = vsub.s32 1, %v548
      %v550 = vrot.slane %v500, %v549
      %v551 = vlaneseq
      %v552 = vshrl.u32 %v551, 7
      %v553 = vsub.s32 2, %v552
      %v554 = vrot.slane %v500, %v553
      %v558 = vadd.f32 %v539, %v546
      %v559 = vadd.f32 %v540, %v550
      %v560 = vadd.f32 %v541, %v554
      %v561 = vpack.c.bf16 %v558, %v558
      %v562 = vpack.c.bf16 %v559, %v559
      %v563 = vpack.c.bf16 %v560, %v560
      %v564 = vld [vmem:[%s3] sm:$0xff]
      %v565 = vld [vmem:[%s3 + $0x8] sm:$0xff]
      %v566 = vld [vmem:[%s3 + $0x10] sm:$0xff]
      %v567 = vld [vmem:[%s3 + $0x18] sm:$0xff]
      %v568 = vld [vmem:[%s3 + $0x20] sm:$0xf]
      %v569 = vld [vmem:[%s3 + $0x24] sm:$0xff]
      %v570 = vld [vmem:[%s3 + $0x2c] sm:$0xff]
      %v571 = vld [vmem:[%s3 + $0x34] sm:$0xff]
      %v572 = vld [vmem:[%s3 + $0x3c] sm:$0xff]
      %v573 = vld [vmem:[%s3 + $0x44] sm:$0xf]
      %v574 = vld [vmem:[%s3 + $0x48] sm:$0xff]
      %v575 = vld [vmem:[%s3 + $0x50] sm:$0xff]
      %v576 = vld [vmem:[%s3 + $0x58] sm:$0xff]
      %v577 = vld [vmem:[%s3 + $0x60] sm:$0xff]
      %v578 = vld [vmem:[%s3 + $0x68] sm:$0xf]
      %v579 = vld [vmem:[%s3 + $0x6c] sm:$0xff]
      %v580 = vld [vmem:[%s3 + $0x74] sm:$0xff]
      %v581 = vld [vmem:[%s3 + $0x7c] sm:$0xff]
      %v582 = vld [vmem:[%s3 + $0x84] sm:$0xff]
      %v583 = vld [vmem:[%s3 + $0x8c] sm:$0xf]
      %v584 = vld [vmem:[%s3 + $0x90] sm:$0xff]
      %v585 = vld [vmem:[%s3 + $0x98] sm:$0xff]
      %v586 = vld [vmem:[%s3 + $0xa0] sm:$0xff]
      %v587 = vld [vmem:[%s3 + $0xa8] sm:$0xff]
      %v588 = vld [vmem:[%s3 + $0xb0] sm:$0xf]
      %v589 = vld [vmem:[%s3 + $0xb4] sm:$0xff]
      %v590 = vld [vmem:[%s3 + $0xbc] sm:$0xff]
      %v591 = vld [vmem:[%s3 + $0xc4] sm:$0xff]
      %v592 = vld [vmem:[%s3 + $0xcc] sm:$0xff]
      %v593 = vld [vmem:[%s3 + $0xd4] sm:$0xf]
      %v594 = vld [vmem:[%s3 + $0xd8] sm:$0xff]
      %v595 = vld [vmem:[%s3 + $0xe0] sm:$0xff]
      %v596 = vld [vmem:[%s3 + $0xe8] sm:$0xff]
      %v597 = vld [vmem:[%s3 + $0xf0] sm:$0xff]
      %v598 = vld [vmem:[%s3 + $0xf8] sm:$0xf]
      %v599 = vld [vmem:[%s3 + $0xfc] sm:$0xff]
      %v600 = vld [vmem:[%s3 + $0x104] sm:$0xff]
      %v601 = vld [vmem:[%s3 + $0x10c] sm:$0xff]
      %v602 = vld [vmem:[%s3 + $0x114] sm:$0xff]
      %v603 = vld [vmem:[%s3 + $0x11c] sm:$0xf]
      %v604 = vld [vmem:[%s3 + $0x120] sm:$0xff]
      %v605 = vld [vmem:[%s3 + $0x128] sm:$0xff]
      %v606 = vld [vmem:[%s3 + $0x130] sm:$0xff]
      %v607 = vld [vmem:[%s3 + $0x138] sm:$0xff]
      %v608 = vld [vmem:[%s3 + $0x140] sm:$0xf]
      %v609 = vld [vmem:[%s3 + $0x144] sm:$0xff]
      %v610 = vld [vmem:[%s3 + $0x14c] sm:$0xff]
      %v611 = vld [vmem:[%s3 + $0x154] sm:$0xff]
      %v612 = vld [vmem:[%s3 + $0x15c] sm:$0xff]
      %v613 = vld [vmem:[%s3 + $0x164] sm:$0xf]
      %v614 = vld [vmem:[%s3 + $0x168] sm:$0xff]
      %v615 = vld [vmem:[%s3 + $0x170] sm:$0xff]
      %v616 = vld [vmem:[%s3 + $0x178] sm:$0xff]
      %v617 = vld [vmem:[%s3 + $0x180] sm:$0xff]
      %v618 = vld [vmem:[%s3 + $0x188] sm:$0xf]
      %v619 = vld [vmem:[%s3 + $0x18c] sm:$0xff]
      %v620 = vld [vmem:[%s3 + $0x194] sm:$0xff]
      %v621 = vld [vmem:[%s3 + $0x19c] sm:$0xff]
      %v622 = vld [vmem:[%s3 + $0x1a4] sm:$0xff]
      %v623 = vld [vmem:[%s3 + $0x1ac] sm:$0xf]
      %v624 = vld [vmem:[%s3 + $0x1b0] sm:$0xff]
      %v625 = vld [vmem:[%s3 + $0x1b8] sm:$0xff]
      %v626 = vld [vmem:[%s3 + $0x1c0] sm:$0xff]
      %v627 = vld [vmem:[%s3 + $0x1c8] sm:$0xff]
      %v628 = vld [vmem:[%s3 + $0x1d0] sm:$0xf]
      %v629 = vld [vmem:[%s3 + $0x1d4] sm:$0xff]
      %v630 = vld [vmem:[%s3 + $0x1dc] sm:$0xff]
      %v631 = vld [vmem:[%s3 + $0x1e4] sm:$0xff]
      %v632 = vld [vmem:[%s3 + $0x1ec] sm:$0xff]
      %v633 = vld [vmem:[%s3 + $0x1f4] sm:$0xf]
      %v634 = vld [vmem:[%s3 + $0x1f8] sm:$0xff]
      %v635 = vld [vmem:[%s3 + $0x200] sm:$0xff]
      %v636 = vld [vmem:[%s3 + $0x208] sm:$0xff]
      %v637 = vld [vmem:[%s3 + $0x210] sm:$0xff]
      %v638 = vld [vmem:[%s3 + $0x218] sm:$0xf]
      %v639 = vld [vmem:[%s3 + $0x21c] sm:$0xff]
      %v640 = vld [vmem:[%s3 + $0x224] sm:$0xff]
      %v641 = vld [vmem:[%s3 + $0x22c] sm:$0xff]
      %v642 = vld [vmem:[%s3 + $0x234] sm:$0xff]
      %v643 = vld [vmem:[%s3 + $0x23c] sm:$0xf]
      %v644 = vld [vmem:[%s3 + $0x240] sm:$0xff]
      %v645 = vld [vmem:[%s3 + $0x248] sm:$0xff]
      %v646 = vld [vmem:[%s3 + $0x250] sm:$0xff]
      %v647 = vld [vmem:[%s3 + $0x258] sm:$0xff]
      %v648 = vld [vmem:[%s3 + $0x260] sm:$0xf]
      %v649 = vld [vmem:[%s3 + $0x264] sm:$0xff]
      %v650 = vld [vmem:[%s3 + $0x26c] sm:$0xff]
      %v651 = vld [vmem:[%s3 + $0x274] sm:$0xff]
      %v652 = vld [vmem:[%s3 + $0x27c] sm:$0xff]
      %v653 = vld [vmem:[%s3 + $0x284] sm:$0xf]
      %v654 = vld [vmem:[%s3 + $0x288] sm:$0xff]
      %v655 = vld [vmem:[%s3 + $0x290] sm:$0xff]
      %v656 = vld [vmem:[%s3 + $0x298] sm:$0xff]
      %v657 = vld [vmem:[%s3 + $0x2a0] sm:$0xff]
      %v658 = vld [vmem:[%s3 + $0x2a8] sm:$0xf]
      %v659 = vld [vmem:[%s3 + $0x2ac] sm:$0xff]
      %v660 = vld [vmem:[%s3 + $0x2b4] sm:$0xff]
      %v661 = vld [vmem:[%s3 + $0x2bc] sm:$0xff]
      %v662 = vld [vmem:[%s3 + $0x2c4] sm:$0xff]
      %v663 = vld [vmem:[%s3 + $0x2cc] sm:$0xf]
      %v664 = vld [vmem:[%s3 + $0x2d0] sm:$0xff]
      %v665 = vld [vmem:[%s3 + $0x2d8] sm:$0xff]
      %v666 = vld [vmem:[%s3 + $0x2e0] sm:$0xff]
      %v667 = vld [vmem:[%s3 + $0x2e8] sm:$0xff]
      %v668 = vld [vmem:[%s3 + $0x2f0] sm:$0xf]
      %v669 = vld [vmem:[%s3 + $0x2f4] sm:$0xff]
      %v670 = vld [vmem:[%s3 + $0x2fc] sm:$0xff]
      %v671 = vld [vmem:[%s3 + $0x304] sm:$0xff]
      %v672 = vld [vmem:[%s3 + $0x30c] sm:$0xff]
      %v673 = vld [vmem:[%s3 + $0x314] sm:$0xf]
      %v674 = vld [vmem:[%s3 + $0x318] sm:$0xff]
      %v675 = vld [vmem:[%s3 + $0x320] sm:$0xff]
      %v676 = vld [vmem:[%s3 + $0x328] sm:$0xff]
      %v677 = vld [vmem:[%s3 + $0x330] sm:$0xff]
      %v678 = vld [vmem:[%s3 + $0x338] sm:$0xf]
      %v679 = vld [vmem:[%s3 + $0x33c] sm:$0xff]
      %v680 = vld [vmem:[%s3 + $0x344] sm:$0xff]
      %v681 = vld [vmem:[%s3 + $0x34c] sm:$0xff]
      %v682 = vld [vmem:[%s3 + $0x354] sm:$0xff]
      %v683 = vld [vmem:[%s3 + $0x35c] sm:$0xf]
      %v684 = vld [vmem:[%s3 + $0x360] sm:$0xff]
      %v685 = vld [vmem:[%s3 + $0x368] sm:$0xff]
      %v686 = vld [vmem:[%s3 + $0x370] sm:$0xff]
      %v687 = vld [vmem:[%s3 + $0x378] sm:$0xff]
      %v688 = vld [vmem:[%s3 + $0x380] sm:$0xf]
      %v689 = vld [vmem:[%s3 + $0x384] sm:$0xff]
      %v690 = vld [vmem:[%s3 + $0x38c] sm:$0xff]
      %v691 = vld [vmem:[%s3 + $0x394] sm:$0xff]
      %v692 = vld [vmem:[%s3 + $0x39c] sm:$0xff]
      %v693 = vld [vmem:[%s3 + $0x3a4] sm:$0xf]
      %v694 = vld [vmem:[%s3 + $0x3a8] sm:$0xff]
      %v695 = vld [vmem:[%s3 + $0x3b0] sm:$0xff]
      %v696 = vld [vmem:[%s3 + $0x3b8] sm:$0xff]
      %v697 = vld [vmem:[%s3 + $0x3c0] sm:$0xff]
      %v698 = vld [vmem:[%s3 + $0x3c8] sm:$0xf]
      %v699 = vld [vmem:[%s3 + $0x3cc] sm:$0xff]
      %v700 = vld [vmem:[%s3 + $0x3d4] sm:$0xff]
      %v701 = vld [vmem:[%s3 + $0x3dc] sm:$0xff]
      %v702 = vld [vmem:[%s3 + $0x3e4] sm:$0xff]
      %v703 = vld [vmem:[%s3 + $0x3ec] sm:$0xf]
      %v704 = vld [vmem:[%s3 + $0x3f0] sm:$0xff]
      %v705 = vld [vmem:[%s3 + $0x3f8] sm:$0xff]
      %v706 = vld [vmem:[%s3 + $0x400] sm:$0xff]
      %v707 = vld [vmem:[%s3 + $0x408] sm:$0xff]
      %v708 = vld [vmem:[%s3 + $0x410] sm:$0xf]
      %v709 = vld [vmem:[%s3 + $0x414] sm:$0xff]
      %v710 = vld [vmem:[%s3 + $0x41c] sm:$0xff]
      %v711 = vld [vmem:[%s3 + $0x424] sm:$0xff]
      %v712 = vld [vmem:[%s3 + $0x42c] sm:$0xff]
      %v713 = vld [vmem:[%s3 + $0x434] sm:$0xf]
      %v714 = vld [vmem:[%s3 + $0x438] sm:$0xff]
      %v715 = vld [vmem:[%s3 + $0x440] sm:$0xff]
      %v716 = vld [vmem:[%s3 + $0x448] sm:$0xff]
      %v717 = vld [vmem:[%s3 + $0x450] sm:$0xff]
      %v718 = vld [vmem:[%s3 + $0x458] sm:$0xf]
      %v719 = vld [vmem:[%s3 + $0x45c] sm:$0xff]
      %v720 = vld [vmem:[%s3 + $0x464] sm:$0xff]
      %v721 = vld [vmem:[%s3 + $0x46c] sm:$0xff]
      %v722 = vld [vmem:[%s3 + $0x474] sm:$0xff]
      %v723 = vld [vmem:[%s3 + $0x47c] sm:$0xf]
      %v724 = vld [vmem:[%s3 + $0x480] sm:$0xff]
      %v725 = vld [vmem:[%s3 + $0x488] sm:$0xff]
      %v726 = vld [vmem:[%s3 + $0x490] sm:$0xff]
      %v727 = vld [vmem:[%s3 + $0x498] sm:$0xff]
      %v728 = vld [vmem:[%s3 + $0x4a0] sm:$0xf]
      %v729 = vld [vmem:[%s3 + $0x4a4] sm:$0xff]
      %v730 = vld [vmem:[%s3 + $0x4ac] sm:$0xff]
      %v731 = vld [vmem:[%s3 + $0x4b4] sm:$0xff]
      %v732 = vld [vmem:[%s3 + $0x4bc] sm:$0xff]
      %v733 = vld [vmem:[%s3 + $0x4c4] sm:$0xf]
      %v734 = vld [vmem:[%s3 + $0x4c8] sm:$0xff]
      %v735 = vld [vmem:[%s3 + $0x4d0] sm:$0xff]
      %v736 = vld [vmem:[%s3 + $0x4d8] sm:$0xff]
      %v737 = vld [vmem:[%s3 + $0x4e0] sm:$0xff]
      %v738 = vld [vmem:[%s3 + $0x4e8] sm:$0xf]
      %v739 = vld [vmem:[%s3 + $0x4ec] sm:$0xff]
      %v740 = vld [vmem:[%s3 + $0x4f4] sm:$0xff]
      %v741 = vld [vmem:[%s3 + $0x4fc] sm:$0xff]
      %v742 = vld [vmem:[%s3 + $0x504] sm:$0xff]
      %v743 = vld [vmem:[%s3 + $0x50c] sm:$0xf]
      %v744 = vld [vmem:[%s3 + $0x510] sm:$0xff]
      %v745 = vld [vmem:[%s3 + $0x518] sm:$0xff]
      %v746 = vld [vmem:[%s3 + $0x520] sm:$0xff]
      %v747 = vld [vmem:[%s3 + $0x528] sm:$0xff]
      %v748 = vld [vmem:[%s3 + $0x530] sm:$0xf]
      %v749 = vld [vmem:[%s3 + $0x534] sm:$0xff]
      %v750 = vld [vmem:[%s3 + $0x53c] sm:$0xff]
      %v751 = vld [vmem:[%s3 + $0x544] sm:$0xff]
      %v752 = vld [vmem:[%s3 + $0x54c] sm:$0xff]
      %v753 = vld [vmem:[%s3 + $0x554] sm:$0xf]
      %v754 = vld [vmem:[%s3 + $0x558] sm:$0xff]
      %v755 = vld [vmem:[%s3 + $0x560] sm:$0xff]
      %v756 = vld [vmem:[%s3 + $0x568] sm:$0xff]
      %v757 = vld [vmem:[%s3 + $0x570] sm:$0xff]
      %v758 = vld [vmem:[%s3 + $0x578] sm:$0xf]
      %v759 = vld [vmem:[%s3 + $0x57c] sm:$0xff]
      %v760 = vld [vmem:[%s3 + $0x584] sm:$0xff]
      %v761 = vld [vmem:[%s3 + $0x58c] sm:$0xff]
      %v762 = vld [vmem:[%s3 + $0x594] sm:$0xff]
      %v763 = vld [vmem:[%s3 + $0x59c] sm:$0xf]
      %v764 = vld [vmem:[%s3 + $0x5a0] sm:$0xff]
      %v765 = vld [vmem:[%s3 + $0x5a8] sm:$0xff]
      %v766 = vld [vmem:[%s3 + $0x5b0] sm:$0xff]
      %v767 = vld [vmem:[%s3 + $0x5b8] sm:$0xff]
      %v768 = vld [vmem:[%s3 + $0x5c0] sm:$0xf]
      %v769 = vld [vmem:[%s3 + $0x5c4] sm:$0xff]
      %v770 = vld [vmem:[%s3 + $0x5cc] sm:$0xff]
      %v771 = vld [vmem:[%s3 + $0x5d4] sm:$0xff]
      %v772 = vld [vmem:[%s3 + $0x5dc] sm:$0xff]
      %v773 = vld [vmem:[%s3 + $0x5e4] sm:$0xf]
      %v774 = vld [vmem:[%s3 + $0x5e8] sm:$0xff]
      %v775 = vld [vmem:[%s3 + $0x5f0] sm:$0xff]
      %v776 = vld [vmem:[%s3 + $0x5f8] sm:$0xff]
      %v777 = vld [vmem:[%s3 + $0x600] sm:$0xff]
      %v778 = vld [vmem:[%s3 + $0x608] sm:$0xf]
      %v779 = vld [vmem:[%s3 + $0x60c] sm:$0xff]
      %v780 = vld [vmem:[%s3 + $0x614] sm:$0xff]
      %v781 = vld [vmem:[%s3 + $0x61c] sm:$0xff]
      %v782 = vld [vmem:[%s3 + $0x624] sm:$0xff]
      %v783 = vld [vmem:[%s3 + $0x62c] sm:$0xf]
      %v784 = vld [vmem:[%s3 + $0x630] sm:$0xff]
      %v785 = vld [vmem:[%s3 + $0x638] sm:$0xff]
      %v786 = vld [vmem:[%s3 + $0x640] sm:$0xff]
      %v787 = vld [vmem:[%s3 + $0x648] sm:$0xff]
      %v788 = vld [vmem:[%s3 + $0x650] sm:$0xf]
      %v789 = vld [vmem:[%s3 + $0x654] sm:$0xff]
      %v790 = vld [vmem:[%s3 + $0x65c] sm:$0xff]
      %v791 = vld [vmem:[%s3 + $0x664] sm:$0xff]
      %v792 = vld [vmem:[%s3 + $0x66c] sm:$0xff]
      %v793 = vld [vmem:[%s3 + $0x674] sm:$0xf]
      %v794 = vld [vmem:[%s3 + $0x678] sm:$0xff]
      %v795 = vld [vmem:[%s3 + $0x680] sm:$0xff]
      %v796 = vld [vmem:[%s3 + $0x688] sm:$0xff]
      %v797 = vld [vmem:[%s3 + $0x690] sm:$0xff]
      %v798 = vld [vmem:[%s3 + $0x698] sm:$0xf]
      %v799 = vld [vmem:[%s3 + $0x69c] sm:$0xff]
      %v800 = vld [vmem:[%s3 + $0x6a4] sm:$0xff]
      %v801 = vld [vmem:[%s3 + $0x6ac] sm:$0xff]
      %v802 = vld [vmem:[%s3 + $0x6b4] sm:$0xff]
      %v803 = vld [vmem:[%s3 + $0x6bc] sm:$0xf]
      %v804 = vld [vmem:[%s4] sm:$0xff]
      %v805 = vld [vmem:[%s4 + $0x8] sm:$0x1]
      %v808 = vlaneseq
      %v809 = vshrl.u32 %v808, 7
      %v810 = vsub.s32 0, %v809
      %v811 = vrot.slane %v804, %v810
      %v812 = vlaneseq
      %v813 = vshrl.u32 %v812, 7
      %v814 = vsub.s32 1, %v813
      %v815 = vrot.slane %v804, %v814
      %v816 = vlaneseq
      %v817 = vshrl.u32 %v816, 7
      %v818 = vsub.s32 2, %v817
      %v819 = vrot.slane %v804, %v818
      %v820 = vlaneseq
      %v821 = vshrl.u32 %v820, 7
      %v822 = vsub.s32 3, %v821
      %v823 = vrot.slane %v804, %v822
      %v824 = vlaneseq
      %v825 = vshrl.u32 %v824, 7
      %v826 = vsub.s32 4, %v825
      %v827 = vrot.slane %v804, %v826
      %v828 = vlaneseq
      %v829 = vshrl.u32 %v828, 7
      %v830 = vsub.s32 5, %v829
      %v831 = vrot.slane %v804, %v830
      %v832 = vlaneseq
      %v833 = vshrl.u32 %v832, 7
      %v834 = vsub.s32 6, %v833
      %v835 = vrot.slane %v804, %v834
      %v836 = vlaneseq
      %v837 = vshrl.u32 %v836, 7
      %v838 = vsub.s32 7, %v837
      %v839 = vrot.slane %v804, %v838
      %v840 = vlaneseq
      %v841 = vshrl.u32 %v840, 7
      %v842 = vsub.s32 0, %v841
      %v843 = vrot.slane %v805, %v842
      %v1093 = vunpack.c.l.b16 %v564
      %v1094 = vunpack.c.h.b16 %v564
      %v1095 = vunpack.c.l.b16 %v565
      %v1096 = vunpack.c.h.b16 %v565
      %v1097 = vunpack.c.l.b16 %v566
      %v1098 = vunpack.c.h.b16 %v566
      %v1099 = vunpack.c.l.b16 %v567
      %v1100 = vunpack.c.h.b16 %v567
      %v1101 = vunpack.c.l.b16 %v568
      %v1102 = vunpack.c.l.b16 %v569
      %v1103 = vunpack.c.h.b16 %v569
      %v1104 = vunpack.c.l.b16 %v570
      %v1105 = vunpack.c.h.b16 %v570
      %v1106 = vunpack.c.l.b16 %v571
      %v1107 = vunpack.c.h.b16 %v571
      %v1108 = vunpack.c.l.b16 %v572
      %v1109 = vunpack.c.h.b16 %v572
      %v1110 = vunpack.c.l.b16 %v573
      %v1111 = vunpack.c.l.b16 %v574
      %v1112 = vunpack.c.h.b16 %v574
      %v1113 = vunpack.c.l.b16 %v575
      %v1114 = vunpack.c.h.b16 %v575
      %v1115 = vunpack.c.l.b16 %v576
      %v1116 = vunpack.c.h.b16 %v576
      %v1117 = vunpack.c.l.b16 %v577
      %v1118 = vunpack.c.h.b16 %v577
      %v1119 = vunpack.c.l.b16 %v578
      %v1120 = vunpack.c.l.b16 %v579
      %v1121 = vunpack.c.h.b16 %v579
      %v1122 = vunpack.c.l.b16 %v580
      %v1123 = vunpack.c.h.b16 %v580
      %v1124 = vunpack.c.l.b16 %v581
      %v1125 = vunpack.c.h.b16 %v581
      %v1126 = vunpack.c.l.b16 %v582
      %v1127 = vunpack.c.h.b16 %v582
      %v1128 = vunpack.c.l.b16 %v583
      %v1129 = vunpack.c.l.b16 %v584
      %v1130 = vunpack.c.h.b16 %v584
      %v1131 = vunpack.c.l.b16 %v585
      %v1132 = vunpack.c.h.b16 %v585
      %v1133 = vunpack.c.l.b16 %v586
      %v1134 = vunpack.c.h.b16 %v586
      %v1135 = vunpack.c.l.b16 %v587
      %v1136 = vunpack.c.h.b16 %v587
      %v1137 = vunpack.c.l.b16 %v588
      %v1138 = vunpack.c.l.b16 %v589
      %v1139 = vunpack.c.h.b16 %v589
      %v1140 = vunpack.c.l.b16 %v590
      %v1141 = vunpack.c.h.b16 %v590
      %v1142 = vunpack.c.l.b16 %v591
      %v1143 = vunpack.c.h.b16 %v591
      %v1144 = vunpack.c.l.b16 %v592
      %v1145 = vunpack.c.h.b16 %v592
      %v1146 = vunpack.c.l.b16 %v593
      %v1147 = vunpack.c.l.b16 %v594
      %v1148 = vunpack.c.h.b16 %v594
      %v1149 = vunpack.c.l.b16 %v595
      %v1150 = vunpack.c.h.b16 %v595
      %v1151 = vunpack.c.l.b16 %v596
      %v1152 = vunpack.c.h.b16 %v596
      %v1153 = vunpack.c.l.b16 %v597
      %v1154 = vunpack.c.h.b16 %v597
      %v1155 = vunpack.c.l.b16 %v598
      %v1156 = vunpack.c.l.b16 %v599
      %v1157 = vunpack.c.h.b16 %v599
      %v1158 = vunpack.c.l.b16 %v600
      %v1159 = vunpack.c.h.b16 %v600
      %v1160 = vunpack.c.l.b16 %v601
      %v1161 = vunpack.c.h.b16 %v601
      %v1162 = vunpack.c.l.b16 %v602
      %v1163 = vunpack.c.h.b16 %v602
      %v1164 = vunpack.c.l.b16 %v603
      %v1165 = vunpack.c.l.b16 %v604
      %v1166 = vunpack.c.h.b16 %v604
      %v1167 = vunpack.c.l.b16 %v605
      %v1168 = vunpack.c.h.b16 %v605
      %v1169 = vunpack.c.l.b16 %v606
      %v1170 = vunpack.c.h.b16 %v606
      %v1171 = vunpack.c.l.b16 %v607
      %v1172 = vunpack.c.h.b16 %v607
      %v1173 = vunpack.c.l.b16 %v608
      %v1174 = vunpack.c.l.b16 %v609
      %v1175 = vunpack.c.h.b16 %v609
      %v1176 = vunpack.c.l.b16 %v610
      %v1177 = vunpack.c.h.b16 %v610
      %v1178 = vunpack.c.l.b16 %v611
      %v1179 = vunpack.c.h.b16 %v611
      %v1180 = vunpack.c.l.b16 %v612
      %v1181 = vunpack.c.h.b16 %v612
      %v1182 = vunpack.c.l.b16 %v613
      %v1183 = vunpack.c.l.b16 %v614
      %v1184 = vunpack.c.h.b16 %v614
      %v1185 = vunpack.c.l.b16 %v615
      %v1186 = vunpack.c.h.b16 %v615
      %v1187 = vunpack.c.l.b16 %v616
      %v1188 = vunpack.c.h.b16 %v616
      %v1189 = vunpack.c.l.b16 %v617
      %v1190 = vunpack.c.h.b16 %v617
      %v1191 = vunpack.c.l.b16 %v618
      %v1192 = vunpack.c.l.b16 %v619
      %v1193 = vunpack.c.h.b16 %v619
      %v1194 = vunpack.c.l.b16 %v620
      %v1195 = vunpack.c.h.b16 %v620
      %v1196 = vunpack.c.l.b16 %v621
      %v1197 = vunpack.c.h.b16 %v621
      %v1198 = vunpack.c.l.b16 %v622
      %v1199 = vunpack.c.h.b16 %v622
      %v1200 = vunpack.c.l.b16 %v623
      %v1201 = vunpack.c.l.b16 %v624
      %v1202 = vunpack.c.h.b16 %v624
      %v1203 = vunpack.c.l.b16 %v625
      %v1204 = vunpack.c.h.b16 %v625
      %v1205 = vunpack.c.l.b16 %v626
      %v1206 = vunpack.c.h.b16 %v626
      %v1207 = vunpack.c.l.b16 %v627
      %v1208 = vunpack.c.h.b16 %v627
      %v1209 = vunpack.c.l.b16 %v628
      %v1210 = vunpack.c.l.b16 %v629
      %v1211 = vunpack.c.h.b16 %v629
      %v1212 = vunpack.c.l.b16 %v630
      %v1213 = vunpack.c.h.b16 %v630
      %v1214 = vunpack.c.l.b16 %v631
      %v1215 = vunpack.c.h.b16 %v631
      %v1216 = vunpack.c.l.b16 %v632
      %v1217 = vunpack.c.h.b16 %v632
      %v1218 = vunpack.c.l.b16 %v633
      %v1219 = vunpack.c.l.b16 %v634
      %v1220 = vunpack.c.h.b16 %v634
      %v1221 = vunpack.c.l.b16 %v635
      %v1222 = vunpack.c.h.b16 %v635
      %v1223 = vunpack.c.l.b16 %v636
      %v1224 = vunpack.c.h.b16 %v636
      %v1225 = vunpack.c.l.b16 %v637
      %v1226 = vunpack.c.h.b16 %v637
      %v1227 = vunpack.c.l.b16 %v638
      %v1228 = vunpack.c.l.b16 %v639
      %v1229 = vunpack.c.h.b16 %v639
      %v1230 = vunpack.c.l.b16 %v640
      %v1231 = vunpack.c.h.b16 %v640
      %v1232 = vunpack.c.l.b16 %v641
      %v1233 = vunpack.c.h.b16 %v641
      %v1234 = vunpack.c.l.b16 %v642
      %v1235 = vunpack.c.h.b16 %v642
      %v1236 = vunpack.c.l.b16 %v643
      %v1237 = vunpack.c.l.b16 %v644
      %v1238 = vunpack.c.h.b16 %v644
      %v1239 = vunpack.c.l.b16 %v645
      %v1240 = vunpack.c.h.b16 %v645
      %v1241 = vunpack.c.l.b16 %v646
      %v1242 = vunpack.c.h.b16 %v646
      %v1243 = vunpack.c.l.b16 %v647
      %v1244 = vunpack.c.h.b16 %v647
      %v1245 = vunpack.c.l.b16 %v648
      %v1246 = vunpack.c.l.b16 %v649
      %v1247 = vunpack.c.h.b16 %v649
      %v1248 = vunpack.c.l.b16 %v650
      %v1249 = vunpack.c.h.b16 %v650
      %v1250 = vunpack.c.l.b16 %v651
      %v1251 = vunpack.c.h.b16 %v651
      %v1252 = vunpack.c.l.b16 %v652
      %v1253 = vunpack.c.h.b16 %v652
      %v1254 = vunpack.c.l.b16 %v653
      %v1255 = vunpack.c.l.b16 %v654
      %v1256 = vunpack.c.h.b16 %v654
      %v1257 = vunpack.c.l.b16 %v655
      %v1258 = vunpack.c.h.b16 %v655
      %v1259 = vunpack.c.l.b16 %v656
      %v1260 = vunpack.c.h.b16 %v656
      %v1261 = vunpack.c.l.b16 %v657
      %v1262 = vunpack.c.h.b16 %v657
      %v1263 = vunpack.c.l.b16 %v658
      %v1264 = vunpack.c.l.b16 %v659
      %v1265 = vunpack.c.h.b16 %v659
      %v1266 = vunpack.c.l.b16 %v660
      %v1267 = vunpack.c.h.b16 %v660
      %v1268 = vunpack.c.l.b16 %v661
      %v1269 = vunpack.c.h.b16 %v661
      %v1270 = vunpack.c.l.b16 %v662
      %v1271 = vunpack.c.h.b16 %v662
      %v1272 = vunpack.c.l.b16 %v663
      %v1273 = vunpack.c.l.b16 %v664
      %v1274 = vunpack.c.h.b16 %v664
      %v1275 = vunpack.c.l.b16 %v665
      %v1276 = vunpack.c.h.b16 %v665
      %v1277 = vunpack.c.l.b16 %v666
      %v1278 = vunpack.c.h.b16 %v666
      %v1279 = vunpack.c.l.b16 %v667
      %v1280 = vunpack.c.h.b16 %v667
      %v1281 = vunpack.c.l.b16 %v668
      %v1282 = vunpack.c.l.b16 %v669
      %v1283 = vunpack.c.h.b16 %v669
      %v1284 = vunpack.c.l.b16 %v670
      %v1285 = vunpack.c.h.b16 %v670
      %v1286 = vunpack.c.l.b16 %v671
      %v1287 = vunpack.c.h.b16 %v671
      %v1288 = vunpack.c.l.b16 %v672
      %v1289 = vunpack.c.h.b16 %v672
      %v1290 = vunpack.c.l.b16 %v673
      %v1291 = vunpack.c.l.b16 %v674
      %v1292 = vunpack.c.h.b16 %v674
      %v1293 = vunpack.c.l.b16 %v675
      %v1294 = vunpack.c.h.b16 %v675
      %v1295 = vunpack.c.l.b16 %v676
      %v1296 = vunpack.c.h.b16 %v676
      %v1297 = vunpack.c.l.b16 %v677
      %v1298 = vunpack.c.h.b16 %v677
      %v1299 = vunpack.c.l.b16 %v678
      %v1300 = vunpack.c.l.b16 %v679
      %v1301 = vunpack.c.h.b16 %v679
      %v1302 = vunpack.c.l.b16 %v680
      %v1303 = vunpack.c.h.b16 %v680
      %v1304 = vunpack.c.l.b16 %v681
      %v1305 = vunpack.c.h.b16 %v681
      %v1306 = vunpack.c.l.b16 %v682
      %v1307 = vunpack.c.h.b16 %v682
      %v1308 = vunpack.c.l.b16 %v683
      %v1309 = vunpack.c.l.b16 %v684
      %v1310 = vunpack.c.h.b16 %v684
      %v1311 = vunpack.c.l.b16 %v685
      %v1312 = vunpack.c.h.b16 %v685
      %v1313 = vunpack.c.l.b16 %v686
      %v1314 = vunpack.c.h.b16 %v686
      %v1315 = vunpack.c.l.b16 %v687
      %v1316 = vunpack.c.h.b16 %v687
      %v1317 = vunpack.c.l.b16 %v688
      %v1318 = vunpack.c.l.b16 %v689
      %v1319 = vunpack.c.h.b16 %v689
      %v1320 = vunpack.c.l.b16 %v690
      %v1321 = vunpack.c.h.b16 %v690
      %v1322 = vunpack.c.l.b16 %v691
      %v1323 = vunpack.c.h.b16 %v691
      %v1324 = vunpack.c.l.b16 %v692
      %v1325 = vunpack.c.h.b16 %v692
      %v1326 = vunpack.c.l.b16 %v693
      %v1327 = vunpack.c.l.b16 %v694
      %v1328 = vunpack.c.h.b16 %v694
      %v1329 = vunpack.c.l.b16 %v695
      %v1330 = vunpack.c.h.b16 %v695
      %v1331 = vunpack.c.l.b16 %v696
      %v1332 = vunpack.c.h.b16 %v696
      %v1333 = vunpack.c.l.b16 %v697
      %v1334 = vunpack.c.h.b16 %v697
      %v1335 = vunpack.c.l.b16 %v698
      %v1336 = vunpack.c.l.b16 %v699
      %v1337 = vunpack.c.h.b16 %v699
      %v1338 = vunpack.c.l.b16 %v700
      %v1339 = vunpack.c.h.b16 %v700
      %v1340 = vunpack.c.l.b16 %v701
      %v1341 = vunpack.c.h.b16 %v701
      %v1342 = vunpack.c.l.b16 %v702
      %v1343 = vunpack.c.h.b16 %v702
      %v1344 = vunpack.c.l.b16 %v703
      %v1345 = vunpack.c.l.b16 %v704
      %v1346 = vunpack.c.h.b16 %v704
      %v1347 = vunpack.c.l.b16 %v705
      %v1348 = vunpack.c.h.b16 %v705
      %v1349 = vunpack.c.l.b16 %v706
      %v1350 = vunpack.c.h.b16 %v706
      %v1351 = vunpack.c.l.b16 %v707
      %v1352 = vunpack.c.h.b16 %v707
      %v1353 = vunpack.c.l.b16 %v708
      %v1354 = vunpack.c.l.b16 %v709
      %v1355 = vunpack.c.h.b16 %v709
      %v1356 = vunpack.c.l.b16 %v710
      %v1357 = vunpack.c.h.b16 %v710
      %v1358 = vunpack.c.l.b16 %v711
      %v1359 = vunpack.c.h.b16 %v711
      %v1360 = vunpack.c.l.b16 %v712
      %v1361 = vunpack.c.h.b16 %v712
      %v1362 = vunpack.c.l.b16 %v713
      %v1363 = vunpack.c.l.b16 %v714
      %v1364 = vunpack.c.h.b16 %v714
      %v1365 = vunpack.c.l.b16 %v715
      %v1366 = vunpack.c.h.b16 %v715
      %v1367 = vunpack.c.l.b16 %v716
      %v1368 = vunpack.c.h.b16 %v716
      %v1369 = vunpack.c.l.b16 %v717
      %v1370 = vunpack.c.h.b16 %v717
      %v1371 = vunpack.c.l.b16 %v718
      %v1372 = vunpack.c.l.b16 %v719
      %v1373 = vunpack.c.h.b16 %v719
      %v1374 = vunpack.c.l.b16 %v720
      %v1375 = vunpack.c.h.b16 %v720
      %v1376 = vunpack.c.l.b16 %v721
      %v1377 = vunpack.c.h.b16 %v721
      %v1378 = vunpack.c.l.b16 %v722
      %v1379 = vunpack.c.h.b16 %v722
      %v1380 = vunpack.c.l.b16 %v723
      %v1381 = vunpack.c.l.b16 %v724
      %v1382 = vunpack.c.h.b16 %v724
      %v1383 = vunpack.c.l.b16 %v725
      %v1384 = vunpack.c.h.b16 %v725
      %v1385 = vunpack.c.l.b16 %v726
      %v1386 = vunpack.c.h.b16 %v726
      %v1387 = vunpack.c.l.b16 %v727
      %v1388 = vunpack.c.h.b16 %v727
      %v1389 = vunpack.c.l.b16 %v728
      %v1390 = vunpack.c.l.b16 %v729
      %v1391 = vunpack.c.h.b16 %v729
      %v1392 = vunpack.c.l.b16 %v730
      %v1393 = vunpack.c.h.b16 %v730
      %v1394 = vunpack.c.l.b16 %v731
      %v1395 = vunpack.c.h.b16 %v731
      %v1396 = vunpack.c.l.b16 %v732
      %v1397 = vunpack.c.h.b16 %v732
      %v1398 = vunpack.c.l.b16 %v733
      %v1399 = vunpack.c.l.b16 %v734
      %v1400 = vunpack.c.h.b16 %v734
      %v1401 = vunpack.c.l.b16 %v735
      %v1402 = vunpack.c.h.b16 %v735
      %v1403 = vunpack.c.l.b16 %v736
      %v1404 = vunpack.c.h.b16 %v736
      %v1405 = vunpack.c.l.b16 %v737
      %v1406 = vunpack.c.h.b16 %v737
      %v1407 = vunpack.c.l.b16 %v738
      %v1408 = vunpack.c.l.b16 %v739
      %v1409 = vunpack.c.h.b16 %v739
      %v1410 = vunpack.c.l.b16 %v740
      %v1411 = vunpack.c.h.b16 %v740
      %v1412 = vunpack.c.l.b16 %v741
      %v1413 = vunpack.c.h.b16 %v741
      %v1414 = vunpack.c.l.b16 %v742
      %v1415 = vunpack.c.h.b16 %v742
      %v1416 = vunpack.c.l.b16 %v743
      %v1417 = vunpack.c.l.b16 %v744
      %v1418 = vunpack.c.h.b16 %v744
      %v1419 = vunpack.c.l.b16 %v745
      %v1420 = vunpack.c.h.b16 %v745
      %v1421 = vunpack.c.l.b16 %v746
      %v1422 = vunpack.c.h.b16 %v746
      %v1423 = vunpack.c.l.b16 %v747
      %v1424 = vunpack.c.h.b16 %v747
      %v1425 = vunpack.c.l.b16 %v748
      %v1426 = vunpack.c.l.b16 %v749
      %v1427 = vunpack.c.h.b16 %v749
      %v1428 = vunpack.c.l.b16 %v750
      %v1429 = vunpack.c.h.b16 %v750
      %v1430 = vunpack.c.l.b16 %v751
      %v1431 = vunpack.c.h.b16 %v751
      %v1432 = vunpack.c.l.b16 %v752
      %v1433 = vunpack.c.h.b16 %v752
      %v1434 = vunpack.c.l.b16 %v753
      %v1435 = vunpack.c.l.b16 %v754
      %v1436 = vunpack.c.h.b16 %v754
      %v1437 = vunpack.c.l.b16 %v755
      %v1438 = vunpack.c.h.b16 %v755
      %v1439 = vunpack.c.l.b16 %v756
      %v1440 = vunpack.c.h.b16 %v756
      %v1441 = vunpack.c.l.b16 %v757
      %v1442 = vunpack.c.h.b16 %v757
      %v1443 = vunpack.c.l.b16 %v758
      %v1444 = vunpack.c.l.b16 %v759
      %v1445 = vunpack.c.h.b16 %v759
      %v1446 = vunpack.c.l.b16 %v760
      %v1447 = vunpack.c.h.b16 %v760
      %v1448 = vunpack.c.l.b16 %v761
      %v1449 = vunpack.c.h.b16 %v761
      %v1450 = vunpack.c.l.b16 %v762
      %v1451 = vunpack.c.h.b16 %v762
      %v1452 = vunpack.c.l.b16 %v763
      %v1453 = vunpack.c.l.b16 %v764
      %v1454 = vunpack.c.h.b16 %v764
      %v1455 = vunpack.c.l.b16 %v765
      %v1456 = vunpack.c.h.b16 %v765
      %v1457 = vunpack.c.l.b16 %v766
      %v1458 = vunpack.c.h.b16 %v766
      %v1459 = vunpack.c.l.b16 %v767
      %v1460 = vunpack.c.h.b16 %v767
      %v1461 = vunpack.c.l.b16 %v768
      %v1462 = vunpack.c.l.b16 %v769
      %v1463 = vunpack.c.h.b16 %v769
      %v1464 = vunpack.c.l.b16 %v770
      %v1465 = vunpack.c.h.b16 %v770
      %v1466 = vunpack.c.l.b16 %v771
      %v1467 = vunpack.c.h.b16 %v771
      %v1468 = vunpack.c.l.b16 %v772
      %v1469 = vunpack.c.h.b16 %v772
      %v1470 = vunpack.c.l.b16 %v773
      %v1471 = vunpack.c.l.b16 %v774
      %v1472 = vunpack.c.h.b16 %v774
      %v1473 = vunpack.c.l.b16 %v775
      %v1474 = vunpack.c.h.b16 %v775
      %v1475 = vunpack.c.l.b16 %v776
      %v1476 = vunpack.c.h.b16 %v776
      %v1477 = vunpack.c.l.b16 %v777
      %v1478 = vunpack.c.h.b16 %v777
      %v1479 = vunpack.c.l.b16 %v778
      %v1480 = vunpack.c.l.b16 %v779
      %v1481 = vunpack.c.h.b16 %v779
      %v1482 = vunpack.c.l.b16 %v780
      %v1483 = vunpack.c.h.b16 %v780
      %v1484 = vunpack.c.l.b16 %v781
      %v1485 = vunpack.c.h.b16 %v781
      %v1486 = vunpack.c.l.b16 %v782
      %v1487 = vunpack.c.h.b16 %v782
      %v1488 = vunpack.c.l.b16 %v783
      %v1489 = vunpack.c.l.b16 %v784
      %v1490 = vunpack.c.h.b16 %v784
      %v1491 = vunpack.c.l.b16 %v785
      %v1492 = vunpack.c.h.b16 %v785
      %v1493 = vunpack.c.l.b16 %v786
      %v1494 = vunpack.c.h.b16 %v786
      %v1495 = vunpack.c.l.b16 %v787
      %v1496 = vunpack.c.h.b16 %v787
      %v1497 = vunpack.c.l.b16 %v788
      %v1498 = vunpack.c.l.b16 %v789
      %v1499 = vunpack.c.h.b16 %v789
      %v1500 = vunpack.c.l.b16 %v790
      %v1501 = vunpack.c.h.b16 %v790
      %v1502 = vunpack.c.l.b16 %v791
      %v1503 = vunpack.c.h.b16 %v791
      %v1504 = vunpack.c.l.b16 %v792
      %v1505 = vunpack.c.h.b16 %v792
      %v1506 = vunpack.c.l.b16 %v793
      %v1507 = vunpack.c.l.b16 %v794
      %v1508 = vunpack.c.h.b16 %v794
      %v1509 = vunpack.c.l.b16 %v795
      %v1510 = vunpack.c.h.b16 %v795
      %v1511 = vunpack.c.l.b16 %v796
      %v1512 = vunpack.c.h.b16 %v796
      %v1513 = vunpack.c.l.b16 %v797
      %v1514 = vunpack.c.h.b16 %v797
      %v1515 = vunpack.c.l.b16 %v798
      %v1516 = vunpack.c.l.b16 %v799
      %v1517 = vunpack.c.h.b16 %v799
      %v1518 = vunpack.c.l.b16 %v800
      %v1519 = vunpack.c.h.b16 %v800
      %v1520 = vunpack.c.l.b16 %v801
      %v1521 = vunpack.c.h.b16 %v801
      %v1522 = vunpack.c.l.b16 %v802
      %v1523 = vunpack.c.h.b16 %v802
      %v1524 = vunpack.c.l.b16 %v803
      %v1525 = vpack.c.b16 %v1102, %v1093
      %v1526 = vpack.c.b16 %v1103, %v1094
      %v1527 = vpack.c.b16 %v1104, %v1095
      %v1528 = vpack.c.b16 %v1105, %v1096
      %v1529 = vpack.c.b16 %v1106, %v1097
      %v1530 = vpack.c.b16 %v1107, %v1098
      %v1531 = vpack.c.b16 %v1108, %v1099
      %v1532 = vpack.c.b16 %v1109, %v1100
      %v1533 = vpack.c.b16 %v1110, %v1101
      %v1534 = vpack.c.b16 %v1120, %v1111
      %v1535 = vpack.c.b16 %v1121, %v1112
      %v1536 = vpack.c.b16 %v1122, %v1113
      %v1537 = vpack.c.b16 %v1123, %v1114
      %v1538 = vpack.c.b16 %v1124, %v1115
      %v1539 = vpack.c.b16 %v1125, %v1116
      %v1540 = vpack.c.b16 %v1126, %v1117
      %v1541 = vpack.c.b16 %v1127, %v1118
      %v1542 = vpack.c.b16 %v1128, %v1119
      %v1543 = vpack.c.b16 %v1138, %v1129
      %v1544 = vpack.c.b16 %v1139, %v1130
      %v1545 = vpack.c.b16 %v1140, %v1131
      %v1546 = vpack.c.b16 %v1141, %v1132
      %v1547 = vpack.c.b16 %v1142, %v1133
      %v1548 = vpack.c.b16 %v1143, %v1134
      %v1549 = vpack.c.b16 %v1144, %v1135
      %v1550 = vpack.c.b16 %v1145, %v1136
      %v1551 = vpack.c.b16 %v1146, %v1137
      %v1552 = vpack.c.b16 %v1156, %v1147
      %v1553 = vpack.c.b16 %v1157, %v1148
      %v1554 = vpack.c.b16 %v1158, %v1149
      %v1555 = vpack.c.b16 %v1159, %v1150
      %v1556 = vpack.c.b16 %v1160, %v1151
      %v1557 = vpack.c.b16 %v1161, %v1152
      %v1558 = vpack.c.b16 %v1162, %v1153
      %v1559 = vpack.c.b16 %v1163, %v1154
      %v1560 = vpack.c.b16 %v1164, %v1155
      %v1561 = vpack.c.b16 %v1174, %v1165
      %v1562 = vpack.c.b16 %v1175, %v1166
      %v1563 = vpack.c.b16 %v1176, %v1167
      %v1564 = vpack.c.b16 %v1177, %v1168
      %v1565 = vpack.c.b16 %v1178, %v1169
      %v1566 = vpack.c.b16 %v1179, %v1170
      %v1567 = vpack.c.b16 %v1180, %v1171
      %v1568 = vpack.c.b16 %v1181, %v1172
      %v1569 = vpack.c.b16 %v1182, %v1173
      %v1570 = vpack.c.b16 %v1192, %v1183
      %v1571 = vpack.c.b16 %v1193, %v1184
      %v1572 = vpack.c.b16 %v1194, %v1185
      %v1573 = vpack.c.b16 %v1195, %v1186
      %v1574 = vpack.c.b16 %v1196, %v1187
      %v1575 = vpack.c.b16 %v1197, %v1188
      %v1576 = vpack.c.b16 %v1198, %v1189
      %v1577 = vpack.c.b16 %v1199, %v1190
      %v1578 = vpack.c.b16 %v1200, %v1191
      %v1579 = vpack.c.b16 %v1210, %v1201
      %v1580 = vpack.c.b16 %v1211, %v1202
      %v1581 = vpack.c.b16 %v1212, %v1203
      %v1582 = vpack.c.b16 %v1213, %v1204
      %v1583 = vpack.c.b16 %v1214, %v1205
      %v1584 = vpack.c.b16 %v1215, %v1206
      %v1585 = vpack.c.b16 %v1216, %v1207
      %v1586 = vpack.c.b16 %v1217, %v1208
      %v1587 = vpack.c.b16 %v1218, %v1209
      %v1588 = vpack.c.b16 %v1228, %v1219
      %v1589 = vpack.c.b16 %v1229, %v1220
      %v1590 = vpack.c.b16 %v1230, %v1221
      %v1591 = vpack.c.b16 %v1231, %v1222
      %v1592 = vpack.c.b16 %v1232, %v1223
      %v1593 = vpack.c.b16 %v1233, %v1224
      %v1594 = vpack.c.b16 %v1234, %v1225
      %v1595 = vpack.c.b16 %v1235, %v1226
      %v1596 = vpack.c.b16 %v1236, %v1227
      %v1597 = vpack.c.b16 %v1246, %v1237
      %v1598 = vpack.c.b16 %v1247, %v1238
      %v1599 = vpack.c.b16 %v1248, %v1239
      %v1600 = vpack.c.b16 %v1249, %v1240
      %v1601 = vpack.c.b16 %v1250, %v1241
      %v1602 = vpack.c.b16 %v1251, %v1242
      %v1603 = vpack.c.b16 %v1252, %v1243
      %v1604 = vpack.c.b16 %v1253, %v1244
      %v1605 = vpack.c.b16 %v1254, %v1245
      %v1606 = vpack.c.b16 %v1264, %v1255
      %v1607 = vpack.c.b16 %v1265, %v1256
      %v1608 = vpack.c.b16 %v1266, %v1257
      %v1609 = vpack.c.b16 %v1267, %v1258
      %v1610 = vpack.c.b16 %v1268, %v1259
      %v1611 = vpack.c.b16 %v1269, %v1260
      %v1612 = vpack.c.b16 %v1270, %v1261
      %v1613 = vpack.c.b16 %v1271, %v1262
      %v1614 = vpack.c.b16 %v1272, %v1263
      %v1615 = vpack.c.b16 %v1282, %v1273
      %v1616 = vpack.c.b16 %v1283, %v1274
      %v1617 = vpack.c.b16 %v1284, %v1275
      %v1618 = vpack.c.b16 %v1285, %v1276
      %v1619 = vpack.c.b16 %v1286, %v1277
      %v1620 = vpack.c.b16 %v1287, %v1278
      %v1621 = vpack.c.b16 %v1288, %v1279
      %v1622 = vpack.c.b16 %v1289, %v1280
      %v1623 = vpack.c.b16 %v1290, %v1281
      %v1624 = vpack.c.b16 %v1300, %v1291
      %v1625 = vpack.c.b16 %v1301, %v1292
      %v1626 = vpack.c.b16 %v1302, %v1293
      %v1627 = vpack.c.b16 %v1303, %v1294
      %v1628 = vpack.c.b16 %v1304, %v1295
      %v1629 = vpack.c.b16 %v1305, %v1296
      %v1630 = vpack.c.b16 %v1306, %v1297
      %v1631 = vpack.c.b16 %v1307, %v1298
      %v1632 = vpack.c.b16 %v1308, %v1299
      %v1633 = vpack.c.b16 %v1318, %v1309
      %v1634 = vpack.c.b16 %v1319, %v1310
      %v1635 = vpack.c.b16 %v1320, %v1311
      %v1636 = vpack.c.b16 %v1321, %v1312
      %v1637 = vpack.c.b16 %v1322, %v1313
      %v1638 = vpack.c.b16 %v1323, %v1314
      %v1639 = vpack.c.b16 %v1324, %v1315
      %v1640 = vpack.c.b16 %v1325, %v1316
      %v1641 = vpack.c.b16 %v1326, %v1317
      %v1642 = vpack.c.b16 %v1336, %v1327
      %v1643 = vpack.c.b16 %v1337, %v1328
      %v1644 = vpack.c.b16 %v1338, %v1329
      %v1645 = vpack.c.b16 %v1339, %v1330
      %v1646 = vpack.c.b16 %v1340, %v1331
      %v1647 = vpack.c.b16 %v1341, %v1332
      %v1648 = vpack.c.b16 %v1342, %v1333
      %v1649 = vpack.c.b16 %v1343, %v1334
      %v1650 = vpack.c.b16 %v1344, %v1335
      %v1651 = vpack.c.b16 %v1354, %v1345
      %v1652 = vpack.c.b16 %v1355, %v1346
      %v1653 = vpack.c.b16 %v1356, %v1347
      %v1654 = vpack.c.b16 %v1357, %v1348
      %v1655 = vpack.c.b16 %v1358, %v1349
      %v1656 = vpack.c.b16 %v1359, %v1350
      %v1657 = vpack.c.b16 %v1360, %v1351
      %v1658 = vpack.c.b16 %v1361, %v1352
      %v1659 = vpack.c.b16 %v1362, %v1353
      %v1660 = vpack.c.b16 %v1372, %v1363
      %v1661 = vpack.c.b16 %v1373, %v1364
      %v1662 = vpack.c.b16 %v1374, %v1365
      %v1663 = vpack.c.b16 %v1375, %v1366
      %v1664 = vpack.c.b16 %v1376, %v1367
      %v1665 = vpack.c.b16 %v1377, %v1368
      %v1666 = vpack.c.b16 %v1378, %v1369
      %v1667 = vpack.c.b16 %v1379, %v1370
      %v1668 = vpack.c.b16 %v1380, %v1371
      %v1669 = vpack.c.b16 %v1390, %v1381
      %v1670 = vpack.c.b16 %v1391, %v1382
      %v1671 = vpack.c.b16 %v1392, %v1383
      %v1672 = vpack.c.b16 %v1393, %v1384
      %v1673 = vpack.c.b16 %v1394, %v1385
      %v1674 = vpack.c.b16 %v1395, %v1386
      %v1675 = vpack.c.b16 %v1396, %v1387
      %v1676 = vpack.c.b16 %v1397, %v1388
      %v1677 = vpack.c.b16 %v1398, %v1389
      %v1678 = vpack.c.b16 %v1408, %v1399
      %v1679 = vpack.c.b16 %v1409, %v1400
      %v1680 = vpack.c.b16 %v1410, %v1401
      %v1681 = vpack.c.b16 %v1411, %v1402
      %v1682 = vpack.c.b16 %v1412, %v1403
      %v1683 = vpack.c.b16 %v1413, %v1404
      %v1684 = vpack.c.b16 %v1414, %v1405
      %v1685 = vpack.c.b16 %v1415, %v1406
      %v1686 = vpack.c.b16 %v1416, %v1407
      %v1687 = vpack.c.b16 %v1426, %v1417
      %v1688 = vpack.c.b16 %v1427, %v1418
      %v1689 = vpack.c.b16 %v1428, %v1419
      %v1690 = vpack.c.b16 %v1429, %v1420
      %v1691 = vpack.c.b16 %v1430, %v1421
      %v1692 = vpack.c.b16 %v1431, %v1422
      %v1693 = vpack.c.b16 %v1432, %v1423
      %v1694 = vpack.c.b16 %v1433, %v1424
      %v1695 = vpack.c.b16 %v1434, %v1425
      %v1696 = vpack.c.b16 %v1444, %v1435
      %v1697 = vpack.c.b16 %v1445, %v1436
      %v1698 = vpack.c.b16 %v1446, %v1437
      %v1699 = vpack.c.b16 %v1447, %v1438
      %v1700 = vpack.c.b16 %v1448, %v1439
      %v1701 = vpack.c.b16 %v1449, %v1440
      %v1702 = vpack.c.b16 %v1450, %v1441
      %v1703 = vpack.c.b16 %v1451, %v1442
      %v1704 = vpack.c.b16 %v1452, %v1443
      %v1705 = vpack.c.b16 %v1462, %v1453
      %v1706 = vpack.c.b16 %v1463, %v1454
      %v1707 = vpack.c.b16 %v1464, %v1455
      %v1708 = vpack.c.b16 %v1465, %v1456
      %v1709 = vpack.c.b16 %v1466, %v1457
      %v1710 = vpack.c.b16 %v1467, %v1458
      %v1711 = vpack.c.b16 %v1468, %v1459
      %v1712 = vpack.c.b16 %v1469, %v1460
      %v1713 = vpack.c.b16 %v1470, %v1461
      %v1714 = vpack.c.b16 %v1480, %v1471
      %v1715 = vpack.c.b16 %v1481, %v1472
      %v1716 = vpack.c.b16 %v1482, %v1473
      %v1717 = vpack.c.b16 %v1483, %v1474
      %v1718 = vpack.c.b16 %v1484, %v1475
      %v1719 = vpack.c.b16 %v1485, %v1476
      %v1720 = vpack.c.b16 %v1486, %v1477
      %v1721 = vpack.c.b16 %v1487, %v1478
      %v1722 = vpack.c.b16 %v1488, %v1479
      %v1723 = vpack.c.b16 %v1498, %v1489
      %v1724 = vpack.c.b16 %v1499, %v1490
      %v1725 = vpack.c.b16 %v1500, %v1491
      %v1726 = vpack.c.b16 %v1501, %v1492
      %v1727 = vpack.c.b16 %v1502, %v1493
      %v1728 = vpack.c.b16 %v1503, %v1494
      %v1729 = vpack.c.b16 %v1504, %v1495
      %v1730 = vpack.c.b16 %v1505, %v1496
      %v1731 = vpack.c.b16 %v1506, %v1497
      %v1732 = vpack.c.b16 %v1516, %v1507
      %v1733 = vpack.c.b16 %v1517, %v1508
      %v1734 = vpack.c.b16 %v1518, %v1509
      %v1735 = vpack.c.b16 %v1519, %v1510
      %v1736 = vpack.c.b16 %v1520, %v1511
      %v1737 = vpack.c.b16 %v1521, %v1512
      %v1738 = vpack.c.b16 %v1522, %v1513
      %v1739 = vpack.c.b16 %v1523, %v1514
      %v1740 = vpack.c.b16 %v1524, %v1515
      %1957 = vmatprep.subr.bf16.mxu0 %v1589
      %1958 = vmatpush1.bf16.msra.mxu0 %v1588
      %1959 = vmatprep.subr.bf16.mxu0 %v1580
      %1960 = vmatpush1.bf16.msra.mxu0 %v1579
      %1961 = vmatprep.subr.bf16.mxu0 %v1571
      %1962 = vmatpush1.bf16.msra.mxu0 %v1570
      %1963 = vmatprep.subr.bf16.mxu0 %v1562
      %1964 = vmatpush1.bf16.msra.mxu0 %v1561
      %1965 = vmatprep.subr.bf16.mxu0 %v1553
      %1966 = vmatpush1.bf16.msra.mxu0 %v1552
      %1967 = vmatprep.subr.bf16.mxu0 %v1544
      %1968 = vmatpush1.bf16.msra.mxu0 %v1543
      %1969 = vmatprep.subr.bf16.mxu0 %v1535
      %1970 = vmatpush1.bf16.msra.mxu0 %v1534
      %1971 = vmatprep.subr.bf16.mxu0 %v1526
      %1972 = vmatpush1.bf16.msra.mxu0 %v1525
      %1973 = vmatprep.subr.bf16.mxu0 %v1661
      %1974 = vmatpush2.bf16.msra.mxu0 %v1660
      %1975 = vmatprep.subr.bf16.mxu0 %v1652
      %1976 = vmatpush2.bf16.msra.mxu0 %v1651
      %1977 = vmatprep.subr.bf16.mxu0 %v1643
      %1978 = vmatpush2.bf16.msra.mxu0 %v1642
      %1979 = vmatprep.subr.bf16.mxu0 %v1634
      %1980 = vmatpush2.bf16.msra.mxu0 %v1633
      %1981 = vmatprep.subr.bf16.mxu0 %v1625
      %1982 = vmatpush2.bf16.msra.mxu0 %v1624
      %1983 = vmatprep.subr.bf16.mxu0 %v1616
      %1984 = vmatpush2.bf16.msra.mxu0 %v1615
      %1985 = vmatprep.subr.bf16.mxu0 %v1607
      %1986 = vmatpush2.bf16.msra.mxu0 %v1606
      %1987 = vmatprep.subr.bf16.mxu0 %v1598
      %1988 = vmatpush2.bf16.msra.mxu0 %v1597
      %1989 = vmatprep.mubr.bf16.mxu0 %v562
      %1990 = vmatmul.mubr.bf16.gmra.mxu0 %v561
      %v1991 = vpop.f32.mrf.mxu0
      %v1992 = vadd.f32 %v811, %v1991
      %v1993 = vpop.f32.mrf.mxu0
      %v1994 = vadd.f32 %v815, %v1993
      %v1995 = vpop.f32.mrf.mxu0
      %v1996 = vpop.f32.mrf.mxu0
      %1997 = vdwg.mxu0
      %1998 = vmatprep.subr.bf16.mxu0 %v1733
      %1999 = vmatpush1.bf16.msra.mxu0 %v1732
      %2000 = vmatprep.subr.bf16.mxu0 %v1724
      %2001 = vmatpush1.bf16.msra.mxu0 %v1723
      %2002 = vmatprep.subr.bf16.mxu0 %v1715
      %2003 = vmatpush1.bf16.msra.mxu0 %v1714
      %2004 = vmatprep.subr.bf16.mxu0 %v1706
      %2005 = vmatpush1.bf16.msra.mxu0 %v1705
      %2006 = vmatprep.subr.bf16.mxu0 %v1697
      %2007 = vmatpush1.bf16.msra.mxu0 %v1696
      %2008 = vmatprep.subr.bf16.mxu0 %v1688
      %2009 = vmatpush1.bf16.msra.mxu0 %v1687
      %2010 = vmatprep.subr.bf16.mxu0 %v1679
      %2011 = vmatpush1.bf16.msra.mxu0 %v1678
      %2012 = vmatprep.subr.bf16.mxu0 %v1670
      %2013 = vmatpush1.bf16.msra.mxu0 %v1669
      %2014 = vmatprep.subr.bf16.mxu0 0
      %2015 = vmatpush2.bf16.msra.mxu0 0
      %2016 = vmatprep.subr.bf16.mxu0 0
      %2017 = vmatpush2.bf16.msra.mxu0 0
      %2018 = vmatprep.subr.bf16.mxu0 0
      %2019 = vmatpush2.bf16.msra.mxu0 0
      %2020 = vmatprep.subr.bf16.mxu0 0
      %2021 = vmatpush2.bf16.msra.mxu0 0
      %2022 = vmatprep.subr.bf16.mxu0 0
      %2023 = vmatpush2.bf16.msra.mxu0 0
      %2024 = vmatprep.subr.bf16.mxu0 0
      %2025 = vmatpush2.bf16.msra.mxu0 0
      %2026 = vmatprep.subr.bf16.mxu0 0
      %2027 = vmatpush2.bf16.msra.mxu0 0
      %2028 = vmatprep.subr.bf16.mxu0 0
      %2029 = vmatpush2.bf16.msra.mxu0 0
      %2030 = vmatprep.mubr.bf16.mxu0 0
      %2031 = vmatmul.mubr.bf16.gmra.mxu0 %v563
      %v2032 = vpop.f32.mrf.mxu0
      %v2033 = vadd.f32 %v1992, %v2032
      %v2034 = vpop.f32.mrf.mxu0
      %v2035 = vadd.f32 %v1994, %v2034
      %v2036 = vpop.f32.mrf.mxu0
      %v2037 = vpop.f32.mrf.mxu0
      %2038 = vdwg.mxu0
      %2039 = vmatprep.subr.bf16.mxu0 %v1591
      %2040 = vmatpush1.bf16.msra.mxu0 %v1590
      %2041 = vmatprep.subr.bf16.mxu0 %v1582
      %2042 = vmatpush1.bf16.msra.mxu0 %v1581
      %2043 = vmatprep.subr.bf16.mxu0 %v1573
      %2044 = vmatpush1.bf16.msra.mxu0 %v1572
      %2045 = vmatprep.subr.bf16.mxu0 %v1564
      %2046 = vmatpush1.bf16.msra.mxu0 %v1563
      %2047 = vmatprep.subr.bf16.mxu0 %v1555
      %2048 = vmatpush1.bf16.msra.mxu0 %v1554
      %2049 = vmatprep.subr.bf16.mxu0 %v1546
      %2050 = vmatpush1.bf16.msra.mxu0 %v1545
      %2051 = vmatprep.subr.bf16.mxu0 %v1537
      %2052 = vmatpush1.bf16.msra.mxu0 %v1536
      %2053 = vmatprep.subr.bf16.mxu0 %v1528
      %2054 = vmatpush1.bf16.msra.mxu0 %v1527
      %2055 = vmatprep.subr.bf16.mxu0 %v1663
      %2056 = vmatpush2.bf16.msra.mxu0 %v1662
      %2057 = vmatprep.subr.bf16.mxu0 %v1654
      %2058 = vmatpush2.bf16.msra.mxu0 %v1653
      %2059 = vmatprep.subr.bf16.mxu0 %v1645
      %2060 = vmatpush2.bf16.msra.mxu0 %v1644
      %2061 = vmatprep.subr.bf16.mxu0 %v1636
      %2062 = vmatpush2.bf16.msra.mxu0 %v1635
      %2063 = vmatprep.subr.bf16.mxu0 %v1627
      %2064 = vmatpush2.bf16.msra.mxu0 %v1626
      %2065 = vmatprep.subr.bf16.mxu0 %v1618
      %2066 = vmatpush2.bf16.msra.mxu0 %v1617
      %2067 = vmatprep.subr.bf16.mxu0 %v1609
      %2068 = vmatpush2.bf16.msra.mxu0 %v1608
      %2069 = vmatprep.subr.bf16.mxu0 %v1600
      %2070 = vmatpush2.bf16.msra.mxu0 %v1599
      %2071 = vmatprep.mubr.bf16.mxu0 %v562
      %2072 = vmatmul.mubr.bf16.gmra.mxu0 %v561
      %v2073 = vpop.f32.mrf.mxu0
      %v2074 = vadd.f32 %v819, %v2073
      %v2075 = vpop.f32.mrf.mxu0
      %v2076 = vadd.f32 %v823, %v2075
      %v2077 = vpop.f32.mrf.mxu0
      %v2078 = vpop.f32.mrf.mxu0
      %2079 = vdwg.mxu0
      %2080 = vmatprep.subr.bf16.mxu0 %v1735
      %2081 = vmatpush1.bf16.msra.mxu0 %v1734
      %2082 = vmatprep.subr.bf16.mxu0 %v1726
      %2083 = vmatpush1.bf16.msra.mxu0 %v1725
      %2084 = vmatprep.subr.bf16.mxu0 %v1717
      %2085 = vmatpush1.bf16.msra.mxu0 %v1716
      %2086 = vmatprep.subr.bf16.mxu0 %v1708
      %2087 = vmatpush1.bf16.msra.mxu0 %v1707
      %2088 = vmatprep.subr.bf16.mxu0 %v1699
      %2089 = vmatpush1.bf16.msra.mxu0 %v1698
      %2090 = vmatprep.subr.bf16.mxu0 %v1690
      %2091 = vmatpush1.bf16.msra.mxu0 %v1689
      %2092 = vmatprep.subr.bf16.mxu0 %v1681
      %2093 = vmatpush1.bf16.msra.mxu0 %v1680
      %2094 = vmatprep.subr.bf16.mxu0 %v1672
      %2095 = vmatpush1.bf16.msra.mxu0 %v1671
      %2096 = vmatprep.subr.bf16.mxu0 0
      %2097 = vmatpush2.bf16.msra.mxu0 0
      %2098 = vmatprep.subr.bf16.mxu0 0
      %2099 = vmatpush2.bf16.msra.mxu0 0
      %2100 = vmatprep.subr.bf16.mxu0 0
      %2101 = vmatpush2.bf16.msra.mxu0 0
      %2102 = vmatprep.subr.bf16.mxu0 0
      %2103 = vmatpush2.bf16.msra.mxu0 0
      %2104 = vmatprep.subr.bf16.mxu0 0
      %2105 = vmatpush2.bf16.msra.mxu0 0
      %2106 = vmatprep.subr.bf16.mxu0 0
      %2107 = vmatpush2.bf16.msra.mxu0 0
      %2108 = vmatprep.subr.bf16.mxu0 0
      %2109 = vmatpush2.bf16.msra.mxu0 0
      %2110 = vmatprep.subr.bf16.mxu0 0
      %2111 = vmatpush2.bf16.msra.mxu0 0
      %2112 = vmatprep.mubr.bf16.mxu0 0
      %2113 = vmatmul.mubr.bf16.gmra.mxu0 %v563
      %v2114 = vpop.f32.mrf.mxu0
      %v2115 = vadd.f32 %v2074, %v2114
      %v2116 = vpop.f32.mrf.mxu0
      %v2117 = vadd.f32 %v2076, %v2116
      %v2118 = vpop.f32.mrf.mxu0
      %v2119 = vpop.f32.mrf.mxu0
      %2120 = vdwg.mxu0
      %2121 = vmatprep.subr.bf16.mxu0 %v1593
      %2122 = vmatpush1.bf16.msra.mxu0 %v1592
      %2123 = vmatprep.subr.bf16.mxu0 %v1584
      %2124 = vmatpush1.bf16.msra.mxu0 %v1583
      %2125 = vmatprep.subr.bf16.mxu0 %v1575
      %2126 = vmatpush1.bf16.msra.mxu0 %v1574
      %2127 = vmatprep.subr.bf16.mxu0 %v1566
      %2128 = vmatpush1.bf16.msra.mxu0 %v1565
      %2129 = vmatprep.subr.bf16.mxu0 %v1557
      %2130 = vmatpush1.bf16.msra.mxu0 %v1556
      %2131 = vmatprep.subr.bf16.mxu0 %v1548
      %2132 = vmatpush1.bf16.msra.mxu0 %v1547
      %2133 = vmatprep.subr.bf16.mxu0 %v1539
      %2134 = vmatpush1.bf16.msra.mxu0 %v1538
      %2135 = vmatprep.subr.bf16.mxu0 %v1530
      %2136 = vmatpush1.bf16.msra.mxu0 %v1529
      %2137 = vmatprep.subr.bf16.mxu0 %v1665
      %2138 = vmatpush2.bf16.msra.mxu0 %v1664
      %2139 = vmatprep.subr.bf16.mxu0 %v1656
      %2140 = vmatpush2.bf16.msra.mxu0 %v1655
      %2141 = vmatprep.subr.bf16.mxu0 %v1647
      %2142 = vmatpush2.bf16.msra.mxu0 %v1646
      %2143 = vmatprep.subr.bf16.mxu0 %v1638
      %2144 = vmatpush2.bf16.msra.mxu0 %v1637
      %2145 = vmatprep.subr.bf16.mxu0 %v1629
      %2146 = vmatpush2.bf16.msra.mxu0 %v1628
      %2147 = vmatprep.subr.bf16.mxu0 %v1620
      %2148 = vmatpush2.bf16.msra.mxu0 %v1619
      %2149 = vmatprep.subr.bf16.mxu0 %v1611
      %2150 = vmatpush2.bf16.msra.mxu0 %v1610
      %2151 = vmatprep.subr.bf16.mxu0 %v1602
      %2152 = vmatpush2.bf16.msra.mxu0 %v1601
      %2153 = vmatprep.mubr.bf16.mxu0 %v562
      %2154 = vmatmul.mubr.bf16.gmra.mxu0 %v561
      %v2155 = vpop.f32.mrf.mxu0
      %v2156 = vadd.f32 %v827, %v2155
      %v2157 = vpop.f32.mrf.mxu0
      %v2158 = vadd.f32 %v831, %v2157
      %v2159 = vpop.f32.mrf.mxu0
      %v2160 = vpop.f32.mrf.mxu0
      %2161 = vdwg.mxu0
      %2162 = vmatprep.subr.bf16.mxu0 %v1737
      %2163 = vmatpush1.bf16.msra.mxu0 %v1736
      %2164 = vmatprep.subr.bf16.mxu0 %v1728
      %2165 = vmatpush1.bf16.msra.mxu0 %v1727
      %2166 = vmatprep.subr.bf16.mxu0 %v1719
      %2167 = vmatpush1.bf16.msra.mxu0 %v1718
      %2168 = vmatprep.subr.bf16.mxu0 %v1710
      %2169 = vmatpush1.bf16.msra.mxu0 %v1709
      %2170 = vmatprep.subr.bf16.mxu0 %v1701
      %2171 = vmatpush1.bf16.msra.mxu0 %v1700
      %2172 = vmatprep.subr.bf16.mxu0 %v1692
      %2173 = vmatpush1.bf16.msra.mxu0 %v1691
      %2174 = vmatprep.subr.bf16.mxu0 %v1683
      %2175 = vmatpush1.bf16.msra.mxu0 %v1682
      %2176 = vmatprep.subr.bf16.mxu0 %v1674
      %2177 = vmatpush1.bf16.msra.mxu0 %v1673
      %2178 = vmatprep.subr.bf16.mxu0 0
      %2179 = vmatpush2.bf16.msra.mxu0 0
      %2180 = vmatprep.subr.bf16.mxu0 0
      %2181 = vmatpush2.bf16.msra.mxu0 0
      %2182 = vmatprep.subr.bf16.mxu0 0
      %2183 = vmatpush2.bf16.msra.mxu0 0
      %2184 = vmatprep.subr.bf16.mxu0 0
      %2185 = vmatpush2.bf16.msra.mxu0 0
      %2186 = vmatprep.subr.bf16.mxu0 0
      %2187 = vmatpush2.bf16.msra.mxu0 0
      %2188 = vmatprep.subr.bf16.mxu0 0
      %2189 = vmatpush2.bf16.msra.mxu0 0
      %2190 = vmatprep.subr.bf16.mxu0 0
      %2191 = vmatpush2.bf16.msra.mxu0 0
      %2192 = vmatprep.subr.bf16.mxu0 0
      %2193 = vmatpush2.bf16.msra.mxu0 0
      %2194 = vmatprep.mubr.bf16.mxu0 0
      %2195 = vmatmul.mubr.bf16.gmra.mxu0 %v563
      %v2196 = vpop.f32.mrf.mxu0
      %v2197 = vadd.f32 %v2156, %v2196
      %v2198 = vpop.f32.mrf.mxu0
      %v2199 = vadd.f32 %v2158, %v2198
      %v2200 = vpop.f32.mrf.mxu0
      %v2201 = vpop.f32.mrf.mxu0
      %2202 = vdwg.mxu0
      %2203 = vmatprep.subr.bf16.mxu0 %v1595
      %2204 = vmatpush1.bf16.msra.mxu0 %v1594
      %2205 = vmatprep.subr.bf16.mxu0 %v1586
      %2206 = vmatpush1.bf16.msra.mxu0 %v1585
      %2207 = vmatprep.subr.bf16.mxu0 %v1577
      %2208 = vmatpush1.bf16.msra.mxu0 %v1576
      %2209 = vmatprep.subr.bf16.mxu0 %v1568
      %2210 = vmatpush1.bf16.msra.mxu0 %v1567
      %2211 = vmatprep.subr.bf16.mxu0 %v1559
      %2212 = vmatpush1.bf16.msra.mxu0 %v1558
      %2213 = vmatprep.subr.bf16.mxu0 %v1550
      %2214 = vmatpush1.bf16.msra.mxu0 %v1549
      %2215 = vmatprep.subr.bf16.mxu0 %v1541
      %2216 = vmatpush1.bf16.msra.mxu0 %v1540
      %2217 = vmatprep.subr.bf16.mxu0 %v1532
      %2218 = vmatpush1.bf16.msra.mxu0 %v1531
      %2219 = vmatprep.subr.bf16.mxu0 %v1667
      %2220 = vmatpush2.bf16.msra.mxu0 %v1666
      %2221 = vmatprep.subr.bf16.mxu0 %v1658
      %2222 = vmatpush2.bf16.msra.mxu0 %v1657
      %2223 = vmatprep.subr.bf16.mxu0 %v1649
      %2224 = vmatpush2.bf16.msra.mxu0 %v1648
      %2225 = vmatprep.subr.bf16.mxu0 %v1640
      %2226 = vmatpush2.bf16.msra.mxu0 %v1639
      %2227 = vmatprep.subr.bf16.mxu0 %v1631
      %2228 = vmatpush2.bf16.msra.mxu0 %v1630
      %2229 = vmatprep.subr.bf16.mxu0 %v1622
      %2230 = vmatpush2.bf16.msra.mxu0 %v1621
      %2231 = vmatprep.subr.bf16.mxu0 %v1613
      %2232 = vmatpush2.bf16.msra.mxu0 %v1612
      %2233 = vmatprep.subr.bf16.mxu0 %v1604
      %2234 = vmatpush2.bf16.msra.mxu0 %v1603
      %2235 = vmatprep.mubr.bf16.mxu0 %v562
      %2236 = vmatmul.mubr.bf16.gmra.mxu0 %v561
      %v2237 = vpop.f32.mrf.mxu0
      %v2238 = vadd.f32 %v835, %v2237
      %v2239 = vpop.f32.mrf.mxu0
      %v2240 = vadd.f32 %v839, %v2239
      %v2241 = vpop.f32.mrf.mxu0
      %v2242 = vpop.f32.mrf.mxu0
      %2243 = vdwg.mxu0
      %2244 = vmatprep.subr.bf16.mxu0 %v1739
      %2245 = vmatpush1.bf16.msra.mxu0 %v1738
      %2246 = vmatprep.subr.bf16.mxu0 %v1730
      %2247 = vmatpush1.bf16.msra.mxu0 %v1729
      %2248 = vmatprep.subr.bf16.mxu0 %v1721
      %2249 = vmatpush1.bf16.msra.mxu0 %v1720
      %2250 = vmatprep.subr.bf16.mxu0 %v1712
      %2251 = vmatpush1.bf16.msra.mxu0 %v1711
      %2252 = vmatprep.subr.bf16.mxu0 %v1703
      %2253 = vmatpush1.bf16.msra.mxu0 %v1702
      %2254 = vmatprep.subr.bf16.mxu0 %v1694
      %2255 = vmatpush1.bf16.msra.mxu0 %v1693
      %2256 = vmatprep.subr.bf16.mxu0 %v1685
      %2257 = vmatpush1.bf16.msra.mxu0 %v1684
      %2258 = vmatprep.subr.bf16.mxu0 %v1676
      %2259 = vmatpush1.bf16.msra.mxu0 %v1675
      %2260 = vmatprep.subr.bf16.mxu0 0
      %2261 = vmatpush2.bf16.msra.mxu0 0
      %2262 = vmatprep.subr.bf16.mxu0 0
      %2263 = vmatpush2.bf16.msra.mxu0 0
      %2264 = vmatprep.subr.bf16.mxu0 0
      %2265 = vmatpush2.bf16.msra.mxu0 0
      %2266 = vmatprep.subr.bf16.mxu0 0
      %2267 = vmatpush2.bf16.msra.mxu0 0
      %2268 = vmatprep.subr.bf16.mxu0 0
      %2269 = vmatpush2.bf16.msra.mxu0 0
      %2270 = vmatprep.subr.bf16.mxu0 0
      %2271 = vmatpush2.bf16.msra.mxu0 0
      %2272 = vmatprep.subr.bf16.mxu0 0
      %2273 = vmatpush2.bf16.msra.mxu0 0
      %2274 = vmatprep.subr.bf16.mxu0 0
      %2275 = vmatpush2.bf16.msra.mxu0 0
      %2276 = vmatprep.mubr.bf16.mxu0 0
      %2277 = vmatmul.mubr.bf16.gmra.mxu0 %v563
      %v2278 = vpop.f32.mrf.mxu0
      %v2279 = vadd.f32 %v2238, %v2278
      %v2280 = vpop.f32.mrf.mxu0
      %v2281 = vadd.f32 %v2240, %v2280
      %v2282 = vpop.f32.mrf.mxu0
      %v2283 = vpop.f32.mrf.mxu0
      %2284 = vdwg.mxu0
      %2285 = vmatprep.subr.bf16.mxu0 0
      %2286 = vmatpush1.bf16.msra.mxu0 %v1596
      %2287 = vmatprep.subr.bf16.mxu0 0
      %2288 = vmatpush1.bf16.msra.mxu0 %v1587
      %2289 = vmatprep.subr.bf16.mxu0 0
      %2290 = vmatpush1.bf16.msra.mxu0 %v1578
      %2291 = vmatprep.subr.bf16.mxu0 0
      %2292 = vmatpush1.bf16.msra.mxu0 %v1569
      %2293 = vmatprep.subr.bf16.mxu0 0
      %2294 = vmatpush1.bf16.msra.mxu0 %v1560
      %2295 = vmatprep.subr.bf16.mxu0 0
      %2296 = vmatpush1.bf16.msra.mxu0 %v1551
      %2297 = vmatprep.subr.bf16.mxu0 0
      %2298 = vmatpush1.bf16.msra.mxu0 %v1542
      %2299 = vmatprep.subr.bf16.mxu0 0
      %2300 = vmatpush1.bf16.msra.mxu0 %v1533
      %2301 = vmatprep.subr.bf16.mxu0 0
      %2302 = vmatpush2.bf16.msra.mxu0 %v1668
      %2303 = vmatprep.subr.bf16.mxu0 0
      %2304 = vmatpush2.bf16.msra.mxu0 %v1659
      %2305 = vmatprep.subr.bf16.mxu0 0
      %2306 = vmatpush2.bf16.msra.mxu0 %v1650
      %2307 = vmatprep.subr.bf16.mxu0 0
      %2308 = vmatpush2.bf16.msra.mxu0 %v1641
      %2309 = vmatprep.subr.bf16.mxu0 0
      %2310 = vmatpush2.bf16.msra.mxu0 %v1632
      %2311 = vmatprep.subr.bf16.mxu0 0
      %2312 = vmatpush2.bf16.msra.mxu0 %v1623
      %2313 = vmatprep.subr.bf16.mxu0 0
      %2314 = vmatpush2.bf16.msra.mxu0 %v1614
      %2315 = vmatprep.subr.bf16.mxu0 0
      %2316 = vmatpush2.bf16.msra.mxu0 %v1605
      %2317 = vmatprep.mubr.bf16.mxu0 %v562
      %2318 = vmatmul.mubr.bf16.gmra.mxu0 %v561
      %v2319 = vpop.f32.mrf.mxu0
      %v2320 = vadd.f32 %v843, %v2319
      %v2321 = vpop.f32.mrf.mxu0
      %v2322 = vpop.f32.mrf.mxu0
      %v2323 = vpop.f32.mrf.mxu0
      %2324 = vdwg.mxu0
      %2325 = vmatprep.subr.bf16.mxu0 0
      %2326 = vmatpush1.bf16.msra.mxu0 %v1740
      %2327 = vmatprep.subr.bf16.mxu0 0
      %2328 = vmatpush1.bf16.msra.mxu0 %v1731
      %2329 = vmatprep.subr.bf16.mxu0 0
      %2330 = vmatpush1.bf16.msra.mxu0 %v1722
      %2331 = vmatprep.subr.bf16.mxu0 0
      %2332 = vmatpush1.bf16.msra.mxu0 %v1713
      %2333 = vmatprep.subr.bf16.mxu0 0
      %2334 = vmatpush1.bf16.msra.mxu0 %v1704
      %2335 = vmatprep.subr.bf16.mxu0 0
      %2336 = vmatpush1.bf16.msra.mxu0 %v1695
      %2337 = vmatprep.subr.bf16.mxu0 0
      %2338 = vmatpush1.bf16.msra.mxu0 %v1686
      %2339 = vmatprep.subr.bf16.mxu0 0
      %2340 = vmatpush1.bf16.msra.mxu0 %v1677
      %2341 = vmatprep.subr.bf16.mxu0 0
      %2342 = vmatpush2.bf16.msra.mxu0 0
      %2343 = vmatprep.subr.bf16.mxu0 0
      %2344 = vmatpush2.bf16.msra.mxu0 0
      %2345 = vmatprep.subr.bf16.mxu0 0
      %2346 = vmatpush2.bf16.msra.mxu0 0
      %2347 = vmatprep.subr.bf16.mxu0 0
      %2348 = vmatpush2.bf16.msra.mxu0 0
      %2349 = vmatprep.subr.bf16.mxu0 0
      %2350 = vmatpush2.bf16.msra.mxu0 0
      %2351 = vmatprep.subr.bf16.mxu0 0
      %2352 = vmatpush2.bf16.msra.mxu0 0
      %2353 = vmatprep.subr.bf16.mxu0 0
      %2354 = vmatpush2.bf16.msra.mxu0 0
      %2355 = vmatprep.subr.bf16.mxu0 0
      %2356 = vmatpush2.bf16.msra.mxu0 0
      %2357 = vmatprep.mubr.bf16.mxu0 0
      %2358 = vmatmul.mubr.bf16.gmra.mxu0 %v563
      %v2359 = vpop.f32.mrf.mxu0
      %v2360 = vadd.f32 %v2320, %v2359
      %v2361 = vpop.f32.mrf.mxu0
      %v2362 = vpop.f32.mrf.mxu0
      %v2363 = vpop.f32.mrf.mxu0
      %2364 = vdwg.mxu0
      %2365 = vst [vmem:[#allocation2] sm:$0xff] %v2033
      %2366 = vst [vmem:[#allocation2 + $0x8] sm:$0xff] %v2035
      %2367 = vst [vmem:[#allocation2 + $0x10] sm:$0xff] %v2115
      %2368 = vst [vmem:[#allocation2 + $0x18] sm:$0xff] %v2117
      %2369 = vst [vmem:[#allocation2 + $0x20] sm:$0xff] %v2197
      %2370 = vst [vmem:[#allocation2 + $0x28] sm:$0xff] %v2199
      %2371 = vst [vmem:[#allocation2 + $0x30] sm:$0xff] %v2279
      %2372 = vst [vmem:[#allocation2 + $0x38] sm:$0xff] %v2281
      %2373 = vst [vmem:[#allocation2 + $0x40] sm:$0xff] %v2360
      %v2374 = vlaneseq
      %v2375 = vand.u32 %v2374, 127
      %vm2376 = vcmp.lt.s32.totalorder %v2375, 5
      %v2377 = vsel %vm2376, 0.0, -1e+30
      %v2378 = vld [vmem:[#allocation2] sm:$0xff]
      %v2379 = vpack.c.bf16 %v2378, %v2378
      %v2380 = vld [vmem:[#allocation2 + $0x18] sm:$0xff]
      %v2381 = vpack.c.bf16 %v2380, %v2380
      %v2382 = vld [vmem:[#allocation2 + $0x30] sm:$0xff]
      %v2383 = vpack.c.bf16 %v2382, %v2382
      %vm2384 = vcmask 523264
      %v2386 = vsel %vm2384, %v2379, 0
      %v2389 = vsel %vm2384, %v2381, 0
      %2391 = vmatprep.subr.bf16.mxu0 0
      %2392 = vmatpush1.bf16.xpose.msra.mxu0 0
      %2393 = vmatprep.subr.bf16.mxu0 0
      %2394 = vmatpush1.bf16.xpose.msra.mxu0 0
      %2395 = vmatprep.subr.bf16.mxu0 0
      %2396 = vmatpush1.bf16.xpose.msra.mxu0 0
      %2397 = vmatprep.subr.bf16.mxu0 0
      %2398 = vmatpush1.bf16.xpose.msra.mxu0 0
      %2399 = vmatprep.subr.bf16.mxu0 0
      %2400 = vmatpush1.bf16.xpose.msra.mxu0 0
      %2401 = vmatprep.subr.bf16.mxu0 0
      %2402 = vmatpush1.bf16.xpose.msra.mxu0 0
      %2403 = vmatprep.subr.bf16.mxu0 0
      %2404 = vmatpush1.bf16.xpose.msra.mxu0 0
      %2405 = vmatprep.subr.bf16.mxu0 0
      %2406 = vmatpush1.bf16.xpose.msra.mxu0 %v2389
      %2407 = vmatprep.subr.bf16.mxu0 0
      %2408 = vmatpush2.bf16.xpose.msra.mxu0 0
      %2409 = vmatprep.subr.bf16.mxu0 0
      %2410 = vmatpush2.bf16.xpose.msra.mxu0 0
      %2411 = vmatprep.subr.bf16.mxu0 0
      %2412 = vmatpush2.bf16.xpose.msra.mxu0 0
      %2413 = vmatprep.subr.bf16.mxu0 0
      %2414 = vmatpush2.bf16.xpose.msra.mxu0 0
      %2415 = vmatprep.subr.bf16.mxu0 0
      %2416 = vmatpush2.bf16.xpose.msra.mxu0 0
      %2417 = vmatprep.subr.bf16.mxu0 0
      %2418 = vmatpush2.bf16.xpose.msra.mxu0 0
      %2419 = vmatprep.subr.bf16.mxu0 0
      %2420 = vmatpush2.bf16.xpose.msra.mxu0 0
      %2421 = vmatprep.subr.bf16.mxu0 0
      %2422 = vmatpush2.bf16.xpose.msra.mxu0 0
      %2423 = vmatprep.mubr.bf16.mxu0 0
      %2424 = vmatmul.mubr.bf16.gmra.mxu0 %v2386
      %v2425 = vpop.f32.mrf.mxu0
      %v2426 = vadd.f32 0.0, %v2425
      %v2427 = vpop.f32.mrf.mxu0
      %v2428 = vpop.f32.mrf.mxu0
      %v2429 = vpop.f32.mrf.mxu0
      %2430 = vdwg.mxu0
      %v2431 = vmul.f32 %v2426, 0.125
      %v2432 = vadd.f32 %v2431, %v2377
      %vm2433 = vcmask 64512
      %v2434 = vsel %vm2433, %v2432, -inf
      %2435 = vmax.xlane.f32.xlu0 %v2434
      %v2436 = vpop.xlane.xlu0 %2435
      %v2437 = vsub.f32 %v2432, %v2436
      %v2438 = vmul.f32 %v2437, 1.442695
      %v2439 = vpow.pop %v2438
      %v2440 = vsel %vm2433, %v2439, 0.0
      %2441 = vadd.xlane.f32.xlu0 %v2440
      %v2442 = vpop.xlane.xlu0 %2441
      %v2443 = vpack.c.bf16 %v2439, %v2439
      %v2445 = vsel %vm2433, %v2443, 0
      %vm2447 = vcmask 1043456
      %v2449 = vsel %vm2447, %v2383, 0
      %2451 = vmatprep.subr.bf16.mxu0 0
      %2452 = vmatpush1.bf16.msra.mxu0 0
      %2453 = vmatprep.subr.bf16.mxu0 0
      %2454 = vmatpush1.bf16.msra.mxu0 0
      %2455 = vmatprep.subr.bf16.mxu0 0
      %2456 = vmatpush1.bf16.msra.mxu0 0
      %2457 = vmatprep.subr.bf16.mxu0 0
      %2458 = vmatpush1.bf16.msra.mxu0 0
      %2459 = vmatprep.subr.bf16.mxu0 0
      %2460 = vmatpush1.bf16.msra.mxu0 0
      %2461 = vmatprep.subr.bf16.mxu0 0
      %2462 = vmatpush1.bf16.msra.mxu0 0
      %2463 = vmatprep.subr.bf16.mxu0 0
      %2464 = vmatpush1.bf16.msra.mxu0 0
      %2465 = vmatprep.subr.bf16.mxu0 0
      %2466 = vmatpush1.bf16.msra.mxu0 %v2449
      %2467 = vmatprep.subr.bf16.mxu0 0
      %2468 = vmatpush2.bf16.msra.mxu0 0
      %2469 = vmatprep.subr.bf16.mxu0 0
      %2470 = vmatpush2.bf16.msra.mxu0 0
      %2471 = vmatprep.subr.bf16.mxu0 0
      %2472 = vmatpush2.bf16.msra.mxu0 0
      %2473 = vmatprep.subr.bf16.mxu0 0
      %2474 = vmatpush2.bf16.msra.mxu0 0
      %2475 = vmatprep.subr.bf16.mxu0 0
      %2476 = vmatpush2.bf16.msra.mxu0 0
      %2477 = vmatprep.subr.bf16.mxu0 0
      %2478 = vmatpush2.bf16.msra.mxu0 0
      %2479 = vmatprep.subr.bf16.mxu0 0
      %2480 = vmatpush2.bf16.msra.mxu0 0
      %2481 = vmatprep.subr.bf16.mxu0 0
      %2482 = vmatpush2.bf16.msra.mxu0 0
      %2483 = vmatprep.mubr.bf16.mxu0 0
      %2484 = vmatmul.mubr.bf16.gmra.mxu0 %v2445
      %v2485 = vpop.f32.mrf.mxu0
      %v2486 = vadd.f32 0.0, %v2485
      %v2487 = vpop.f32.mrf.mxu0
      %v2488 = vpop.f32.mrf.mxu0
      %v2489 = vpop.f32.mrf.mxu0
      %2490 = vdwg.mxu0
      %v2491 = vrcp.pop %v2442
      %v2492 = vmul.f32 %v2486, %v2491
      %2493 = vst.msk [vmem:[#allocation3] sm:$0xff] %vm2384, %v2492
      %v2494 = vld [vmem:[#allocation2] sm:$0xff]
      %v2495 = vpack.c.bf16 %v2494, %v2494
      %v2496 = vld [vmem:[#allocation2 + $0x18] sm:$0xff]
      %v2497 = vpack.c.bf16 %v2496, %v2496
      %v2498 = vld [vmem:[#allocation2 + $0x30] sm:$0xff]
      %v2499 = vpack.c.bf16 %v2498, %v2498
      %2501 = vrot.lane.b32.xlu0 %v2495, 64
      %v2502 = vpop.permute.xlu0 %2501
      %2504 = vrot.lane.b32.xlu0 %v2497, 64
      %v2505 = vpop.permute.xlu0 %2504
      %v2507 = vsel %vm2384, %v2502, 0
      %v2510 = vsel %vm2384, %v2505, 0
      %2512 = vmatprep.subr.bf16.mxu0 0
      %2513 = vmatpush1.bf16.xpose.msra.mxu0 0
      %2514 = vmatprep.subr.bf16.mxu0 0
      %2515 = vmatpush1.bf16.xpose.msra.mxu0 0
      %2516 = vmatprep.subr.bf16.mxu0 0
      %2517 = vmatpush1.bf16.xpose.msra.mxu0 0
      %2518 = vmatprep.subr.bf16.mxu0 0
      %2519 = vmatpush1.bf16.xpose.msra.mxu0 0
      %2520 = vmatprep.subr.bf16.mxu0 0
      %2521 = vmatpush1.bf16.xpose.msra.mxu0 0
      %2522 = vmatprep.subr.bf16.mxu0 0
      %2523 = vmatpush1.bf16.xpose.msra.mxu0 0
      %2524 = vmatprep.subr.bf16.mxu0 0
      %2525 = vmatpush1.bf16.xpose.msra.mxu0 0
      %2526 = vmatprep.subr.bf16.mxu0 0
      %2527 = vmatpush1.bf16.xpose.msra.mxu0 %v2510
      %2528 = vmatprep.subr.bf16.mxu0 0
      %2529 = vmatpush2.bf16.xpose.msra.mxu0 0
      %2530 = vmatprep.subr.bf16.mxu0 0
      %2531 = vmatpush2.bf16.xpose.msra.mxu0 0
      %2532 = vmatprep.subr.bf16.mxu0 0
      %2533 = vmatpush2.bf16.xpose.msra.mxu0 0
      %2534 = vmatprep.subr.bf16.mxu0 0
      %2535 = vmatpush2.bf16.xpose.msra.mxu0 0
      %2536 = vmatprep.subr.bf16.mxu0 0
      %2537 = vmatpush2.bf16.xpose.msra.mxu0 0
      %2538 = vmatprep.subr.bf16.mxu0 0
      %2539 = vmatpush2.bf16.xpose.msra.mxu0 0
      %2540 = vmatprep.subr.bf16.mxu0 0
      %2541 = vmatpush2.bf16.xpose.msra.mxu0 0
      %2542 = vmatprep.subr.bf16.mxu0 0
      %2543 = vmatpush2.bf16.xpose.msra.mxu0 0
      %2544 = vmatprep.mubr.bf16.mxu0 0
      %2545 = vmatmul.mubr.bf16.gmra.mxu0 %v2507
      %v2546 = vpop.f32.mrf.mxu0
      %v2547 = vadd.f32 0.0, %v2546
      %v2548 = vpop.f32.mrf.mxu0
      %v2549 = vpop.f32.mrf.mxu0
      %v2550 = vpop.f32.mrf.mxu0
      %2551 = vdwg.mxu0
      %v2552 = vmul.f32 %v2547, 0.125
      %v2553 = vadd.f32 %v2552, %v2377
      %v2554 = vsel %vm2433, %v2553, -inf
      %2555 = vmax.xlane.f32.xlu0 %v2554
      %v2556 = vpop.xlane.xlu0 %2555
      %v2557 = vsub.f32 %v2553, %v2556
      %v2558 = vmul.f32 %v2557, 1.442695
      %v2559 = vpow.pop %v2558
      %v2560 = vsel %vm2433, %v2559, 0.0
      %2561 = vadd.xlane.f32.xlu0 %v2560
      %v2562 = vpop.xlane.xlu0 %2561
      %v2563 = vpack.c.bf16 %v2559, %v2559
      %2565 = vrot.lane.b32.xlu0 %v2499, 64
      %v2566 = vpop.permute.xlu0 %2565
      %v2568 = vsel %vm2433, %v2563, 0
      %v2571 = vsel %vm2447, %v2566, 0
      %2573 = vmatprep.subr.bf16.mxu0 0
      %2574 = vmatpush1.bf16.msra.mxu0 0
      %2575 = vmatprep.subr.bf16.mxu0 0
      %2576 = vmatpush1.bf16.msra.mxu0 0
      %2577 = vmatprep.subr.bf16.mxu0 0
      %2578 = vmatpush1.bf16.msra.mxu0 0
      %2579 = vmatprep.subr.bf16.mxu0 0
      %2580 = vmatpush1.bf16.msra.mxu0 0
      %2581 = vmatprep.subr.bf16.mxu0 0
      %2582 = vmatpush1.bf16.msra.mxu0 0
      %2583 = vmatprep.subr.bf16.mxu0 0
      %2584 = vmatpush1.bf16.msra.mxu0 0
      %2585 = vmatprep.subr.bf16.mxu0 0
      %2586 = vmatpush1.bf16.msra.mxu0 0
      %2587 = vmatprep.subr.bf16.mxu0 0
      %2588 = vmatpush1.bf16.msra.mxu0 %v2571
      %2589 = vmatprep.subr.bf16.mxu0 0
      %2590 = vmatpush2.bf16.msra.mxu0 0
      %2591 = vmatprep.subr.bf16.mxu0 0
      %2592 = vmatpush2.bf16.msra.mxu0 0
      %2593 = vmatprep.subr.bf16.mxu0 0
      %2594 = vmatpush2.bf16.msra.mxu0 0
      %2595 = vmatprep.subr.bf16.mxu0 0
      %2596 = vmatpush2.bf16.msra.mxu0 0
      %2597 = vmatprep.subr.bf16.mxu0 0
      %2598 = vmatpush2.bf16.msra.mxu0 0
      %2599 = vmatprep.subr.bf16.mxu0 0
      %2600 = vmatpush2.bf16.msra.mxu0 0
      %2601 = vmatprep.subr.bf16.mxu0 0
      %2602 = vmatpush2.bf16.msra.mxu0 0
      %2603 = vmatprep.subr.bf16.mxu0 0
      %2604 = vmatpush2.bf16.msra.mxu0 0
      %2605 = vmatprep.mubr.bf16.mxu0 0
      %2606 = vmatmul.mubr.bf16.gmra.mxu0 %v2568
      %v2607 = vpop.f32.mrf.mxu0
      %v2608 = vadd.f32 0.0, %v2607
      %v2609 = vpop.f32.mrf.mxu0
      %v2610 = vpop.f32.mrf.mxu0
      %v2611 = vpop.f32.mrf.mxu0
      %2612 = vdwg.mxu0
      %v2613 = vrcp.pop %v2562
      %v2614 = vmul.f32 %v2608, %v2613
      %2616 = vrot.lane.b32.xlu0 %v2614, 64
      %v2617 = vpop.permute.xlu0 %2616
      %vm2619 = vcmask 1048064
      %2620 = vst.msk [vmem:[#allocation3] sm:$0xff] %vm2619, %v2617
      %v2621 = vld [vmem:[#allocation2 + $0x8] sm:$0xff]
      %v2622 = vpack.c.bf16 %v2621, %v2621
      %v2623 = vld [vmem:[#allocation2 + $0x20] sm:$0xff]
      %v2624 = vpack.c.bf16 %v2623, %v2623
      %v2625 = vld [vmem:[#allocation2 + $0x38] sm:$0xff]
      %v2626 = vpack.c.bf16 %v2625, %v2625
      %v2628 = vsel %vm2384, %v2622, 0
      %v2631 = vsel %vm2384, %v2624, 0
      %2633 = vmatprep.subr.bf16.mxu0 0
      %2634 = vmatpush1.bf16.xpose.msra.mxu0 0
      %2635 = vmatprep.subr.bf16.mxu0 0
      %2636 = vmatpush1.bf16.xpose.msra.mxu0 0
      %2637 = vmatprep.subr.bf16.mxu0 0
      %2638 = vmatpush1.bf16.xpose.msra.mxu0 0
      %2639 = vmatprep.subr.bf16.mxu0 0
      %2640 = vmatpush1.bf16.xpose.msra.mxu0 0
      %2641 = vmatprep.subr.bf16.mxu0 0
      %2642 = vmatpush1.bf16.xpose.msra.mxu0 0
      %2643 = vmatprep.subr.bf16.mxu0 0
      %2644 = vmatpush1.bf16.xpose.msra.mxu0 0
      %2645 = vmatprep.subr.bf16.mxu0 0
      %2646 = vmatpush1.bf16.xpose.msra.mxu0 0
      %2647 = vmatprep.subr.bf16.mxu0 0
      %2648 = vmatpush1.bf16.xpose.msra.mxu0 %v2631
      %2649 = vmatprep.subr.bf16.mxu0 0
      %2650 = vmatpush2.bf16.xpose.msra.mxu0 0
      %2651 = vmatprep.subr.bf16.mxu0 0
      %2652 = vmatpush2.bf16.xpose.msra.mxu0 0
      %2653 = vmatprep.subr.bf16.mxu0 0
      %2654 = vmatpush2.bf16.xpose.msra.mxu0 0
      %2655 = vmatprep.subr.bf16.mxu0 0
      %2656 = vmatpush2.bf16.xpose.msra.mxu0 0
      %2657 = vmatprep.subr.bf16.mxu0 0
      %2658 = vmatpush2.bf16.xpose.msra.mxu0 0
      %2659 = vmatprep.subr.bf16.mxu0 0
      %2660 = vmatpush2.bf16.xpose.msra.mxu0 0
      %2661 = vmatprep.subr.bf16.mxu0 0
      %2662 = vmatpush2.bf16.xpose.msra.mxu0 0
      %2663 = vmatprep.subr.bf16.mxu0 0
      %2664 = vmatpush2.bf16.xpose.msra.mxu0 0
      %2665 = vmatprep.mubr.bf16.mxu0 0
      %2666 = vmatmul.mubr.bf16.gmra.mxu0 %v2628
      %v2667 = vpop.f32.mrf.mxu0
      %v2668 = vadd.f32 0.0, %v2667
      %v2669 = vpop.f32.mrf.mxu0
      %v2670 = vpop.f32.mrf.mxu0
      %v2671 = vpop.f32.mrf.mxu0
      %2672 = vdwg.mxu0
      %v2673 = vmul.f32 %v2668, 0.125
      %v2674 = vadd.f32 %v2673, %v2377
      %v2675 = vsel %vm2433, %v2674, -inf
      %2676 = vmax.xlane.f32.xlu0 %v2675
      %v2677 = vpop.xlane.xlu0 %2676
      %v2678 = vsub.f32 %v2674, %v2677
      %v2679 = vmul.f32 %v2678, 1.442695
      %v2680 = vpow.pop %v2679
      %v2681 = vsel %vm2433, %v2680, 0.0
      %2682 = vadd.xlane.f32.xlu0 %v2681
      %v2683 = vpop.xlane.xlu0 %2682
      %v2684 = vpack.c.bf16 %v2680, %v2680
      %v2686 = vsel %vm2433, %v2684, 0
      %v2689 = vsel %vm2447, %v2626, 0
      %2691 = vmatprep.subr.bf16.mxu0 0
      %2692 = vmatpush1.bf16.msra.mxu0 0
      %2693 = vmatprep.subr.bf16.mxu0 0
      %2694 = vmatpush1.bf16.msra.mxu0 0
      %2695 = vmatprep.subr.bf16.mxu0 0
      %2696 = vmatpush1.bf16.msra.mxu0 0
      %2697 = vmatprep.subr.bf16.mxu0 0
      %2698 = vmatpush1.bf16.msra.mxu0 0
      %2699 = vmatprep.subr.bf16.mxu0 0
      %2700 = vmatpush1.bf16.msra.mxu0 0
      %2701 = vmatprep.subr.bf16.mxu0 0
      %2702 = vmatpush1.bf16.msra.mxu0 0
      %2703 = vmatprep.subr.bf16.mxu0 0
      %2704 = vmatpush1.bf16.msra.mxu0 0
      %2705 = vmatprep.subr.bf16.mxu0 0
      %2706 = vmatpush1.bf16.msra.mxu0 %v2689
      %2707 = vmatprep.subr.bf16.mxu0 0
      %2708 = vmatpush2.bf16.msra.mxu0 0
      %2709 = vmatprep.subr.bf16.mxu0 0
      %2710 = vmatpush2.bf16.msra.mxu0 0
      %2711 = vmatprep.subr.bf16.mxu0 0
      %2712 = vmatpush2.bf16.msra.mxu0 0
      %2713 = vmatprep.subr.bf16.mxu0 0
      %2714 = vmatpush2.bf16.msra.mxu0 0
      %2715 = vmatprep.subr.bf16.mxu0 0
      %2716 = vmatpush2.bf16.msra.mxu0 0
      %2717 = vmatprep.subr.bf16.mxu0 0
      %2718 = vmatpush2.bf16.msra.mxu0 0
      %2719 = vmatprep.subr.bf16.mxu0 0
      %2720 = vmatpush2.bf16.msra.mxu0 0
      %2721 = vmatprep.subr.bf16.mxu0 0
      %2722 = vmatpush2.bf16.msra.mxu0 0
      %2723 = vmatprep.mubr.bf16.mxu0 0
      %2724 = vmatmul.mubr.bf16.gmra.mxu0 %v2686
      %v2725 = vpop.f32.mrf.mxu0
      %v2726 = vadd.f32 0.0, %v2725
      %v2727 = vpop.f32.mrf.mxu0
      %v2728 = vpop.f32.mrf.mxu0
      %v2729 = vpop.f32.mrf.mxu0
      %2730 = vdwg.mxu0
      %v2731 = vrcp.pop %v2683
      %v2732 = vmul.f32 %v2726, %v2731
      %2733 = vst.msk [vmem:[#allocation3 + $0x8] sm:$0xff] %vm2384, %v2732
      %v2734 = vld [vmem:[#allocation2 + $0x8] sm:$0xff]
      %v2735 = vpack.c.bf16 %v2734, %v2734
      %v2736 = vld [vmem:[#allocation2 + $0x20] sm:$0xff]
      %v2737 = vpack.c.bf16 %v2736, %v2736
      %v2738 = vld [vmem:[#allocation2 + $0x38] sm:$0xff]
      %v2739 = vpack.c.bf16 %v2738, %v2738
      %2741 = vrot.lane.b32.xlu0 %v2735, 64
      %v2742 = vpop.permute.xlu0 %2741
      %2744 = vrot.lane.b32.xlu0 %v2737, 64
      %v2745 = vpop.permute.xlu0 %2744
      %v2747 = vsel %vm2384, %v2742, 0
      %v2750 = vsel %vm2384, %v2745, 0
      %2752 = vmatprep.subr.bf16.mxu0 0
      %2753 = vmatpush1.bf16.xpose.msra.mxu0 0
      %2754 = vmatprep.subr.bf16.mxu0 0
      %2755 = vmatpush1.bf16.xpose.msra.mxu0 0
      %2756 = vmatprep.subr.bf16.mxu0 0
      %2757 = vmatpush1.bf16.xpose.msra.mxu0 0
      %2758 = vmatprep.subr.bf16.mxu0 0
      %2759 = vmatpush1.bf16.xpose.msra.mxu0 0
      %2760 = vmatprep.subr.bf16.mxu0 0
      %2761 = vmatpush1.bf16.xpose.msra.mxu0 0
      %2762 = vmatprep.subr.bf16.mxu0 0
      %2763 = vmatpush1.bf16.xpose.msra.mxu0 0
      %2764 = vmatprep.subr.bf16.mxu0 0
      %2765 = vmatpush1.bf16.xpose.msra.mxu0 0
      %2766 = vmatprep.subr.bf16.mxu0 0
      %2767 = vmatpush1.bf16.xpose.msra.mxu0 %v2750
      %2768 = vmatprep.subr.bf16.mxu0 0
      %2769 = vmatpush2.bf16.xpose.msra.mxu0 0
      %2770 = vmatprep.subr.bf16.mxu0 0
      %2771 = vmatpush2.bf16.xpose.msra.mxu0 0
      %2772 = vmatprep.subr.bf16.mxu0 0
      %2773 = vmatpush2.bf16.xpose.msra.mxu0 0
      %2774 = vmatprep.subr.bf16.mxu0 0
      %2775 = vmatpush2.bf16.xpose.msra.mxu0 0
      %2776 = vmatprep.subr.bf16.mxu0 0
      %2777 = vmatpush2.bf16.xpose.msra.mxu0 0
      %2778 = vmatprep.subr.bf16.mxu0 0
      %2779 = vmatpush2.bf16.xpose.msra.mxu0 0
      %2780 = vmatprep.subr.bf16.mxu0 0
      %2781 = vmatpush2.bf16.xpose.msra.mxu0 0
      %2782 = vmatprep.subr.bf16.mxu0 0
      %2783 = vmatpush2.bf16.xpose.msra.mxu0 0
      %2784 = vmatprep.mubr.bf16.mxu0 0
      %2785 = vmatmul.mubr.bf16.gmra.mxu0 %v2747
      %v2786 = vpop.f32.mrf.mxu0
      %v2787 = vadd.f32 0.0, %v2786
      %v2788 = vpop.f32.mrf.mxu0
      %v2789 = vpop.f32.mrf.mxu0
      %v2790 = vpop.f32.mrf.mxu0
      %2791 = vdwg.mxu0
      %v2792 = vmul.f32 %v2787, 0.125
      %v2793 = vadd.f32 %v2792, %v2377
      %v2794 = vsel %vm2433, %v2793, -inf
      %2795 = vmax.xlane.f32.xlu0 %v2794
      %v2796 = vpop.xlane.xlu0 %2795
      %v2797 = vsub.f32 %v2793, %v2796
      %v2798 = vmul.f32 %v2797, 1.442695
      %v2799 = vpow.pop %v2798
      %v2800 = vsel %vm2433, %v2799, 0.0
      %2801 = vadd.xlane.f32.xlu0 %v2800
      %v2802 = vpop.xlane.xlu0 %2801
      %v2803 = vpack.c.bf16 %v2799, %v2799
      %2805 = vrot.lane.b32.xlu0 %v2739, 64
      %v2806 = vpop.permute.xlu0 %2805
      %v2808 = vsel %vm2433, %v2803, 0
      %v2811 = vsel %vm2447, %v2806, 0
      %2813 = vmatprep.subr.bf16.mxu0 0
      %2814 = vmatpush1.bf16.msra.mxu0 0
      %2815 = vmatprep.subr.bf16.mxu0 0
      %2816 = vmatpush1.bf16.msra.mxu0 0
      %2817 = vmatprep.subr.bf16.mxu0 0
      %2818 = vmatpush1.bf16.msra.mxu0 0
      %2819 = vmatprep.subr.bf16.mxu0 0
      %2820 = vmatpush1.bf16.msra.mxu0 0
      %2821 = vmatprep.subr.bf16.mxu0 0
      %2822 = vmatpush1.bf16.msra.mxu0 0
      %2823 = vmatprep.subr.bf16.mxu0 0
      %2824 = vmatpush1.bf16.msra.mxu0 0
      %2825 = vmatprep.subr.bf16.mxu0 0
      %2826 = vmatpush1.bf16.msra.mxu0 0
      %2827 = vmatprep.subr.bf16.mxu0 0
      %2828 = vmatpush1.bf16.msra.mxu0 %v2811
      %2829 = vmatprep.subr.bf16.mxu0 0
      %2830 = vmatpush2.bf16.msra.mxu0 0
      %2831 = vmatprep.subr.bf16.mxu0 0
      %2832 = vmatpush2.bf16.msra.mxu0 0
      %2833 = vmatprep.subr.bf16.mxu0 0
      %2834 = vmatpush2.bf16.msra.mxu0 0
      %2835 = vmatprep.subr.bf16.mxu0 0
      %2836 = vmatpush2.bf16.msra.mxu0 0
      %2837 = vmatprep.subr.bf16.mxu0 0
      %2838 = vmatpush2.bf16.msra.mxu0 0
      %2839 = vmatprep.subr.bf16.mxu0 0
      %2840 = vmatpush2.bf16.msra.mxu0 0
      %2841 = vmatprep.subr.bf16.mxu0 0
      %2842 = vmatpush2.bf16.msra.mxu0 0
      %2843 = vmatprep.subr.bf16.mxu0 0
      %2844 = vmatpush2.bf16.msra.mxu0 0
      %2845 = vmatprep.mubr.bf16.mxu0 0
      %2846 = vmatmul.mubr.bf16.gmra.mxu0 %v2808
      %v2847 = vpop.f32.mrf.mxu0
      %v2848 = vadd.f32 0.0, %v2847
      %v2849 = vpop.f32.mrf.mxu0
      %v2850 = vpop.f32.mrf.mxu0
      %v2851 = vpop.f32.mrf.mxu0
      %2852 = vdwg.mxu0
      %v2853 = vrcp.pop %v2802
      %v2854 = vmul.f32 %v2848, %v2853
      %2856 = vrot.lane.b32.xlu0 %v2854, 64
      %v2857 = vpop.permute.xlu0 %2856
      %2859 = vst.msk [vmem:[#allocation3 + $0x8] sm:$0xff] %vm2619, %v2857
      %v2860 = vld [vmem:[#allocation2 + $0x10] sm:$0xff]
      %v2861 = vpack.c.bf16 %v2860, %v2860
      %v2862 = vld [vmem:[#allocation2 + $0x28] sm:$0xff]
      %v2863 = vpack.c.bf16 %v2862, %v2862
      %v2864 = vld [vmem:[#allocation2 + $0x40] sm:$0xff]
      %v2865 = vpack.c.bf16 %v2864, %v2864
      %v2867 = vsel %vm2384, %v2861, 0
      %v2870 = vsel %vm2384, %v2863, 0
      %2872 = vmatprep.subr.bf16.mxu0 0
      %2873 = vmatpush1.bf16.xpose.msra.mxu0 0
      %2874 = vmatprep.subr.bf16.mxu0 0
      %2875 = vmatpush1.bf16.xpose.msra.mxu0 0
      %2876 = vmatprep.subr.bf16.mxu0 0
      %2877 = vmatpush1.bf16.xpose.msra.mxu0 0
      %2878 = vmatprep.subr.bf16.mxu0 0
      %2879 = vmatpush1.bf16.xpose.msra.mxu0 0
      %2880 = vmatprep.subr.bf16.mxu0 0
      %2881 = vmatpush1.bf16.xpose.msra.mxu0 0
      %2882 = vmatprep.subr.bf16.mxu0 0
      %2883 = vmatpush1.bf16.xpose.msra.mxu0 0
      %2884 = vmatprep.subr.bf16.mxu0 0
      %2885 = vmatpush1.bf16.xpose.msra.mxu0 0
      %2886 = vmatprep.subr.bf16.mxu0 0
      %2887 = vmatpush1.bf16.xpose.msra.mxu0 %v2870
      %2888 = vmatprep.subr.bf16.mxu0 0
      %2889 = vmatpush2.bf16.xpose.msra.mxu0 0
      %2890 = vmatprep.subr.bf16.mxu0 0
      %2891 = vmatpush2.bf16.xpose.msra.mxu0 0
      %2892 = vmatprep.subr.bf16.mxu0 0
      %2893 = vmatpush2.bf16.xpose.msra.mxu0 0
      %2894 = vmatprep.subr.bf16.mxu0 0
      %2895 = vmatpush2.bf16.xpose.msra.mxu0 0
      %2896 = vmatprep.subr.bf16.mxu0 0
      %2897 = vmatpush2.bf16.xpose.msra.mxu0 0
      %2898 = vmatprep.subr.bf16.mxu0 0
      %2899 = vmatpush2.bf16.xpose.msra.mxu0 0
      %2900 = vmatprep.subr.bf16.mxu0 0
      %2901 = vmatpush2.bf16.xpose.msra.mxu0 0
      %2902 = vmatprep.subr.bf16.mxu0 0
      %2903 = vmatpush2.bf16.xpose.msra.mxu0 0
      %2904 = vmatprep.mubr.bf16.mxu0 0
      %2905 = vmatmul.mubr.bf16.gmra.mxu0 %v2867
      %v2906 = vpop.f32.mrf.mxu0
      %v2907 = vadd.f32 0.0, %v2906
      %v2908 = vpop.f32.mrf.mxu0
      %v2909 = vpop.f32.mrf.mxu0
      %v2910 = vpop.f32.mrf.mxu0
      %2911 = vdwg.mxu0
      %v2912 = vmul.f32 %v2907, 0.125
      %v2913 = vadd.f32 %v2912, %v2377
      %v2914 = vsel %vm2433, %v2913, -inf
      %2915 = vmax.xlane.f32.xlu0 %v2914
      %v2916 = vpop.xlane.xlu0 %2915
      %v2917 = vsub.f32 %v2913, %v2916
      %v2918 = vmul.f32 %v2917, 1.442695
      %v2919 = vpow.pop %v2918
      %v2920 = vsel %vm2433, %v2919, 0.0
      %2921 = vadd.xlane.f32.xlu0 %v2920
      %v2922 = vpop.xlane.xlu0 %2921
      %v2923 = vpack.c.bf16 %v2919, %v2919
      %v2925 = vsel %vm2433, %v2923, 0
      %v2928 = vsel %vm2447, %v2865, 0
      %2930 = vmatprep.subr.bf16.mxu0 0
      %2931 = vmatpush1.bf16.msra.mxu0 0
      %2932 = vmatprep.subr.bf16.mxu0 0
      %2933 = vmatpush1.bf16.msra.mxu0 0
      %2934 = vmatprep.subr.bf16.mxu0 0
      %2935 = vmatpush1.bf16.msra.mxu0 0
      %2936 = vmatprep.subr.bf16.mxu0 0
      %2937 = vmatpush1.bf16.msra.mxu0 0
      %2938 = vmatprep.subr.bf16.mxu0 0
      %2939 = vmatpush1.bf16.msra.mxu0 0
      %2940 = vmatprep.subr.bf16.mxu0 0
      %2941 = vmatpush1.bf16.msra.mxu0 0
      %2942 = vmatprep.subr.bf16.mxu0 0
      %2943 = vmatpush1.bf16.msra.mxu0 0
      %2944 = vmatprep.subr.bf16.mxu0 0
      %2945 = vmatpush1.bf16.msra.mxu0 %v2928
      %2946 = vmatprep.subr.bf16.mxu0 0
      %2947 = vmatpush2.bf16.msra.mxu0 0
      %2948 = vmatprep.subr.bf16.mxu0 0
      %2949 = vmatpush2.bf16.msra.mxu0 0
      %2950 = vmatprep.subr.bf16.mxu0 0
      %2951 = vmatpush2.bf16.msra.mxu0 0
      %2952 = vmatprep.subr.bf16.mxu0 0
      %2953 = vmatpush2.bf16.msra.mxu0 0
      %2954 = vmatprep.subr.bf16.mxu0 0
      %2955 = vmatpush2.bf16.msra.mxu0 0
      %2956 = vmatprep.subr.bf16.mxu0 0
      %2957 = vmatpush2.bf16.msra.mxu0 0
      %2958 = vmatprep.subr.bf16.mxu0 0
      %2959 = vmatpush2.bf16.msra.mxu0 0
      %2960 = vmatprep.subr.bf16.mxu0 0
      %2961 = vmatpush2.bf16.msra.mxu0 0
      %2962 = vmatprep.mubr.bf16.mxu0 0
      %2963 = vmatmul.mubr.bf16.gmra.mxu0 %v2925
      %v2964 = vpop.f32.mrf.mxu0
      %v2965 = vadd.f32 0.0, %v2964
      %v2966 = vpop.f32.mrf.mxu0
      %v2967 = vpop.f32.mrf.mxu0
      %v2968 = vpop.f32.mrf.mxu0
      %2969 = vdwg.mxu0
      %v2970 = vrcp.pop %v2922
      %v2971 = vmul.f32 %v2965, %v2970
      %2972 = vst.msk [vmem:[#allocation3 + $0x10] sm:$0xff] %vm2384, %v2971
      %v2973 = vld [vmem:[#allocation2 + $0x10] sm:$0xff]
      %v2974 = vpack.c.bf16 %v2973, %v2973
      %v2975 = vld [vmem:[#allocation2 + $0x28] sm:$0xff]
      %v2976 = vpack.c.bf16 %v2975, %v2975
      %v2977 = vld [vmem:[#allocation2 + $0x40] sm:$0xff]
      %v2978 = vpack.c.bf16 %v2977, %v2977
      %2980 = vrot.lane.b32.xlu0 %v2974, 64
      %v2981 = vpop.permute.xlu0 %2980
      %2983 = vrot.lane.b32.xlu0 %v2976, 64
      %v2984 = vpop.permute.xlu0 %2983
      %v2986 = vsel %vm2384, %v2981, 0
      %v2989 = vsel %vm2384, %v2984, 0
      %2991 = vmatprep.subr.bf16.mxu0 0
      %2992 = vmatpush1.bf16.xpose.msra.mxu0 0
      %2993 = vmatprep.subr.bf16.mxu0 0
      %2994 = vmatpush1.bf16.xpose.msra.mxu0 0
      %2995 = vmatprep.subr.bf16.mxu0 0
      %2996 = vmatpush1.bf16.xpose.msra.mxu0 0
      %2997 = vmatprep.subr.bf16.mxu0 0
      %2998 = vmatpush1.bf16.xpose.msra.mxu0 0
      %2999 = vmatprep.subr.bf16.mxu0 0
      %3000 = vmatpush1.bf16.xpose.msra.mxu0 0
      %3001 = vmatprep.subr.bf16.mxu0 0
      %3002 = vmatpush1.bf16.xpose.msra.mxu0 0
      %3003 = vmatprep.subr.bf16.mxu0 0
      %3004 = vmatpush1.bf16.xpose.msra.mxu0 0
      %3005 = vmatprep.subr.bf16.mxu0 0
      %3006 = vmatpush1.bf16.xpose.msra.mxu0 %v2989
      %3007 = vmatprep.subr.bf16.mxu0 0
      %3008 = vmatpush2.bf16.xpose.msra.mxu0 0
      %3009 = vmatprep.subr.bf16.mxu0 0
      %3010 = vmatpush2.bf16.xpose.msra.mxu0 0
      %3011 = vmatprep.subr.bf16.mxu0 0
      %3012 = vmatpush2.bf16.xpose.msra.mxu0 0
      %3013 = vmatprep.subr.bf16.mxu0 0
      %3014 = vmatpush2.bf16.xpose.msra.mxu0 0
      %3015 = vmatprep.subr.bf16.mxu0 0
      %3016 = vmatpush2.bf16.xpose.msra.mxu0 0
      %3017 = vmatprep.subr.bf16.mxu0 0
      %3018 = vmatpush2.bf16.xpose.msra.mxu0 0
      %3019 = vmatprep.subr.bf16.mxu0 0
      %3020 = vmatpush2.bf16.xpose.msra.mxu0 0
      %3021 = vmatprep.subr.bf16.mxu0 0
      %3022 = vmatpush2.bf16.xpose.msra.mxu0 0
      %3023 = vmatprep.mubr.bf16.mxu0 0
      %3024 = vmatmul.mubr.bf16.gmra.mxu0 %v2986
      %v3025 = vpop.f32.mrf.mxu0
      %v3026 = vadd.f32 0.0, %v3025
      %v3027 = vpop.f32.mrf.mxu0
      %v3028 = vpop.f32.mrf.mxu0
      %v3029 = vpop.f32.mrf.mxu0
      %3030 = vdwg.mxu0
      %v3031 = vmul.f32 %v3026, 0.125
      %v3032 = vadd.f32 %v3031, %v2377
      %v3033 = vsel %vm2433, %v3032, -inf
      %3034 = vmax.xlane.f32.xlu0 %v3033
      %v3035 = vpop.xlane.xlu0 %3034
      %v3036 = vsub.f32 %v3032, %v3035
      %v3037 = vmul.f32 %v3036, 1.442695
      %v3038 = vpow.pop %v3037
      %v3039 = vsel %vm2433, %v3038, 0.0
      %3040 = vadd.xlane.f32.xlu0 %v3039
      %v3041 = vpop.xlane.xlu0 %3040
      %v3042 = vpack.c.bf16 %v3038, %v3038
      %3044 = vrot.lane.b32.xlu0 %v2978, 64
      %v3045 = vpop.permute.xlu0 %3044
      %v3047 = vsel %vm2433, %v3042, 0
      %v3050 = vsel %vm2447, %v3045, 0
      %3052 = vmatprep.subr.bf16.mxu0 0
      %3053 = vmatpush1.bf16.msra.mxu0 0
      %3054 = vmatprep.subr.bf16.mxu0 0
      %3055 = vmatpush1.bf16.msra.mxu0 0
      %3056 = vmatprep.subr.bf16.mxu0 0
      %3057 = vmatpush1.bf16.msra.mxu0 0
      %3058 = vmatprep.subr.bf16.mxu0 0
      %3059 = vmatpush1.bf16.msra.mxu0 0
      %3060 = vmatprep.subr.bf16.mxu0 0
      %3061 = vmatpush1.bf16.msra.mxu0 0
      %3062 = vmatprep.subr.bf16.mxu0 0
      %3063 = vmatpush1.bf16.msra.mxu0 0
      %3064 = vmatprep.subr.bf16.mxu0 0
      %3065 = vmatpush1.bf16.msra.mxu0 0
      %3066 = vmatprep.subr.bf16.mxu0 0
      %3067 = vmatpush1.bf16.msra.mxu0 %v3050
      %3068 = vmatprep.subr.bf16.mxu0 0
      %3069 = vmatpush2.bf16.msra.mxu0 0
      %3070 = vmatprep.subr.bf16.mxu0 0
      %3071 = vmatpush2.bf16.msra.mxu0 0
      %3072 = vmatprep.subr.bf16.mxu0 0
      %3073 = vmatpush2.bf16.msra.mxu0 0
      %3074 = vmatprep.subr.bf16.mxu0 0
      %3075 = vmatpush2.bf16.msra.mxu0 0
      %3076 = vmatprep.subr.bf16.mxu0 0
      %3077 = vmatpush2.bf16.msra.mxu0 0
      %3078 = vmatprep.subr.bf16.mxu0 0
      %3079 = vmatpush2.bf16.msra.mxu0 0
      %3080 = vmatprep.subr.bf16.mxu0 0
      %3081 = vmatpush2.bf16.msra.mxu0 0
      %3082 = vmatprep.subr.bf16.mxu0 0
      %3083 = vmatpush2.bf16.msra.mxu0 0
      %3084 = vmatprep.mubr.bf16.mxu0 0
      %3085 = vmatmul.mubr.bf16.gmra.mxu0 %v3047
      %v3086 = vpop.f32.mrf.mxu0
      %v3087 = vadd.f32 0.0, %v3086
      %v3088 = vpop.f32.mrf.mxu0
      %v3089 = vpop.f32.mrf.mxu0
      %v3090 = vpop.f32.mrf.mxu0
      %3091 = vdwg.mxu0
      %v3092 = vrcp.pop %v3041
      %v3093 = vmul.f32 %v3087, %v3092
      %3095 = vrot.lane.b32.xlu0 %v3093, 64
      %v3096 = vpop.permute.xlu0 %3095
      %3098 = vst.msk [vmem:[#allocation3 + $0x10] sm:$0xff] %vm2619, %v3096
      %v3099 = vld [vmem:[#allocation3] sm:$0xff]
      %v3100 = vld [vmem:[#allocation3 + $0x8] sm:$0xff]
      %v3101 = vld [vmem:[#allocation3 + $0x10] sm:$0xff]
      %v3102 = vpack.c.bf16 %v3099, %v3099
      %v3103 = vpack.c.bf16 %v3100, %v3100
      %v3104 = vpack.c.bf16 %v3101, %v3101
      %v3105 = vld [vmem:[%s5] sm:$0xff]
      %v3106 = vld [vmem:[%s5 + $0x8] sm:$0xf]
      %v3107 = vld [vmem:[%s5 + $0xc] sm:$0xff]
      %v3108 = vld [vmem:[%s5 + $0x14] sm:$0xf]
      %v3109 = vld [vmem:[%s5 + $0x18] sm:$0xff]
      %v3110 = vld [vmem:[%s5 + $0x20] sm:$0xf]
      %v3111 = vld [vmem:[%s5 + $0x24] sm:$0xff]
      %v3112 = vld [vmem:[%s5 + $0x2c] sm:$0xf]
      %v3113 = vld [vmem:[%s5 + $0x30] sm:$0xff]
      %v3114 = vld [vmem:[%s5 + $0x38] sm:$0xf]
      %v3115 = vld [vmem:[%s5 + $0x3c] sm:$0xff]
      %v3116 = vld [vmem:[%s5 + $0x44] sm:$0xf]
      %v3117 = vld [vmem:[%s5 + $0x48] sm:$0xff]
      %v3118 = vld [vmem:[%s5 + $0x50] sm:$0xf]
      %v3119 = vld [vmem:[%s5 + $0x54] sm:$0xff]
      %v3120 = vld [vmem:[%s5 + $0x5c] sm:$0xf]
      %v3121 = vld [vmem:[%s5 + $0x60] sm:$0xff]
      %v3122 = vld [vmem:[%s5 + $0x68] sm:$0xf]
      %v3123 = vld [vmem:[%s5 + $0x6c] sm:$0xff]
      %v3124 = vld [vmem:[%s5 + $0x74] sm:$0xf]
      %v3125 = vld [vmem:[%s5 + $0x78] sm:$0xff]
      %v3126 = vld [vmem:[%s5 + $0x80] sm:$0xf]
      %v3127 = vld [vmem:[%s5 + $0x84] sm:$0xff]
      %v3128 = vld [vmem:[%s5 + $0x8c] sm:$0xf]
      %v3129 = vld [vmem:[%s5 + $0x90] sm:$0xff]
      %v3130 = vld [vmem:[%s5 + $0x98] sm:$0xf]
      %v3131 = vld [vmem:[%s5 + $0x9c] sm:$0xff]
      %v3132 = vld [vmem:[%s5 + $0xa4] sm:$0xf]
      %v3133 = vld [vmem:[%s5 + $0xa8] sm:$0xff]
      %v3134 = vld [vmem:[%s5 + $0xb0] sm:$0xf]
      %v3135 = vld [vmem:[%s5 + $0xb4] sm:$0xff]
      %v3136 = vld [vmem:[%s5 + $0xbc] sm:$0xf]
      %v3137 = vld [vmem:[%s5 + $0xc0] sm:$0xff]
      %v3138 = vld [vmem:[%s5 + $0xc8] sm:$0xf]
      %v3139 = vld [vmem:[%s5 + $0xcc] sm:$0xff]
      %v3140 = vld [vmem:[%s5 + $0xd4] sm:$0xf]
      %v3141 = vld [vmem:[%s5 + $0xd8] sm:$0xff]
      %v3142 = vld [vmem:[%s5 + $0xe0] sm:$0xf]
      %v3143 = vld [vmem:[%s5 + $0xe4] sm:$0xff]
      %v3144 = vld [vmem:[%s5 + $0xec] sm:$0xf]
      %v3145 = vld [vmem:[%s5 + $0xf0] sm:$0xff]
      %v3146 = vld [vmem:[%s5 + $0xf8] sm:$0xf]
      %v3147 = vld [vmem:[%s5 + $0xfc] sm:$0xff]
      %v3148 = vld [vmem:[%s5 + $0x104] sm:$0xf]
      %v3149 = vld [vmem:[%s5 + $0x108] sm:$0xff]
      %v3150 = vld [vmem:[%s5 + $0x110] sm:$0xf]
      %v3151 = vld [vmem:[%s5 + $0x114] sm:$0xff]
      %v3152 = vld [vmem:[%s5 + $0x11c] sm:$0xf]
      %v3153 = vld [vmem:[%s5 + $0x120] sm:$0xff]
      %v3154 = vld [vmem:[%s5 + $0x128] sm:$0xf]
      %v3155 = vld [vmem:[%s5 + $0x12c] sm:$0xff]
      %v3156 = vld [vmem:[%s5 + $0x134] sm:$0xf]
      %v3157 = vld [vmem:[%s5 + $0x138] sm:$0xff]
      %v3158 = vld [vmem:[%s5 + $0x140] sm:$0xf]
      %v3159 = vld [vmem:[%s5 + $0x144] sm:$0xff]
      %v3160 = vld [vmem:[%s5 + $0x14c] sm:$0xf]
      %v3161 = vld [vmem:[%s5 + $0x150] sm:$0xff]
      %v3162 = vld [vmem:[%s5 + $0x158] sm:$0xf]
      %v3163 = vld [vmem:[%s5 + $0x15c] sm:$0xff]
      %v3164 = vld [vmem:[%s5 + $0x164] sm:$0xf]
      %v3165 = vld [vmem:[%s5 + $0x168] sm:$0xff]
      %v3166 = vld [vmem:[%s5 + $0x170] sm:$0xf]
      %v3167 = vld [vmem:[%s5 + $0x174] sm:$0xff]
      %v3168 = vld [vmem:[%s5 + $0x17c] sm:$0xf]
      %v3169 = vld [vmem:[%s5 + $0x180] sm:$0xff]
      %v3170 = vld [vmem:[%s5 + $0x188] sm:$0xf]
      %v3171 = vld [vmem:[%s5 + $0x18c] sm:$0xff]
      %v3172 = vld [vmem:[%s5 + $0x194] sm:$0xf]
      %v3173 = vld [vmem:[%s5 + $0x198] sm:$0xff]
      %v3174 = vld [vmem:[%s5 + $0x1a0] sm:$0xf]
      %v3175 = vld [vmem:[%s5 + $0x1a4] sm:$0xff]
      %v3176 = vld [vmem:[%s5 + $0x1ac] sm:$0xf]
      %v3177 = vld [vmem:[%s5 + $0x1b0] sm:$0xff]
      %v3178 = vld [vmem:[%s5 + $0x1b8] sm:$0xf]
      %v3179 = vld [vmem:[%s5 + $0x1bc] sm:$0xff]
      %v3180 = vld [vmem:[%s5 + $0x1c4] sm:$0xf]
      %v3181 = vld [vmem:[%s5 + $0x1c8] sm:$0xff]
      %v3182 = vld [vmem:[%s5 + $0x1d0] sm:$0xf]
      %v3183 = vld [vmem:[%s5 + $0x1d4] sm:$0xff]
      %v3184 = vld [vmem:[%s5 + $0x1dc] sm:$0xf]
      %v3185 = vld [vmem:[%s5 + $0x1e0] sm:$0xff]
      %v3186 = vld [vmem:[%s5 + $0x1e8] sm:$0xf]
      %v3187 = vld [vmem:[%s5 + $0x1ec] sm:$0xff]
      %v3188 = vld [vmem:[%s5 + $0x1f4] sm:$0xf]
      %v3189 = vld [vmem:[%s5 + $0x1f8] sm:$0xff]
      %v3190 = vld [vmem:[%s5 + $0x200] sm:$0xf]
      %v3191 = vld [vmem:[%s5 + $0x204] sm:$0xff]
      %v3192 = vld [vmem:[%s5 + $0x20c] sm:$0xf]
      %v3193 = vld [vmem:[%s5 + $0x210] sm:$0xff]
      %v3194 = vld [vmem:[%s5 + $0x218] sm:$0xf]
      %v3195 = vld [vmem:[%s5 + $0x21c] sm:$0xff]
      %v3196 = vld [vmem:[%s5 + $0x224] sm:$0xf]
      %v3197 = vld [vmem:[%s5 + $0x228] sm:$0xff]
      %v3198 = vld [vmem:[%s5 + $0x230] sm:$0xf]
      %v3199 = vld [vmem:[%s5 + $0x234] sm:$0xff]
      %v3200 = vld [vmem:[%s5 + $0x23c] sm:$0xf]
      %v3201 = vld [vmem:[%s6] sm:$0x7]
      %v3203 = vlaneseq
      %v3204 = vshrl.u32 %v3203, 7
      %v3205 = vsub.s32 0, %v3204
      %v3206 = vrot.slane %v3201, %v3205
      %v3207 = vlaneseq
      %v3208 = vshrl.u32 %v3207, 7
      %v3209 = vsub.s32 1, %v3208
      %v3210 = vrot.slane %v3201, %v3209
      %v3211 = vlaneseq
      %v3212 = vshrl.u32 %v3211, 7
      %v3213 = vsub.s32 2, %v3212
      %v3214 = vrot.slane %v3201, %v3213
      %v3314 = vunpack.c.l.b16 %v3105
      %v3315 = vunpack.c.h.b16 %v3105
      %v3316 = vunpack.c.l.b16 %v3106
      %v3317 = vunpack.c.l.b16 %v3107
      %v3318 = vunpack.c.h.b16 %v3107
      %v3319 = vunpack.c.l.b16 %v3108
      %v3320 = vunpack.c.l.b16 %v3109
      %v3321 = vunpack.c.h.b16 %v3109
      %v3322 = vunpack.c.l.b16 %v3110
      %v3323 = vunpack.c.l.b16 %v3111
      %v3324 = vunpack.c.h.b16 %v3111
      %v3325 = vunpack.c.l.b16 %v3112
      %v3326 = vunpack.c.l.b16 %v3113
      %v3327 = vunpack.c.h.b16 %v3113
      %v3328 = vunpack.c.l.b16 %v3114
      %v3329 = vunpack.c.l.b16 %v3115
      %v3330 = vunpack.c.h.b16 %v3115
      %v3331 = vunpack.c.l.b16 %v3116
      %v3332 = vunpack.c.l.b16 %v3117
      %v3333 = vunpack.c.h.b16 %v3117
      %v3334 = vunpack.c.l.b16 %v3118
      %v3335 = vunpack.c.l.b16 %v3119
      %v3336 = vunpack.c.h.b16 %v3119
      %v3337 = vunpack.c.l.b16 %v3120
      %v3338 = vunpack.c.l.b16 %v3121
      %v3339 = vunpack.c.h.b16 %v3121
      %v3340 = vunpack.c.l.b16 %v3122
      %v3341 = vunpack.c.l.b16 %v3123
      %v3342 = vunpack.c.h.b16 %v3123
      %v3343 = vunpack.c.l.b16 %v3124
      %v3344 = vunpack.c.l.b16 %v3125
      %v3345 = vunpack.c.h.b16 %v3125
      %v3346 = vunpack.c.l.b16 %v3126
      %v3347 = vunpack.c.l.b16 %v3127
      %v3348 = vunpack.c.h.b16 %v3127
      %v3349 = vunpack.c.l.b16 %v3128
      %v3350 = vunpack.c.l.b16 %v3129
      %v3351 = vunpack.c.h.b16 %v3129
      %v3352 = vunpack.c.l.b16 %v3130
      %v3353 = vunpack.c.l.b16 %v3131
      %v3354 = vunpack.c.h.b16 %v3131
      %v3355 = vunpack.c.l.b16 %v3132
      %v3356 = vunpack.c.l.b16 %v3133
      %v3357 = vunpack.c.h.b16 %v3133
      %v3358 = vunpack.c.l.b16 %v3134
      %v3359 = vunpack.c.l.b16 %v3135
      %v3360 = vunpack.c.h.b16 %v3135
      %v3361 = vunpack.c.l.b16 %v3136
      %v3362 = vunpack.c.l.b16 %v3137
      %v3363 = vunpack.c.h.b16 %v3137
      %v3364 = vunpack.c.l.b16 %v3138
      %v3365 = vunpack.c.l.b16 %v3139
      %v3366 = vunpack.c.h.b16 %v3139
      %v3367 = vunpack.c.l.b16 %v3140
      %v3368 = vunpack.c.l.b16 %v3141
      %v3369 = vunpack.c.h.b16 %v3141
      %v3370 = vunpack.c.l.b16 %v3142
      %v3371 = vunpack.c.l.b16 %v3143
      %v3372 = vunpack.c.h.b16 %v3143
      %v3373 = vunpack.c.l.b16 %v3144
      %v3374 = vunpack.c.l.b16 %v3145
      %v3375 = vunpack.c.h.b16 %v3145
      %v3376 = vunpack.c.l.b16 %v3146
      %v3377 = vunpack.c.l.b16 %v3147
      %v3378 = vunpack.c.h.b16 %v3147
      %v3379 = vunpack.c.l.b16 %v3148
      %v3380 = vunpack.c.l.b16 %v3149
      %v3381 = vunpack.c.h.b16 %v3149
      %v3382 = vunpack.c.l.b16 %v3150
      %v3383 = vunpack.c.l.b16 %v3151
      %v3384 = vunpack.c.h.b16 %v3151
      %v3385 = vunpack.c.l.b16 %v3152
      %v3386 = vunpack.c.l.b16 %v3153
      %v3387 = vunpack.c.h.b16 %v3153
      %v3388 = vunpack.c.l.b16 %v3154
      %v3389 = vunpack.c.l.b16 %v3155
      %v3390 = vunpack.c.h.b16 %v3155
      %v3391 = vunpack.c.l.b16 %v3156
      %v3392 = vunpack.c.l.b16 %v3157
      %v3393 = vunpack.c.h.b16 %v3157
      %v3394 = vunpack.c.l.b16 %v3158
      %v3395 = vunpack.c.l.b16 %v3159
      %v3396 = vunpack.c.h.b16 %v3159
      %v3397 = vunpack.c.l.b16 %v3160
      %v3398 = vunpack.c.l.b16 %v3161
      %v3399 = vunpack.c.h.b16 %v3161
      %v3400 = vunpack.c.l.b16 %v3162
      %v3401 = vunpack.c.l.b16 %v3163
      %v3402 = vunpack.c.h.b16 %v3163
      %v3403 = vunpack.c.l.b16 %v3164
      %v3404 = vunpack.c.l.b16 %v3165
      %v3405 = vunpack.c.h.b16 %v3165
      %v3406 = vunpack.c.l.b16 %v3166
      %v3407 = vunpack.c.l.b16 %v3167
      %v3408 = vunpack.c.h.b16 %v3167
      %v3409 = vunpack.c.l.b16 %v3168
      %v3410 = vunpack.c.l.b16 %v3169
      %v3411 = vunpack.c.h.b16 %v3169
      %v3412 = vunpack.c.l.b16 %v3170
      %v3413 = vunpack.c.l.b16 %v3171
      %v3414 = vunpack.c.h.b16 %v3171
      %v3415 = vunpack.c.l.b16 %v3172
      %v3416 = vunpack.c.l.b16 %v3173
      %v3417 = vunpack.c.h.b16 %v3173
      %v3418 = vunpack.c.l.b16 %v3174
      %v3419 = vunpack.c.l.b16 %v3175
      %v3420 = vunpack.c.h.b16 %v3175
      %v3421 = vunpack.c.l.b16 %v3176
      %v3422 = vunpack.c.l.b16 %v3177
      %v3423 = vunpack.c.h.b16 %v3177
      %v3424 = vunpack.c.l.b16 %v3178
      %v3425 = vunpack.c.l.b16 %v3179
      %v3426 = vunpack.c.h.b16 %v3179
      %v3427 = vunpack.c.l.b16 %v3180
      %v3428 = vunpack.c.l.b16 %v3181
      %v3429 = vunpack.c.h.b16 %v3181
      %v3430 = vunpack.c.l.b16 %v3182
      %v3431 = vunpack.c.l.b16 %v3183
      %v3432 = vunpack.c.h.b16 %v3183
      %v3433 = vunpack.c.l.b16 %v3184
      %v3434 = vunpack.c.l.b16 %v3185
      %v3435 = vunpack.c.h.b16 %v3185
      %v3436 = vunpack.c.l.b16 %v3186
      %v3437 = vunpack.c.l.b16 %v3187
      %v3438 = vunpack.c.h.b16 %v3187
      %v3439 = vunpack.c.l.b16 %v3188
      %v3440 = vunpack.c.l.b16 %v3189
      %v3441 = vunpack.c.h.b16 %v3189
      %v3442 = vunpack.c.l.b16 %v3190
      %v3443 = vunpack.c.l.b16 %v3191
      %v3444 = vunpack.c.h.b16 %v3191
      %v3445 = vunpack.c.l.b16 %v3192
      %v3446 = vunpack.c.l.b16 %v3193
      %v3447 = vunpack.c.h.b16 %v3193
      %v3448 = vunpack.c.l.b16 %v3194
      %v3449 = vunpack.c.l.b16 %v3195
      %v3450 = vunpack.c.h.b16 %v3195
      %v3451 = vunpack.c.l.b16 %v3196
      %v3452 = vunpack.c.l.b16 %v3197
      %v3453 = vunpack.c.h.b16 %v3197
      %v3454 = vunpack.c.l.b16 %v3198
      %v3455 = vunpack.c.l.b16 %v3199
      %v3456 = vunpack.c.h.b16 %v3199
      %v3457 = vunpack.c.l.b16 %v3200
      %v3458 = vpack.c.b16 %v3317, %v3314
      %v3459 = vpack.c.b16 %v3318, %v3315
      %v3460 = vpack.c.b16 %v3319, %v3316
      %v3461 = vpack.c.b16 %v3323, %v3320
      %v3462 = vpack.c.b16 %v3324, %v3321
      %v3463 = vpack.c.b16 %v3325, %v3322
      %v3464 = vpack.c.b16 %v3329, %v3326
      %v3465 = vpack.c.b16 %v3330, %v3327
      %v3466 = vpack.c.b16 %v3331, %v3328
      %v3467 = vpack.c.b16 %v3335, %v3332
      %v3468 = vpack.c.b16 %v3336, %v3333
      %v3469 = vpack.c.b16 %v3337, %v3334
      %v3470 = vpack.c.b16 %v3341, %v3338
      %v3471 = vpack.c.b16 %v3342, %v3339
      %v3472 = vpack.c.b16 %v3343, %v3340
      %v3473 = vpack.c.b16 %v3347, %v3344
      %v3474 = vpack.c.b16 %v3348, %v3345
      %v3475 = vpack.c.b16 %v3349, %v3346
      %v3476 = vpack.c.b16 %v3353, %v3350
      %v3477 = vpack.c.b16 %v3354, %v3351
      %v3478 = vpack.c.b16 %v3355, %v3352
      %v3479 = vpack.c.b16 %v3359, %v3356
      %v3480 = vpack.c.b16 %v3360, %v3357
      %v3481 = vpack.c.b16 %v3361, %v3358
      %v3482 = vpack.c.b16 %v3365, %v3362
      %v3483 = vpack.c.b16 %v3366, %v3363
      %v3484 = vpack.c.b16 %v3367, %v3364
      %v3485 = vpack.c.b16 %v3371, %v3368
      %v3486 = vpack.c.b16 %v3372, %v3369
      %v3487 = vpack.c.b16 %v3373, %v3370
      %v3488 = vpack.c.b16 %v3377, %v3374
      %v3489 = vpack.c.b16 %v3378, %v3375
      %v3490 = vpack.c.b16 %v3379, %v3376
      %v3491 = vpack.c.b16 %v3383, %v3380
      %v3492 = vpack.c.b16 %v3384, %v3381
      %v3493 = vpack.c.b16 %v3385, %v3382
      %v3494 = vpack.c.b16 %v3389, %v3386
      %v3495 = vpack.c.b16 %v3390, %v3387
      %v3496 = vpack.c.b16 %v3391, %v3388
      %v3497 = vpack.c.b16 %v3395, %v3392
      %v3498 = vpack.c.b16 %v3396, %v3393
      %v3499 = vpack.c.b16 %v3397, %v3394
      %v3500 = vpack.c.b16 %v3401, %v3398
      %v3501 = vpack.c.b16 %v3402, %v3399
      %v3502 = vpack.c.b16 %v3403, %v3400
      %v3503 = vpack.c.b16 %v3407, %v3404
      %v3504 = vpack.c.b16 %v3408, %v3405
      %v3505 = vpack.c.b16 %v3409, %v3406
      %v3506 = vpack.c.b16 %v3413, %v3410
      %v3507 = vpack.c.b16 %v3414, %v3411
      %v3508 = vpack.c.b16 %v3415, %v3412
      %v3509 = vpack.c.b16 %v3419, %v3416
      %v3510 = vpack.c.b16 %v3420, %v3417
      %v3511 = vpack.c.b16 %v3421, %v3418
      %v3512 = vpack.c.b16 %v3425, %v3422
      %v3513 = vpack.c.b16 %v3426, %v3423
      %v3514 = vpack.c.b16 %v3427, %v3424
      %v3515 = vpack.c.b16 %v3431, %v3428
      %v3516 = vpack.c.b16 %v3432, %v3429
      %v3517 = vpack.c.b16 %v3433, %v3430
      %v3518 = vpack.c.b16 %v3437, %v3434
      %v3519 = vpack.c.b16 %v3438, %v3435
      %v3520 = vpack.c.b16 %v3439, %v3436
      %v3521 = vpack.c.b16 %v3443, %v3440
      %v3522 = vpack.c.b16 %v3444, %v3441
      %v3523 = vpack.c.b16 %v3445, %v3442
      %v3524 = vpack.c.b16 %v3449, %v3446
      %v3525 = vpack.c.b16 %v3450, %v3447
      %v3526 = vpack.c.b16 %v3451, %v3448
      %v3527 = vpack.c.b16 %v3455, %v3452
      %v3528 = vpack.c.b16 %v3456, %v3453
      %v3529 = vpack.c.b16 %v3457, %v3454
      %3602 = vmatprep.subr.bf16.mxu0 %v3480
      %3603 = vmatpush1.bf16.msra.mxu0 %v3479
      %3604 = vmatprep.subr.bf16.mxu0 %v3477
      %3605 = vmatpush1.bf16.msra.mxu0 %v3476
      %3606 = vmatprep.subr.bf16.mxu0 %v3474
      %3607 = vmatpush1.bf16.msra.mxu0 %v3473
      %3608 = vmatprep.subr.bf16.mxu0 %v3471
      %3609 = vmatpush1.bf16.msra.mxu0 %v3470
      %3610 = vmatprep.subr.bf16.mxu0 %v3468
      %3611 = vmatpush1.bf16.msra.mxu0 %v3467
      %3612 = vmatprep.subr.bf16.mxu0 %v3465
      %3613 = vmatpush1.bf16.msra.mxu0 %v3464
      %3614 = vmatprep.subr.bf16.mxu0 %v3462
      %3615 = vmatpush1.bf16.msra.mxu0 %v3461
      %3616 = vmatprep.subr.bf16.mxu0 %v3459
      %3617 = vmatpush1.bf16.msra.mxu0 %v3458
      %3618 = vmatprep.subr.bf16.mxu0 %v3504
      %3619 = vmatpush2.bf16.msra.mxu0 %v3503
      %3620 = vmatprep.subr.bf16.mxu0 %v3501
      %3621 = vmatpush2.bf16.msra.mxu0 %v3500
      %3622 = vmatprep.subr.bf16.mxu0 %v3498
      %3623 = vmatpush2.bf16.msra.mxu0 %v3497
      %3624 = vmatprep.subr.bf16.mxu0 %v3495
      %3625 = vmatpush2.bf16.msra.mxu0 %v3494
      %3626 = vmatprep.subr.bf16.mxu0 %v3492
      %3627 = vmatpush2.bf16.msra.mxu0 %v3491
      %3628 = vmatprep.subr.bf16.mxu0 %v3489
      %3629 = vmatpush2.bf16.msra.mxu0 %v3488
      %3630 = vmatprep.subr.bf16.mxu0 %v3486
      %3631 = vmatpush2.bf16.msra.mxu0 %v3485
      %3632 = vmatprep.subr.bf16.mxu0 %v3483
      %3633 = vmatpush2.bf16.msra.mxu0 %v3482
      %3634 = vmatprep.mubr.bf16.mxu0 %v3103
      %3635 = vmatmul.mubr.bf16.gmra.mxu0 %v3102
      %v3636 = vpop.f32.mrf.mxu0
      %v3637 = vadd.f32 %v3206, %v3636
      %v3638 = vpop.f32.mrf.mxu0
      %v3639 = vadd.f32 %v3210, %v3638
      %v3640 = vpop.f32.mrf.mxu0
      %v3641 = vpop.f32.mrf.mxu0
      %3642 = vdwg.mxu0
      %3643 = vmatprep.subr.bf16.mxu0 %v3528
      %3644 = vmatpush1.bf16.msra.mxu0 %v3527
      %3645 = vmatprep.subr.bf16.mxu0 %v3525
      %3646 = vmatpush1.bf16.msra.mxu0 %v3524
      %3647 = vmatprep.subr.bf16.mxu0 %v3522
      %3648 = vmatpush1.bf16.msra.mxu0 %v3521
      %3649 = vmatprep.subr.bf16.mxu0 %v3519
      %3650 = vmatpush1.bf16.msra.mxu0 %v3518
      %3651 = vmatprep.subr.bf16.mxu0 %v3516
      %3652 = vmatpush1.bf16.msra.mxu0 %v3515
      %3653 = vmatprep.subr.bf16.mxu0 %v3513
      %3654 = vmatpush1.bf16.msra.mxu0 %v3512
      %3655 = vmatprep.subr.bf16.mxu0 %v3510
      %3656 = vmatpush1.bf16.msra.mxu0 %v3509
      %3657 = vmatprep.subr.bf16.mxu0 %v3507
      %3658 = vmatpush1.bf16.msra.mxu0 %v3506
      %3659 = vmatprep.subr.bf16.mxu0 0
      %3660 = vmatpush2.bf16.msra.mxu0 0
      %3661 = vmatprep.subr.bf16.mxu0 0
      %3662 = vmatpush2.bf16.msra.mxu0 0
      %3663 = vmatprep.subr.bf16.mxu0 0
      %3664 = vmatpush2.bf16.msra.mxu0 0
      %3665 = vmatprep.subr.bf16.mxu0 0
      %3666 = vmatpush2.bf16.msra.mxu0 0
      %3667 = vmatprep.subr.bf16.mxu0 0
      %3668 = vmatpush2.bf16.msra.mxu0 0
      %3669 = vmatprep.subr.bf16.mxu0 0
      %3670 = vmatpush2.bf16.msra.mxu0 0
      %3671 = vmatprep.subr.bf16.mxu0 0
      %3672 = vmatpush2.bf16.msra.mxu0 0
      %3673 = vmatprep.subr.bf16.mxu0 0
      %3674 = vmatpush2.bf16.msra.mxu0 0
      %3675 = vmatprep.mubr.bf16.mxu0 0
      %3676 = vmatmul.mubr.bf16.gmra.mxu0 %v3104
      %v3677 = vpop.f32.mrf.mxu0
      %v3678 = vadd.f32 %v3637, %v3677
      %v3679 = vpop.f32.mrf.mxu0
      %v3680 = vadd.f32 %v3639, %v3679
      %v3681 = vpop.f32.mrf.mxu0
      %v3682 = vpop.f32.mrf.mxu0
      %3683 = vdwg.mxu0
      %3684 = vmatprep.subr.bf16.mxu0 0
      %3685 = vmatpush1.bf16.msra.mxu0 %v3481
      %3686 = vmatprep.subr.bf16.mxu0 0
      %3687 = vmatpush1.bf16.msra.mxu0 %v3478
      %3688 = vmatprep.subr.bf16.mxu0 0
      %3689 = vmatpush1.bf16.msra.mxu0 %v3475
      %3690 = vmatprep.subr.bf16.mxu0 0
      %3691 = vmatpush1.bf16.msra.mxu0 %v3472
      %3692 = vmatprep.subr.bf16.mxu0 0
      %3693 = vmatpush1.bf16.msra.mxu0 %v3469
      %3694 = vmatprep.subr.bf16.mxu0 0
      %3695 = vmatpush1.bf16.msra.mxu0 %v3466
      %3696 = vmatprep.subr.bf16.mxu0 0
      %3697 = vmatpush1.bf16.msra.mxu0 %v3463
      %3698 = vmatprep.subr.bf16.mxu0 0
      %3699 = vmatpush1.bf16.msra.mxu0 %v3460
      %3700 = vmatprep.subr.bf16.mxu0 0
      %3701 = vmatpush2.bf16.msra.mxu0 %v3505
      %3702 = vmatprep.subr.bf16.mxu0 0
      %3703 = vmatpush2.bf16.msra.mxu0 %v3502
      %3704 = vmatprep.subr.bf16.mxu0 0
      %3705 = vmatpush2.bf16.msra.mxu0 %v3499
      %3706 = vmatprep.subr.bf16.mxu0 0
      %3707 = vmatpush2.bf16.msra.mxu0 %v3496
      %3708 = vmatprep.subr.bf16.mxu0 0
      %3709 = vmatpush2.bf16.msra.mxu0 %v3493
      %3710 = vmatprep.subr.bf16.mxu0 0
      %3711 = vmatpush2.bf16.msra.mxu0 %v3490
      %3712 = vmatprep.subr.bf16.mxu0 0
      %3713 = vmatpush2.bf16.msra.mxu0 %v3487
      %3714 = vmatprep.subr.bf16.mxu0 0
      %3715 = vmatpush2.bf16.msra.mxu0 %v3484
      %3716 = vmatprep.mubr.bf16.mxu0 %v3103
      %3717 = vmatmul.mubr.bf16.gmra.mxu0 %v3102
      %v3718 = vpop.f32.mrf.mxu0
      %v3719 = vadd.f32 %v3214, %v3718
      %v3720 = vpop.f32.mrf.mxu0
      %v3721 = vpop.f32.mrf.mxu0
      %v3722 = vpop.f32.mrf.mxu0
      %3723 = vdwg.mxu0
      %3724 = vmatprep.subr.bf16.mxu0 0
      %3725 = vmatpush1.bf16.msra.mxu0 %v3529
      %3726 = vmatprep.subr.bf16.mxu0 0
      %3727 = vmatpush1.bf16.msra.mxu0 %v3526
      %3728 = vmatprep.subr.bf16.mxu0 0
      %3729 = vmatpush1.bf16.msra.mxu0 %v3523
      %3730 = vmatprep.subr.bf16.mxu0 0
      %3731 = vmatpush1.bf16.msra.mxu0 %v3520
      %3732 = vmatprep.subr.bf16.mxu0 0
      %3733 = vmatpush1.bf16.msra.mxu0 %v3517
      %3734 = vmatprep.subr.bf16.mxu0 0
      %3735 = vmatpush1.bf16.msra.mxu0 %v3514
      %3736 = vmatprep.subr.bf16.mxu0 0
      %3737 = vmatpush1.bf16.msra.mxu0 %v3511
      %3738 = vmatprep.subr.bf16.mxu0 0
      %3739 = vmatpush1.bf16.msra.mxu0 %v3508
      %3740 = vmatprep.subr.bf16.mxu0 0
      %3741 = vmatpush2.bf16.msra.mxu0 0
      %3742 = vmatprep.subr.bf16.mxu0 0
      %3743 = vmatpush2.bf16.msra.mxu0 0
      %3744 = vmatprep.subr.bf16.mxu0 0
      %3745 = vmatpush2.bf16.msra.mxu0 0
      %3746 = vmatprep.subr.bf16.mxu0 0
      %3747 = vmatpush2.bf16.msra.mxu0 0
      %3748 = vmatprep.subr.bf16.mxu0 0
      %3749 = vmatpush2.bf16.msra.mxu0 0
      %3750 = vmatprep.subr.bf16.mxu0 0
      %3751 = vmatpush2.bf16.msra.mxu0 0
      %3752 = vmatprep.subr.bf16.mxu0 0
      %3753 = vmatpush2.bf16.msra.mxu0 0
      %3754 = vmatprep.subr.bf16.mxu0 0
      %3755 = vmatpush2.bf16.msra.mxu0 0
      %3756 = vmatprep.mubr.bf16.mxu0 0
      %3757 = vmatmul.mubr.bf16.gmra.mxu0 %v3104
      %v3758 = vpop.f32.mrf.mxu0
      %v3759 = vadd.f32 %v3719, %v3758
      %v3760 = vpop.f32.mrf.mxu0
      %v3761 = vpop.f32.mrf.mxu0
      %v3762 = vpop.f32.mrf.mxu0
      %3763 = vdwg.mxu0
      %v3764 = vld [vmem:[%s7] sm:$0x7]
      %v3766 = vlaneseq
      %v3767 = vshrl.u32 %v3766, 7
      %v3768 = vsub.s32 0, %v3767
      %v3769 = vrot.slane %v3764, %v3768
      %v3770 = vlaneseq
      %v3771 = vshrl.u32 %v3770, 7
      %v3772 = vsub.s32 1, %v3771
      %v3773 = vrot.slane %v3764, %v3772
      %v3774 = vlaneseq
      %v3775 = vshrl.u32 %v3774, 7
      %v3776 = vsub.s32 2, %v3775
      %v3777 = vrot.slane %v3764, %v3776
      %v3781 = vmul.f32 %v3769, %v3678
      %v3782 = vmul.f32 %v3773, %v3680
      %v3783 = vmul.f32 %v3777, %v3759
      %v3784 = vadd.f32 %v496, %v3781
      %v3785 = vadd.f32 %v497, %v3782
      %v3786 = vadd.f32 %v498, %v3783
      %v3787 = vld [vmem:[%s8] sm:$0x7]
      %v3788 = vld [vmem:[%s9] sm:$0x7]
      %v3789 = vadd.f32 %v3784, %v3785
      %v3790 = vadd.f32 %v3789, %v3786
      %3791 = vadd.xlane.f32.xlu0 %v3790
      %v3792 = vpop.xlane.xlu0 %3791
      %v3793 = vmul.f32 %v3792, %v505
      %v3794 = vsub.f32 %v3784, %v3793
      %v3795 = vsub.f32 %v3785, %v3793
      %v3796 = vsub.f32 %v3786, %v3793
      %v3797 = vmul.f32 %v3794, %v3794
      %v3798 = vmul.f32 %v3795, %v3795
      %v3799 = vmul.f32 %v3796, %v3796
      %v3800 = vadd.f32 %v3797, %v3798
      %v3801 = vadd.f32 %v3800, %v3799
      %3802 = vadd.xlane.f32.xlu0 %v3801
      %v3803 = vpop.xlane.xlu0 %3802
      %v3804 = vmul.f32 %v3803, %v505
      %v3805 = vadd.f32 %v3804, 1e-06
      %v3806 = vrsqrt.pop %v3805
      %v3807 = vmul.f32 %v3794, %v3806
      %v3808 = vmul.f32 %v3795, %v3806
      %v3809 = vmul.f32 %v3796, %v3806
      %v3811 = vlaneseq
      %v3812 = vshrl.u32 %v3811, 7
      %v3813 = vsub.s32 0, %v3812
      %v3814 = vrot.slane %v3787, %v3813
      %v3815 = vlaneseq
      %v3816 = vshrl.u32 %v3815, 7
      %v3817 = vsub.s32 1, %v3816
      %v3818 = vrot.slane %v3787, %v3817
      %v3819 = vlaneseq
      %v3820 = vshrl.u32 %v3819, 7
      %v3821 = vsub.s32 2, %v3820
      %v3822 = vrot.slane %v3787, %v3821
      %v3826 = vmul.f32 %v3807, %v3814
      %v3827 = vmul.f32 %v3808, %v3818
      %v3828 = vmul.f32 %v3809, %v3822
      %v3830 = vlaneseq
      %v3831 = vshrl.u32 %v3830, 7
      %v3832 = vsub.s32 0, %v3831
      %v3833 = vrot.slane %v3788, %v3832
      %v3834 = vlaneseq
      %v3835 = vshrl.u32 %v3834, 7
      %v3836 = vsub.s32 1, %v3835
      %v3837 = vrot.slane %v3788, %v3836
      %v3838 = vlaneseq
      %v3839 = vshrl.u32 %v3838, 7
      %v3840 = vsub.s32 2, %v3839
      %v3841 = vrot.slane %v3788, %v3840
      %v3845 = vadd.f32 %v3826, %v3833
      %v3846 = vadd.f32 %v3827, %v3837
      %v3847 = vadd.f32 %v3828, %v3841
      %v3848 = vpack.c.bf16 %v3845, %v3845
      %v3849 = vpack.c.bf16 %v3846, %v3846
      %v3850 = vpack.c.bf16 %v3847, %v3847
      %v3851 = vld [vmem:[%s10] sm:$0xff]
      %v3852 = vld [vmem:[%s10 + $0x8] sm:$0xff]
      %v3853 = vld [vmem:[%s10 + $0x10] sm:$0xff]
      %v3854 = vld [vmem:[%s10 + $0x18] sm:$0xff]
      %v3855 = vld [vmem:[%s10 + $0x20] sm:$0xff]
      %v3856 = vld [vmem:[%s10 + $0x28] sm:$0xff]
      %v3857 = vld [vmem:[%s10 + $0x30] sm:$0xff]
      %v3858 = vld [vmem:[%s10 + $0x38] sm:$0xff]
      %v3859 = vld [vmem:[%s10 + $0x40] sm:$0xff]
      %v3860 = vld [vmem:[%s10 + $0x48] sm:$0xff]
      %v3861 = vld [vmem:[%s10 + $0x50] sm:$0xff]
      %v3862 = vld [vmem:[%s10 + $0x58] sm:$0xff]
      %v3863 = vld [vmem:[%s10 + $0x60] sm:$0xff]
      %v3864 = vld [vmem:[%s10 + $0x68] sm:$0xff]
      %v3865 = vld [vmem:[%s10 + $0x70] sm:$0xff]
      %v3866 = vld [vmem:[%s10 + $0x78] sm:$0xff]
      %v3867 = vld [vmem:[%s10 + $0x80] sm:$0xff]
      %v3868 = vld [vmem:[%s10 + $0x88] sm:$0xff]
      %v3869 = vld [vmem:[%s10 + $0x90] sm:$0xff]
      %v3870 = vld [vmem:[%s10 + $0x98] sm:$0xff]
      %v3871 = vld [vmem:[%s10 + $0xa0] sm:$0xff]
      %v3872 = vld [vmem:[%s10 + $0xa8] sm:$0xff]
      %v3873 = vld [vmem:[%s10 + $0xb0] sm:$0xff]
      %v3874 = vld [vmem:[%s10 + $0xb8] sm:$0xff]
      %v3875 = vld [vmem:[%s10 + $0xc0] sm:$0xff]
      %v3876 = vld [vmem:[%s10 + $0xc8] sm:$0xff]
      %v3877 = vld [vmem:[%s10 + $0xd0] sm:$0xff]
      %v3878 = vld [vmem:[%s10 + $0xd8] sm:$0xff]
      %v3879 = vld [vmem:[%s10 + $0xe0] sm:$0xff]
      %v3880 = vld [vmem:[%s10 + $0xe8] sm:$0xff]
      %v3881 = vld [vmem:[%s10 + $0xf0] sm:$0xff]
      %v3882 = vld [vmem:[%s10 + $0xf8] sm:$0xff]
      %v3883 = vld [vmem:[%s10 + $0x100] sm:$0xff]
      %v3884 = vld [vmem:[%s10 + $0x108] sm:$0xff]
      %v3885 = vld [vmem:[%s10 + $0x110] sm:$0xff]
      %v3886 = vld [vmem:[%s10 + $0x118] sm:$0xff]
      %v3887 = vld [vmem:[%s10 + $0x120] sm:$0xff]
      %v3888 = vld [vmem:[%s10 + $0x128] sm:$0xff]
      %v3889 = vld [vmem:[%s10 + $0x130] sm:$0xff]
      %v3890 = vld [vmem:[%s10 + $0x138] sm:$0xff]
      %v3891 = vld [vmem:[%s10 + $0x140] sm:$0xff]
      %v3892 = vld [vmem:[%s10 + $0x148] sm:$0xff]
      %v3893 = vld [vmem:[%s10 + $0x150] sm:$0xff]
      %v3894 = vld [vmem:[%s10 + $0x158] sm:$0xff]
      %v3895 = vld [vmem:[%s10 + $0x160] sm:$0xff]
      %v3896 = vld [vmem:[%s10 + $0x168] sm:$0xff]
      %v3897 = vld [vmem:[%s10 + $0x170] sm:$0xff]
      %v3898 = vld [vmem:[%s10 + $0x178] sm:$0xff]
      %v3899 = vld [vmem:[%s10 + $0x180] sm:$0xff]
      %v3900 = vld [vmem:[%s10 + $0x188] sm:$0xff]
      %v3901 = vld [vmem:[%s10 + $0x190] sm:$0xff]
      %v3902 = vld [vmem:[%s10 + $0x198] sm:$0xff]
      %v3903 = vld [vmem:[%s10 + $0x1a0] sm:$0xff]
      %v3904 = vld [vmem:[%s10 + $0x1a8] sm:$0xff]
      %v3905 = vld [vmem:[%s10 + $0x1b0] sm:$0xff]
      %v3906 = vld [vmem:[%s10 + $0x1b8] sm:$0xff]
      %v3907 = vld [vmem:[%s10 + $0x1c0] sm:$0xff]
      %v3908 = vld [vmem:[%s10 + $0x1c8] sm:$0xff]
      %v3909 = vld [vmem:[%s10 + $0x1d0] sm:$0xff]
      %v3910 = vld [vmem:[%s10 + $0x1d8] sm:$0xff]
      %v3911 = vld [vmem:[%s10 + $0x1e0] sm:$0xff]
      %v3912 = vld [vmem:[%s10 + $0x1e8] sm:$0xff]
      %v3913 = vld [vmem:[%s10 + $0x1f0] sm:$0xff]
      %v3914 = vld [vmem:[%s10 + $0x1f8] sm:$0xff]
      %v3915 = vld [vmem:[%s10 + $0x200] sm:$0xff]
      %v3916 = vld [vmem:[%s10 + $0x208] sm:$0xff]
      %v3917 = vld [vmem:[%s10 + $0x210] sm:$0xff]
      %v3918 = vld [vmem:[%s10 + $0x218] sm:$0xff]
      %v3919 = vld [vmem:[%s10 + $0x220] sm:$0xff]
      %v3920 = vld [vmem:[%s10 + $0x228] sm:$0xff]
      %v3921 = vld [vmem:[%s10 + $0x230] sm:$0xff]
      %v3922 = vld [vmem:[%s10 + $0x238] sm:$0xff]
      %v3923 = vld [vmem:[%s10 + $0x240] sm:$0xff]
      %v3924 = vld [vmem:[%s10 + $0x248] sm:$0xff]
      %v3925 = vld [vmem:[%s10 + $0x250] sm:$0xff]
      %v3926 = vld [vmem:[%s10 + $0x258] sm:$0xff]
      %v3927 = vld [vmem:[%s10 + $0x260] sm:$0xff]
      %v3928 = vld [vmem:[%s10 + $0x268] sm:$0xff]
      %v3929 = vld [vmem:[%s10 + $0x270] sm:$0xff]
      %v3930 = vld [vmem:[%s10 + $0x278] sm:$0xff]
      %v3931 = vld [vmem:[%s10 + $0x280] sm:$0xff]
      %v3932 = vld [vmem:[%s10 + $0x288] sm:$0xff]
      %v3933 = vld [vmem:[%s10 + $0x290] sm:$0xff]
      %v3934 = vld [vmem:[%s10 + $0x298] sm:$0xff]
      %v3935 = vld [vmem:[%s10 + $0x2a0] sm:$0xff]
      %v3936 = vld [vmem:[%s10 + $0x2a8] sm:$0xff]
      %v3937 = vld [vmem:[%s10 + $0x2b0] sm:$0xff]
      %v3938 = vld [vmem:[%s10 + $0x2b8] sm:$0xff]
      %v3939 = vld [vmem:[%s10 + $0x2c0] sm:$0xff]
      %v3940 = vld [vmem:[%s10 + $0x2c8] sm:$0xff]
      %v3941 = vld [vmem:[%s10 + $0x2d0] sm:$0xff]
      %v3942 = vld [vmem:[%s10 + $0x2d8] sm:$0xff]
      %v3943 = vld [vmem:[%s10 + $0x2e0] sm:$0xff]
      %v3944 = vld [vmem:[%s10 + $0x2e8] sm:$0xff]
      %v3945 = vld [vmem:[%s10 + $0x2f0] sm:$0xff]
      %v3946 = vld [vmem:[%s10 + $0x2f8] sm:$0xff]
      %v3947 = vld [vmem:[%s10 + $0x300] sm:$0xff]
      %v3948 = vld [vmem:[%s10 + $0x308] sm:$0xff]
      %v3949 = vld [vmem:[%s10 + $0x310] sm:$0xff]
      %v3950 = vld [vmem:[%s10 + $0x318] sm:$0xff]
      %v3951 = vld [vmem:[%s10 + $0x320] sm:$0xff]
      %v3952 = vld [vmem:[%s10 + $0x328] sm:$0xff]
      %v3953 = vld [vmem:[%s10 + $0x330] sm:$0xff]
      %v3954 = vld [vmem:[%s10 + $0x338] sm:$0xff]
      %v3955 = vld [vmem:[%s10 + $0x340] sm:$0xff]
      %v3956 = vld [vmem:[%s10 + $0x348] sm:$0xff]
      %v3957 = vld [vmem:[%s10 + $0x350] sm:$0xff]
      %v3958 = vld [vmem:[%s10 + $0x358] sm:$0xff]
      %v3959 = vld [vmem:[%s10 + $0x360] sm:$0xff]
      %v3960 = vld [vmem:[%s10 + $0x368] sm:$0xff]
      %v3961 = vld [vmem:[%s10 + $0x370] sm:$0xff]
      %v3962 = vld [vmem:[%s10 + $0x378] sm:$0xff]
      %v3963 = vld [vmem:[%s10 + $0x380] sm:$0xff]
      %v3964 = vld [vmem:[%s10 + $0x388] sm:$0xff]
      %v3965 = vld [vmem:[%s10 + $0x390] sm:$0xff]
      %v3966 = vld [vmem:[%s10 + $0x398] sm:$0xff]
      %v3967 = vld [vmem:[%s10 + $0x3a0] sm:$0xff]
      %v3968 = vld [vmem:[%s10 + $0x3a8] sm:$0xff]
      %v3969 = vld [vmem:[%s10 + $0x3b0] sm:$0xff]
      %v3970 = vld [vmem:[%s10 + $0x3b8] sm:$0xff]
      %v3971 = vld [vmem:[%s10 + $0x3c0] sm:$0xff]
      %v3972 = vld [vmem:[%s10 + $0x3c8] sm:$0xff]
      %v3973 = vld [vmem:[%s10 + $0x3d0] sm:$0xff]
      %v3974 = vld [vmem:[%s10 + $0x3d8] sm:$0xff]
      %v3975 = vld [vmem:[%s10 + $0x3e0] sm:$0xff]
      %v3976 = vld [vmem:[%s10 + $0x3e8] sm:$0xff]
      %v3977 = vld [vmem:[%s10 + $0x3f0] sm:$0xff]
      %v3978 = vld [vmem:[%s10 + $0x3f8] sm:$0xff]
      %v3979 = vld [vmem:[%s10 + $0x400] sm:$0xff]
      %v3980 = vld [vmem:[%s10 + $0x408] sm:$0xff]
      %v3981 = vld [vmem:[%s10 + $0x410] sm:$0xff]
      %v3982 = vld [vmem:[%s10 + $0x418] sm:$0xff]
      %v3983 = vld [vmem:[%s10 + $0x420] sm:$0xff]
      %v3984 = vld [vmem:[%s10 + $0x428] sm:$0xff]
      %v3985 = vld [vmem:[%s10 + $0x430] sm:$0xff]
      %v3986 = vld [vmem:[%s10 + $0x438] sm:$0xff]
      %v3987 = vld [vmem:[%s10 + $0x440] sm:$0xff]
      %v3988 = vld [vmem:[%s10 + $0x448] sm:$0xff]
      %v3989 = vld [vmem:[%s10 + $0x450] sm:$0xff]
      %v3990 = vld [vmem:[%s10 + $0x458] sm:$0xff]
      %v3991 = vld [vmem:[%s10 + $0x460] sm:$0xff]
      %v3992 = vld [vmem:[%s10 + $0x468] sm:$0xff]
      %v3993 = vld [vmem:[%s10 + $0x470] sm:$0xff]
      %v3994 = vld [vmem:[%s10 + $0x478] sm:$0xff]
      %v3995 = vld [vmem:[%s10 + $0x480] sm:$0xff]
      %v3996 = vld [vmem:[%s10 + $0x488] sm:$0xff]
      %v3997 = vld [vmem:[%s10 + $0x490] sm:$0xff]
      %v3998 = vld [vmem:[%s10 + $0x498] sm:$0xff]
      %v3999 = vld [vmem:[%s10 + $0x4a0] sm:$0xff]
      %v4000 = vld [vmem:[%s10 + $0x4a8] sm:$0xff]
      %v4001 = vld [vmem:[%s10 + $0x4b0] sm:$0xff]
      %v4002 = vld [vmem:[%s10 + $0x4b8] sm:$0xff]
      %v4003 = vld [vmem:[%s10 + $0x4c0] sm:$0xff]
      %v4004 = vld [vmem:[%s10 + $0x4c8] sm:$0xff]
      %v4005 = vld [vmem:[%s10 + $0x4d0] sm:$0xff]
      %v4006 = vld [vmem:[%s10 + $0x4d8] sm:$0xff]
      %v4007 = vld [vmem:[%s10 + $0x4e0] sm:$0xff]
      %v4008 = vld [vmem:[%s10 + $0x4e8] sm:$0xff]
      %v4009 = vld [vmem:[%s10 + $0x4f0] sm:$0xff]
      %v4010 = vld [vmem:[%s10 + $0x4f8] sm:$0xff]
      %v4011 = vld [vmem:[%s10 + $0x500] sm:$0xff]
      %v4012 = vld [vmem:[%s10 + $0x508] sm:$0xff]
      %v4013 = vld [vmem:[%s10 + $0x510] sm:$0xff]
      %v4014 = vld [vmem:[%s10 + $0x518] sm:$0xff]
      %v4015 = vld [vmem:[%s10 + $0x520] sm:$0xff]
      %v4016 = vld [vmem:[%s10 + $0x528] sm:$0xff]
      %v4017 = vld [vmem:[%s10 + $0x530] sm:$0xff]
      %v4018 = vld [vmem:[%s10 + $0x538] sm:$0xff]
      %v4019 = vld [vmem:[%s10 + $0x540] sm:$0xff]
      %v4020 = vld [vmem:[%s10 + $0x548] sm:$0xff]
      %v4021 = vld [vmem:[%s10 + $0x550] sm:$0xff]
      %v4022 = vld [vmem:[%s10 + $0x558] sm:$0xff]
      %v4023 = vld [vmem:[%s10 + $0x560] sm:$0xff]
      %v4024 = vld [vmem:[%s10 + $0x568] sm:$0xff]
      %v4025 = vld [vmem:[%s10 + $0x570] sm:$0xff]
      %v4026 = vld [vmem:[%s10 + $0x578] sm:$0xff]
      %v4027 = vld [vmem:[%s10 + $0x580] sm:$0xff]
      %v4028 = vld [vmem:[%s10 + $0x588] sm:$0xff]
      %v4029 = vld [vmem:[%s10 + $0x590] sm:$0xff]
      %v4030 = vld [vmem:[%s10 + $0x598] sm:$0xff]
      %v4031 = vld [vmem:[%s10 + $0x5a0] sm:$0xff]
      %v4032 = vld [vmem:[%s10 + $0x5a8] sm:$0xff]
      %v4033 = vld [vmem:[%s10 + $0x5b0] sm:$0xff]
      %v4034 = vld [vmem:[%s10 + $0x5b8] sm:$0xff]
      %v4035 = vld [vmem:[%s10 + $0x5c0] sm:$0xff]
      %v4036 = vld [vmem:[%s10 + $0x5c8] sm:$0xff]
      %v4037 = vld [vmem:[%s10 + $0x5d0] sm:$0xff]
      %v4038 = vld [vmem:[%s10 + $0x5d8] sm:$0xff]
      %v4039 = vld [vmem:[%s10 + $0x5e0] sm:$0xff]
      %v4040 = vld [vmem:[%s10 + $0x5e8] sm:$0xff]
      %v4041 = vld [vmem:[%s10 + $0x5f0] sm:$0xff]
      %v4042 = vld [vmem:[%s10 + $0x5f8] sm:$0xff]
      %v4043 = vld [vmem:[%s10 + $0x600] sm:$0xff]
      %v4044 = vld [vmem:[%s10 + $0x608] sm:$0xff]
      %v4045 = vld [vmem:[%s10 + $0x610] sm:$0xff]
      %v4046 = vld [vmem:[%s10 + $0x618] sm:$0xff]
      %v4047 = vld [vmem:[%s10 + $0x620] sm:$0xff]
      %v4048 = vld [vmem:[%s10 + $0x628] sm:$0xff]
      %v4049 = vld [vmem:[%s10 + $0x630] sm:$0xff]
      %v4050 = vld [vmem:[%s10 + $0x638] sm:$0xff]
      %v4051 = vld [vmem:[%s10 + $0x640] sm:$0xff]
      %v4052 = vld [vmem:[%s10 + $0x648] sm:$0xff]
      %v4053 = vld [vmem:[%s10 + $0x650] sm:$0xff]
      %v4054 = vld [vmem:[%s10 + $0x658] sm:$0xff]
      %v4055 = vld [vmem:[%s10 + $0x660] sm:$0xff]
      %v4056 = vld [vmem:[%s10 + $0x668] sm:$0xff]
      %v4057 = vld [vmem:[%s10 + $0x670] sm:$0xff]
      %v4058 = vld [vmem:[%s10 + $0x678] sm:$0xff]
      %v4059 = vld [vmem:[%s10 + $0x680] sm:$0xff]
      %v4060 = vld [vmem:[%s10 + $0x688] sm:$0xff]
      %v4061 = vld [vmem:[%s10 + $0x690] sm:$0xff]
      %v4062 = vld [vmem:[%s10 + $0x698] sm:$0xff]
      %v4063 = vld [vmem:[%s10 + $0x6a0] sm:$0xff]
      %v4064 = vld [vmem:[%s10 + $0x6a8] sm:$0xff]
      %v4065 = vld [vmem:[%s10 + $0x6b0] sm:$0xff]
      %v4066 = vld [vmem:[%s10 + $0x6b8] sm:$0xff]
      %v4067 = vld [vmem:[%s10 + $0x6c0] sm:$0xff]
      %v4068 = vld [vmem:[%s10 + $0x6c8] sm:$0xff]
      %v4069 = vld [vmem:[%s10 + $0x6d0] sm:$0xff]
      %v4070 = vld [vmem:[%s10 + $0x6d8] sm:$0xff]
      %v4071 = vld [vmem:[%s10 + $0x6e0] sm:$0xff]
      %v4072 = vld [vmem:[%s10 + $0x6e8] sm:$0xff]
      %v4073 = vld [vmem:[%s10 + $0x6f0] sm:$0xff]
      %v4074 = vld [vmem:[%s10 + $0x6f8] sm:$0xff]
      %v4075 = vld [vmem:[%s10 + $0x700] sm:$0xff]
      %v4076 = vld [vmem:[%s10 + $0x708] sm:$0xff]
      %v4077 = vld [vmem:[%s10 + $0x710] sm:$0xff]
      %v4078 = vld [vmem:[%s10 + $0x718] sm:$0xff]
      %v4079 = vld [vmem:[%s10 + $0x720] sm:$0xff]
      %v4080 = vld [vmem:[%s10 + $0x728] sm:$0xff]
      %v4081 = vld [vmem:[%s10 + $0x730] sm:$0xff]
      %v4082 = vld [vmem:[%s10 + $0x738] sm:$0xff]
      %v4083 = vld [vmem:[%s10 + $0x740] sm:$0xff]
      %v4084 = vld [vmem:[%s10 + $0x748] sm:$0xff]
      %v4085 = vld [vmem:[%s10 + $0x750] sm:$0xff]
      %v4086 = vld [vmem:[%s10 + $0x758] sm:$0xff]
      %v4087 = vld [vmem:[%s10 + $0x760] sm:$0xff]
      %v4088 = vld [vmem:[%s10 + $0x768] sm:$0xff]
      %v4089 = vld [vmem:[%s10 + $0x770] sm:$0xff]
      %v4090 = vld [vmem:[%s10 + $0x778] sm:$0xff]
      %v4091 = vld [vmem:[%s10 + $0x780] sm:$0xff]
      %v4092 = vld [vmem:[%s10 + $0x788] sm:$0xff]
      %v4093 = vld [vmem:[%s10 + $0x790] sm:$0xff]
      %v4094 = vld [vmem:[%s10 + $0x798] sm:$0xff]
      %v4095 = vld [vmem:[%s10 + $0x7a0] sm:$0xff]
      %v4096 = vld [vmem:[%s10 + $0x7a8] sm:$0xff]
      %v4097 = vld [vmem:[%s10 + $0x7b0] sm:$0xff]
      %v4098 = vld [vmem:[%s10 + $0x7b8] sm:$0xff]
      %v4099 = vld [vmem:[%s10 + $0x7c0] sm:$0xff]
      %v4100 = vld [vmem:[%s10 + $0x7c8] sm:$0xff]
      %v4101 = vld [vmem:[%s10 + $0x7d0] sm:$0xff]
      %v4102 = vld [vmem:[%s10 + $0x7d8] sm:$0xff]
      %v4103 = vld [vmem:[%s10 + $0x7e0] sm:$0xff]
      %v4104 = vld [vmem:[%s10 + $0x7e8] sm:$0xff]
      %v4105 = vld [vmem:[%s10 + $0x7f0] sm:$0xff]
      %v4106 = vld [vmem:[%s10 + $0x7f8] sm:$0xff]
      %v4107 = vld [vmem:[%s10 + $0x800] sm:$0xff]
      %v4108 = vld [vmem:[%s10 + $0x808] sm:$0xff]
      %v4109 = vld [vmem:[%s10 + $0x810] sm:$0xff]
      %v4110 = vld [vmem:[%s10 + $0x818] sm:$0xff]
      %v4111 = vld [vmem:[%s10 + $0x820] sm:$0xff]
      %v4112 = vld [vmem:[%s10 + $0x828] sm:$0xff]
      %v4113 = vld [vmem:[%s10 + $0x830] sm:$0xff]
      %v4114 = vld [vmem:[%s10 + $0x838] sm:$0xff]
      %v4115 = vld [vmem:[%s10 + $0x840] sm:$0xff]
      %v4116 = vld [vmem:[%s10 + $0x848] sm:$0xff]
      %v4117 = vld [vmem:[%s10 + $0x850] sm:$0xff]
      %v4118 = vld [vmem:[%s10 + $0x858] sm:$0xff]
      %v4119 = vld [vmem:[%s10 + $0x860] sm:$0xff]
      %v4120 = vld [vmem:[%s10 + $0x868] sm:$0xff]
      %v4121 = vld [vmem:[%s10 + $0x870] sm:$0xff]
      %v4122 = vld [vmem:[%s10 + $0x878] sm:$0xff]
      %v4123 = vld [vmem:[%s10 + $0x880] sm:$0xff]
      %v4124 = vld [vmem:[%s10 + $0x888] sm:$0xff]
      %v4125 = vld [vmem:[%s10 + $0x890] sm:$0xff]
      %v4126 = vld [vmem:[%s10 + $0x898] sm:$0xff]
      %v4127 = vld [vmem:[%s10 + $0x8a0] sm:$0xff]
      %v4128 = vld [vmem:[%s10 + $0x8a8] sm:$0xff]
      %v4129 = vld [vmem:[%s10 + $0x8b0] sm:$0xff]
      %v4130 = vld [vmem:[%s10 + $0x8b8] sm:$0xff]
      %v4131 = vld [vmem:[%s10 + $0x8c0] sm:$0xff]
      %v4132 = vld [vmem:[%s10 + $0x8c8] sm:$0xff]
      %v4133 = vld [vmem:[%s10 + $0x8d0] sm:$0xff]
      %v4134 = vld [vmem:[%s10 + $0x8d8] sm:$0xff]
      %v4135 = vld [vmem:[%s10 + $0x8e0] sm:$0xff]
      %v4136 = vld [vmem:[%s10 + $0x8e8] sm:$0xff]
      %v4137 = vld [vmem:[%s10 + $0x8f0] sm:$0xff]
      %v4138 = vld [vmem:[%s10 + $0x8f8] sm:$0xff]
      %v4139 = vld [vmem:[%s11] sm:$0xff]
      %v4140 = vld [vmem:[%s11 + $0x8] sm:$0xf]
      %v4143 = vlaneseq
      %v4144 = vshrl.u32 %v4143, 7
      %v4145 = vsub.s32 0, %v4144
      %v4146 = vrot.slane %v4139, %v4145
      %v4147 = vlaneseq
      %v4148 = vshrl.u32 %v4147, 7
      %v4149 = vsub.s32 1, %v4148
      %v4150 = vrot.slane %v4139, %v4149
      %v4151 = vlaneseq
      %v4152 = vshrl.u32 %v4151, 7
      %v4153 = vsub.s32 2, %v4152
      %v4154 = vrot.slane %v4139, %v4153
      %v4155 = vlaneseq
      %v4156 = vshrl.u32 %v4155, 7
      %v4157 = vsub.s32 3, %v4156
      %v4158 = vrot.slane %v4139, %v4157
      %v4159 = vlaneseq
      %v4160 = vshrl.u32 %v4159, 7
      %v4161 = vsub.s32 4, %v4160
      %v4162 = vrot.slane %v4139, %v4161
      %v4163 = vlaneseq
      %v4164 = vshrl.u32 %v4163, 7
      %v4165 = vsub.s32 5, %v4164
      %v4166 = vrot.slane %v4139, %v4165
      %v4167 = vlaneseq
      %v4168 = vshrl.u32 %v4167, 7
      %v4169 = vsub.s32 6, %v4168
      %v4170 = vrot.slane %v4139, %v4169
      %v4171 = vlaneseq
      %v4172 = vshrl.u32 %v4171, 7
      %v4173 = vsub.s32 7, %v4172
      %v4174 = vrot.slane %v4139, %v4173
      %v4175 = vlaneseq
      %v4176 = vshrl.u32 %v4175, 7
      %v4177 = vsub.s32 0, %v4176
      %v4178 = vrot.slane %v4140, %v4177
      %v4179 = vlaneseq
      %v4180 = vshrl.u32 %v4179, 7
      %v4181 = vsub.s32 1, %v4180
      %v4182 = vrot.slane %v4140, %v4181
      %v4183 = vlaneseq
      %v4184 = vshrl.u32 %v4183, 7
      %v4185 = vsub.s32 2, %v4184
      %v4186 = vrot.slane %v4140, %v4185
      %v4187 = vlaneseq
      %v4188 = vshrl.u32 %v4187, 7
      %v4189 = vsub.s32 3, %v4188
      %v4190 = vrot.slane %v4140, %v4189
      %v4491 = vunpack.c.l.b16 %v3851
      %v4492 = vunpack.c.h.b16 %v3851
      %v4493 = vunpack.c.l.b16 %v3852
      %v4494 = vunpack.c.h.b16 %v3852
      %v4495 = vunpack.c.l.b16 %v3853
      %v4496 = vunpack.c.h.b16 %v3853
      %v4497 = vunpack.c.l.b16 %v3854
      %v4498 = vunpack.c.h.b16 %v3854
      %v4499 = vunpack.c.l.b16 %v3855
      %v4500 = vunpack.c.h.b16 %v3855
      %v4501 = vunpack.c.l.b16 %v3856
      %v4502 = vunpack.c.h.b16 %v3856
      %v4503 = vunpack.c.l.b16 %v3857
      %v4504 = vunpack.c.h.b16 %v3857
      %v4505 = vunpack.c.l.b16 %v3858
      %v4506 = vunpack.c.h.b16 %v3858
      %v4507 = vunpack.c.l.b16 %v3859
      %v4508 = vunpack.c.h.b16 %v3859
      %v4509 = vunpack.c.l.b16 %v3860
      %v4510 = vunpack.c.h.b16 %v3860
      %v4511 = vunpack.c.l.b16 %v3861
      %v4512 = vunpack.c.h.b16 %v3861
      %v4513 = vunpack.c.l.b16 %v3862
      %v4514 = vunpack.c.h.b16 %v3862
      %v4515 = vunpack.c.l.b16 %v3863
      %v4516 = vunpack.c.h.b16 %v3863
      %v4517 = vunpack.c.l.b16 %v3864
      %v4518 = vunpack.c.h.b16 %v3864
      %v4519 = vunpack.c.l.b16 %v3865
      %v4520 = vunpack.c.h.b16 %v3865
      %v4521 = vunpack.c.l.b16 %v3866
      %v4522 = vunpack.c.h.b16 %v3866
      %v4523 = vunpack.c.l.b16 %v3867
      %v4524 = vunpack.c.h.b16 %v3867
      %v4525 = vunpack.c.l.b16 %v3868
      %v4526 = vunpack.c.h.b16 %v3868
      %v4527 = vunpack.c.l.b16 %v3869
      %v4528 = vunpack.c.h.b16 %v3869
      %v4529 = vunpack.c.l.b16 %v3870
      %v4530 = vunpack.c.h.b16 %v3870
      %v4531 = vunpack.c.l.b16 %v3871
      %v4532 = vunpack.c.h.b16 %v3871
      %v4533 = vunpack.c.l.b16 %v3872
      %v4534 = vunpack.c.h.b16 %v3872
      %v4535 = vunpack.c.l.b16 %v3873
      %v4536 = vunpack.c.h.b16 %v3873
      %v4537 = vunpack.c.l.b16 %v3874
      %v4538 = vunpack.c.h.b16 %v3874
      %v4539 = vunpack.c.l.b16 %v3875
      %v4540 = vunpack.c.h.b16 %v3875
      %v4541 = vunpack.c.l.b16 %v3876
      %v4542 = vunpack.c.h.b16 %v3876
      %v4543 = vunpack.c.l.b16 %v3877
      %v4544 = vunpack.c.h.b16 %v3877
      %v4545 = vunpack.c.l.b16 %v3878
      %v4546 = vunpack.c.h.b16 %v3878
      %v4547 = vunpack.c.l.b16 %v3879
      %v4548 = vunpack.c.h.b16 %v3879
      %v4549 = vunpack.c.l.b16 %v3880
      %v4550 = vunpack.c.h.b16 %v3880
      %v4551 = vunpack.c.l.b16 %v3881
      %v4552 = vunpack.c.h.b16 %v3881
      %v4553 = vunpack.c.l.b16 %v3882
      %v4554 = vunpack.c.h.b16 %v3882
      %v4555 = vunpack.c.l.b16 %v3883
      %v4556 = vunpack.c.h.b16 %v3883
      %v4557 = vunpack.c.l.b16 %v3884
      %v4558 = vunpack.c.h.b16 %v3884
      %v4559 = vunpack.c.l.b16 %v3885
      %v4560 = vunpack.c.h.b16 %v3885
      %v4561 = vunpack.c.l.b16 %v3886
      %v4562 = vunpack.c.h.b16 %v3886
      %v4563 = vunpack.c.l.b16 %v3887
      %v4564 = vunpack.c.h.b16 %v3887
      %v4565 = vunpack.c.l.b16 %v3888
      %v4566 = vunpack.c.h.b16 %v3888
      %v4567 = vunpack.c.l.b16 %v3889
      %v4568 = vunpack.c.h.b16 %v3889
      %v4569 = vunpack.c.l.b16 %v3890
      %v4570 = vunpack.c.h.b16 %v3890
      %v4571 = vunpack.c.l.b16 %v3891
      %v4572 = vunpack.c.h.b16 %v3891
      %v4573 = vunpack.c.l.b16 %v3892
      %v4574 = vunpack.c.h.b16 %v3892
      %v4575 = vunpack.c.l.b16 %v3893
      %v4576 = vunpack.c.h.b16 %v3893
      %v4577 = vunpack.c.l.b16 %v3894
      %v4578 = vunpack.c.h.b16 %v3894
      %v4579 = vunpack.c.l.b16 %v3895
      %v4580 = vunpack.c.h.b16 %v3895
      %v4581 = vunpack.c.l.b16 %v3896
      %v4582 = vunpack.c.h.b16 %v3896
      %v4583 = vunpack.c.l.b16 %v3897
      %v4584 = vunpack.c.h.b16 %v3897
      %v4585 = vunpack.c.l.b16 %v3898
      %v4586 = vunpack.c.h.b16 %v3898
      %v4587 = vunpack.c.l.b16 %v3899
      %v4588 = vunpack.c.h.b16 %v3899
      %v4589 = vunpack.c.l.b16 %v3900
      %v4590 = vunpack.c.h.b16 %v3900
      %v4591 = vunpack.c.l.b16 %v3901
      %v4592 = vunpack.c.h.b16 %v3901
      %v4593 = vunpack.c.l.b16 %v3902
      %v4594 = vunpack.c.h.b16 %v3902
      %v4595 = vunpack.c.l.b16 %v3903
      %v4596 = vunpack.c.h.b16 %v3903
      %v4597 = vunpack.c.l.b16 %v3904
      %v4598 = vunpack.c.h.b16 %v3904
      %v4599 = vunpack.c.l.b16 %v3905
      %v4600 = vunpack.c.h.b16 %v3905
      %v4601 = vunpack.c.l.b16 %v3906
      %v4602 = vunpack.c.h.b16 %v3906
      %v4603 = vunpack.c.l.b16 %v3907
      %v4604 = vunpack.c.h.b16 %v3907
      %v4605 = vunpack.c.l.b16 %v3908
      %v4606 = vunpack.c.h.b16 %v3908
      %v4607 = vunpack.c.l.b16 %v3909
      %v4608 = vunpack.c.h.b16 %v3909
      %v4609 = vunpack.c.l.b16 %v3910
      %v4610 = vunpack.c.h.b16 %v3910
      %v4611 = vunpack.c.l.b16 %v3911
      %v4612 = vunpack.c.h.b16 %v3911
      %v4613 = vunpack.c.l.b16 %v3912
      %v4614 = vunpack.c.h.b16 %v3912
      %v4615 = vunpack.c.l.b16 %v3913
      %v4616 = vunpack.c.h.b16 %v3913
      %v4617 = vunpack.c.l.b16 %v3914
      %v4618 = vunpack.c.h.b16 %v3914
      %v4619 = vunpack.c.l.b16 %v3915
      %v4620 = vunpack.c.h.b16 %v3915
      %v4621 = vunpack.c.l.b16 %v3916
      %v4622 = vunpack.c.h.b16 %v3916
      %v4623 = vunpack.c.l.b16 %v3917
      %v4624 = vunpack.c.h.b16 %v3917
      %v4625 = vunpack.c.l.b16 %v3918
      %v4626 = vunpack.c.h.b16 %v3918
      %v4627 = vunpack.c.l.b16 %v3919
      %v4628 = vunpack.c.h.b16 %v3919
      %v4629 = vunpack.c.l.b16 %v3920
      %v4630 = vunpack.c.h.b16 %v3920
      %v4631 = vunpack.c.l.b16 %v3921
      %v4632 = vunpack.c.h.b16 %v3921
      %v4633 = vunpack.c.l.b16 %v3922
      %v4634 = vunpack.c.h.b16 %v3922
      %v4635 = vunpack.c.l.b16 %v3923
      %v4636 = vunpack.c.h.b16 %v3923
      %v4637 = vunpack.c.l.b16 %v3924
      %v4638 = vunpack.c.h.b16 %v3924
      %v4639 = vunpack.c.l.b16 %v3925
      %v4640 = vunpack.c.h.b16 %v3925
      %v4641 = vunpack.c.l.b16 %v3926
      %v4642 = vunpack.c.h.b16 %v3926
      %v4643 = vunpack.c.l.b16 %v3927
      %v4644 = vunpack.c.h.b16 %v3927
      %v4645 = vunpack.c.l.b16 %v3928
      %v4646 = vunpack.c.h.b16 %v3928
      %v4647 = vunpack.c.l.b16 %v3929
      %v4648 = vunpack.c.h.b16 %v3929
      %v4649 = vunpack.c.l.b16 %v3930
      %v4650 = vunpack.c.h.b16 %v3930
      %v4651 = vunpack.c.l.b16 %v3931
      %v4652 = vunpack.c.h.b16 %v3931
      %v4653 = vunpack.c.l.b16 %v3932
      %v4654 = vunpack.c.h.b16 %v3932
      %v4655 = vunpack.c.l.b16 %v3933
      %v4656 = vunpack.c.h.b16 %v3933
      %v4657 = vunpack.c.l.b16 %v3934
      %v4658 = vunpack.c.h.b16 %v3934
      %v4659 = vunpack.c.l.b16 %v3935
      %v4660 = vunpack.c.h.b16 %v3935
      %v4661 = vunpack.c.l.b16 %v3936
      %v4662 = vunpack.c.h.b16 %v3936
      %v4663 = vunpack.c.l.b16 %v3937
      %v4664 = vunpack.c.h.b16 %v3937
      %v4665 = vunpack.c.l.b16 %v3938
      %v4666 = vunpack.c.h.b16 %v3938
      %v4667 = vunpack.c.l.b16 %v3939
      %v4668 = vunpack.c.h.b16 %v3939
      %v4669 = vunpack.c.l.b16 %v3940
      %v4670 = vunpack.c.h.b16 %v3940
      %v4671 = vunpack.c.l.b16 %v3941
      %v4672 = vunpack.c.h.b16 %v3941
      %v4673 = vunpack.c.l.b16 %v3942
      %v4674 = vunpack.c.h.b16 %v3942
      %v4675 = vunpack.c.l.b16 %v3943
      %v4676 = vunpack.c.h.b16 %v3943
      %v4677 = vunpack.c.l.b16 %v3944
      %v4678 = vunpack.c.h.b16 %v3944
      %v4679 = vunpack.c.l.b16 %v3945
      %v4680 = vunpack.c.h.b16 %v3945
      %v4681 = vunpack.c.l.b16 %v3946
      %v4682 = vunpack.c.h.b16 %v3946
      %v4683 = vunpack.c.l.b16 %v3947
      %v4684 = vunpack.c.h.b16 %v3947
      %v4685 = vunpack.c.l.b16 %v3948
      %v4686 = vunpack.c.h.b16 %v3948
      %v4687 = vunpack.c.l.b16 %v3949
      %v4688 = vunpack.c.h.b16 %v3949
      %v4689 = vunpack.c.l.b16 %v3950
      %v4690 = vunpack.c.h.b16 %v3950
      %v4691 = vunpack.c.l.b16 %v3951
      %v4692 = vunpack.c.h.b16 %v3951
      %v4693 = vunpack.c.l.b16 %v3952
      %v4694 = vunpack.c.h.b16 %v3952
      %v4695 = vunpack.c.l.b16 %v3953
      %v4696 = vunpack.c.h.b16 %v3953
      %v4697 = vunpack.c.l.b16 %v3954
      %v4698 = vunpack.c.h.b16 %v3954
      %v4699 = vunpack.c.l.b16 %v3955
      %v4700 = vunpack.c.h.b16 %v3955
      %v4701 = vunpack.c.l.b16 %v3956
      %v4702 = vunpack.c.h.b16 %v3956
      %v4703 = vunpack.c.l.b16 %v3957
      %v4704 = vunpack.c.h.b16 %v3957
      %v4705 = vunpack.c.l.b16 %v3958
      %v4706 = vunpack.c.h.b16 %v3958
      %v4707 = vunpack.c.l.b16 %v3959
      %v4708 = vunpack.c.h.b16 %v3959
      %v4709 = vunpack.c.l.b16 %v3960
      %v4710 = vunpack.c.h.b16 %v3960
      %v4711 = vunpack.c.l.b16 %v3961
      %v4712 = vunpack.c.h.b16 %v3961
      %v4713 = vunpack.c.l.b16 %v3962
      %v4714 = vunpack.c.h.b16 %v3962
      %v4715 = vunpack.c.l.b16 %v3963
      %v4716 = vunpack.c.h.b16 %v3963
      %v4717 = vunpack.c.l.b16 %v3964
      %v4718 = vunpack.c.h.b16 %v3964
      %v4719 = vunpack.c.l.b16 %v3965
      %v4720 = vunpack.c.h.b16 %v3965
      %v4721 = vunpack.c.l.b16 %v3966
      %v4722 = vunpack.c.h.b16 %v3966
      %v4723 = vunpack.c.l.b16 %v3967
      %v4724 = vunpack.c.h.b16 %v3967
      %v4725 = vunpack.c.l.b16 %v3968
      %v4726 = vunpack.c.h.b16 %v3968
      %v4727 = vunpack.c.l.b16 %v3969
      %v4728 = vunpack.c.h.b16 %v3969
      %v4729 = vunpack.c.l.b16 %v3970
      %v4730 = vunpack.c.h.b16 %v3970
      %v4731 = vunpack.c.l.b16 %v3971
      %v4732 = vunpack.c.h.b16 %v3971
      %v4733 = vunpack.c.l.b16 %v3972
      %v4734 = vunpack.c.h.b16 %v3972
      %v4735 = vunpack.c.l.b16 %v3973
      %v4736 = vunpack.c.h.b16 %v3973
      %v4737 = vunpack.c.l.b16 %v3974
      %v4738 = vunpack.c.h.b16 %v3974
      %v4739 = vunpack.c.l.b16 %v3975
      %v4740 = vunpack.c.h.b16 %v3975
      %v4741 = vunpack.c.l.b16 %v3976
      %v4742 = vunpack.c.h.b16 %v3976
      %v4743 = vunpack.c.l.b16 %v3977
      %v4744 = vunpack.c.h.b16 %v3977
      %v4745 = vunpack.c.l.b16 %v3978
      %v4746 = vunpack.c.h.b16 %v3978
      %v4747 = vunpack.c.l.b16 %v3979
      %v4748 = vunpack.c.h.b16 %v3979
      %v4749 = vunpack.c.l.b16 %v3980
      %v4750 = vunpack.c.h.b16 %v3980
      %v4751 = vunpack.c.l.b16 %v3981
      %v4752 = vunpack.c.h.b16 %v3981
      %v4753 = vunpack.c.l.b16 %v3982
      %v4754 = vunpack.c.h.b16 %v3982
      %v4755 = vunpack.c.l.b16 %v3983
      %v4756 = vunpack.c.h.b16 %v3983
      %v4757 = vunpack.c.l.b16 %v3984
      %v4758 = vunpack.c.h.b16 %v3984
      %v4759 = vunpack.c.l.b16 %v3985
      %v4760 = vunpack.c.h.b16 %v3985
      %v4761 = vunpack.c.l.b16 %v3986
      %v4762 = vunpack.c.h.b16 %v3986
      %v4763 = vunpack.c.l.b16 %v3987
      %v4764 = vunpack.c.h.b16 %v3987
      %v4765 = vunpack.c.l.b16 %v3988
      %v4766 = vunpack.c.h.b16 %v3988
      %v4767 = vunpack.c.l.b16 %v3989
      %v4768 = vunpack.c.h.b16 %v3989
      %v4769 = vunpack.c.l.b16 %v3990
      %v4770 = vunpack.c.h.b16 %v3990
      %v4771 = vunpack.c.l.b16 %v3991
      %v4772 = vunpack.c.h.b16 %v3991
      %v4773 = vunpack.c.l.b16 %v3992
      %v4774 = vunpack.c.h.b16 %v3992
      %v4775 = vunpack.c.l.b16 %v3993
      %v4776 = vunpack.c.h.b16 %v3993
      %v4777 = vunpack.c.l.b16 %v3994
      %v4778 = vunpack.c.h.b16 %v3994
      %v4779 = vunpack.c.l.b16 %v3995
      %v4780 = vunpack.c.h.b16 %v3995
      %v4781 = vunpack.c.l.b16 %v3996
      %v4782 = vunpack.c.h.b16 %v3996
      %v4783 = vunpack.c.l.b16 %v3997
      %v4784 = vunpack.c.h.b16 %v3997
      %v4785 = vunpack.c.l.b16 %v3998
      %v4786 = vunpack.c.h.b16 %v3998
      %v4787 = vunpack.c.l.b16 %v3999
      %v4788 = vunpack.c.h.b16 %v3999
      %v4789 = vunpack.c.l.b16 %v4000
      %v4790 = vunpack.c.h.b16 %v4000
      %v4791 = vunpack.c.l.b16 %v4001
      %v4792 = vunpack.c.h.b16 %v4001
      %v4793 = vunpack.c.l.b16 %v4002
      %v4794 = vunpack.c.h.b16 %v4002
      %v4795 = vunpack.c.l.b16 %v4003
      %v4796 = vunpack.c.h.b16 %v4003
      %v4797 = vunpack.c.l.b16 %v4004
      %v4798 = vunpack.c.h.b16 %v4004
      %v4799 = vunpack.c.l.b16 %v4005
      %v4800 = vunpack.c.h.b16 %v4005
      %v4801 = vunpack.c.l.b16 %v4006
      %v4802 = vunpack.c.h.b16 %v4006
      %v4803 = vunpack.c.l.b16 %v4007
      %v4804 = vunpack.c.h.b16 %v4007
      %v4805 = vunpack.c.l.b16 %v4008
      %v4806 = vunpack.c.h.b16 %v4008
      %v4807 = vunpack.c.l.b16 %v4009
      %v4808 = vunpack.c.h.b16 %v4009
      %v4809 = vunpack.c.l.b16 %v4010
      %v4810 = vunpack.c.h.b16 %v4010
      %v4811 = vunpack.c.l.b16 %v4011
      %v4812 = vunpack.c.h.b16 %v4011
      %v4813 = vunpack.c.l.b16 %v4012
      %v4814 = vunpack.c.h.b16 %v4012
      %v4815 = vunpack.c.l.b16 %v4013
      %v4816 = vunpack.c.h.b16 %v4013
      %v4817 = vunpack.c.l.b16 %v4014
      %v4818 = vunpack.c.h.b16 %v4014
      %v4819 = vunpack.c.l.b16 %v4015
      %v4820 = vunpack.c.h.b16 %v4015
      %v4821 = vunpack.c.l.b16 %v4016
      %v4822 = vunpack.c.h.b16 %v4016
      %v4823 = vunpack.c.l.b16 %v4017
      %v4824 = vunpack.c.h.b16 %v4017
      %v4825 = vunpack.c.l.b16 %v4018
      %v4826 = vunpack.c.h.b16 %v4018
      %v4827 = vunpack.c.l.b16 %v4019
      %v4828 = vunpack.c.h.b16 %v4019
      %v4829 = vunpack.c.l.b16 %v4020
      %v4830 = vunpack.c.h.b16 %v4020
      %v4831 = vunpack.c.l.b16 %v4021
      %v4832 = vunpack.c.h.b16 %v4021
      %v4833 = vunpack.c.l.b16 %v4022
      %v4834 = vunpack.c.h.b16 %v4022
      %v4835 = vunpack.c.l.b16 %v4023
      %v4836 = vunpack.c.h.b16 %v4023
      %v4837 = vunpack.c.l.b16 %v4024
      %v4838 = vunpack.c.h.b16 %v4024
      %v4839 = vunpack.c.l.b16 %v4025
      %v4840 = vunpack.c.h.b16 %v4025
      %v4841 = vunpack.c.l.b16 %v4026
      %v4842 = vunpack.c.h.b16 %v4026
      %v4843 = vunpack.c.l.b16 %v4027
      %v4844 = vunpack.c.h.b16 %v4027
      %v4845 = vunpack.c.l.b16 %v4028
      %v4846 = vunpack.c.h.b16 %v4028
      %v4847 = vunpack.c.l.b16 %v4029
      %v4848 = vunpack.c.h.b16 %v4029
      %v4849 = vunpack.c.l.b16 %v4030
      %v4850 = vunpack.c.h.b16 %v4030
      %v4851 = vunpack.c.l.b16 %v4031
      %v4852 = vunpack.c.h.b16 %v4031
      %v4853 = vunpack.c.l.b16 %v4032
      %v4854 = vunpack.c.h.b16 %v4032
      %v4855 = vunpack.c.l.b16 %v4033
      %v4856 = vunpack.c.h.b16 %v4033
      %v4857 = vunpack.c.l.b16 %v4034
      %v4858 = vunpack.c.h.b16 %v4034
      %v4859 = vunpack.c.l.b16 %v4035
      %v4860 = vunpack.c.h.b16 %v4035
      %v4861 = vunpack.c.l.b16 %v4036
      %v4862 = vunpack.c.h.b16 %v4036
      %v4863 = vunpack.c.l.b16 %v4037
      %v4864 = vunpack.c.h.b16 %v4037
      %v4865 = vunpack.c.l.b16 %v4038
      %v4866 = vunpack.c.h.b16 %v4038
      %v4867 = vunpack.c.l.b16 %v4039
      %v4868 = vunpack.c.h.b16 %v4039
      %v4869 = vunpack.c.l.b16 %v4040
      %v4870 = vunpack.c.h.b16 %v4040
      %v4871 = vunpack.c.l.b16 %v4041
      %v4872 = vunpack.c.h.b16 %v4041
      %v4873 = vunpack.c.l.b16 %v4042
      %v4874 = vunpack.c.h.b16 %v4042
      %v4875 = vunpack.c.l.b16 %v4043
      %v4876 = vunpack.c.h.b16 %v4043
      %v4877 = vunpack.c.l.b16 %v4044
      %v4878 = vunpack.c.h.b16 %v4044
      %v4879 = vunpack.c.l.b16 %v4045
      %v4880 = vunpack.c.h.b16 %v4045
      %v4881 = vunpack.c.l.b16 %v4046
      %v4882 = vunpack.c.h.b16 %v4046
      %v4883 = vunpack.c.l.b16 %v4047
      %v4884 = vunpack.c.h.b16 %v4047
      %v4885 = vunpack.c.l.b16 %v4048
      %v4886 = vunpack.c.h.b16 %v4048
      %v4887 = vunpack.c.l.b16 %v4049
      %v4888 = vunpack.c.h.b16 %v4049
      %v4889 = vunpack.c.l.b16 %v4050
      %v4890 = vunpack.c.h.b16 %v4050
      %v4891 = vunpack.c.l.b16 %v4051
      %v4892 = vunpack.c.h.b16 %v4051
      %v4893 = vunpack.c.l.b16 %v4052
      %v4894 = vunpack.c.h.b16 %v4052
      %v4895 = vunpack.c.l.b16 %v4053
      %v4896 = vunpack.c.h.b16 %v4053
      %v4897 = vunpack.c.l.b16 %v4054
      %v4898 = vunpack.c.h.b16 %v4054
      %v4899 = vunpack.c.l.b16 %v4055
      %v4900 = vunpack.c.h.b16 %v4055
      %v4901 = vunpack.c.l.b16 %v4056
      %v4902 = vunpack.c.h.b16 %v4056
      %v4903 = vunpack.c.l.b16 %v4057
      %v4904 = vunpack.c.h.b16 %v4057
      %v4905 = vunpack.c.l.b16 %v4058
      %v4906 = vunpack.c.h.b16 %v4058
      %v4907 = vunpack.c.l.b16 %v4059
      %v4908 = vunpack.c.h.b16 %v4059
      %v4909 = vunpack.c.l.b16 %v4060
      %v4910 = vunpack.c.h.b16 %v4060
      %v4911 = vunpack.c.l.b16 %v4061
      %v4912 = vunpack.c.h.b16 %v4061
      %v4913 = vunpack.c.l.b16 %v4062
      %v4914 = vunpack.c.h.b16 %v4062
      %v4915 = vunpack.c.l.b16 %v4063
      %v4916 = vunpack.c.h.b16 %v4063
      %v4917 = vunpack.c.l.b16 %v4064
      %v4918 = vunpack.c.h.b16 %v4064
      %v4919 = vunpack.c.l.b16 %v4065
      %v4920 = vunpack.c.h.b16 %v4065
      %v4921 = vunpack.c.l.b16 %v4066
      %v4922 = vunpack.c.h.b16 %v4066
      %v4923 = vunpack.c.l.b16 %v4067
      %v4924 = vunpack.c.h.b16 %v4067
      %v4925 = vunpack.c.l.b16 %v4068
      %v4926 = vunpack.c.h.b16 %v4068
      %v4927 = vunpack.c.l.b16 %v4069
      %v4928 = vunpack.c.h.b16 %v4069
      %v4929 = vunpack.c.l.b16 %v4070
      %v4930 = vunpack.c.h.b16 %v4070
      %v4931 = vunpack.c.l.b16 %v4071
      %v4932 = vunpack.c.h.b16 %v4071
      %v4933 = vunpack.c.l.b16 %v4072
      %v4934 = vunpack.c.h.b16 %v4072
      %v4935 = vunpack.c.l.b16 %v4073
      %v4936 = vunpack.c.h.b16 %v4073
      %v4937 = vunpack.c.l.b16 %v4074
      %v4938 = vunpack.c.h.b16 %v4074
      %v4939 = vunpack.c.l.b16 %v4075
      %v4940 = vunpack.c.h.b16 %v4075
      %v4941 = vunpack.c.l.b16 %v4076
      %v4942 = vunpack.c.h.b16 %v4076
      %v4943 = vunpack.c.l.b16 %v4077
      %v4944 = vunpack.c.h.b16 %v4077
      %v4945 = vunpack.c.l.b16 %v4078
      %v4946 = vunpack.c.h.b16 %v4078
      %v4947 = vunpack.c.l.b16 %v4079
      %v4948 = vunpack.c.h.b16 %v4079
      %v4949 = vunpack.c.l.b16 %v4080
      %v4950 = vunpack.c.h.b16 %v4080
      %v4951 = vunpack.c.l.b16 %v4081
      %v4952 = vunpack.c.h.b16 %v4081
      %v4953 = vunpack.c.l.b16 %v4082
      %v4954 = vunpack.c.h.b16 %v4082
      %v4955 = vunpack.c.l.b16 %v4083
      %v4956 = vunpack.c.h.b16 %v4083
      %v4957 = vunpack.c.l.b16 %v4084
      %v4958 = vunpack.c.h.b16 %v4084
      %v4959 = vunpack.c.l.b16 %v4085
      %v4960 = vunpack.c.h.b16 %v4085
      %v4961 = vunpack.c.l.b16 %v4086
      %v4962 = vunpack.c.h.b16 %v4086
      %v4963 = vunpack.c.l.b16 %v4087
      %v4964 = vunpack.c.h.b16 %v4087
      %v4965 = vunpack.c.l.b16 %v4088
      %v4966 = vunpack.c.h.b16 %v4088
      %v4967 = vunpack.c.l.b16 %v4089
      %v4968 = vunpack.c.h.b16 %v4089
      %v4969 = vunpack.c.l.b16 %v4090
      %v4970 = vunpack.c.h.b16 %v4090
      %v4971 = vunpack.c.l.b16 %v4091
      %v4972 = vunpack.c.h.b16 %v4091
      %v4973 = vunpack.c.l.b16 %v4092
      %v4974 = vunpack.c.h.b16 %v4092
      %v4975 = vunpack.c.l.b16 %v4093
      %v4976 = vunpack.c.h.b16 %v4093
      %v4977 = vunpack.c.l.b16 %v4094
      %v4978 = vunpack.c.h.b16 %v4094
      %v4979 = vunpack.c.l.b16 %v4095
      %v4980 = vunpack.c.h.b16 %v4095
      %v4981 = vunpack.c.l.b16 %v4096
      %v4982 = vunpack.c.h.b16 %v4096
      %v4983 = vunpack.c.l.b16 %v4097
      %v4984 = vunpack.c.h.b16 %v4097
      %v4985 = vunpack.c.l.b16 %v4098
      %v4986 = vunpack.c.h.b16 %v4098
      %v4987 = vunpack.c.l.b16 %v4099
      %v4988 = vunpack.c.h.b16 %v4099
      %v4989 = vunpack.c.l.b16 %v4100
      %v4990 = vunpack.c.h.b16 %v4100
      %v4991 = vunpack.c.l.b16 %v4101
      %v4992 = vunpack.c.h.b16 %v4101
      %v4993 = vunpack.c.l.b16 %v4102
      %v4994 = vunpack.c.h.b16 %v4102
      %v4995 = vunpack.c.l.b16 %v4103
      %v4996 = vunpack.c.h.b16 %v4103
      %v4997 = vunpack.c.l.b16 %v4104
      %v4998 = vunpack.c.h.b16 %v4104
      %v4999 = vunpack.c.l.b16 %v4105
      %v5000 = vunpack.c.h.b16 %v4105
      %v5001 = vunpack.c.l.b16 %v4106
      %v5002 = vunpack.c.h.b16 %v4106
      %v5003 = vunpack.c.l.b16 %v4107
      %v5004 = vunpack.c.h.b16 %v4107
      %v5005 = vunpack.c.l.b16 %v4108
      %v5006 = vunpack.c.h.b16 %v4108
      %v5007 = vunpack.c.l.b16 %v4109
      %v5008 = vunpack.c.h.b16 %v4109
      %v5009 = vunpack.c.l.b16 %v4110
      %v5010 = vunpack.c.h.b16 %v4110
      %v5011 = vunpack.c.l.b16 %v4111
      %v5012 = vunpack.c.h.b16 %v4111
      %v5013 = vunpack.c.l.b16 %v4112
      %v5014 = vunpack.c.h.b16 %v4112
      %v5015 = vunpack.c.l.b16 %v4113
      %v5016 = vunpack.c.h.b16 %v4113
      %v5017 = vunpack.c.l.b16 %v4114
      %v5018 = vunpack.c.h.b16 %v4114
      %v5019 = vunpack.c.l.b16 %v4115
      %v5020 = vunpack.c.h.b16 %v4115
      %v5021 = vunpack.c.l.b16 %v4116
      %v5022 = vunpack.c.h.b16 %v4116
      %v5023 = vunpack.c.l.b16 %v4117
      %v5024 = vunpack.c.h.b16 %v4117
      %v5025 = vunpack.c.l.b16 %v4118
      %v5026 = vunpack.c.h.b16 %v4118
      %v5027 = vunpack.c.l.b16 %v4119
      %v5028 = vunpack.c.h.b16 %v4119
      %v5029 = vunpack.c.l.b16 %v4120
      %v5030 = vunpack.c.h.b16 %v4120
      %v5031 = vunpack.c.l.b16 %v4121
      %v5032 = vunpack.c.h.b16 %v4121
      %v5033 = vunpack.c.l.b16 %v4122
      %v5034 = vunpack.c.h.b16 %v4122
      %v5035 = vunpack.c.l.b16 %v4123
      %v5036 = vunpack.c.h.b16 %v4123
      %v5037 = vunpack.c.l.b16 %v4124
      %v5038 = vunpack.c.h.b16 %v4124
      %v5039 = vunpack.c.l.b16 %v4125
      %v5040 = vunpack.c.h.b16 %v4125
      %v5041 = vunpack.c.l.b16 %v4126
      %v5042 = vunpack.c.h.b16 %v4126
      %v5043 = vunpack.c.l.b16 %v4127
      %v5044 = vunpack.c.h.b16 %v4127
      %v5045 = vunpack.c.l.b16 %v4128
      %v5046 = vunpack.c.h.b16 %v4128
      %v5047 = vunpack.c.l.b16 %v4129
      %v5048 = vunpack.c.h.b16 %v4129
      %v5049 = vunpack.c.l.b16 %v4130
      %v5050 = vunpack.c.h.b16 %v4130
      %v5051 = vunpack.c.l.b16 %v4131
      %v5052 = vunpack.c.h.b16 %v4131
      %v5053 = vunpack.c.l.b16 %v4132
      %v5054 = vunpack.c.h.b16 %v4132
      %v5055 = vunpack.c.l.b16 %v4133
      %v5056 = vunpack.c.h.b16 %v4133
      %v5057 = vunpack.c.l.b16 %v4134
      %v5058 = vunpack.c.h.b16 %v4134
      %v5059 = vunpack.c.l.b16 %v4135
      %v5060 = vunpack.c.h.b16 %v4135
      %v5061 = vunpack.c.l.b16 %v4136
      %v5062 = vunpack.c.h.b16 %v4136
      %v5063 = vunpack.c.l.b16 %v4137
      %v5064 = vunpack.c.h.b16 %v4137
      %v5065 = vunpack.c.l.b16 %v4138
      %v5066 = vunpack.c.h.b16 %v4138
      %v5067 = vpack.c.b16 %v4503, %v4491
      %v5068 = vpack.c.b16 %v4504, %v4492
      %v5069 = vpack.c.b16 %v4505, %v4493
      %v5070 = vpack.c.b16 %v4506, %v4494
      %v5071 = vpack.c.b16 %v4507, %v4495
      %v5072 = vpack.c.b16 %v4508, %v4496
      %v5073 = vpack.c.b16 %v4509, %v4497
      %v5074 = vpack.c.b16 %v4510, %v4498
      %v5075 = vpack.c.b16 %v4511, %v4499
      %v5076 = vpack.c.b16 %v4512, %v4500
      %v5077 = vpack.c.b16 %v4513, %v4501
      %v5078 = vpack.c.b16 %v4514, %v4502
      %v5079 = vpack.c.b16 %v4527, %v4515
      %v5080 = vpack.c.b16 %v4528, %v4516
      %v5081 = vpack.c.b16 %v4529, %v4517
      %v5082 = vpack.c.b16 %v4530, %v4518
      %v5083 = vpack.c.b16 %v4531, %v4519
      %v5084 = vpack.c.b16 %v4532, %v4520
      %v5085 = vpack.c.b16 %v4533, %v4521
      %v5086 = vpack.c.b16 %v4534, %v4522
      %v5087 = vpack.c.b16 %v4535, %v4523
      %v5088 = vpack.c.b16 %v4536, %v4524
      %v5089 = vpack.c.b16 %v4537, %v4525
      %v5090 = vpack.c.b16 %v4538, %v4526
      %v5091 = vpack.c.b16 %v4551, %v4539
      %v5092 = vpack.c.b16 %v4552, %v4540
      %v5093 = vpack.c.b16 %v4553, %v4541
      %v5094 = vpack.c.b16 %v4554, %v4542
      %v5095 = vpack.c.b16 %v4555, %v4543
      %v5096 = vpack.c.b16 %v4556, %v4544
      %v5097 = vpack.c.b16 %v4557, %v4545
      %v5098 = vpack.c.b16 %v4558, %v4546
      %v5099 = vpack.c.b16 %v4559, %v4547
      %v5100 = vpack.c.b16 %v4560, %v4548
      %v5101 = vpack.c.b16 %v4561, %v4549
      %v5102 = vpack.c.b16 %v4562, %v4550
      %v5103 = vpack.c.b16 %v4575, %v4563
      %v5104 = vpack.c.b16 %v4576, %v4564
      %v5105 = vpack.c.b16 %v4577, %v4565
      %v5106 = vpack.c.b16 %v4578, %v4566
      %v5107 = vpack.c.b16 %v4579, %v4567
      %v5108 = vpack.c.b16 %v4580, %v4568
      %v5109 = vpack.c.b16 %v4581, %v4569
      %v5110 = vpack.c.b16 %v4582, %v4570
      %v5111 = vpack.c.b16 %v4583, %v4571
      %v5112 = vpack.c.b16 %v4584, %v4572
      %v5113 = vpack.c.b16 %v4585, %v4573
      %v5114 = vpack.c.b16 %v4586, %v4574
      %v5115 = vpack.c.b16 %v4599, %v4587
      %v5116 = vpack.c.b16 %v4600, %v4588
      %v5117 = vpack.c.b16 %v4601, %v4589
      %v5118 = vpack.c.b16 %v4602, %v4590
      %v5119 = vpack.c.b16 %v4603, %v4591
      %v5120 = vpack.c.b16 %v4604, %v4592
      %v5121 = vpack.c.b16 %v4605, %v4593
      %v5122 = vpack.c.b16 %v4606, %v4594
      %v5123 = vpack.c.b16 %v4607, %v4595
      %v5124 = vpack.c.b16 %v4608, %v4596
      %v5125 = vpack.c.b16 %v4609, %v4597
      %v5126 = vpack.c.b16 %v4610, %v4598
      %v5127 = vpack.c.b16 %v4623, %v4611
      %v5128 = vpack.c.b16 %v4624, %v4612
      %v5129 = vpack.c.b16 %v4625, %v4613
      %v5130 = vpack.c.b16 %v4626, %v4614
      %v5131 = vpack.c.b16 %v4627, %v4615
      %v5132 = vpack.c.b16 %v4628, %v4616
      %v5133 = vpack.c.b16 %v4629, %v4617
      %v5134 = vpack.c.b16 %v4630, %v4618
      %v5135 = vpack.c.b16 %v4631, %v4619
      %v5136 = vpack.c.b16 %v4632, %v4620
      %v5137 = vpack.c.b16 %v4633, %v4621
      %v5138 = vpack.c.b16 %v4634, %v4622
      %v5139 = vpack.c.b16 %v4647, %v4635
      %v5140 = vpack.c.b16 %v4648, %v4636
      %v5141 = vpack.c.b16 %v4649, %v4637
      %v5142 = vpack.c.b16 %v4650, %v4638
      %v5143 = vpack.c.b16 %v4651, %v4639
      %v5144 = vpack.c.b16 %v4652, %v4640
      %v5145 = vpack.c.b16 %v4653, %v4641
      %v5146 = vpack.c.b16 %v4654, %v4642
      %v5147 = vpack.c.b16 %v4655, %v4643
      %v5148 = vpack.c.b16 %v4656, %v4644
      %v5149 = vpack.c.b16 %v4657, %v4645
      %v5150 = vpack.c.b16 %v4658, %v4646
      %v5151 = vpack.c.b16 %v4671, %v4659
      %v5152 = vpack.c.b16 %v4672, %v4660
      %v5153 = vpack.c.b16 %v4673, %v4661
      %v5154 = vpack.c.b16 %v4674, %v4662
      %v5155 = vpack.c.b16 %v4675, %v4663
      %v5156 = vpack.c.b16 %v4676, %v4664
      %v5157 = vpack.c.b16 %v4677, %v4665
      %v5158 = vpack.c.b16 %v4678, %v4666
      %v5159 = vpack.c.b16 %v4679, %v4667
      %v5160 = vpack.c.b16 %v4680, %v4668
      %v5161 = vpack.c.b16 %v4681, %v4669
      %v5162 = vpack.c.b16 %v4682, %v4670
      %v5163 = vpack.c.b16 %v4695, %v4683
      %v5164 = vpack.c.b16 %v4696, %v4684
      %v5165 = vpack.c.b16 %v4697, %v4685
      %v5166 = vpack.c.b16 %v4698, %v4686
      %v5167 = vpack.c.b16 %v4699, %v4687
      %v5168 = vpack.c.b16 %v4700, %v4688
      %v5169 = vpack.c.b16 %v4701, %v4689
      %v5170 = vpack.c.b16 %v4702, %v4690
      %v5171 = vpack.c.b16 %v4703, %v4691
      %v5172 = vpack.c.b16 %v4704, %v4692
      %v5173 = vpack.c.b16 %v4705, %v4693
      %v5174 = vpack.c.b16 %v4706, %v4694
      %v5175 = vpack.c.b16 %v4719, %v4707
      %v5176 = vpack.c.b16 %v4720, %v4708
      %v5177 = vpack.c.b16 %v4721, %v4709
      %v5178 = vpack.c.b16 %v4722, %v4710
      %v5179 = vpack.c.b16 %v4723, %v4711
      %v5180 = vpack.c.b16 %v4724, %v4712
      %v5181 = vpack.c.b16 %v4725, %v4713
      %v5182 = vpack.c.b16 %v4726, %v4714
      %v5183 = vpack.c.b16 %v4727, %v4715
      %v5184 = vpack.c.b16 %v4728, %v4716
      %v5185 = vpack.c.b16 %v4729, %v4717
      %v5186 = vpack.c.b16 %v4730, %v4718
      %v5187 = vpack.c.b16 %v4743, %v4731
      %v5188 = vpack.c.b16 %v4744, %v4732
      %v5189 = vpack.c.b16 %v4745, %v4733
      %v5190 = vpack.c.b16 %v4746, %v4734
      %v5191 = vpack.c.b16 %v4747, %v4735
      %v5192 = vpack.c.b16 %v4748, %v4736
      %v5193 = vpack.c.b16 %v4749, %v4737
      %v5194 = vpack.c.b16 %v4750, %v4738
      %v5195 = vpack.c.b16 %v4751, %v4739
      %v5196 = vpack.c.b16 %v4752, %v4740
      %v5197 = vpack.c.b16 %v4753, %v4741
      %v5198 = vpack.c.b16 %v4754, %v4742
      %v5199 = vpack.c.b16 %v4767, %v4755
      %v5200 = vpack.c.b16 %v4768, %v4756
      %v5201 = vpack.c.b16 %v4769, %v4757
      %v5202 = vpack.c.b16 %v4770, %v4758
      %v5203 = vpack.c.b16 %v4771, %v4759
      %v5204 = vpack.c.b16 %v4772, %v4760
      %v5205 = vpack.c.b16 %v4773, %v4761
      %v5206 = vpack.c.b16 %v4774, %v4762
      %v5207 = vpack.c.b16 %v4775, %v4763
      %v5208 = vpack.c.b16 %v4776, %v4764
      %v5209 = vpack.c.b16 %v4777, %v4765
      %v5210 = vpack.c.b16 %v4778, %v4766
      %v5211 = vpack.c.b16 %v4791, %v4779
      %v5212 = vpack.c.b16 %v4792, %v4780
      %v5213 = vpack.c.b16 %v4793, %v4781
      %v5214 = vpack.c.b16 %v4794, %v4782
      %v5215 = vpack.c.b16 %v4795, %v4783
      %v5216 = vpack.c.b16 %v4796, %v4784
      %v5217 = vpack.c.b16 %v4797, %v4785
      %v5218 = vpack.c.b16 %v4798, %v4786
      %v5219 = vpack.c.b16 %v4799, %v4787
      %v5220 = vpack.c.b16 %v4800, %v4788
      %v5221 = vpack.c.b16 %v4801, %v4789
      %v5222 = vpack.c.b16 %v4802, %v4790
      %v5223 = vpack.c.b16 %v4815, %v4803
      %v5224 = vpack.c.b16 %v4816, %v4804
      %v5225 = vpack.c.b16 %v4817, %v4805
      %v5226 = vpack.c.b16 %v4818, %v4806
      %v5227 = vpack.c.b16 %v4819, %v4807
      %v5228 = vpack.c.b16 %v4820, %v4808
      %v5229 = vpack.c.b16 %v4821, %v4809
      %v5230 = vpack.c.b16 %v4822, %v4810
      %v5231 = vpack.c.b16 %v4823, %v4811
      %v5232 = vpack.c.b16 %v4824, %v4812
      %v5233 = vpack.c.b16 %v4825, %v4813
      %v5234 = vpack.c.b16 %v4826, %v4814
      %v5235 = vpack.c.b16 %v4839, %v4827
      %v5236 = vpack.c.b16 %v4840, %v4828
      %v5237 = vpack.c.b16 %v4841, %v4829
      %v5238 = vpack.c.b16 %v4842, %v4830
      %v5239 = vpack.c.b16 %v4843, %v4831
      %v5240 = vpack.c.b16 %v4844, %v4832
      %v5241 = vpack.c.b16 %v4845, %v4833
      %v5242 = vpack.c.b16 %v4846, %v4834
      %v5243 = vpack.c.b16 %v4847, %v4835
      %v5244 = vpack.c.b16 %v4848, %v4836
      %v5245 = vpack.c.b16 %v4849, %v4837
      %v5246 = vpack.c.b16 %v4850, %v4838
      %v5247 = vpack.c.b16 %v4863, %v4851
      %v5248 = vpack.c.b16 %v4864, %v4852
      %v5249 = vpack.c.b16 %v4865, %v4853
      %v5250 = vpack.c.b16 %v4866, %v4854
      %v5251 = vpack.c.b16 %v4867, %v4855
      %v5252 = vpack.c.b16 %v4868, %v4856
      %v5253 = vpack.c.b16 %v4869, %v4857
      %v5254 = vpack.c.b16 %v4870, %v4858
      %v5255 = vpack.c.b16 %v4871, %v4859
      %v5256 = vpack.c.b16 %v4872, %v4860
      %v5257 = vpack.c.b16 %v4873, %v4861
      %v5258 = vpack.c.b16 %v4874, %v4862
      %v5259 = vpack.c.b16 %v4887, %v4875
      %v5260 = vpack.c.b16 %v4888, %v4876
      %v5261 = vpack.c.b16 %v4889, %v4877
      %v5262 = vpack.c.b16 %v4890, %v4878
      %v5263 = vpack.c.b16 %v4891, %v4879
      %v5264 = vpack.c.b16 %v4892, %v4880
      %v5265 = vpack.c.b16 %v4893, %v4881
      %v5266 = vpack.c.b16 %v4894, %v4882
      %v5267 = vpack.c.b16 %v4895, %v4883
      %v5268 = vpack.c.b16 %v4896, %v4884
      %v5269 = vpack.c.b16 %v4897, %v4885
      %v5270 = vpack.c.b16 %v4898, %v4886
      %v5271 = vpack.c.b16 %v4911, %v4899
      %v5272 = vpack.c.b16 %v4912, %v4900
      %v5273 = vpack.c.b16 %v4913, %v4901
      %v5274 = vpack.c.b16 %v4914, %v4902
      %v5275 = vpack.c.b16 %v4915, %v4903
      %v5276 = vpack.c.b16 %v4916, %v4904
      %v5277 = vpack.c.b16 %v4917, %v4905
      %v5278 = vpack.c.b16 %v4918, %v4906
      %v5279 = vpack.c.b16 %v4919, %v4907
      %v5280 = vpack.c.b16 %v4920, %v4908
      %v5281 = vpack.c.b16 %v4921, %v4909
      %v5282 = vpack.c.b16 %v4922, %v4910
      %v5283 = vpack.c.b16 %v4935, %v4923
      %v5284 = vpack.c.b16 %v4936, %v4924
      %v5285 = vpack.c.b16 %v4937, %v4925
      %v5286 = vpack.c.b16 %v4938, %v4926
      %v5287 = vpack.c.b16 %v4939, %v4927
      %v5288 = vpack.c.b16 %v4940, %v4928
      %v5289 = vpack.c.b16 %v4941, %v4929
      %v5290 = vpack.c.b16 %v4942, %v4930
      %v5291 = vpack.c.b16 %v4943, %v4931
      %v5292 = vpack.c.b16 %v4944, %v4932
      %v5293 = vpack.c.b16 %v4945, %v4933
      %v5294 = vpack.c.b16 %v4946, %v4934
      %v5295 = vpack.c.b16 %v4959, %v4947
      %v5296 = vpack.c.b16 %v4960, %v4948
      %v5297 = vpack.c.b16 %v4961, %v4949
      %v5298 = vpack.c.b16 %v4962, %v4950
      %v5299 = vpack.c.b16 %v4963, %v4951
      %v5300 = vpack.c.b16 %v4964, %v4952
      %v5301 = vpack.c.b16 %v4965, %v4953
      %v5302 = vpack.c.b16 %v4966, %v4954
      %v5303 = vpack.c.b16 %v4967, %v4955
      %v5304 = vpack.c.b16 %v4968, %v4956
      %v5305 = vpack.c.b16 %v4969, %v4957
      %v5306 = vpack.c.b16 %v4970, %v4958
      %v5307 = vpack.c.b16 %v4983, %v4971
      %v5308 = vpack.c.b16 %v4984, %v4972
      %v5309 = vpack.c.b16 %v4985, %v4973
      %v5310 = vpack.c.b16 %v4986, %v4974
      %v5311 = vpack.c.b16 %v4987, %v4975
      %v5312 = vpack.c.b16 %v4988, %v4976
      %v5313 = vpack.c.b16 %v4989, %v4977
      %v5314 = vpack.c.b16 %v4990, %v4978
      %v5315 = vpack.c.b16 %v4991, %v4979
      %v5316 = vpack.c.b16 %v4992, %v4980
      %v5317 = vpack.c.b16 %v4993, %v4981
      %v5318 = vpack.c.b16 %v4994, %v4982
      %v5319 = vpack.c.b16 %v5007, %v4995
      %v5320 = vpack.c.b16 %v5008, %v4996
      %v5321 = vpack.c.b16 %v5009, %v4997
      %v5322 = vpack.c.b16 %v5010, %v4998
      %v5323 = vpack.c.b16 %v5011, %v4999
      %v5324 = vpack.c.b16 %v5012, %v5000
      %v5325 = vpack.c.b16 %v5013, %v5001
      %v5326 = vpack.c.b16 %v5014, %v5002
      %v5327 = vpack.c.b16 %v5015, %v5003
      %v5328 = vpack.c.b16 %v5016, %v5004
      %v5329 = vpack.c.b16 %v5017, %v5005
      %v5330 = vpack.c.b16 %v5018, %v5006
      %v5331 = vpack.c.b16 %v5031, %v5019
      %v5332 = vpack.c.b16 %v5032, %v5020
      %v5333 = vpack.c.b16 %v5033, %v5021
      %v5334 = vpack.c.b16 %v5034, %v5022
      %v5335 = vpack.c.b16 %v5035, %v5023
      %v5336 = vpack.c.b16 %v5036, %v5024
      %v5337 = vpack.c.b16 %v5037, %v5025
      %v5338 = vpack.c.b16 %v5038, %v5026
      %v5339 = vpack.c.b16 %v5039, %v5027
      %v5340 = vpack.c.b16 %v5040, %v5028
      %v5341 = vpack.c.b16 %v5041, %v5029
      %v5342 = vpack.c.b16 %v5042, %v5030
      %v5343 = vpack.c.b16 %v5055, %v5043
      %v5344 = vpack.c.b16 %v5056, %v5044
      %v5345 = vpack.c.b16 %v5057, %v5045
      %v5346 = vpack.c.b16 %v5058, %v5046
      %v5347 = vpack.c.b16 %v5059, %v5047
      %v5348 = vpack.c.b16 %v5060, %v5048
      %v5349 = vpack.c.b16 %v5061, %v5049
      %v5350 = vpack.c.b16 %v5062, %v5050
      %v5351 = vpack.c.b16 %v5063, %v5051
      %v5352 = vpack.c.b16 %v5064, %v5052
      %v5353 = vpack.c.b16 %v5065, %v5053
      %v5354 = vpack.c.b16 %v5066, %v5054
      %5643 = vmatprep.subr.bf16.mxu0 %v5152
      %5644 = vmatpush1.bf16.msra.mxu0 %v5151
      %5645 = vmatprep.subr.bf16.mxu0 %v5140
      %5646 = vmatpush1.bf16.msra.mxu0 %v5139
      %5647 = vmatprep.subr.bf16.mxu0 %v5128
      %5648 = vmatpush1.bf16.msra.mxu0 %v5127
      %5649 = vmatprep.subr.bf16.mxu0 %v5116
      %5650 = vmatpush1.bf16.msra.mxu0 %v5115
      %5651 = vmatprep.subr.bf16.mxu0 %v5104
      %5652 = vmatpush1.bf16.msra.mxu0 %v5103
      %5653 = vmatprep.subr.bf16.mxu0 %v5092
      %5654 = vmatpush1.bf16.msra.mxu0 %v5091
      %5655 = vmatprep.subr.bf16.mxu0 %v5080
      %5656 = vmatpush1.bf16.msra.mxu0 %v5079
      %5657 = vmatprep.subr.bf16.mxu0 %v5068
      %5658 = vmatpush1.bf16.msra.mxu0 %v5067
      %5659 = vmatprep.subr.bf16.mxu0 %v5248
      %5660 = vmatpush2.bf16.msra.mxu0 %v5247
      %5661 = vmatprep.subr.bf16.mxu0 %v5236
      %5662 = vmatpush2.bf16.msra.mxu0 %v5235
      %5663 = vmatprep.subr.bf16.mxu0 %v5224
      %5664 = vmatpush2.bf16.msra.mxu0 %v5223
      %5665 = vmatprep.subr.bf16.mxu0 %v5212
      %5666 = vmatpush2.bf16.msra.mxu0 %v5211
      %5667 = vmatprep.subr.bf16.mxu0 %v5200
      %5668 = vmatpush2.bf16.msra.mxu0 %v5199
      %5669 = vmatprep.subr.bf16.mxu0 %v5188
      %5670 = vmatpush2.bf16.msra.mxu0 %v5187
      %5671 = vmatprep.subr.bf16.mxu0 %v5176
      %5672 = vmatpush2.bf16.msra.mxu0 %v5175
      %5673 = vmatprep.subr.bf16.mxu0 %v5164
      %5674 = vmatpush2.bf16.msra.mxu0 %v5163
      %5675 = vmatprep.mubr.bf16.mxu0 %v3849
      %5676 = vmatmul.mubr.bf16.gmra.mxu0 %v3848
      %v5677 = vpop.f32.mrf.mxu0
      %v5678 = vadd.f32 %v4146, %v5677
      %v5679 = vpop.f32.mrf.mxu0
      %v5680 = vadd.f32 %v4150, %v5679
      %v5681 = vpop.f32.mrf.mxu0
      %v5682 = vpop.f32.mrf.mxu0
      %5683 = vdwg.mxu0
      %5684 = vmatprep.subr.bf16.mxu0 %v5344
      %5685 = vmatpush1.bf16.msra.mxu0 %v5343
      %5686 = vmatprep.subr.bf16.mxu0 %v5332
      %5687 = vmatpush1.bf16.msra.mxu0 %v5331
      %5688 = vmatprep.subr.bf16.mxu0 %v5320
      %5689 = vmatpush1.bf16.msra.mxu0 %v5319
      %5690 = vmatprep.subr.bf16.mxu0 %v5308
      %5691 = vmatpush1.bf16.msra.mxu0 %v5307
      %5692 = vmatprep.subr.bf16.mxu0 %v5296
      %5693 = vmatpush1.bf16.msra.mxu0 %v5295
      %5694 = vmatprep.subr.bf16.mxu0 %v5284
      %5695 = vmatpush1.bf16.msra.mxu0 %v5283
      %5696 = vmatprep.subr.bf16.mxu0 %v5272
      %5697 = vmatpush1.bf16.msra.mxu0 %v5271
      %5698 = vmatprep.subr.bf16.mxu0 %v5260
      %5699 = vmatpush1.bf16.msra.mxu0 %v5259
      %5700 = vmatprep.subr.bf16.mxu0 0
      %5701 = vmatpush2.bf16.msra.mxu0 0
      %5702 = vmatprep.subr.bf16.mxu0 0
      %5703 = vmatpush2.bf16.msra.mxu0 0
      %5704 = vmatprep.subr.bf16.mxu0 0
      %5705 = vmatpush2.bf16.msra.mxu0 0
      %5706 = vmatprep.subr.bf16.mxu0 0
      %5707 = vmatpush2.bf16.msra.mxu0 0
      %5708 = vmatprep.subr.bf16.mxu0 0
      %5709 = vmatpush2.bf16.msra.mxu0 0
      %5710 = vmatprep.subr.bf16.mxu0 0
      %5711 = vmatpush2.bf16.msra.mxu0 0
      %5712 = vmatprep.subr.bf16.mxu0 0
      %5713 = vmatpush2.bf16.msra.mxu0 0
      %5714 = vmatprep.subr.bf16.mxu0 0
      %5715 = vmatpush2.bf16.msra.mxu0 0
      %5716 = vmatprep.mubr.bf16.mxu0 0
      %5717 = vmatmul.mubr.bf16.gmra.mxu0 %v3850
      %v5718 = vpop.f32.mrf.mxu0
      %v5719 = vadd.f32 %v5678, %v5718
      %v5720 = vpop.f32.mrf.mxu0
      %v5721 = vadd.f32 %v5680, %v5720
      %v5722 = vpop.f32.mrf.mxu0
      %v5723 = vpop.f32.mrf.mxu0
      %5724 = vdwg.mxu0
      %5725 = vmatprep.subr.bf16.mxu0 %v5154
      %5726 = vmatpush1.bf16.msra.mxu0 %v5153
      %5727 = vmatprep.subr.bf16.mxu0 %v5142
      %5728 = vmatpush1.bf16.msra.mxu0 %v5141
      %5729 = vmatprep.subr.bf16.mxu0 %v5130
      %5730 = vmatpush1.bf16.msra.mxu0 %v5129
      %5731 = vmatprep.subr.bf16.mxu0 %v5118
      %5732 = vmatpush1.bf16.msra.mxu0 %v5117
      %5733 = vmatprep.subr.bf16.mxu0 %v5106
      %5734 = vmatpush1.bf16.msra.mxu0 %v5105
      %5735 = vmatprep.subr.bf16.mxu0 %v5094
      %5736 = vmatpush1.bf16.msra.mxu0 %v5093
      %5737 = vmatprep.subr.bf16.mxu0 %v5082
      %5738 = vmatpush1.bf16.msra.mxu0 %v5081
      %5739 = vmatprep.subr.bf16.mxu0 %v5070
      %5740 = vmatpush1.bf16.msra.mxu0 %v5069
      %5741 = vmatprep.subr.bf16.mxu0 %v5250
      %5742 = vmatpush2.bf16.msra.mxu0 %v5249
      %5743 = vmatprep.subr.bf16.mxu0 %v5238
      %5744 = vmatpush2.bf16.msra.mxu0 %v5237
      %5745 = vmatprep.subr.bf16.mxu0 %v5226
      %5746 = vmatpush2.bf16.msra.mxu0 %v5225
      %5747 = vmatprep.subr.bf16.mxu0 %v5214
      %5748 = vmatpush2.bf16.msra.mxu0 %v5213
      %5749 = vmatprep.subr.bf16.mxu0 %v5202
      %5750 = vmatpush2.bf16.msra.mxu0 %v5201
      %5751 = vmatprep.subr.bf16.mxu0 %v5190
      %5752 = vmatpush2.bf16.msra.mxu0 %v5189
      %5753 = vmatprep.subr.bf16.mxu0 %v5178
      %5754 = vmatpush2.bf16.msra.mxu0 %v5177
      %5755 = vmatprep.subr.bf16.mxu0 %v5166
      %5756 = vmatpush2.bf16.msra.mxu0 %v5165
      %5757 = vmatprep.mubr.bf16.mxu0 %v3849
      %5758 = vmatmul.mubr.bf16.gmra.mxu0 %v3848
      %v5759 = vpop.f32.mrf.mxu0
      %v5760 = vadd.f32 %v4154, %v5759
      %v5761 = vpop.f32.mrf.mxu0
      %v5762 = vadd.f32 %v4158, %v5761
      %v5763 = vpop.f32.mrf.mxu0
      %v5764 = vpop.f32.mrf.mxu0
      %5765 = vdwg.mxu0
      %5766 = vmatprep.subr.bf16.mxu0 %v5346
      %5767 = vmatpush1.bf16.msra.mxu0 %v5345
      %5768 = vmatprep.subr.bf16.mxu0 %v5334
      %5769 = vmatpush1.bf16.msra.mxu0 %v5333
      %5770 = vmatprep.subr.bf16.mxu0 %v5322
      %5771 = vmatpush1.bf16.msra.mxu0 %v5321
      %5772 = vmatprep.subr.bf16.mxu0 %v5310
      %5773 = vmatpush1.bf16.msra.mxu0 %v5309
      %5774 = vmatprep.subr.bf16.mxu0 %v5298
      %5775 = vmatpush1.bf16.msra.mxu0 %v5297
      %5776 = vmatprep.subr.bf16.mxu0 %v5286
      %5777 = vmatpush1.bf16.msra.mxu0 %v5285
      %5778 = vmatprep.subr.bf16.mxu0 %v5274
      %5779 = vmatpush1.bf16.msra.mxu0 %v5273
      %5780 = vmatprep.subr.bf16.mxu0 %v5262
      %5781 = vmatpush1.bf16.msra.mxu0 %v5261
      %5782 = vmatprep.subr.bf16.mxu0 0
      %5783 = vmatpush2.bf16.msra.mxu0 0
      %5784 = vmatprep.subr.bf16.mxu0 0
      %5785 = vmatpush2.bf16.msra.mxu0 0
      %5786 = vmatprep.subr.bf16.mxu0 0
      %5787 = vmatpush2.bf16.msra.mxu0 0
      %5788 = vmatprep.subr.bf16.mxu0 0
      %5789 = vmatpush2.bf16.msra.mxu0 0
      %5790 = vmatprep.subr.bf16.mxu0 0
      %5791 = vmatpush2.bf16.msra.mxu0 0
      %5792 = vmatprep.subr.bf16.mxu0 0
      %5793 = vmatpush2.bf16.msra.mxu0 0
      %5794 = vmatprep.subr.bf16.mxu0 0
      %5795 = vmatpush2.bf16.msra.mxu0 0
      %5796 = vmatprep.subr.bf16.mxu0 0
      %5797 = vmatpush2.bf16.msra.mxu0 0
      %5798 = vmatprep.mubr.bf16.mxu0 0
      %5799 = vmatmul.mubr.bf16.gmra.mxu0 %v3850
      %v5800 = vpop.f32.mrf.mxu0
      %v5801 = vadd.f32 %v5760, %v5800
      %v5802 = vpop.f32.mrf.mxu0
      %v5803 = vadd.f32 %v5762, %v5802
      %v5804 = vpop.f32.mrf.mxu0
      %v5805 = vpop.f32.mrf.mxu0
      %5806 = vdwg.mxu0
      %5807 = vmatprep.subr.bf16.mxu0 %v5156
      %5808 = vmatpush1.bf16.msra.mxu0 %v5155
      %5809 = vmatprep.subr.bf16.mxu0 %v5144
      %5810 = vmatpush1.bf16.msra.mxu0 %v5143
      %5811 = vmatprep.subr.bf16.mxu0 %v5132
      %5812 = vmatpush1.bf16.msra.mxu0 %v5131
      %5813 = vmatprep.subr.bf16.mxu0 %v5120
      %5814 = vmatpush1.bf16.msra.mxu0 %v5119
      %5815 = vmatprep.subr.bf16.mxu0 %v5108
      %5816 = vmatpush1.bf16.msra.mxu0 %v5107
      %5817 = vmatprep.subr.bf16.mxu0 %v5096
      %5818 = vmatpush1.bf16.msra.mxu0 %v5095
      %5819 = vmatprep.subr.bf16.mxu0 %v5084
      %5820 = vmatpush1.bf16.msra.mxu0 %v5083
      %5821 = vmatprep.subr.bf16.mxu0 %v5072
      %5822 = vmatpush1.bf16.msra.mxu0 %v5071
      %5823 = vmatprep.subr.bf16.mxu0 %v5252
      %5824 = vmatpush2.bf16.msra.mxu0 %v5251
      %5825 = vmatprep.subr.bf16.mxu0 %v5240
      %5826 = vmatpush2.bf16.msra.mxu0 %v5239
      %5827 = vmatprep.subr.bf16.mxu0 %v5228
      %5828 = vmatpush2.bf16.msra.mxu0 %v5227
      %5829 = vmatprep.subr.bf16.mxu0 %v5216
      %5830 = vmatpush2.bf16.msra.mxu0 %v5215
      %5831 = vmatprep.subr.bf16.mxu0 %v5204
      %5832 = vmatpush2.bf16.msra.mxu0 %v5203
      %5833 = vmatprep.subr.bf16.mxu0 %v5192
      %5834 = vmatpush2.bf16.msra.mxu0 %v5191
      %5835 = vmatprep.subr.bf16.mxu0 %v5180
      %5836 = vmatpush2.bf16.msra.mxu0 %v5179
      %5837 = vmatprep.subr.bf16.mxu0 %v5168
      %5838 = vmatpush2.bf16.msra.mxu0 %v5167
      %5839 = vmatprep.mubr.bf16.mxu0 %v3849
      %5840 = vmatmul.mubr.bf16.gmra.mxu0 %v3848
      %v5841 = vpop.f32.mrf.mxu0
      %v5842 = vadd.f32 %v4162, %v5841
      %v5843 = vpop.f32.mrf.mxu0
      %v5844 = vadd.f32 %v4166, %v5843
      %v5845 = vpop.f32.mrf.mxu0
      %v5846 = vpop.f32.mrf.mxu0
      %5847 = vdwg.mxu0
      %5848 = vmatprep.subr.bf16.mxu0 %v5348
      %5849 = vmatpush1.bf16.msra.mxu0 %v5347
      %5850 = vmatprep.subr.bf16.mxu0 %v5336
      %5851 = vmatpush1.bf16.msra.mxu0 %v5335
      %5852 = vmatprep.subr.bf16.mxu0 %v5324
      %5853 = vmatpush1.bf16.msra.mxu0 %v5323
      %5854 = vmatprep.subr.bf16.mxu0 %v5312
      %5855 = vmatpush1.bf16.msra.mxu0 %v5311
      %5856 = vmatprep.subr.bf16.mxu0 %v5300
      %5857 = vmatpush1.bf16.msra.mxu0 %v5299
      %5858 = vmatprep.subr.bf16.mxu0 %v5288
      %5859 = vmatpush1.bf16.msra.mxu0 %v5287
      %5860 = vmatprep.subr.bf16.mxu0 %v5276
      %5861 = vmatpush1.bf16.msra.mxu0 %v5275
      %5862 = vmatprep.subr.bf16.mxu0 %v5264
      %5863 = vmatpush1.bf16.msra.mxu0 %v5263
      %5864 = vmatprep.subr.bf16.mxu0 0
      %5865 = vmatpush2.bf16.msra.mxu0 0
      %5866 = vmatprep.subr.bf16.mxu0 0
      %5867 = vmatpush2.bf16.msra.mxu0 0
      %5868 = vmatprep.subr.bf16.mxu0 0
      %5869 = vmatpush2.bf16.msra.mxu0 0
      %5870 = vmatprep.subr.bf16.mxu0 0
      %5871 = vmatpush2.bf16.msra.mxu0 0
      %5872 = vmatprep.subr.bf16.mxu0 0
      %5873 = vmatpush2.bf16.msra.mxu0 0
      %5874 = vmatprep.subr.bf16.mxu0 0
      %5875 = vmatpush2.bf16.msra.mxu0 0
      %5876 = vmatprep.subr.bf16.mxu0 0
      %5877 = vmatpush2.bf16.msra.mxu0 0
      %5878 = vmatprep.subr.bf16.mxu0 0
      %5879 = vmatpush2.bf16.msra.mxu0 0
      %5880 = vmatprep.mubr.bf16.mxu0 0
      %5881 = vmatmul.mubr.bf16.gmra.mxu0 %v3850
      %v5882 = vpop.f32.mrf.mxu0
      %v5883 = vadd.f32 %v5842, %v5882
      %v5884 = vpop.f32.mrf.mxu0
      %v5885 = vadd.f32 %v5844, %v5884
      %v5886 = vpop.f32.mrf.mxu0
      %v5887 = vpop.f32.mrf.mxu0
      %5888 = vdwg.mxu0
      %5889 = vmatprep.subr.bf16.mxu0 %v5158
      %5890 = vmatpush1.bf16.msra.mxu0 %v5157
      %5891 = vmatprep.subr.bf16.mxu0 %v5146
      %5892 = vmatpush1.bf16.msra.mxu0 %v5145
      %5893 = vmatprep.subr.bf16.mxu0 %v5134
      %5894 = vmatpush1.bf16.msra.mxu0 %v5133
      %5895 = vmatprep.subr.bf16.mxu0 %v5122
      %5896 = vmatpush1.bf16.msra.mxu0 %v5121
      %5897 = vmatprep.subr.bf16.mxu0 %v5110
      %5898 = vmatpush1.bf16.msra.mxu0 %v5109
      %5899 = vmatprep.subr.bf16.mxu0 %v5098
      %5900 = vmatpush1.bf16.msra.mxu0 %v5097
      %5901 = vmatprep.subr.bf16.mxu0 %v5086
      %5902 = vmatpush1.bf16.msra.mxu0 %v5085
      %5903 = vmatprep.subr.bf16.mxu0 %v5074
      %5904 = vmatpush1.bf16.msra.mxu0 %v5073
      %5905 = vmatprep.subr.bf16.mxu0 %v5254
      %5906 = vmatpush2.bf16.msra.mxu0 %v5253
      %5907 = vmatprep.subr.bf16.mxu0 %v5242
      %5908 = vmatpush2.bf16.msra.mxu0 %v5241
      %5909 = vmatprep.subr.bf16.mxu0 %v5230
      %5910 = vmatpush2.bf16.msra.mxu0 %v5229
      %5911 = vmatprep.subr.bf16.mxu0 %v5218
      %5912 = vmatpush2.bf16.msra.mxu0 %v5217
      %5913 = vmatprep.subr.bf16.mxu0 %v5206
      %5914 = vmatpush2.bf16.msra.mxu0 %v5205
      %5915 = vmatprep.subr.bf16.mxu0 %v5194
      %5916 = vmatpush2.bf16.msra.mxu0 %v5193
      %5917 = vmatprep.subr.bf16.mxu0 %v5182
      %5918 = vmatpush2.bf16.msra.mxu0 %v5181
      %5919 = vmatprep.subr.bf16.mxu0 %v5170
      %5920 = vmatpush2.bf16.msra.mxu0 %v5169
      %5921 = vmatprep.mubr.bf16.mxu0 %v3849
      %5922 = vmatmul.mubr.bf16.gmra.mxu0 %v3848
      %v5923 = vpop.f32.mrf.mxu0
      %v5924 = vadd.f32 %v4170, %v5923
      %v5925 = vpop.f32.mrf.mxu0
      %v5926 = vadd.f32 %v4174, %v5925
      %v5927 = vpop.f32.mrf.mxu0
      %v5928 = vpop.f32.mrf.mxu0
      %5929 = vdwg.mxu0
      %5930 = vmatprep.subr.bf16.mxu0 %v5350
      %5931 = vmatpush1.bf16.msra.mxu0 %v5349
      %5932 = vmatprep.subr.bf16.mxu0 %v5338
      %5933 = vmatpush1.bf16.msra.mxu0 %v5337
      %5934 = vmatprep.subr.bf16.mxu0 %v5326
      %5935 = vmatpush1.bf16.msra.mxu0 %v5325
      %5936 = vmatprep.subr.bf16.mxu0 %v5314
      %5937 = vmatpush1.bf16.msra.mxu0 %v5313
      %5938 = vmatprep.subr.bf16.mxu0 %v5302
      %5939 = vmatpush1.bf16.msra.mxu0 %v5301
      %5940 = vmatprep.subr.bf16.mxu0 %v5290
      %5941 = vmatpush1.bf16.msra.mxu0 %v5289
      %5942 = vmatprep.subr.bf16.mxu0 %v5278
      %5943 = vmatpush1.bf16.msra.mxu0 %v5277
      %5944 = vmatprep.subr.bf16.mxu0 %v5266
      %5945 = vmatpush1.bf16.msra.mxu0 %v5265
      %5946 = vmatprep.subr.bf16.mxu0 0
      %5947 = vmatpush2.bf16.msra.mxu0 0
      %5948 = vmatprep.subr.bf16.mxu0 0
      %5949 = vmatpush2.bf16.msra.mxu0 0
      %5950 = vmatprep.subr.bf16.mxu0 0
      %5951 = vmatpush2.bf16.msra.mxu0 0
      %5952 = vmatprep.subr.bf16.mxu0 0
      %5953 = vmatpush2.bf16.msra.mxu0 0
      %5954 = vmatprep.subr.bf16.mxu0 0
      %5955 = vmatpush2.bf16.msra.mxu0 0
      %5956 = vmatprep.subr.bf16.mxu0 0
      %5957 = vmatpush2.bf16.msra.mxu0 0
      %5958 = vmatprep.subr.bf16.mxu0 0
      %5959 = vmatpush2.bf16.msra.mxu0 0
      %5960 = vmatprep.subr.bf16.mxu0 0
      %5961 = vmatpush2.bf16.msra.mxu0 0
      %5962 = vmatprep.mubr.bf16.mxu0 0
      %5963 = vmatmul.mubr.bf16.gmra.mxu0 %v3850
      %v5964 = vpop.f32.mrf.mxu0
      %v5965 = vadd.f32 %v5924, %v5964
      %v5966 = vpop.f32.mrf.mxu0
      %v5967 = vadd.f32 %v5926, %v5966
      %v5968 = vpop.f32.mrf.mxu0
      %v5969 = vpop.f32.mrf.mxu0
      %5970 = vdwg.mxu0
      %5971 = vmatprep.subr.bf16.mxu0 %v5160
      %5972 = vmatpush1.bf16.msra.mxu0 %v5159
      %5973 = vmatprep.subr.bf16.mxu0 %v5148
      %5974 = vmatpush1.bf16.msra.mxu0 %v5147
      %5975 = vmatprep.subr.bf16.mxu0 %v5136
      %5976 = vmatpush1.bf16.msra.mxu0 %v5135
      %5977 = vmatprep.subr.bf16.mxu0 %v5124
      %5978 = vmatpush1.bf16.msra.mxu0 %v5123
      %5979 = vmatprep.subr.bf16.mxu0 %v5112
      %5980 = vmatpush1.bf16.msra.mxu0 %v5111
      %5981 = vmatprep.subr.bf16.mxu0 %v5100
      %5982 = vmatpush1.bf16.msra.mxu0 %v5099
      %5983 = vmatprep.subr.bf16.mxu0 %v5088
      %5984 = vmatpush1.bf16.msra.mxu0 %v5087
      %5985 = vmatprep.subr.bf16.mxu0 %v5076
      %5986 = vmatpush1.bf16.msra.mxu0 %v5075
      %5987 = vmatprep.subr.bf16.mxu0 %v5256
      %5988 = vmatpush2.bf16.msra.mxu0 %v5255
      %5989 = vmatprep.subr.bf16.mxu0 %v5244
      %5990 = vmatpush2.bf16.msra.mxu0 %v5243
      %5991 = vmatprep.subr.bf16.mxu0 %v5232
      %5992 = vmatpush2.bf16.msra.mxu0 %v5231
      %5993 = vmatprep.subr.bf16.mxu0 %v5220
      %5994 = vmatpush2.bf16.msra.mxu0 %v5219
      %5995 = vmatprep.subr.bf16.mxu0 %v5208
      %5996 = vmatpush2.bf16.msra.mxu0 %v5207
      %5997 = vmatprep.subr.bf16.mxu0 %v5196
      %5998 = vmatpush2.bf16.msra.mxu0 %v5195
      %5999 = vmatprep.subr.bf16.mxu0 %v5184
      %6000 = vmatpush2.bf16.msra.mxu0 %v5183
      %6001 = vmatprep.subr.bf16.mxu0 %v5172
      %6002 = vmatpush2.bf16.msra.mxu0 %v5171
      %6003 = vmatprep.mubr.bf16.mxu0 %v3849
      %6004 = vmatmul.mubr.bf16.gmra.mxu0 %v3848
      %v6005 = vpop.f32.mrf.mxu0
      %v6006 = vadd.f32 %v4178, %v6005
      %v6007 = vpop.f32.mrf.mxu0
      %v6008 = vadd.f32 %v4182, %v6007
      %v6009 = vpop.f32.mrf.mxu0
      %v6010 = vpop.f32.mrf.mxu0
      %6011 = vdwg.mxu0
      %6012 = vmatprep.subr.bf16.mxu0 %v5352
      %6013 = vmatpush1.bf16.msra.mxu0 %v5351
      %6014 = vmatprep.subr.bf16.mxu0 %v5340
      %6015 = vmatpush1.bf16.msra.mxu0 %v5339
      %6016 = vmatprep.subr.bf16.mxu0 %v5328
      %6017 = vmatpush1.bf16.msra.mxu0 %v5327
      %6018 = vmatprep.subr.bf16.mxu0 %v5316
      %6019 = vmatpush1.bf16.msra.mxu0 %v5315
      %6020 = vmatprep.subr.bf16.mxu0 %v5304
      %6021 = vmatpush1.bf16.msra.mxu0 %v5303
      %6022 = vmatprep.subr.bf16.mxu0 %v5292
      %6023 = vmatpush1.bf16.msra.mxu0 %v5291
      %6024 = vmatprep.subr.bf16.mxu0 %v5280
      %6025 = vmatpush1.bf16.msra.mxu0 %v5279
      %6026 = vmatprep.subr.bf16.mxu0 %v5268
      %6027 = vmatpush1.bf16.msra.mxu0 %v5267
      %6028 = vmatprep.subr.bf16.mxu0 0
      %6029 = vmatpush2.bf16.msra.mxu0 0
      %6030 = vmatprep.subr.bf16.mxu0 0
      %6031 = vmatpush2.bf16.msra.mxu0 0
      %6032 = vmatprep.subr.bf16.mxu0 0
      %6033 = vmatpush2.bf16.msra.mxu0 0
      %6034 = vmatprep.subr.bf16.mxu0 0
      %6035 = vmatpush2.bf16.msra.mxu0 0
      %6036 = vmatprep.subr.bf16.mxu0 0
      %6037 = vmatpush2.bf16.msra.mxu0 0
      %6038 = vmatprep.subr.bf16.mxu0 0
      %6039 = vmatpush2.bf16.msra.mxu0 0
      %6040 = vmatprep.subr.bf16.mxu0 0
      %6041 = vmatpush2.bf16.msra.mxu0 0
      %6042 = vmatprep.subr.bf16.mxu0 0
      %6043 = vmatpush2.bf16.msra.mxu0 0
      %6044 = vmatprep.mubr.bf16.mxu0 0
      %6045 = vmatmul.mubr.bf16.gmra.mxu0 %v3850
      %v6046 = vpop.f32.mrf.mxu0
      %v6047 = vadd.f32 %v6006, %v6046
      %v6048 = vpop.f32.mrf.mxu0
      %v6049 = vadd.f32 %v6008, %v6048
      %v6050 = vpop.f32.mrf.mxu0
      %v6051 = vpop.f32.mrf.mxu0
      %6052 = vdwg.mxu0
      %6053 = vmatprep.subr.bf16.mxu0 %v5162
      %6054 = vmatpush1.bf16.msra.mxu0 %v5161
      %6055 = vmatprep.subr.bf16.mxu0 %v5150
      %6056 = vmatpush1.bf16.msra.mxu0 %v5149
      %6057 = vmatprep.subr.bf16.mxu0 %v5138
      %6058 = vmatpush1.bf16.msra.mxu0 %v5137
      %6059 = vmatprep.subr.bf16.mxu0 %v5126
      %6060 = vmatpush1.bf16.msra.mxu0 %v5125
      %6061 = vmatprep.subr.bf16.mxu0 %v5114
      %6062 = vmatpush1.bf16.msra.mxu0 %v5113
      %6063 = vmatprep.subr.bf16.mxu0 %v5102
      %6064 = vmatpush1.bf16.msra.mxu0 %v5101
      %6065 = vmatprep.subr.bf16.mxu0 %v5090
      %6066 = vmatpush1.bf16.msra.mxu0 %v5089
      %6067 = vmatprep.subr.bf16.mxu0 %v5078
      %6068 = vmatpush1.bf16.msra.mxu0 %v5077
      %6069 = vmatprep.subr.bf16.mxu0 %v5258
      %6070 = vmatpush2.bf16.msra.mxu0 %v5257
      %6071 = vmatprep.subr.bf16.mxu0 %v5246
      %6072 = vmatpush2.bf16.msra.mxu0 %v5245
      %6073 = vmatprep.subr.bf16.mxu0 %v5234
      %6074 = vmatpush2.bf16.msra.mxu0 %v5233
      %6075 = vmatprep.subr.bf16.mxu0 %v5222
      %6076 = vmatpush2.bf16.msra.mxu0 %v5221
      %6077 = vmatprep.subr.bf16.mxu0 %v5210
      %6078 = vmatpush2.bf16.msra.mxu0 %v5209
      %6079 = vmatprep.subr.bf16.mxu0 %v5198
      %6080 = vmatpush2.bf16.msra.mxu0 %v5197
      %6081 = vmatprep.subr.bf16.mxu0 %v5186
      %6082 = vmatpush2.bf16.msra.mxu0 %v5185
      %6083 = vmatprep.subr.bf16.mxu0 %v5174
      %6084 = vmatpush2.bf16.msra.mxu0 %v5173
      %6085 = vmatprep.mubr.bf16.mxu0 %v3849
      %6086 = vmatmul.mubr.bf16.gmra.mxu0 %v3848
      %v6087 = vpop.f32.mrf.mxu0
      %v6088 = vadd.f32 %v4186, %v6087
      %v6089 = vpop.f32.mrf.mxu0
      %v6090 = vadd.f32 %v4190, %v6089
      %v6091 = vpop.f32.mrf.mxu0
      %v6092 = vpop.f32.mrf.mxu0
      %6093 = vdwg.mxu0
      %6094 = vmatprep.subr.bf16.mxu0 %v5354
      %6095 = vmatpush1.bf16.msra.mxu0 %v5353
      %6096 = vmatprep.subr.bf16.mxu0 %v5342
      %6097 = vmatpush1.bf16.msra.mxu0 %v5341
      %6098 = vmatprep.subr.bf16.mxu0 %v5330
      %6099 = vmatpush1.bf16.msra.mxu0 %v5329
      %6100 = vmatprep.subr.bf16.mxu0 %v5318
      %6101 = vmatpush1.bf16.msra.mxu0 %v5317
      %6102 = vmatprep.subr.bf16.mxu0 %v5306
      %6103 = vmatpush1.bf16.msra.mxu0 %v5305
      %6104 = vmatprep.subr.bf16.mxu0 %v5294
      %6105 = vmatpush1.bf16.msra.mxu0 %v5293
      %6106 = vmatprep.subr.bf16.mxu0 %v5282
      %6107 = vmatpush1.bf16.msra.mxu0 %v5281
      %6108 = vmatprep.subr.bf16.mxu0 %v5270
      %6109 = vmatpush1.bf16.msra.mxu0 %v5269
      %6110 = vmatprep.subr.bf16.mxu0 0
      %6111 = vmatpush2.bf16.msra.mxu0 0
      %6112 = vmatprep.subr.bf16.mxu0 0
      %6113 = vmatpush2.bf16.msra.mxu0 0
      %6114 = vmatprep.subr.bf16.mxu0 0
      %6115 = vmatpush2.bf16.msra.mxu0 0
      %6116 = vmatprep.subr.bf16.mxu0 0
      %6117 = vmatpush2.bf16.msra.mxu0 0
      %6118 = vmatprep.subr.bf16.mxu0 0
      %6119 = vmatpush2.bf16.msra.mxu0 0
      %6120 = vmatprep.subr.bf16.mxu0 0
      %6121 = vmatpush2.bf16.msra.mxu0 0
      %6122 = vmatprep.subr.bf16.mxu0 0
      %6123 = vmatpush2.bf16.msra.mxu0 0
      %6124 = vmatprep.subr.bf16.mxu0 0
      %6125 = vmatpush2.bf16.msra.mxu0 0
      %6126 = vmatprep.mubr.bf16.mxu0 0
      %6127 = vmatmul.mubr.bf16.gmra.mxu0 %v3850
      %v6128 = vpop.f32.mrf.mxu0
      %v6129 = vadd.f32 %v6088, %v6128
      %v6130 = vpop.f32.mrf.mxu0
      %v6131 = vadd.f32 %v6090, %v6130
      %v6132 = vpop.f32.mrf.mxu0
      %v6133 = vpop.f32.mrf.mxu0
      %6134 = vdwg.mxu0
      %v6135 = vmul.f32 %v5719, %v5719
      %v6136 = vmul.f32 %v5721, %v5721
      %v6137 = vmul.f32 %v5801, %v5801
      %v6138 = vmul.f32 %v5803, %v5803
      %v6139 = vmul.f32 %v5883, %v5883
      %v6140 = vmul.f32 %v5885, %v5885
      %v6141 = vmul.f32 %v5965, %v5965
      %v6142 = vmul.f32 %v5967, %v5967
      %v6143 = vmul.f32 %v6047, %v6047
      %v6144 = vmul.f32 %v6049, %v6049
      %v6145 = vmul.f32 %v6129, %v6129
      %v6146 = vmul.f32 %v6131, %v6131
      %v6147 = vmul.f32 %v5719, %v6135
      %v6148 = vmul.f32 %v5721, %v6136
      %v6149 = vmul.f32 %v5801, %v6137
      %v6150 = vmul.f32 %v5803, %v6138
      %v6151 = vmul.f32 %v5883, %v6139
      %v6152 = vmul.f32 %v5885, %v6140
      %v6153 = vmul.f32 %v5965, %v6141
      %v6154 = vmul.f32 %v5967, %v6142
      %v6155 = vmul.f32 %v6047, %v6143
      %v6156 = vmul.f32 %v6049, %v6144
      %v6157 = vmul.f32 %v6129, %v6145
      %v6158 = vmul.f32 %v6131, %v6146
      %v6159 = vmul.f32 %v6147, 0.044715
      %v6160 = vmul.f32 %v6148, 0.044715
      %v6161 = vmul.f32 %v6149, 0.044715
      %v6162 = vmul.f32 %v6150, 0.044715
      %v6163 = vmul.f32 %v6151, 0.044715
      %v6164 = vmul.f32 %v6152, 0.044715
      %v6165 = vmul.f32 %v6153, 0.044715
      %v6166 = vmul.f32 %v6154, 0.044715
      %v6167 = vmul.f32 %v6155, 0.044715
      %v6168 = vmul.f32 %v6156, 0.044715
      %v6169 = vmul.f32 %v6157, 0.044715
      %v6170 = vmul.f32 %v6158, 0.044715
      %v6171 = vadd.f32 %v5719, %v6159
      %v6172 = vadd.f32 %v5721, %v6160
      %v6173 = vadd.f32 %v5801, %v6161
      %v6174 = vadd.f32 %v5803, %v6162
      %v6175 = vadd.f32 %v5883, %v6163
      %v6176 = vadd.f32 %v5885, %v6164
      %v6177 = vadd.f32 %v5965, %v6165
      %v6178 = vadd.f32 %v5967, %v6166
      %v6179 = vadd.f32 %v6047, %v6167
      %v6180 = vadd.f32 %v6049, %v6168
      %v6181 = vadd.f32 %v6129, %v6169
      %v6182 = vadd.f32 %v6131, %v6170
      %v6183 = vmul.f32 %v6171, 0.7978846
      %v6184 = vmul.f32 %v6172, 0.7978846
      %v6185 = vmul.f32 %v6173, 0.7978846
      %v6186 = vmul.f32 %v6174, 0.7978846
      %v6187 = vmul.f32 %v6175, 0.7978846
      %v6188 = vmul.f32 %v6176, 0.7978846
      %v6189 = vmul.f32 %v6177, 0.7978846
      %v6190 = vmul.f32 %v6178, 0.7978846
      %v6191 = vmul.f32 %v6179, 0.7978846
      %v6192 = vmul.f32 %v6180, 0.7978846
      %v6193 = vmul.f32 %v6181, 0.7978846
      %v6194 = vmul.f32 %v6182, 0.7978846
      %v6195 = vtanh.pop %v6183
      %v6196 = vtanh.pop %v6184
      %v6197 = vtanh.pop %v6185
      %v6198 = vtanh.pop %v6186
      %v6199 = vtanh.pop %v6187
      %v6200 = vtanh.pop %v6188
      %v6201 = vtanh.pop %v6189
      %v6202 = vtanh.pop %v6190
      %v6203 = vtanh.pop %v6191
      %v6204 = vtanh.pop %v6192
      %v6205 = vtanh.pop %v6193
      %v6206 = vtanh.pop %v6194
      %v6207 = vadd.f32 %v6195, 1.0
      %v6208 = vadd.f32 %v6196, 1.0
      %v6209 = vadd.f32 %v6197, 1.0
      %v6210 = vadd.f32 %v6198, 1.0
      %v6211 = vadd.f32 %v6199, 1.0
      %v6212 = vadd.f32 %v6200, 1.0
      %v6213 = vadd.f32 %v6201, 1.0
      %v6214 = vadd.f32 %v6202, 1.0
      %v6215 = vadd.f32 %v6203, 1.0
      %v6216 = vadd.f32 %v6204, 1.0
      %v6217 = vadd.f32 %v6205, 1.0
      %v6218 = vadd.f32 %v6206, 1.0
      %v6219 = vmul.f32 %v6207, 0.5
      %v6220 = vmul.f32 %v6208, 0.5
      %v6221 = vmul.f32 %v6209, 0.5
      %v6222 = vmul.f32 %v6210, 0.5
      %v6223 = vmul.f32 %v6211, 0.5
      %v6224 = vmul.f32 %v6212, 0.5
      %v6225 = vmul.f32 %v6213, 0.5
      %v6226 = vmul.f32 %v6214, 0.5
      %v6227 = vmul.f32 %v6215, 0.5
      %v6228 = vmul.f32 %v6216, 0.5
      %v6229 = vmul.f32 %v6217, 0.5
      %v6230 = vmul.f32 %v6218, 0.5
      %v6231 = vmul.f32 %v5719, %v6219
      %v6232 = vmul.f32 %v5721, %v6220
      %v6233 = vmul.f32 %v5801, %v6221
      %v6234 = vmul.f32 %v5803, %v6222
      %v6235 = vmul.f32 %v5883, %v6223
      %v6236 = vmul.f32 %v5885, %v6224
      %v6237 = vmul.f32 %v5965, %v6225
      %v6238 = vmul.f32 %v5967, %v6226
      %v6239 = vmul.f32 %v6047, %v6227
      %v6240 = vmul.f32 %v6049, %v6228
      %v6241 = vmul.f32 %v6129, %v6229
      %v6242 = vmul.f32 %v6131, %v6230
      %v6243 = vpack.c.bf16 %v6231, %v6231
      %v6244 = vpack.c.bf16 %v6232, %v6232
      %v6245 = vpack.c.bf16 %v6233, %v6233
      %v6246 = vpack.c.bf16 %v6234, %v6234
      %v6247 = vpack.c.bf16 %v6235, %v6235
      %v6248 = vpack.c.bf16 %v6236, %v6236
      %v6249 = vpack.c.bf16 %v6237, %v6237
      %v6250 = vpack.c.bf16 %v6238, %v6238
      %v6251 = vpack.c.bf16 %v6239, %v6239
      %v6252 = vpack.c.bf16 %v6240, %v6240
      %v6253 = vpack.c.bf16 %v6241, %v6241
      %v6254 = vpack.c.bf16 %v6242, %v6242
      %v6255 = vld [vmem:[%s12] sm:$0xff]
      %v6256 = vld [vmem:[%s12 + $0x8] sm:$0xf]
      %v6257 = vld [vmem:[%s12 + $0xc] sm:$0xff]
      %v6258 = vld [vmem:[%s12 + $0x14] sm:$0xf]
      %v6259 = vld [vmem:[%s12 + $0x18] sm:$0xff]
      %v6260 = vld [vmem:[%s12 + $0x20] sm:$0xf]
      %v6261 = vld [vmem:[%s12 + $0x24] sm:$0xff]
      %v6262 = vld [vmem:[%s12 + $0x2c] sm:$0xf]
      %v6263 = vld [vmem:[%s12 + $0x30] sm:$0xff]
      %v6264 = vld [vmem:[%s12 + $0x38] sm:$0xf]
      %v6265 = vld [vmem:[%s12 + $0x3c] sm:$0xff]
      %v6266 = vld [vmem:[%s12 + $0x44] sm:$0xf]
      %v6267 = vld [vmem:[%s12 + $0x48] sm:$0xff]
      %v6268 = vld [vmem:[%s12 + $0x50] sm:$0xf]
      %v6269 = vld [vmem:[%s12 + $0x54] sm:$0xff]
      %v6270 = vld [vmem:[%s12 + $0x5c] sm:$0xf]
      %v6271 = vld [vmem:[%s12 + $0x60] sm:$0xff]
      %v6272 = vld [vmem:[%s12 + $0x68] sm:$0xf]
      %v6273 = vld [vmem:[%s12 + $0x6c] sm:$0xff]
      %v6274 = vld [vmem:[%s12 + $0x74] sm:$0xf]
      %v6275 = vld [vmem:[%s12 + $0x78] sm:$0xff]
      %v6276 = vld [vmem:[%s12 + $0x80] sm:$0xf]
      %v6277 = vld [vmem:[%s12 + $0x84] sm:$0xff]
      %v6278 = vld [vmem:[%s12 + $0x8c] sm:$0xf]
      %v6279 = vld [vmem:[%s12 + $0x90] sm:$0xff]
      %v6280 = vld [vmem:[%s12 + $0x98] sm:$0xf]
      %v6281 = vld [vmem:[%s12 + $0x9c] sm:$0xff]
      %v6282 = vld [vmem:[%s12 + $0xa4] sm:$0xf]
      %v6283 = vld [vmem:[%s12 + $0xa8] sm:$0xff]
      %v6284 = vld [vmem:[%s12 + $0xb0] sm:$0xf]
      %v6285 = vld [vmem:[%s12 + $0xb4] sm:$0xff]
      %v6286 = vld [vmem:[%s12 + $0xbc] sm:$0xf]
      %v6287 = vld [vmem:[%s12 + $0xc0] sm:$0xff]
      %v6288 = vld [vmem:[%s12 + $0xc8] sm:$0xf]
      %v6289 = vld [vmem:[%s12 + $0xcc] sm:$0xff]
      %v6290 = vld [vmem:[%s12 + $0xd4] sm:$0xf]
      %v6291 = vld [vmem:[%s12 + $0xd8] sm:$0xff]
      %v6292 = vld [vmem:[%s12 + $0xe0] sm:$0xf]
      %v6293 = vld [vmem:[%s12 + $0xe4] sm:$0xff]
      %v6294 = vld [vmem:[%s12 + $0xec] sm:$0xf]
      %v6295 = vld [vmem:[%s12 + $0xf0] sm:$0xff]
      %v6296 = vld [vmem:[%s12 + $0xf8] sm:$0xf]
      %v6297 = vld [vmem:[%s12 + $0xfc] sm:$0xff]
      %v6298 = vld [vmem:[%s12 + $0x104] sm:$0xf]
      %v6299 = vld [vmem:[%s12 + $0x108] sm:$0xff]
      %v6300 = vld [vmem:[%s12 + $0x110] sm:$0xf]
      %v6301 = vld [vmem:[%s12 + $0x114] sm:$0xff]
      %v6302 = vld [vmem:[%s12 + $0x11c] sm:$0xf]
      %v6303 = vld [vmem:[%s12 + $0x120] sm:$0xff]
      %v6304 = vld [vmem:[%s12 + $0x128] sm:$0xf]
      %v6305 = vld [vmem:[%s12 + $0x12c] sm:$0xff]
      %v6306 = vld [vmem:[%s12 + $0x134] sm:$0xf]
      %v6307 = vld [vmem:[%s12 + $0x138] sm:$0xff]
      %v6308 = vld [vmem:[%s12 + $0x140] sm:$0xf]
      %v6309 = vld [vmem:[%s12 + $0x144] sm:$0xff]
      %v6310 = vld [vmem:[%s12 + $0x14c] sm:$0xf]
      %v6311 = vld [vmem:[%s12 + $0x150] sm:$0xff]
      %v6312 = vld [vmem:[%s12 + $0x158] sm:$0xf]
      %v6313 = vld [vmem:[%s12 + $0x15c] sm:$0xff]
      %v6314 = vld [vmem:[%s12 + $0x164] sm:$0xf]
      %v6315 = vld [vmem:[%s12 + $0x168] sm:$0xff]
      %v6316 = vld [vmem:[%s12 + $0x170] sm:$0xf]
      %v6317 = vld [vmem:[%s12 + $0x174] sm:$0xff]
      %v6318 = vld [vmem:[%s12 + $0x17c] sm:$0xf]
      %v6319 = vld [vmem:[%s12 + $0x180] sm:$0xff]
      %v6320 = vld [vmem:[%s12 + $0x188] sm:$0xf]
      %v6321 = vld [vmem:[%s12 + $0x18c] sm:$0xff]
      %v6322 = vld [vmem:[%s12 + $0x194] sm:$0xf]
      %v6323 = vld [vmem:[%s12 + $0x198] sm:$0xff]
      %v6324 = vld [vmem:[%s12 + $0x1a0] sm:$0xf]
      %v6325 = vld [vmem:[%s12 + $0x1a4] sm:$0xff]
      %v6326 = vld [vmem:[%s12 + $0x1ac] sm:$0xf]
      %v6327 = vld [vmem:[%s12 + $0x1b0] sm:$0xff]
      %v6328 = vld [vmem:[%s12 + $0x1b8] sm:$0xf]
      %v6329 = vld [vmem:[%s12 + $0x1bc] sm:$0xff]
      %v6330 = vld [vmem:[%s12 + $0x1c4] sm:$0xf]
      %v6331 = vld [vmem:[%s12 + $0x1c8] sm:$0xff]
      %v6332 = vld [vmem:[%s12 + $0x1d0] sm:$0xf]
      %v6333 = vld [vmem:[%s12 + $0x1d4] sm:$0xff]
      %v6334 = vld [vmem:[%s12 + $0x1dc] sm:$0xf]
      %v6335 = vld [vmem:[%s12 + $0x1e0] sm:$0xff]
      %v6336 = vld [vmem:[%s12 + $0x1e8] sm:$0xf]
      %v6337 = vld [vmem:[%s12 + $0x1ec] sm:$0xff]
      %v6338 = vld [vmem:[%s12 + $0x1f4] sm:$0xf]
      %v6339 = vld [vmem:[%s12 + $0x1f8] sm:$0xff]
      %v6340 = vld [vmem:[%s12 + $0x200] sm:$0xf]
      %v6341 = vld [vmem:[%s12 + $0x204] sm:$0xff]
      %v6342 = vld [vmem:[%s12 + $0x20c] sm:$0xf]
      %v6343 = vld [vmem:[%s12 + $0x210] sm:$0xff]
      %v6344 = vld [vmem:[%s12 + $0x218] sm:$0xf]
      %v6345 = vld [vmem:[%s12 + $0x21c] sm:$0xff]
      %v6346 = vld [vmem:[%s12 + $0x224] sm:$0xf]
      %v6347 = vld [vmem:[%s12 + $0x228] sm:$0xff]
      %v6348 = vld [vmem:[%s12 + $0x230] sm:$0xf]
      %v6349 = vld [vmem:[%s12 + $0x234] sm:$0xff]
      %v6350 = vld [vmem:[%s12 + $0x23c] sm:$0xf]
      %v6351 = vld [vmem:[%s12 + $0x240] sm:$0xff]
      %v6352 = vld [vmem:[%s12 + $0x248] sm:$0xf]
      %v6353 = vld [vmem:[%s12 + $0x24c] sm:$0xff]
      %v6354 = vld [vmem:[%s12 + $0x254] sm:$0xf]
      %v6355 = vld [vmem:[%s12 + $0x258] sm:$0xff]
      %v6356 = vld [vmem:[%s12 + $0x260] sm:$0xf]
      %v6357 = vld [vmem:[%s12 + $0x264] sm:$0xff]
      %v6358 = vld [vmem:[%s12 + $0x26c] sm:$0xf]
      %v6359 = vld [vmem:[%s12 + $0x270] sm:$0xff]
      %v6360 = vld [vmem:[%s12 + $0x278] sm:$0xf]
      %v6361 = vld [vmem:[%s12 + $0x27c] sm:$0xff]
      %v6362 = vld [vmem:[%s12 + $0x284] sm:$0xf]
      %v6363 = vld [vmem:[%s12 + $0x288] sm:$0xff]
      %v6364 = vld [vmem:[%s12 + $0x290] sm:$0xf]
      %v6365 = vld [vmem:[%s12 + $0x294] sm:$0xff]
      %v6366 = vld [vmem:[%s12 + $0x29c] sm:$0xf]
      %v6367 = vld [vmem:[%s12 + $0x2a0] sm:$0xff]
      %v6368 = vld [vmem:[%s12 + $0x2a8] sm:$0xf]
      %v6369 = vld [vmem:[%s12 + $0x2ac] sm:$0xff]
      %v6370 = vld [vmem:[%s12 + $0x2b4] sm:$0xf]
      %v6371 = vld [vmem:[%s12 + $0x2b8] sm:$0xff]
      %v6372 = vld [vmem:[%s12 + $0x2c0] sm:$0xf]
      %v6373 = vld [vmem:[%s12 + $0x2c4] sm:$0xff]
      %v6374 = vld [vmem:[%s12 + $0x2cc] sm:$0xf]
      %v6375 = vld [vmem:[%s12 + $0x2d0] sm:$0xff]
      %v6376 = vld [vmem:[%s12 + $0x2d8] sm:$0xf]
      %v6377 = vld [vmem:[%s12 + $0x2dc] sm:$0xff]
      %v6378 = vld [vmem:[%s12 + $0x2e4] sm:$0xf]
      %v6379 = vld [vmem:[%s12 + $0x2e8] sm:$0xff]
      %v6380 = vld [vmem:[%s12 + $0x2f0] sm:$0xf]
      %v6381 = vld [vmem:[%s12 + $0x2f4] sm:$0xff]
      %v6382 = vld [vmem:[%s12 + $0x2fc] sm:$0xf]
      %v6383 = vld [vmem:[%s12 + $0x300] sm:$0xff]
      %v6384 = vld [vmem:[%s12 + $0x308] sm:$0xf]
      %v6385 = vld [vmem:[%s12 + $0x30c] sm:$0xff]
      %v6386 = vld [vmem:[%s12 + $0x314] sm:$0xf]
      %v6387 = vld [vmem:[%s12 + $0x318] sm:$0xff]
      %v6388 = vld [vmem:[%s12 + $0x320] sm:$0xf]
      %v6389 = vld [vmem:[%s12 + $0x324] sm:$0xff]
      %v6390 = vld [vmem:[%s12 + $0x32c] sm:$0xf]
      %v6391 = vld [vmem:[%s12 + $0x330] sm:$0xff]
      %v6392 = vld [vmem:[%s12 + $0x338] sm:$0xf]
      %v6393 = vld [vmem:[%s12 + $0x33c] sm:$0xff]
      %v6394 = vld [vmem:[%s12 + $0x344] sm:$0xf]
      %v6395 = vld [vmem:[%s12 + $0x348] sm:$0xff]
      %v6396 = vld [vmem:[%s12 + $0x350] sm:$0xf]
      %v6397 = vld [vmem:[%s12 + $0x354] sm:$0xff]
      %v6398 = vld [vmem:[%s12 + $0x35c] sm:$0xf]
      %v6399 = vld [vmem:[%s12 + $0x360] sm:$0xff]
      %v6400 = vld [vmem:[%s12 + $0x368] sm:$0xf]
      %v6401 = vld [vmem:[%s12 + $0x36c] sm:$0xff]
      %v6402 = vld [vmem:[%s12 + $0x374] sm:$0xf]
      %v6403 = vld [vmem:[%s12 + $0x378] sm:$0xff]
      %v6404 = vld [vmem:[%s12 + $0x380] sm:$0xf]
      %v6405 = vld [vmem:[%s12 + $0x384] sm:$0xff]
      %v6406 = vld [vmem:[%s12 + $0x38c] sm:$0xf]
      %v6407 = vld [vmem:[%s12 + $0x390] sm:$0xff]
      %v6408 = vld [vmem:[%s12 + $0x398] sm:$0xf]
      %v6409 = vld [vmem:[%s12 + $0x39c] sm:$0xff]
      %v6410 = vld [vmem:[%s12 + $0x3a4] sm:$0xf]
      %v6411 = vld [vmem:[%s12 + $0x3a8] sm:$0xff]
      %v6412 = vld [vmem:[%s12 + $0x3b0] sm:$0xf]
      %v6413 = vld [vmem:[%s12 + $0x3b4] sm:$0xff]
      %v6414 = vld [vmem:[%s12 + $0x3bc] sm:$0xf]
      %v6415 = vld [vmem:[%s12 + $0x3c0] sm:$0xff]
      %v6416 = vld [vmem:[%s12 + $0x3c8] sm:$0xf]
      %v6417 = vld [vmem:[%s12 + $0x3cc] sm:$0xff]
      %v6418 = vld [vmem:[%s12 + $0x3d4] sm:$0xf]
      %v6419 = vld [vmem:[%s12 + $0x3d8] sm:$0xff]
      %v6420 = vld [vmem:[%s12 + $0x3e0] sm:$0xf]
      %v6421 = vld [vmem:[%s12 + $0x3e4] sm:$0xff]
      %v6422 = vld [vmem:[%s12 + $0x3ec] sm:$0xf]
      %v6423 = vld [vmem:[%s12 + $0x3f0] sm:$0xff]
      %v6424 = vld [vmem:[%s12 + $0x3f8] sm:$0xf]
      %v6425 = vld [vmem:[%s12 + $0x3fc] sm:$0xff]
      %v6426 = vld [vmem:[%s12 + $0x404] sm:$0xf]
      %v6427 = vld [vmem:[%s12 + $0x408] sm:$0xff]
      %v6428 = vld [vmem:[%s12 + $0x410] sm:$0xf]
      %v6429 = vld [vmem:[%s12 + $0x414] sm:$0xff]
      %v6430 = vld [vmem:[%s12 + $0x41c] sm:$0xf]
      %v6431 = vld [vmem:[%s12 + $0x420] sm:$0xff]
      %v6432 = vld [vmem:[%s12 + $0x428] sm:$0xf]
      %v6433 = vld [vmem:[%s12 + $0x42c] sm:$0xff]
      %v6434 = vld [vmem:[%s12 + $0x434] sm:$0xf]
      %v6435 = vld [vmem:[%s12 + $0x438] sm:$0xff]
      %v6436 = vld [vmem:[%s12 + $0x440] sm:$0xf]
      %v6437 = vld [vmem:[%s12 + $0x444] sm:$0xff]
      %v6438 = vld [vmem:[%s12 + $0x44c] sm:$0xf]
      %v6439 = vld [vmem:[%s12 + $0x450] sm:$0xff]
      %v6440 = vld [vmem:[%s12 + $0x458] sm:$0xf]
      %v6441 = vld [vmem:[%s12 + $0x45c] sm:$0xff]
      %v6442 = vld [vmem:[%s12 + $0x464] sm:$0xf]
      %v6443 = vld [vmem:[%s12 + $0x468] sm:$0xff]
      %v6444 = vld [vmem:[%s12 + $0x470] sm:$0xf]
      %v6445 = vld [vmem:[%s12 + $0x474] sm:$0xff]
      %v6446 = vld [vmem:[%s12 + $0x47c] sm:$0xf]
      %v6447 = vld [vmem:[%s12 + $0x480] sm:$0xff]
      %v6448 = vld [vmem:[%s12 + $0x488] sm:$0xf]
      %v6449 = vld [vmem:[%s12 + $0x48c] sm:$0xff]
      %v6450 = vld [vmem:[%s12 + $0x494] sm:$0xf]
      %v6451 = vld [vmem:[%s12 + $0x498] sm:$0xff]
      %v6452 = vld [vmem:[%s12 + $0x4a0] sm:$0xf]
      %v6453 = vld [vmem:[%s12 + $0x4a4] sm:$0xff]
      %v6454 = vld [vmem:[%s12 + $0x4ac] sm:$0xf]
      %v6455 = vld [vmem:[%s12 + $0x4b0] sm:$0xff]
      %v6456 = vld [vmem:[%s12 + $0x4b8] sm:$0xf]
      %v6457 = vld [vmem:[%s12 + $0x4bc] sm:$0xff]
      %v6458 = vld [vmem:[%s12 + $0x4c4] sm:$0xf]
      %v6459 = vld [vmem:[%s12 + $0x4c8] sm:$0xff]
      %v6460 = vld [vmem:[%s12 + $0x4d0] sm:$0xf]
      %v6461 = vld [vmem:[%s12 + $0x4d4] sm:$0xff]
      %v6462 = vld [vmem:[%s12 + $0x4dc] sm:$0xf]
      %v6463 = vld [vmem:[%s12 + $0x4e0] sm:$0xff]
      %v6464 = vld [vmem:[%s12 + $0x4e8] sm:$0xf]
      %v6465 = vld [vmem:[%s12 + $0x4ec] sm:$0xff]
      %v6466 = vld [vmem:[%s12 + $0x4f4] sm:$0xf]
      %v6467 = vld [vmem:[%s12 + $0x4f8] sm:$0xff]
      %v6468 = vld [vmem:[%s12 + $0x500] sm:$0xf]
      %v6469 = vld [vmem:[%s12 + $0x504] sm:$0xff]
      %v6470 = vld [vmem:[%s12 + $0x50c] sm:$0xf]
      %v6471 = vld [vmem:[%s12 + $0x510] sm:$0xff]
      %v6472 = vld [vmem:[%s12 + $0x518] sm:$0xf]
      %v6473 = vld [vmem:[%s12 + $0x51c] sm:$0xff]
      %v6474 = vld [vmem:[%s12 + $0x524] sm:$0xf]
      %v6475 = vld [vmem:[%s12 + $0x528] sm:$0xff]
      %v6476 = vld [vmem:[%s12 + $0x530] sm:$0xf]
      %v6477 = vld [vmem:[%s12 + $0x534] sm:$0xff]
      %v6478 = vld [vmem:[%s12 + $0x53c] sm:$0xf]
      %v6479 = vld [vmem:[%s12 + $0x540] sm:$0xff]
      %v6480 = vld [vmem:[%s12 + $0x548] sm:$0xf]
      %v6481 = vld [vmem:[%s12 + $0x54c] sm:$0xff]
      %v6482 = vld [vmem:[%s12 + $0x554] sm:$0xf]
      %v6483 = vld [vmem:[%s12 + $0x558] sm:$0xff]
      %v6484 = vld [vmem:[%s12 + $0x560] sm:$0xf]
      %v6485 = vld [vmem:[%s12 + $0x564] sm:$0xff]
      %v6486 = vld [vmem:[%s12 + $0x56c] sm:$0xf]
      %v6487 = vld [vmem:[%s12 + $0x570] sm:$0xff]
      %v6488 = vld [vmem:[%s12 + $0x578] sm:$0xf]
      %v6489 = vld [vmem:[%s12 + $0x57c] sm:$0xff]
      %v6490 = vld [vmem:[%s12 + $0x584] sm:$0xf]
      %v6491 = vld [vmem:[%s12 + $0x588] sm:$0xff]
      %v6492 = vld [vmem:[%s12 + $0x590] sm:$0xf]
      %v6493 = vld [vmem:[%s12 + $0x594] sm:$0xff]
      %v6494 = vld [vmem:[%s12 + $0x59c] sm:$0xf]
      %v6495 = vld [vmem:[%s12 + $0x5a0] sm:$0xff]
      %v6496 = vld [vmem:[%s12 + $0x5a8] sm:$0xf]
      %v6497 = vld [vmem:[%s12 + $0x5ac] sm:$0xff]
      %v6498 = vld [vmem:[%s12 + $0x5b4] sm:$0xf]
      %v6499 = vld [vmem:[%s12 + $0x5b8] sm:$0xff]
      %v6500 = vld [vmem:[%s12 + $0x5c0] sm:$0xf]
      %v6501 = vld [vmem:[%s12 + $0x5c4] sm:$0xff]
      %v6502 = vld [vmem:[%s12 + $0x5cc] sm:$0xf]
      %v6503 = vld [vmem:[%s12 + $0x5d0] sm:$0xff]
      %v6504 = vld [vmem:[%s12 + $0x5d8] sm:$0xf]
      %v6505 = vld [vmem:[%s12 + $0x5dc] sm:$0xff]
      %v6506 = vld [vmem:[%s12 + $0x5e4] sm:$0xf]
      %v6507 = vld [vmem:[%s12 + $0x5e8] sm:$0xff]
      %v6508 = vld [vmem:[%s12 + $0x5f0] sm:$0xf]
      %v6509 = vld [vmem:[%s12 + $0x5f4] sm:$0xff]
      %v6510 = vld [vmem:[%s12 + $0x5fc] sm:$0xf]
      %v6511 = vld [vmem:[%s12 + $0x600] sm:$0xff]
      %v6512 = vld [vmem:[%s12 + $0x608] sm:$0xf]
      %v6513 = vld [vmem:[%s12 + $0x60c] sm:$0xff]
      %v6514 = vld [vmem:[%s12 + $0x614] sm:$0xf]
      %v6515 = vld [vmem:[%s12 + $0x618] sm:$0xff]
      %v6516 = vld [vmem:[%s12 + $0x620] sm:$0xf]
      %v6517 = vld [vmem:[%s12 + $0x624] sm:$0xff]
      %v6518 = vld [vmem:[%s12 + $0x62c] sm:$0xf]
      %v6519 = vld [vmem:[%s12 + $0x630] sm:$0xff]
      %v6520 = vld [vmem:[%s12 + $0x638] sm:$0xf]
      %v6521 = vld [vmem:[%s12 + $0x63c] sm:$0xff]
      %v6522 = vld [vmem:[%s12 + $0x644] sm:$0xf]
      %v6523 = vld [vmem:[%s12 + $0x648] sm:$0xff]
      %v6524 = vld [vmem:[%s12 + $0x650] sm:$0xf]
      %v6525 = vld [vmem:[%s12 + $0x654] sm:$0xff]
      %v6526 = vld [vmem:[%s12 + $0x65c] sm:$0xf]
      %v6527 = vld [vmem:[%s12 + $0x660] sm:$0xff]
      %v6528 = vld [vmem:[%s12 + $0x668] sm:$0xf]
      %v6529 = vld [vmem:[%s12 + $0x66c] sm:$0xff]
      %v6530 = vld [vmem:[%s12 + $0x674] sm:$0xf]
      %v6531 = vld [vmem:[%s12 + $0x678] sm:$0xff]
      %v6532 = vld [vmem:[%s12 + $0x680] sm:$0xf]
      %v6533 = vld [vmem:[%s12 + $0x684] sm:$0xff]
      %v6534 = vld [vmem:[%s12 + $0x68c] sm:$0xf]
      %v6535 = vld [vmem:[%s12 + $0x690] sm:$0xff]
      %v6536 = vld [vmem:[%s12 + $0x698] sm:$0xf]
      %v6537 = vld [vmem:[%s12 + $0x69c] sm:$0xff]
      %v6538 = vld [vmem:[%s12 + $0x6a4] sm:$0xf]
      %v6539 = vld [vmem:[%s12 + $0x6a8] sm:$0xff]
      %v6540 = vld [vmem:[%s12 + $0x6b0] sm:$0xf]
      %v6541 = vld [vmem:[%s12 + $0x6b4] sm:$0xff]
      %v6542 = vld [vmem:[%s12 + $0x6bc] sm:$0xf]
      %v6543 = vld [vmem:[%s12 + $0x6c0] sm:$0xff]
      %v6544 = vld [vmem:[%s12 + $0x6c8] sm:$0xf]
      %v6545 = vld [vmem:[%s12 + $0x6cc] sm:$0xff]
      %v6546 = vld [vmem:[%s12 + $0x6d4] sm:$0xf]
      %v6547 = vld [vmem:[%s12 + $0x6d8] sm:$0xff]
      %v6548 = vld [vmem:[%s12 + $0x6e0] sm:$0xf]
      %v6549 = vld [vmem:[%s12 + $0x6e4] sm:$0xff]
      %v6550 = vld [vmem:[%s12 + $0x6ec] sm:$0xf]
      %v6551 = vld [vmem:[%s12 + $0x6f0] sm:$0xff]
      %v6552 = vld [vmem:[%s12 + $0x6f8] sm:$0xf]
      %v6553 = vld [vmem:[%s12 + $0x6fc] sm:$0xff]
      %v6554 = vld [vmem:[%s12 + $0x704] sm:$0xf]
      %v6555 = vld [vmem:[%s12 + $0x708] sm:$0xff]
      %v6556 = vld [vmem:[%s12 + $0x710] sm:$0xf]
      %v6557 = vld [vmem:[%s12 + $0x714] sm:$0xff]
      %v6558 = vld [vmem:[%s12 + $0x71c] sm:$0xf]
      %v6559 = vld [vmem:[%s12 + $0x720] sm:$0xff]
      %v6560 = vld [vmem:[%s12 + $0x728] sm:$0xf]
      %v6561 = vld [vmem:[%s12 + $0x72c] sm:$0xff]
      %v6562 = vld [vmem:[%s12 + $0x734] sm:$0xf]
      %v6563 = vld [vmem:[%s12 + $0x738] sm:$0xff]
      %v6564 = vld [vmem:[%s12 + $0x740] sm:$0xf]
      %v6565 = vld [vmem:[%s12 + $0x744] sm:$0xff]
      %v6566 = vld [vmem:[%s12 + $0x74c] sm:$0xf]
      %v6567 = vld [vmem:[%s12 + $0x750] sm:$0xff]
      %v6568 = vld [vmem:[%s12 + $0x758] sm:$0xf]
      %v6569 = vld [vmem:[%s12 + $0x75c] sm:$0xff]
      %v6570 = vld [vmem:[%s12 + $0x764] sm:$0xf]
      %v6571 = vld [vmem:[%s12 + $0x768] sm:$0xff]
      %v6572 = vld [vmem:[%s12 + $0x770] sm:$0xf]
      %v6573 = vld [vmem:[%s12 + $0x774] sm:$0xff]
      %v6574 = vld [vmem:[%s12 + $0x77c] sm:$0xf]
      %v6575 = vld [vmem:[%s12 + $0x780] sm:$0xff]
      %v6576 = vld [vmem:[%s12 + $0x788] sm:$0xf]
      %v6577 = vld [vmem:[%s12 + $0x78c] sm:$0xff]
      %v6578 = vld [vmem:[%s12 + $0x794] sm:$0xf]
      %v6579 = vld [vmem:[%s12 + $0x798] sm:$0xff]
      %v6580 = vld [vmem:[%s12 + $0x7a0] sm:$0xf]
      %v6581 = vld [vmem:[%s12 + $0x7a4] sm:$0xff]
      %v6582 = vld [vmem:[%s12 + $0x7ac] sm:$0xf]
      %v6583 = vld [vmem:[%s12 + $0x7b0] sm:$0xff]
      %v6584 = vld [vmem:[%s12 + $0x7b8] sm:$0xf]
      %v6585 = vld [vmem:[%s12 + $0x7bc] sm:$0xff]
      %v6586 = vld [vmem:[%s12 + $0x7c4] sm:$0xf]
      %v6587 = vld [vmem:[%s12 + $0x7c8] sm:$0xff]
      %v6588 = vld [vmem:[%s12 + $0x7d0] sm:$0xf]
      %v6589 = vld [vmem:[%s12 + $0x7d4] sm:$0xff]
      %v6590 = vld [vmem:[%s12 + $0x7dc] sm:$0xf]
      %v6591 = vld [vmem:[%s12 + $0x7e0] sm:$0xff]
      %v6592 = vld [vmem:[%s12 + $0x7e8] sm:$0xf]
      %v6593 = vld [vmem:[%s12 + $0x7ec] sm:$0xff]
      %v6594 = vld [vmem:[%s12 + $0x7f4] sm:$0xf]
      %v6595 = vld [vmem:[%s12 + $0x7f8] sm:$0xff]
      %v6596 = vld [vmem:[%s12 + $0x800] sm:$0xf]
      %v6597 = vld [vmem:[%s12 + $0x804] sm:$0xff]
      %v6598 = vld [vmem:[%s12 + $0x80c] sm:$0xf]
      %v6599 = vld [vmem:[%s12 + $0x810] sm:$0xff]
      %v6600 = vld [vmem:[%s12 + $0x818] sm:$0xf]
      %v6601 = vld [vmem:[%s12 + $0x81c] sm:$0xff]
      %v6602 = vld [vmem:[%s12 + $0x824] sm:$0xf]
      %v6603 = vld [vmem:[%s12 + $0x828] sm:$0xff]
      %v6604 = vld [vmem:[%s12 + $0x830] sm:$0xf]
      %v6605 = vld [vmem:[%s12 + $0x834] sm:$0xff]
      %v6606 = vld [vmem:[%s12 + $0x83c] sm:$0xf]
      %v6607 = vld [vmem:[%s12 + $0x840] sm:$0xff]
      %v6608 = vld [vmem:[%s12 + $0x848] sm:$0xf]
      %v6609 = vld [vmem:[%s12 + $0x84c] sm:$0xff]
      %v6610 = vld [vmem:[%s12 + $0x854] sm:$0xf]
      %v6611 = vld [vmem:[%s12 + $0x858] sm:$0xff]
      %v6612 = vld [vmem:[%s12 + $0x860] sm:$0xf]
      %v6613 = vld [vmem:[%s12 + $0x864] sm:$0xff]
      %v6614 = vld [vmem:[%s12 + $0x86c] sm:$0xf]
      %v6615 = vld [vmem:[%s12 + $0x870] sm:$0xff]
      %v6616 = vld [vmem:[%s12 + $0x878] sm:$0xf]
      %v6617 = vld [vmem:[%s12 + $0x87c] sm:$0xff]
      %v6618 = vld [vmem:[%s12 + $0x884] sm:$0xf]
      %v6619 = vld [vmem:[%s12 + $0x888] sm:$0xff]
      %v6620 = vld [vmem:[%s12 + $0x890] sm:$0xf]
      %v6621 = vld [vmem:[%s12 + $0x894] sm:$0xff]
      %v6622 = vld [vmem:[%s12 + $0x89c] sm:$0xf]
      %v6623 = vld [vmem:[%s12 + $0x8a0] sm:$0xff]
      %v6624 = vld [vmem:[%s12 + $0x8a8] sm:$0xf]
      %v6625 = vld [vmem:[%s12 + $0x8ac] sm:$0xff]
      %v6626 = vld [vmem:[%s12 + $0x8b4] sm:$0xf]
      %v6627 = vld [vmem:[%s12 + $0x8b8] sm:$0xff]
      %v6628 = vld [vmem:[%s12 + $0x8c0] sm:$0xf]
      %v6629 = vld [vmem:[%s12 + $0x8c4] sm:$0xff]
      %v6630 = vld [vmem:[%s12 + $0x8cc] sm:$0xf]
      %v6631 = vld [vmem:[%s12 + $0x8d0] sm:$0xff]
      %v6632 = vld [vmem:[%s12 + $0x8d8] sm:$0xf]
      %v6633 = vld [vmem:[%s12 + $0x8dc] sm:$0xff]
      %v6634 = vld [vmem:[%s12 + $0x8e4] sm:$0xf]
      %v6635 = vld [vmem:[%s12 + $0x8e8] sm:$0xff]
      %v6636 = vld [vmem:[%s12 + $0x8f0] sm:$0xf]
      %v6637 = vld [vmem:[%s12 + $0x8f4] sm:$0xff]
      %v6638 = vld [vmem:[%s12 + $0x8fc] sm:$0xf]
      %v6639 = vld [vmem:[%s13] sm:$0x7]
      %v6641 = vlaneseq
      %v6642 = vshrl.u32 %v6641, 7
      %v6643 = vsub.s32 0, %v6642
      %v6644 = vrot.slane %v6639, %v6643
      %v6645 = vlaneseq
      %v6646 = vshrl.u32 %v6645, 7
      %v6647 = vsub.s32 1, %v6646
      %v6648 = vrot.slane %v6639, %v6647
      %v6649 = vlaneseq
      %v6650 = vshrl.u32 %v6649, 7
      %v6651 = vsub.s32 2, %v6650
      %v6652 = vrot.slane %v6639, %v6651
      %v7040 = vunpack.c.l.b16 %v6255
      %v7041 = vunpack.c.h.b16 %v6255
      %v7042 = vunpack.c.l.b16 %v6256
      %v7043 = vunpack.c.l.b16 %v6257
      %v7044 = vunpack.c.h.b16 %v6257
      %v7045 = vunpack.c.l.b16 %v6258
      %v7046 = vunpack.c.l.b16 %v6259
      %v7047 = vunpack.c.h.b16 %v6259
      %v7048 = vunpack.c.l.b16 %v6260
      %v7049 = vunpack.c.l.b16 %v6261
      %v7050 = vunpack.c.h.b16 %v6261
      %v7051 = vunpack.c.l.b16 %v6262
      %v7052 = vunpack.c.l.b16 %v6263
      %v7053 = vunpack.c.h.b16 %v6263
      %v7054 = vunpack.c.l.b16 %v6264
      %v7055 = vunpack.c.l.b16 %v6265
      %v7056 = vunpack.c.h.b16 %v6265
      %v7057 = vunpack.c.l.b16 %v6266
      %v7058 = vunpack.c.l.b16 %v6267
      %v7059 = vunpack.c.h.b16 %v6267
      %v7060 = vunpack.c.l.b16 %v6268
      %v7061 = vunpack.c.l.b16 %v6269
      %v7062 = vunpack.c.h.b16 %v6269
      %v7063 = vunpack.c.l.b16 %v6270
      %v7064 = vunpack.c.l.b16 %v6271
      %v7065 = vunpack.c.h.b16 %v6271
      %v7066 = vunpack.c.l.b16 %v6272
      %v7067 = vunpack.c.l.b16 %v6273
      %v7068 = vunpack.c.h.b16 %v6273
      %v7069 = vunpack.c.l.b16 %v6274
      %v7070 = vunpack.c.l.b16 %v6275
      %v7071 = vunpack.c.h.b16 %v6275
      %v7072 = vunpack.c.l.b16 %v6276
      %v7073 = vunpack.c.l.b16 %v6277
      %v7074 = vunpack.c.h.b16 %v6277
      %v7075 = vunpack.c.l.b16 %v6278
      %v7076 = vunpack.c.l.b16 %v6279
      %v7077 = vunpack.c.h.b16 %v6279
      %v7078 = vunpack.c.l.b16 %v6280
      %v7079 = vunpack.c.l.b16 %v6281
      %v7080 = vunpack.c.h.b16 %v6281
      %v7081 = vunpack.c.l.b16 %v6282
      %v7082 = vunpack.c.l.b16 %v6283
      %v7083 = vunpack.c.h.b16 %v6283
      %v7084 = vunpack.c.l.b16 %v6284
      %v7085 = vunpack.c.l.b16 %v6285
      %v7086 = vunpack.c.h.b16 %v6285
      %v7087 = vunpack.c.l.b16 %v6286
      %v7088 = vunpack.c.l.b16 %v6287
      %v7089 = vunpack.c.h.b16 %v6287
      %v7090 = vunpack.c.l.b16 %v6288
      %v7091 = vunpack.c.l.b16 %v6289
      %v7092 = vunpack.c.h.b16 %v6289
      %v7093 = vunpack.c.l.b16 %v6290
      %v7094 = vunpack.c.l.b16 %v6291
      %v7095 = vunpack.c.h.b16 %v6291
      %v7096 = vunpack.c.l.b16 %v6292
      %v7097 = vunpack.c.l.b16 %v6293
      %v7098 = vunpack.c.h.b16 %v6293
      %v7099 = vunpack.c.l.b16 %v6294
      %v7100 = vunpack.c.l.b16 %v6295
      %v7101 = vunpack.c.h.b16 %v6295
      %v7102 = vunpack.c.l.b16 %v6296
      %v7103 = vunpack.c.l.b16 %v6297
      %v7104 = vunpack.c.h.b16 %v6297
      %v7105 = vunpack.c.l.b16 %v6298
      %v7106 = vunpack.c.l.b16 %v6299
      %v7107 = vunpack.c.h.b16 %v6299
      %v7108 = vunpack.c.l.b16 %v6300
      %v7109 = vunpack.c.l.b16 %v6301
      %v7110 = vunpack.c.h.b16 %v6301
      %v7111 = vunpack.c.l.b16 %v6302
      %v7112 = vunpack.c.l.b16 %v6303
      %v7113 = vunpack.c.h.b16 %v6303
      %v7114 = vunpack.c.l.b16 %v6304
      %v7115 = vunpack.c.l.b16 %v6305
      %v7116 = vunpack.c.h.b16 %v6305
      %v7117 = vunpack.c.l.b16 %v6306
      %v7118 = vunpack.c.l.b16 %v6307
      %v7119 = vunpack.c.h.b16 %v6307
      %v7120 = vunpack.c.l.b16 %v6308
      %v7121 = vunpack.c.l.b16 %v6309
      %v7122 = vunpack.c.h.b16 %v6309
      %v7123 = vunpack.c.l.b16 %v6310
      %v7124 = vunpack.c.l.b16 %v6311
      %v7125 = vunpack.c.h.b16 %v6311
      %v7126 = vunpack.c.l.b16 %v6312
      %v7127 = vunpack.c.l.b16 %v6313
      %v7128 = vunpack.c.h.b16 %v6313
      %v7129 = vunpack.c.l.b16 %v6314
      %v7130 = vunpack.c.l.b16 %v6315
      %v7131 = vunpack.c.h.b16 %v6315
      %v7132 = vunpack.c.l.b16 %v6316
      %v7133 = vunpack.c.l.b16 %v6317
      %v7134 = vunpack.c.h.b16 %v6317
      %v7135 = vunpack.c.l.b16 %v6318
      %v7136 = vunpack.c.l.b16 %v6319
      %v7137 = vunpack.c.h.b16 %v6319
      %v7138 = vunpack.c.l.b16 %v6320
      %v7139 = vunpack.c.l.b16 %v6321
      %v7140 = vunpack.c.h.b16 %v6321
      %v7141 = vunpack.c.l.b16 %v6322
      %v7142 = vunpack.c.l.b16 %v6323
      %v7143 = vunpack.c.h.b16 %v6323
      %v7144 = vunpack.c.l.b16 %v6324
      %v7145 = vunpack.c.l.b16 %v6325
      %v7146 = vunpack.c.h.b16 %v6325
      %v7147 = vunpack.c.l.b16 %v6326
      %v7148 = vunpack.c.l.b16 %v6327
      %v7149 = vunpack.c.h.b16 %v6327
      %v7150 = vunpack.c.l.b16 %v6328
      %v7151 = vunpack.c.l.b16 %v6329
      %v7152 = vunpack.c.h.b16 %v6329
      %v7153 = vunpack.c.l.b16 %v6330
      %v7154 = vunpack.c.l.b16 %v6331
      %v7155 = vunpack.c.h.b16 %v6331
      %v7156 = vunpack.c.l.b16 %v6332
      %v7157 = vunpack.c.l.b16 %v6333
      %v7158 = vunpack.c.h.b16 %v6333
      %v7159 = vunpack.c.l.b16 %v6334
      %v7160 = vunpack.c.l.b16 %v6335
      %v7161 = vunpack.c.h.b16 %v6335
      %v7162 = vunpack.c.l.b16 %v6336
      %v7163 = vunpack.c.l.b16 %v6337
      %v7164 = vunpack.c.h.b16 %v6337
      %v7165 = vunpack.c.l.b16 %v6338
      %v7166 = vunpack.c.l.b16 %v6339
      %v7167 = vunpack.c.h.b16 %v6339
      %v7168 = vunpack.c.l.b16 %v6340
      %v7169 = vunpack.c.l.b16 %v6341
      %v7170 = vunpack.c.h.b16 %v6341
      %v7171 = vunpack.c.l.b16 %v6342
      %v7172 = vunpack.c.l.b16 %v6343
      %v7173 = vunpack.c.h.b16 %v6343
      %v7174 = vunpack.c.l.b16 %v6344
      %v7175 = vunpack.c.l.b16 %v6345
      %v7176 = vunpack.c.h.b16 %v6345
      %v7177 = vunpack.c.l.b16 %v6346
      %v7178 = vunpack.c.l.b16 %v6347
      %v7179 = vunpack.c.h.b16 %v6347
      %v7180 = vunpack.c.l.b16 %v6348
      %v7181 = vunpack.c.l.b16 %v6349
      %v7182 = vunpack.c.h.b16 %v6349
      %v7183 = vunpack.c.l.b16 %v6350
      %v7184 = vunpack.c.l.b16 %v6351
      %v7185 = vunpack.c.h.b16 %v6351
      %v7186 = vunpack.c.l.b16 %v6352
      %v7187 = vunpack.c.l.b16 %v6353
      %v7188 = vunpack.c.h.b16 %v6353
      %v7189 = vunpack.c.l.b16 %v6354
      %v7190 = vunpack.c.l.b16 %v6355
      %v7191 = vunpack.c.h.b16 %v6355
      %v7192 = vunpack.c.l.b16 %v6356
      %v7193 = vunpack.c.l.b16 %v6357
      %v7194 = vunpack.c.h.b16 %v6357
      %v7195 = vunpack.c.l.b16 %v6358
      %v7196 = vunpack.c.l.b16 %v6359
      %v7197 = vunpack.c.h.b16 %v6359
      %v7198 = vunpack.c.l.b16 %v6360
      %v7199 = vunpack.c.l.b16 %v6361
      %v7200 = vunpack.c.h.b16 %v6361
      %v7201 = vunpack.c.l.b16 %v6362
      %v7202 = vunpack.c.l.b16 %v6363
      %v7203 = vunpack.c.h.b16 %v6363
      %v7204 = vunpack.c.l.b16 %v6364
      %v7205 = vunpack.c.l.b16 %v6365
      %v7206 = vunpack.c.h.b16 %v6365
      %v7207 = vunpack.c.l.b16 %v6366
      %v7208 = vunpack.c.l.b16 %v6367
      %v7209 = vunpack.c.h.b16 %v6367
      %v7210 = vunpack.c.l.b16 %v6368
      %v7211 = vunpack.c.l.b16 %v6369
      %v7212 = vunpack.c.h.b16 %v6369
      %v7213 = vunpack.c.l.b16 %v6370
      %v7214 = vunpack.c.l.b16 %v6371
      %v7215 = vunpack.c.h.b16 %v6371
      %v7216 = vunpack.c.l.b16 %v6372
      %v7217 = vunpack.c.l.b16 %v6373
      %v7218 = vunpack.c.h.b16 %v6373
      %v7219 = vunpack.c.l.b16 %v6374
      %v7220 = vunpack.c.l.b16 %v6375
      %v7221 = vunpack.c.h.b16 %v6375
      %v7222 = vunpack.c.l.b16 %v6376
      %v7223 = vunpack.c.l.b16 %v6377
      %v7224 = vunpack.c.h.b16 %v6377
      %v7225 = vunpack.c.l.b16 %v6378
      %v7226 = vunpack.c.l.b16 %v6379
      %v7227 = vunpack.c.h.b16 %v6379
      %v7228 = vunpack.c.l.b16 %v6380
      %v7229 = vunpack.c.l.b16 %v6381
      %v7230 = vunpack.c.h.b16 %v6381
      %v7231 = vunpack.c.l.b16 %v6382
      %v7232 = vunpack.c.l.b16 %v6383
      %v7233 = vunpack.c.h.b16 %v6383
      %v7234 = vunpack.c.l.b16 %v6384
      %v7235 = vunpack.c.l.b16 %v6385
      %v7236 = vunpack.c.h.b16 %v6385
      %v7237 = vunpack.c.l.b16 %v6386
      %v7238 = vunpack.c.l.b16 %v6387
      %v7239 = vunpack.c.h.b16 %v6387
      %v7240 = vunpack.c.l.b16 %v6388
      %v7241 = vunpack.c.l.b16 %v6389
      %v7242 = vunpack.c.h.b16 %v6389
      %v7243 = vunpack.c.l.b16 %v6390
      %v7244 = vunpack.c.l.b16 %v6391
      %v7245 = vunpack.c.h.b16 %v6391
      %v7246 = vunpack.c.l.b16 %v6392
      %v7247 = vunpack.c.l.b16 %v6393
      %v7248 = vunpack.c.h.b16 %v6393
      %v7249 = vunpack.c.l.b16 %v6394
      %v7250 = vunpack.c.l.b16 %v6395
      %v7251 = vunpack.c.h.b16 %v6395
      %v7252 = vunpack.c.l.b16 %v6396
      %v7253 = vunpack.c.l.b16 %v6397
      %v7254 = vunpack.c.h.b16 %v6397
      %v7255 = vunpack.c.l.b16 %v6398
      %v7256 = vunpack.c.l.b16 %v6399
      %v7257 = vunpack.c.h.b16 %v6399
      %v7258 = vunpack.c.l.b16 %v6400
      %v7259 = vunpack.c.l.b16 %v6401
      %v7260 = vunpack.c.h.b16 %v6401
      %v7261 = vunpack.c.l.b16 %v6402
      %v7262 = vunpack.c.l.b16 %v6403
      %v7263 = vunpack.c.h.b16 %v6403
      %v7264 = vunpack.c.l.b16 %v6404
      %v7265 = vunpack.c.l.b16 %v6405
      %v7266 = vunpack.c.h.b16 %v6405
      %v7267 = vunpack.c.l.b16 %v6406
      %v7268 = vunpack.c.l.b16 %v6407
      %v7269 = vunpack.c.h.b16 %v6407
      %v7270 = vunpack.c.l.b16 %v6408
      %v7271 = vunpack.c.l.b16 %v6409
      %v7272 = vunpack.c.h.b16 %v6409
      %v7273 = vunpack.c.l.b16 %v6410
      %v7274 = vunpack.c.l.b16 %v6411
      %v7275 = vunpack.c.h.b16 %v6411
      %v7276 = vunpack.c.l.b16 %v6412
      %v7277 = vunpack.c.l.b16 %v6413
      %v7278 = vunpack.c.h.b16 %v6413
      %v7279 = vunpack.c.l.b16 %v6414
      %v7280 = vunpack.c.l.b16 %v6415
      %v7281 = vunpack.c.h.b16 %v6415
      %v7282 = vunpack.c.l.b16 %v6416
      %v7283 = vunpack.c.l.b16 %v6417
      %v7284 = vunpack.c.h.b16 %v6417
      %v7285 = vunpack.c.l.b16 %v6418
      %v7286 = vunpack.c.l.b16 %v6419
      %v7287 = vunpack.c.h.b16 %v6419
      %v7288 = vunpack.c.l.b16 %v6420
      %v7289 = vunpack.c.l.b16 %v6421
      %v7290 = vunpack.c.h.b16 %v6421
      %v7291 = vunpack.c.l.b16 %v6422
      %v7292 = vunpack.c.l.b16 %v6423
      %v7293 = vunpack.c.h.b16 %v6423
      %v7294 = vunpack.c.l.b16 %v6424
      %v7295 = vunpack.c.l.b16 %v6425
      %v7296 = vunpack.c.h.b16 %v6425
      %v7297 = vunpack.c.l.b16 %v6426
      %v7298 = vunpack.c.l.b16 %v6427
      %v7299 = vunpack.c.h.b16 %v6427
      %v7300 = vunpack.c.l.b16 %v6428
      %v7301 = vunpack.c.l.b16 %v6429
      %v7302 = vunpack.c.h.b16 %v6429
      %v7303 = vunpack.c.l.b16 %v6430
      %v7304 = vunpack.c.l.b16 %v6431
      %v7305 = vunpack.c.h.b16 %v6431
      %v7306 = vunpack.c.l.b16 %v6432
      %v7307 = vunpack.c.l.b16 %v6433
      %v7308 = vunpack.c.h.b16 %v6433
      %v7309 = vunpack.c.l.b16 %v6434
      %v7310 = vunpack.c.l.b16 %v6435
      %v7311 = vunpack.c.h.b16 %v6435
      %v7312 = vunpack.c.l.b16 %v6436
      %v7313 = vunpack.c.l.b16 %v6437
      %v7314 = vunpack.c.h.b16 %v6437
      %v7315 = vunpack.c.l.b16 %v6438
      %v7316 = vunpack.c.l.b16 %v6439
      %v7317 = vunpack.c.h.b16 %v6439
      %v7318 = vunpack.c.l.b16 %v6440
      %v7319 = vunpack.c.l.b16 %v6441
      %v7320 = vunpack.c.h.b16 %v6441
      %v7321 = vunpack.c.l.b16 %v6442
      %v7322 = vunpack.c.l.b16 %v6443
      %v7323 = vunpack.c.h.b16 %v6443
      %v7324 = vunpack.c.l.b16 %v6444
      %v7325 = vunpack.c.l.b16 %v6445
      %v7326 = vunpack.c.h.b16 %v6445
      %v7327 = vunpack.c.l.b16 %v6446
      %v7328 = vunpack.c.l.b16 %v6447
      %v7329 = vunpack.c.h.b16 %v6447
      %v7330 = vunpack.c.l.b16 %v6448
      %v7331 = vunpack.c.l.b16 %v6449
      %v7332 = vunpack.c.h.b16 %v6449
      %v7333 = vunpack.c.l.b16 %v6450
      %v7334 = vunpack.c.l.b16 %v6451
      %v7335 = vunpack.c.h.b16 %v6451
      %v7336 = vunpack.c.l.b16 %v6452
      %v7337 = vunpack.c.l.b16 %v6453
      %v7338 = vunpack.c.h.b16 %v6453
      %v7339 = vunpack.c.l.b16 %v6454
      %v7340 = vunpack.c.l.b16 %v6455
      %v7341 = vunpack.c.h.b16 %v6455
      %v7342 = vunpack.c.l.b16 %v6456
      %v7343 = vunpack.c.l.b16 %v6457
      %v7344 = vunpack.c.h.b16 %v6457
      %v7345 = vunpack.c.l.b16 %v6458
      %v7346 = vunpack.c.l.b16 %v6459
      %v7347 = vunpack.c.h.b16 %v6459
      %v7348 = vunpack.c.l.b16 %v6460
      %v7349 = vunpack.c.l.b16 %v6461
      %v7350 = vunpack.c.h.b16 %v6461
      %v7351 = vunpack.c.l.b16 %v6462
      %v7352 = vunpack.c.l.b16 %v6463
      %v7353 = vunpack.c.h.b16 %v6463
      %v7354 = vunpack.c.l.b16 %v6464
      %v7355 = vunpack.c.l.b16 %v6465
      %v7356 = vunpack.c.h.b16 %v6465
      %v7357 = vunpack.c.l.b16 %v6466
      %v7358 = vunpack.c.l.b16 %v6467
      %v7359 = vunpack.c.h.b16 %v6467
      %v7360 = vunpack.c.l.b16 %v6468
      %v7361 = vunpack.c.l.b16 %v6469
      %v7362 = vunpack.c.h.b16 %v6469
      %v7363 = vunpack.c.l.b16 %v6470
      %v7364 = vunpack.c.l.b16 %v6471
      %v7365 = vunpack.c.h.b16 %v6471
      %v7366 = vunpack.c.l.b16 %v6472
      %v7367 = vunpack.c.l.b16 %v6473
      %v7368 = vunpack.c.h.b16 %v6473
      %v7369 = vunpack.c.l.b16 %v6474
      %v7370 = vunpack.c.l.b16 %v6475
      %v7371 = vunpack.c.h.b16 %v6475
      %v7372 = vunpack.c.l.b16 %v6476
      %v7373 = vunpack.c.l.b16 %v6477
      %v7374 = vunpack.c.h.b16 %v6477
      %v7375 = vunpack.c.l.b16 %v6478
      %v7376 = vunpack.c.l.b16 %v6479
      %v7377 = vunpack.c.h.b16 %v6479
      %v7378 = vunpack.c.l.b16 %v6480
      %v7379 = vunpack.c.l.b16 %v6481
      %v7380 = vunpack.c.h.b16 %v6481
      %v7381 = vunpack.c.l.b16 %v6482
      %v7382 = vunpack.c.l.b16 %v6483
      %v7383 = vunpack.c.h.b16 %v6483
      %v7384 = vunpack.c.l.b16 %v6484
      %v7385 = vunpack.c.l.b16 %v6485
      %v7386 = vunpack.c.h.b16 %v6485
      %v7387 = vunpack.c.l.b16 %v6486
      %v7388 = vunpack.c.l.b16 %v6487
      %v7389 = vunpack.c.h.b16 %v6487
      %v7390 = vunpack.c.l.b16 %v6488
      %v7391 = vunpack.c.l.b16 %v6489
      %v7392 = vunpack.c.h.b16 %v6489
      %v7393 = vunpack.c.l.b16 %v6490
      %v7394 = vunpack.c.l.b16 %v6491
      %v7395 = vunpack.c.h.b16 %v6491
      %v7396 = vunpack.c.l.b16 %v6492
      %v7397 = vunpack.c.l.b16 %v6493
      %v7398 = vunpack.c.h.b16 %v6493
      %v7399 = vunpack.c.l.b16 %v6494
      %v7400 = vunpack.c.l.b16 %v6495
      %v7401 = vunpack.c.h.b16 %v6495
      %v7402 = vunpack.c.l.b16 %v6496
      %v7403 = vunpack.c.l.b16 %v6497
      %v7404 = vunpack.c.h.b16 %v6497
      %v7405 = vunpack.c.l.b16 %v6498
      %v7406 = vunpack.c.l.b16 %v6499
      %v7407 = vunpack.c.h.b16 %v6499
      %v7408 = vunpack.c.l.b16 %v6500
      %v7409 = vunpack.c.l.b16 %v6501
      %v7410 = vunpack.c.h.b16 %v6501
      %v7411 = vunpack.c.l.b16 %v6502
      %v7412 = vunpack.c.l.b16 %v6503
      %v7413 = vunpack.c.h.b16 %v6503
      %v7414 = vunpack.c.l.b16 %v6504
      %v7415 = vunpack.c.l.b16 %v6505
      %v7416 = vunpack.c.h.b16 %v6505
      %v7417 = vunpack.c.l.b16 %v6506
      %v7418 = vunpack.c.l.b16 %v6507
      %v7419 = vunpack.c.h.b16 %v6507
      %v7420 = vunpack.c.l.b16 %v6508
      %v7421 = vunpack.c.l.b16 %v6509
      %v7422 = vunpack.c.h.b16 %v6509
      %v7423 = vunpack.c.l.b16 %v6510
      %v7424 = vunpack.c.l.b16 %v6511
      %v7425 = vunpack.c.h.b16 %v6511
      %v7426 = vunpack.c.l.b16 %v6512
      %v7427 = vunpack.c.l.b16 %v6513
      %v7428 = vunpack.c.h.b16 %v6513
      %v7429 = vunpack.c.l.b16 %v6514
      %v7430 = vunpack.c.l.b16 %v6515
      %v7431 = vunpack.c.h.b16 %v6515
      %v7432 = vunpack.c.l.b16 %v6516
      %v7433 = vunpack.c.l.b16 %v6517
      %v7434 = vunpack.c.h.b16 %v6517
      %v7435 = vunpack.c.l.b16 %v6518
      %v7436 = vunpack.c.l.b16 %v6519
      %v7437 = vunpack.c.h.b16 %v6519
      %v7438 = vunpack.c.l.b16 %v6520
      %v7439 = vunpack.c.l.b16 %v6521
      %v7440 = vunpack.c.h.b16 %v6521
      %v7441 = vunpack.c.l.b16 %v6522
      %v7442 = vunpack.c.l.b16 %v6523
      %v7443 = vunpack.c.h.b16 %v6523
      %v7444 = vunpack.c.l.b16 %v6524
      %v7445 = vunpack.c.l.b16 %v6525
      %v7446 = vunpack.c.h.b16 %v6525
      %v7447 = vunpack.c.l.b16 %v6526
      %v7448 = vunpack.c.l.b16 %v6527
      %v7449 = vunpack.c.h.b16 %v6527
      %v7450 = vunpack.c.l.b16 %v6528
      %v7451 = vunpack.c.l.b16 %v6529
      %v7452 = vunpack.c.h.b16 %v6529
      %v7453 = vunpack.c.l.b16 %v6530
      %v7454 = vunpack.c.l.b16 %v6531
      %v7455 = vunpack.c.h.b16 %v6531
      %v7456 = vunpack.c.l.b16 %v6532
      %v7457 = vunpack.c.l.b16 %v6533
      %v7458 = vunpack.c.h.b16 %v6533
      %v7459 = vunpack.c.l.b16 %v6534
      %v7460 = vunpack.c.l.b16 %v6535
      %v7461 = vunpack.c.h.b16 %v6535
      %v7462 = vunpack.c.l.b16 %v6536
      %v7463 = vunpack.c.l.b16 %v6537
      %v7464 = vunpack.c.h.b16 %v6537
      %v7465 = vunpack.c.l.b16 %v6538
      %v7466 = vunpack.c.l.b16 %v6539
      %v7467 = vunpack.c.h.b16 %v6539
      %v7468 = vunpack.c.l.b16 %v6540
      %v7469 = vunpack.c.l.b16 %v6541
      %v7470 = vunpack.c.h.b16 %v6541
      %v7471 = vunpack.c.l.b16 %v6542
      %v7472 = vunpack.c.l.b16 %v6543
      %v7473 = vunpack.c.h.b16 %v6543
      %v7474 = vunpack.c.l.b16 %v6544
      %v7475 = vunpack.c.l.b16 %v6545
      %v7476 = vunpack.c.h.b16 %v6545
      %v7477 = vunpack.c.l.b16 %v6546
      %v7478 = vunpack.c.l.b16 %v6547
      %v7479 = vunpack.c.h.b16 %v6547
      %v7480 = vunpack.c.l.b16 %v6548
      %v7481 = vunpack.c.l.b16 %v6549
      %v7482 = vunpack.c.h.b16 %v6549
      %v7483 = vunpack.c.l.b16 %v6550
      %v7484 = vunpack.c.l.b16 %v6551
      %v7485 = vunpack.c.h.b16 %v6551
      %v7486 = vunpack.c.l.b16 %v6552
      %v7487 = vunpack.c.l.b16 %v6553
      %v7488 = vunpack.c.h.b16 %v6553
      %v7489 = vunpack.c.l.b16 %v6554
      %v7490 = vunpack.c.l.b16 %v6555
      %v7491 = vunpack.c.h.b16 %v6555
      %v7492 = vunpack.c.l.b16 %v6556
      %v7493 = vunpack.c.l.b16 %v6557
      %v7494 = vunpack.c.h.b16 %v6557
      %v7495 = vunpack.c.l.b16 %v6558
      %v7496 = vunpack.c.l.b16 %v6559
      %v7497 = vunpack.c.h.b16 %v6559
      %v7498 = vunpack.c.l.b16 %v6560
      %v7499 = vunpack.c.l.b16 %v6561
      %v7500 = vunpack.c.h.b16 %v6561
      %v7501 = vunpack.c.l.b16 %v6562
      %v7502 = vunpack.c.l.b16 %v6563
      %v7503 = vunpack.c.h.b16 %v6563
      %v7504 = vunpack.c.l.b16 %v6564
      %v7505 = vunpack.c.l.b16 %v6565
      %v7506 = vunpack.c.h.b16 %v6565
      %v7507 = vunpack.c.l.b16 %v6566
      %v7508 = vunpack.c.l.b16 %v6567
      %v7509 = vunpack.c.h.b16 %v6567
      %v7510 = vunpack.c.l.b16 %v6568
      %v7511 = vunpack.c.l.b16 %v6569
      %v7512 = vunpack.c.h.b16 %v6569
      %v7513 = vunpack.c.l.b16 %v6570
      %v7514 = vunpack.c.l.b16 %v6571
      %v7515 = vunpack.c.h.b16 %v6571
      %v7516 = vunpack.c.l.b16 %v6572
      %v7517 = vunpack.c.l.b16 %v6573
      %v7518 = vunpack.c.h.b16 %v6573
      %v7519 = vunpack.c.l.b16 %v6574
      %v7520 = vunpack.c.l.b16 %v6575
      %v7521 = vunpack.c.h.b16 %v6575
      %v7522 = vunpack.c.l.b16 %v6576
      %v7523 = vunpack.c.l.b16 %v6577
      %v7524 = vunpack.c.h.b16 %v6577
      %v7525 = vunpack.c.l.b16 %v6578
      %v7526 = vunpack.c.l.b16 %v6579
      %v7527 = vunpack.c.h.b16 %v6579
      %v7528 = vunpack.c.l.b16 %v6580
      %v7529 = vunpack.c.l.b16 %v6581
      %v7530 = vunpack.c.h.b16 %v6581
      %v7531 = vunpack.c.l.b16 %v6582
      %v7532 = vunpack.c.l.b16 %v6583
      %v7533 = vunpack.c.h.b16 %v6583
      %v7534 = vunpack.c.l.b16 %v6584
      %v7535 = vunpack.c.l.b16 %v6585
      %v7536 = vunpack.c.h.b16 %v6585
      %v7537 = vunpack.c.l.b16 %v6586
      %v7538 = vunpack.c.l.b16 %v6587
      %v7539 = vunpack.c.h.b16 %v6587
      %v7540 = vunpack.c.l.b16 %v6588
      %v7541 = vunpack.c.l.b16 %v6589
      %v7542 = vunpack.c.h.b16 %v6589
      %v7543 = vunpack.c.l.b16 %v6590
      %v7544 = vunpack.c.l.b16 %v6591
      %v7545 = vunpack.c.h.b16 %v6591
      %v7546 = vunpack.c.l.b16 %v6592
      %v7547 = vunpack.c.l.b16 %v6593
      %v7548 = vunpack.c.h.b16 %v6593
      %v7549 = vunpack.c.l.b16 %v6594
      %v7550 = vunpack.c.l.b16 %v6595
      %v7551 = vunpack.c.h.b16 %v6595
      %v7552 = vunpack.c.l.b16 %v6596
      %v7553 = vunpack.c.l.b16 %v6597
      %v7554 = vunpack.c.h.b16 %v6597
      %v7555 = vunpack.c.l.b16 %v6598
      %v7556 = vunpack.c.l.b16 %v6599
      %v7557 = vunpack.c.h.b16 %v6599
      %v7558 = vunpack.c.l.b16 %v6600
      %v7559 = vunpack.c.l.b16 %v6601
      %v7560 = vunpack.c.h.b16 %v6601
      %v7561 = vunpack.c.l.b16 %v6602
      %v7562 = vunpack.c.l.b16 %v6603
      %v7563 = vunpack.c.h.b16 %v6603
      %v7564 = vunpack.c.l.b16 %v6604
      %v7565 = vunpack.c.l.b16 %v6605
      %v7566 = vunpack.c.h.b16 %v6605
      %v7567 = vunpack.c.l.b16 %v6606
      %v7568 = vunpack.c.l.b16 %v6607
      %v7569 = vunpack.c.h.b16 %v6607
      %v7570 = vunpack.c.l.b16 %v6608
      %v7571 = vunpack.c.l.b16 %v6609
      %v7572 = vunpack.c.h.b16 %v6609
      %v7573 = vunpack.c.l.b16 %v6610
      %v7574 = vunpack.c.l.b16 %v6611
      %v7575 = vunpack.c.h.b16 %v6611
      %v7576 = vunpack.c.l.b16 %v6612
      %v7577 = vunpack.c.l.b16 %v6613
      %v7578 = vunpack.c.h.b16 %v6613
      %v7579 = vunpack.c.l.b16 %v6614
      %v7580 = vunpack.c.l.b16 %v6615
      %v7581 = vunpack.c.h.b16 %v6615
      %v7582 = vunpack.c.l.b16 %v6616
      %v7583 = vunpack.c.l.b16 %v6617
      %v7584 = vunpack.c.h.b16 %v6617
      %v7585 = vunpack.c.l.b16 %v6618
      %v7586 = vunpack.c.l.b16 %v6619
      %v7587 = vunpack.c.h.b16 %v6619
      %v7588 = vunpack.c.l.b16 %v6620
      %v7589 = vunpack.c.l.b16 %v6621
      %v7590 = vunpack.c.h.b16 %v6621
      %v7591 = vunpack.c.l.b16 %v6622
      %v7592 = vunpack.c.l.b16 %v6623
      %v7593 = vunpack.c.h.b16 %v6623
      %v7594 = vunpack.c.l.b16 %v6624
      %v7595 = vunpack.c.l.b16 %v6625
      %v7596 = vunpack.c.h.b16 %v6625
      %v7597 = vunpack.c.l.b16 %v6626
      %v7598 = vunpack.c.l.b16 %v6627
      %v7599 = vunpack.c.h.b16 %v6627
      %v7600 = vunpack.c.l.b16 %v6628
      %v7601 = vunpack.c.l.b16 %v6629
      %v7602 = vunpack.c.h.b16 %v6629
      %v7603 = vunpack.c.l.b16 %v6630
      %v7604 = vunpack.c.l.b16 %v6631
      %v7605 = vunpack.c.h.b16 %v6631
      %v7606 = vunpack.c.l.b16 %v6632
      %v7607 = vunpack.c.l.b16 %v6633
      %v7608 = vunpack.c.h.b16 %v6633
      %v7609 = vunpack.c.l.b16 %v6634
      %v7610 = vunpack.c.l.b16 %v6635
      %v7611 = vunpack.c.h.b16 %v6635
      %v7612 = vunpack.c.l.b16 %v6636
      %v7613 = vunpack.c.l.b16 %v6637
      %v7614 = vunpack.c.h.b16 %v6637
      %v7615 = vunpack.c.l.b16 %v6638
      %v7616 = vpack.c.b16 %v7043, %v7040
      %v7617 = vpack.c.b16 %v7044, %v7041
      %v7618 = vpack.c.b16 %v7045, %v7042
      %v7619 = vpack.c.b16 %v7049, %v7046
      %v7620 = vpack.c.b16 %v7050, %v7047
      %v7621 = vpack.c.b16 %v7051, %v7048
      %v7622 = vpack.c.b16 %v7055, %v7052
      %v7623 = vpack.c.b16 %v7056, %v7053
      %v7624 = vpack.c.b16 %v7057, %v7054
      %v7625 = vpack.c.b16 %v7061, %v7058
      %v7626 = vpack.c.b16 %v7062, %v7059
      %v7627 = vpack.c.b16 %v7063, %v7060
      %v7628 = vpack.c.b16 %v7067, %v7064
      %v7629 = vpack.c.b16 %v7068, %v7065
      %v7630 = vpack.c.b16 %v7069, %v7066
      %v7631 = vpack.c.b16 %v7073, %v7070
      %v7632 = vpack.c.b16 %v7074, %v7071
      %v7633 = vpack.c.b16 %v7075, %v7072
      %v7634 = vpack.c.b16 %v7079, %v7076
      %v7635 = vpack.c.b16 %v7080, %v7077
      %v7636 = vpack.c.b16 %v7081, %v7078
      %v7637 = vpack.c.b16 %v7085, %v7082
      %v7638 = vpack.c.b16 %v7086, %v7083
      %v7639 = vpack.c.b16 %v7087, %v7084
      %v7640 = vpack.c.b16 %v7091, %v7088
      %v7641 = vpack.c.b16 %v7092, %v7089
      %v7642 = vpack.c.b16 %v7093, %v7090
      %v7643 = vpack.c.b16 %v7097, %v7094
      %v7644 = vpack.c.b16 %v7098, %v7095
      %v7645 = vpack.c.b16 %v7099, %v7096
      %v7646 = vpack.c.b16 %v7103, %v7100
      %v7647 = vpack.c.b16 %v7104, %v7101
      %v7648 = vpack.c.b16 %v7105, %v7102
      %v7649 = vpack.c.b16 %v7109, %v7106
      %v7650 = vpack.c.b16 %v7110, %v7107
      %v7651 = vpack.c.b16 %v7111, %v7108
      %v7652 = vpack.c.b16 %v7115, %v7112
      %v7653 = vpack.c.b16 %v7116, %v7113
      %v7654 = vpack.c.b16 %v7117, %v7114
      %v7655 = vpack.c.b16 %v7121, %v7118
      %v7656 = vpack.c.b16 %v7122, %v7119
      %v7657 = vpack.c.b16 %v7123, %v7120
      %v7658 = vpack.c.b16 %v7127, %v7124
      %v7659 = vpack.c.b16 %v7128, %v7125
      %v7660 = vpack.c.b16 %v7129, %v7126
      %v7661 = vpack.c.b16 %v7133, %v7130
      %v7662 = vpack.c.b16 %v7134, %v7131
      %v7663 = vpack.c.b16 %v7135, %v7132
      %v7664 = vpack.c.b16 %v7139, %v7136
      %v7665 = vpack.c.b16 %v7140, %v7137
      %v7666 = vpack.c.b16 %v7141, %v7138
      %v7667 = vpack.c.b16 %v7145, %v7142
      %v7668 = vpack.c.b16 %v7146, %v7143
      %v7669 = vpack.c.b16 %v7147, %v7144
      %v7670 = vpack.c.b16 %v7151, %v7148
      %v7671 = vpack.c.b16 %v7152, %v7149
      %v7672 = vpack.c.b16 %v7153, %v7150
      %v7673 = vpack.c.b16 %v7157, %v7154
      %v7674 = vpack.c.b16 %v7158, %v7155
      %v7675 = vpack.c.b16 %v7159, %v7156
      %v7676 = vpack.c.b16 %v7163, %v7160
      %v7677 = vpack.c.b16 %v7164, %v7161
      %v7678 = vpack.c.b16 %v7165, %v7162
      %v7679 = vpack.c.b16 %v7169, %v7166
      %v7680 = vpack.c.b16 %v7170, %v7167
      %v7681 = vpack.c.b16 %v7171, %v7168
      %v7682 = vpack.c.b16 %v7175, %v7172
      %v7683 = vpack.c.b16 %v7176, %v7173
      %v7684 = vpack.c.b16 %v7177, %v7174
      %v7685 = vpack.c.b16 %v7181, %v7178
      %v7686 = vpack.c.b16 %v7182, %v7179
      %v7687 = vpack.c.b16 %v7183, %v7180
      %v7688 = vpack.c.b16 %v7187, %v7184
      %v7689 = vpack.c.b16 %v7188, %v7185
      %v7690 = vpack.c.b16 %v7189, %v7186
      %v7691 = vpack.c.b16 %v7193, %v7190
      %v7692 = vpack.c.b16 %v7194, %v7191
      %v7693 = vpack.c.b16 %v7195, %v7192
      %v7694 = vpack.c.b16 %v7199, %v7196
      %v7695 = vpack.c.b16 %v7200, %v7197
      %v7696 = vpack.c.b16 %v7201, %v7198
      %v7697 = vpack.c.b16 %v7205, %v7202
      %v7698 = vpack.c.b16 %v7206, %v7203
      %v7699 = vpack.c.b16 %v7207, %v7204
      %v7700 = vpack.c.b16 %v7211, %v7208
      %v7701 = vpack.c.b16 %v7212, %v7209
      %v7702 = vpack.c.b16 %v7213, %v7210
      %v7703 = vpack.c.b16 %v7217, %v7214
      %v7704 = vpack.c.b16 %v7218, %v7215
      %v7705 = vpack.c.b16 %v7219, %v7216
      %v7706 = vpack.c.b16 %v7223, %v7220
      %v7707 = vpack.c.b16 %v7224, %v7221
      %v7708 = vpack.c.b16 %v7225, %v7222
      %v7709 = vpack.c.b16 %v7229, %v7226
      %v7710 = vpack.c.b16 %v7230, %v7227
      %v7711 = vpack.c.b16 %v7231, %v7228
      %v7712 = vpack.c.b16 %v7235, %v7232
      %v7713 = vpack.c.b16 %v7236, %v7233
      %v7714 = vpack.c.b16 %v7237, %v7234
      %v7715 = vpack.c.b16 %v7241, %v7238
      %v7716 = vpack.c.b16 %v7242, %v7239
      %v7717 = vpack.c.b16 %v7243, %v7240
      %v7718 = vpack.c.b16 %v7247, %v7244
      %v7719 = vpack.c.b16 %v7248, %v7245
      %v7720 = vpack.c.b16 %v7249, %v7246
      %v7721 = vpack.c.b16 %v7253, %v7250
      %v7722 = vpack.c.b16 %v7254, %v7251
      %v7723 = vpack.c.b16 %v7255, %v7252
      %v7724 = vpack.c.b16 %v7259, %v7256
      %v7725 = vpack.c.b16 %v7260, %v7257
      %v7726 = vpack.c.b16 %v7261, %v7258
      %v7727 = vpack.c.b16 %v7265, %v7262
      %v7728 = vpack.c.b16 %v7266, %v7263
      %v7729 = vpack.c.b16 %v7267, %v7264
      %v7730 = vpack.c.b16 %v7271, %v7268
      %v7731 = vpack.c.b16 %v7272, %v7269
      %v7732 = vpack.c.b16 %v7273, %v7270
      %v7733 = vpack.c.b16 %v7277, %v7274
      %v7734 = vpack.c.b16 %v7278, %v7275
      %v7735 = vpack.c.b16 %v7279, %v7276
      %v7736 = vpack.c.b16 %v7283, %v7280
      %v7737 = vpack.c.b16 %v7284, %v7281
      %v7738 = vpack.c.b16 %v7285, %v7282
      %v7739 = vpack.c.b16 %v7289, %v7286
      %v7740 = vpack.c.b16 %v7290, %v7287
      %v7741 = vpack.c.b16 %v7291, %v7288
      %v7742 = vpack.c.b16 %v7295, %v7292
      %v7743 = vpack.c.b16 %v7296, %v7293
      %v7744 = vpack.c.b16 %v7297, %v7294
      %v7745 = vpack.c.b16 %v7301, %v7298
      %v7746 = vpack.c.b16 %v7302, %v7299
      %v7747 = vpack.c.b16 %v7303, %v7300
      %v7748 = vpack.c.b16 %v7307, %v7304
      %v7749 = vpack.c.b16 %v7308, %v7305
      %v7750 = vpack.c.b16 %v7309, %v7306
      %v7751 = vpack.c.b16 %v7313, %v7310
      %v7752 = vpack.c.b16 %v7314, %v7311
      %v7753 = vpack.c.b16 %v7315, %v7312
      %v7754 = vpack.c.b16 %v7319, %v7316
      %v7755 = vpack.c.b16 %v7320, %v7317
      %v7756 = vpack.c.b16 %v7321, %v7318
      %v7757 = vpack.c.b16 %v7325, %v7322
      %v7758 = vpack.c.b16 %v7326, %v7323
      %v7759 = vpack.c.b16 %v7327, %v7324
      %v7760 = vpack.c.b16 %v7331, %v7328
      %v7761 = vpack.c.b16 %v7332, %v7329
      %v7762 = vpack.c.b16 %v7333, %v7330
      %v7763 = vpack.c.b16 %v7337, %v7334
      %v7764 = vpack.c.b16 %v7338, %v7335
      %v7765 = vpack.c.b16 %v7339, %v7336
      %v7766 = vpack.c.b16 %v7343, %v7340
      %v7767 = vpack.c.b16 %v7344, %v7341
      %v7768 = vpack.c.b16 %v7345, %v7342
      %v7769 = vpack.c.b16 %v7349, %v7346
      %v7770 = vpack.c.b16 %v7350, %v7347
      %v7771 = vpack.c.b16 %v7351, %v7348
      %v7772 = vpack.c.b16 %v7355, %v7352
      %v7773 = vpack.c.b16 %v7356, %v7353
      %v7774 = vpack.c.b16 %v7357, %v7354
      %v7775 = vpack.c.b16 %v7361, %v7358
      %v7776 = vpack.c.b16 %v7362, %v7359
      %v7777 = vpack.c.b16 %v7363, %v7360
      %v7778 = vpack.c.b16 %v7367, %v7364
      %v7779 = vpack.c.b16 %v7368, %v7365
      %v7780 = vpack.c.b16 %v7369, %v7366
      %v7781 = vpack.c.b16 %v7373, %v7370
      %v7782 = vpack.c.b16 %v7374, %v7371
      %v7783 = vpack.c.b16 %v7375, %v7372
      %v7784 = vpack.c.b16 %v7379, %v7376
      %v7785 = vpack.c.b16 %v7380, %v7377
      %v7786 = vpack.c.b16 %v7381, %v7378
      %v7787 = vpack.c.b16 %v7385, %v7382
      %v7788 = vpack.c.b16 %v7386, %v7383
      %v7789 = vpack.c.b16 %v7387, %v7384
      %v7790 = vpack.c.b16 %v7391, %v7388
      %v7791 = vpack.c.b16 %v7392, %v7389
      %v7792 = vpack.c.b16 %v7393, %v7390
      %v7793 = vpack.c.b16 %v7397, %v7394
      %v7794 = vpack.c.b16 %v7398, %v7395
      %v7795 = vpack.c.b16 %v7399, %v7396
      %v7796 = vpack.c.b16 %v7403, %v7400
      %v7797 = vpack.c.b16 %v7404, %v7401
      %v7798 = vpack.c.b16 %v7405, %v7402
      %v7799 = vpack.c.b16 %v7409, %v7406
      %v7800 = vpack.c.b16 %v7410, %v7407
      %v7801 = vpack.c.b16 %v7411, %v7408
      %v7802 = vpack.c.b16 %v7415, %v7412
      %v7803 = vpack.c.b16 %v7416, %v7413
      %v7804 = vpack.c.b16 %v7417, %v7414
      %v7805 = vpack.c.b16 %v7421, %v7418
      %v7806 = vpack.c.b16 %v7422, %v7419
      %v7807 = vpack.c.b16 %v7423, %v7420
      %v7808 = vpack.c.b16 %v7427, %v7424
      %v7809 = vpack.c.b16 %v7428, %v7425
      %v7810 = vpack.c.b16 %v7429, %v7426
      %v7811 = vpack.c.b16 %v7433, %v7430
      %v7812 = vpack.c.b16 %v7434, %v7431
      %v7813 = vpack.c.b16 %v7435, %v7432
      %v7814 = vpack.c.b16 %v7439, %v7436
      %v7815 = vpack.c.b16 %v7440, %v7437
      %v7816 = vpack.c.b16 %v7441, %v7438
      %v7817 = vpack.c.b16 %v7445, %v7442
      %v7818 = vpack.c.b16 %v7446, %v7443
      %v7819 = vpack.c.b16 %v7447, %v7444
      %v7820 = vpack.c.b16 %v7451, %v7448
      %v7821 = vpack.c.b16 %v7452, %v7449
      %v7822 = vpack.c.b16 %v7453, %v7450
      %v7823 = vpack.c.b16 %v7457, %v7454
      %v7824 = vpack.c.b16 %v7458, %v7455
      %v7825 = vpack.c.b16 %v7459, %v7456
      %v7826 = vpack.c.b16 %v7463, %v7460
      %v7827 = vpack.c.b16 %v7464, %v7461
      %v7828 = vpack.c.b16 %v7465, %v7462
      %v7829 = vpack.c.b16 %v7469, %v7466
      %v7830 = vpack.c.b16 %v7470, %v7467
      %v7831 = vpack.c.b16 %v7471, %v7468
      %v7832 = vpack.c.b16 %v7475, %v7472
      %v7833 = vpack.c.b16 %v7476, %v7473
      %v7834 = vpack.c.b16 %v7477, %v7474
      %v7835 = vpack.c.b16 %v7481, %v7478
      %v7836 = vpack.c.b16 %v7482, %v7479
      %v7837 = vpack.c.b16 %v7483, %v7480
      %v7838 = vpack.c.b16 %v7487, %v7484
      %v7839 = vpack.c.b16 %v7488, %v7485
      %v7840 = vpack.c.b16 %v7489, %v7486
      %v7841 = vpack.c.b16 %v7493, %v7490
      %v7842 = vpack.c.b16 %v7494, %v7491
      %v7843 = vpack.c.b16 %v7495, %v7492
      %v7844 = vpack.c.b16 %v7499, %v7496
      %v7845 = vpack.c.b16 %v7500, %v7497
      %v7846 = vpack.c.b16 %v7501, %v7498
      %v7847 = vpack.c.b16 %v7505, %v7502
      %v7848 = vpack.c.b16 %v7506, %v7503
      %v7849 = vpack.c.b16 %v7507, %v7504
      %v7850 = vpack.c.b16 %v7511, %v7508
      %v7851 = vpack.c.b16 %v7512, %v7509
      %v7852 = vpack.c.b16 %v7513, %v7510
      %v7853 = vpack.c.b16 %v7517, %v7514
      %v7854 = vpack.c.b16 %v7518, %v7515
      %v7855 = vpack.c.b16 %v7519, %v7516
      %v7856 = vpack.c.b16 %v7523, %v7520
      %v7857 = vpack.c.b16 %v7524, %v7521
      %v7858 = vpack.c.b16 %v7525, %v7522
      %v7859 = vpack.c.b16 %v7529, %v7526
      %v7860 = vpack.c.b16 %v7530, %v7527
      %v7861 = vpack.c.b16 %v7531, %v7528
      %v7862 = vpack.c.b16 %v7535, %v7532
      %v7863 = vpack.c.b16 %v7536, %v7533
      %v7864 = vpack.c.b16 %v7537, %v7534
      %v7865 = vpack.c.b16 %v7541, %v7538
      %v7866 = vpack.c.b16 %v7542, %v7539
      %v7867 = vpack.c.b16 %v7543, %v7540
      %v7868 = vpack.c.b16 %v7547, %v7544
      %v7869 = vpack.c.b16 %v7548, %v7545
      %v7870 = vpack.c.b16 %v7549, %v7546
      %v7871 = vpack.c.b16 %v7553, %v7550
      %v7872 = vpack.c.b16 %v7554, %v7551
      %v7873 = vpack.c.b16 %v7555, %v7552
      %v7874 = vpack.c.b16 %v7559, %v7556
      %v7875 = vpack.c.b16 %v7560, %v7557
      %v7876 = vpack.c.b16 %v7561, %v7558
      %v7877 = vpack.c.b16 %v7565, %v7562
      %v7878 = vpack.c.b16 %v7566, %v7563
      %v7879 = vpack.c.b16 %v7567, %v7564
      %v7880 = vpack.c.b16 %v7571, %v7568
      %v7881 = vpack.c.b16 %v7572, %v7569
      %v7882 = vpack.c.b16 %v7573, %v7570
      %v7883 = vpack.c.b16 %v7577, %v7574
      %v7884 = vpack.c.b16 %v7578, %v7575
      %v7885 = vpack.c.b16 %v7579, %v7576
      %v7886 = vpack.c.b16 %v7583, %v7580
      %v7887 = vpack.c.b16 %v7584, %v7581
      %v7888 = vpack.c.b16 %v7585, %v7582
      %v7889 = vpack.c.b16 %v7589, %v7586
      %v7890 = vpack.c.b16 %v7590, %v7587
      %v7891 = vpack.c.b16 %v7591, %v7588
      %v7892 = vpack.c.b16 %v7595, %v7592
      %v7893 = vpack.c.b16 %v7596, %v7593
      %v7894 = vpack.c.b16 %v7597, %v7594
      %v7895 = vpack.c.b16 %v7601, %v7598
      %v7896 = vpack.c.b16 %v7602, %v7599
      %v7897 = vpack.c.b16 %v7603, %v7600
      %v7898 = vpack.c.b16 %v7607, %v7604
      %v7899 = vpack.c.b16 %v7608, %v7605
      %v7900 = vpack.c.b16 %v7609, %v7606
      %v7901 = vpack.c.b16 %v7613, %v7610
      %v7902 = vpack.c.b16 %v7614, %v7611
      %v7903 = vpack.c.b16 %v7615, %v7612
      %8192 = vmatprep.subr.bf16.mxu0 %v7638
      %8193 = vmatpush1.bf16.msra.mxu0 %v7637
      %8194 = vmatprep.subr.bf16.mxu0 %v7635
      %8195 = vmatpush1.bf16.msra.mxu0 %v7634
      %8196 = vmatprep.subr.bf16.mxu0 %v7632
      %8197 = vmatpush1.bf16.msra.mxu0 %v7631
      %8198 = vmatprep.subr.bf16.mxu0 %v7629
      %8199 = vmatpush1.bf16.msra.mxu0 %v7628
      %8200 = vmatprep.subr.bf16.mxu0 %v7626
      %8201 = vmatpush1.bf16.msra.mxu0 %v7625
      %8202 = vmatprep.subr.bf16.mxu0 %v7623
      %8203 = vmatpush1.bf16.msra.mxu0 %v7622
      %8204 = vmatprep.subr.bf16.mxu0 %v7620
      %8205 = vmatpush1.bf16.msra.mxu0 %v7619
      %8206 = vmatprep.subr.bf16.mxu0 %v7617
      %8207 = vmatpush1.bf16.msra.mxu0 %v7616
      %8208 = vmatprep.subr.bf16.mxu0 %v7662
      %8209 = vmatpush2.bf16.msra.mxu0 %v7661
      %8210 = vmatprep.subr.bf16.mxu0 %v7659
      %8211 = vmatpush2.bf16.msra.mxu0 %v7658
      %8212 = vmatprep.subr.bf16.mxu0 %v7656
      %8213 = vmatpush2.bf16.msra.mxu0 %v7655
      %8214 = vmatprep.subr.bf16.mxu0 %v7653
      %8215 = vmatpush2.bf16.msra.mxu0 %v7652
      %8216 = vmatprep.subr.bf16.mxu0 %v7650
      %8217 = vmatpush2.bf16.msra.mxu0 %v7649
      %8218 = vmatprep.subr.bf16.mxu0 %v7647
      %8219 = vmatpush2.bf16.msra.mxu0 %v7646
      %8220 = vmatprep.subr.bf16.mxu0 %v7644
      %8221 = vmatpush2.bf16.msra.mxu0 %v7643
      %8222 = vmatprep.subr.bf16.mxu0 %v7641
      %8223 = vmatpush2.bf16.msra.mxu0 %v7640
      %8224 = vmatprep.mubr.bf16.mxu0 %v6244
      %8225 = vmatmul.mubr.bf16.gmra.mxu0 %v6243
      %v8226 = vpop.f32.mrf.mxu0
      %v8227 = vadd.f32 %v6644, %v8226
      %v8228 = vpop.f32.mrf.mxu0
      %v8229 = vadd.f32 %v6648, %v8228
      %v8230 = vpop.f32.mrf.mxu0
      %v8231 = vpop.f32.mrf.mxu0
      %8232 = vdwg.mxu0
      %8233 = vmatprep.subr.bf16.mxu0 %v7686
      %8234 = vmatpush1.bf16.msra.mxu0 %v7685
      %8235 = vmatprep.subr.bf16.mxu0 %v7683
      %8236 = vmatpush1.bf16.msra.mxu0 %v7682
      %8237 = vmatprep.subr.bf16.mxu0 %v7680
      %8238 = vmatpush1.bf16.msra.mxu0 %v7679
      %8239 = vmatprep.subr.bf16.mxu0 %v7677
      %8240 = vmatpush1.bf16.msra.mxu0 %v7676
      %8241 = vmatprep.subr.bf16.mxu0 %v7674
      %8242 = vmatpush1.bf16.msra.mxu0 %v7673
      %8243 = vmatprep.subr.bf16.mxu0 %v7671
      %8244 = vmatpush1.bf16.msra.mxu0 %v7670
      %8245 = vmatprep.subr.bf16.mxu0 %v7668
      %8246 = vmatpush1.bf16.msra.mxu0 %v7667
      %8247 = vmatprep.subr.bf16.mxu0 %v7665
      %8248 = vmatpush1.bf16.msra.mxu0 %v7664
      %8249 = vmatprep.subr.bf16.mxu0 %v7710
      %8250 = vmatpush2.bf16.msra.mxu0 %v7709
      %8251 = vmatprep.subr.bf16.mxu0 %v7707
      %8252 = vmatpush2.bf16.msra.mxu0 %v7706
      %8253 = vmatprep.subr.bf16.mxu0 %v7704
      %8254 = vmatpush2.bf16.msra.mxu0 %v7703
      %8255 = vmatprep.subr.bf16.mxu0 %v7701
      %8256 = vmatpush2.bf16.msra.mxu0 %v7700
      %8257 = vmatprep.subr.bf16.mxu0 %v7698
      %8258 = vmatpush2.bf16.msra.mxu0 %v7697
      %8259 = vmatprep.subr.bf16.mxu0 %v7695
      %8260 = vmatpush2.bf16.msra.mxu0 %v7694
      %8261 = vmatprep.subr.bf16.mxu0 %v7692
      %8262 = vmatpush2.bf16.msra.mxu0 %v7691
      %8263 = vmatprep.subr.bf16.mxu0 %v7689
      %8264 = vmatpush2.bf16.msra.mxu0 %v7688
      %8265 = vmatprep.mubr.bf16.mxu0 %v6246
      %8266 = vmatmul.mubr.bf16.gmra.mxu0 %v6245
      %v8267 = vpop.f32.mrf.mxu0
      %v8268 = vadd.f32 %v8227, %v8267
      %v8269 = vpop.f32.mrf.mxu0
      %v8270 = vadd.f32 %v8229, %v8269
      %v8271 = vpop.f32.mrf.mxu0
      %v8272 = vpop.f32.mrf.mxu0
      %8273 = vdwg.mxu0
      %8274 = vmatprep.subr.bf16.mxu0 %v7734
      %8275 = vmatpush1.bf16.msra.mxu0 %v7733
      %8276 = vmatprep.subr.bf16.mxu0 %v7731
      %8277 = vmatpush1.bf16.msra.mxu0 %v7730
      %8278 = vmatprep.subr.bf16.mxu0 %v7728
      %8279 = vmatpush1.bf16.msra.mxu0 %v7727
      %8280 = vmatprep.subr.bf16.mxu0 %v7725
      %8281 = vmatpush1.bf16.msra.mxu0 %v7724
      %8282 = vmatprep.subr.bf16.mxu0 %v7722
      %8283 = vmatpush1.bf16.msra.mxu0 %v7721
      %8284 = vmatprep.subr.bf16.mxu0 %v7719
      %8285 = vmatpush1.bf16.msra.mxu0 %v7718
      %8286 = vmatprep.subr.bf16.mxu0 %v7716
      %8287 = vmatpush1.bf16.msra.mxu0 %v7715
      %8288 = vmatprep.subr.bf16.mxu0 %v7713
      %8289 = vmatpush1.bf16.msra.mxu0 %v7712
      %8290 = vmatprep.subr.bf16.mxu0 %v7758
      %8291 = vmatpush2.bf16.msra.mxu0 %v7757
      %8292 = vmatprep.subr.bf16.mxu0 %v7755
      %8293 = vmatpush2.bf16.msra.mxu0 %v7754
      %8294 = vmatprep.subr.bf16.mxu0 %v7752
      %8295 = vmatpush2.bf16.msra.mxu0 %v7751
      %8296 = vmatprep.subr.bf16.mxu0 %v7749
      %8297 = vmatpush2.bf16.msra.mxu0 %v7748
      %8298 = vmatprep.subr.bf16.mxu0 %v7746
      %8299 = vmatpush2.bf16.msra.mxu0 %v7745
      %8300 = vmatprep.subr.bf16.mxu0 %v7743
      %8301 = vmatpush2.bf16.msra.mxu0 %v7742
      %8302 = vmatprep.subr.bf16.mxu0 %v7740
      %8303 = vmatpush2.bf16.msra.mxu0 %v7739
      %8304 = vmatprep.subr.bf16.mxu0 %v7737
      %8305 = vmatpush2.bf16.msra.mxu0 %v7736
      %8306 = vmatprep.mubr.bf16.mxu0 %v6248
      %8307 = vmatmul.mubr.bf16.gmra.mxu0 %v6247
      %v8308 = vpop.f32.mrf.mxu0
      %v8309 = vadd.f32 %v8268, %v8308
      %v8310 = vpop.f32.mrf.mxu0
      %v8311 = vadd.f32 %v8270, %v8310
      %v8312 = vpop.f32.mrf.mxu0
      %v8313 = vpop.f32.mrf.mxu0
      %8314 = vdwg.mxu0
      %8315 = vmatprep.subr.bf16.mxu0 %v7782
      %8316 = vmatpush1.bf16.msra.mxu0 %v7781
      %8317 = vmatprep.subr.bf16.mxu0 %v7779
      %8318 = vmatpush1.bf16.msra.mxu0 %v7778
      %8319 = vmatprep.subr.bf16.mxu0 %v7776
      %8320 = vmatpush1.bf16.msra.mxu0 %v7775
      %8321 = vmatprep.subr.bf16.mxu0 %v7773
      %8322 = vmatpush1.bf16.msra.mxu0 %v7772
      %8323 = vmatprep.subr.bf16.mxu0 %v7770
      %8324 = vmatpush1.bf16.msra.mxu0 %v7769
      %8325 = vmatprep.subr.bf16.mxu0 %v7767
      %8326 = vmatpush1.bf16.msra.mxu0 %v7766
      %8327 = vmatprep.subr.bf16.mxu0 %v7764
      %8328 = vmatpush1.bf16.msra.mxu0 %v7763
      %8329 = vmatprep.subr.bf16.mxu0 %v7761
      %8330 = vmatpush1.bf16.msra.mxu0 %v7760
      %8331 = vmatprep.subr.bf16.mxu0 %v7806
      %8332 = vmatpush2.bf16.msra.mxu0 %v7805
      %8333 = vmatprep.subr.bf16.mxu0 %v7803
      %8334 = vmatpush2.bf16.msra.mxu0 %v7802
      %8335 = vmatprep.subr.bf16.mxu0 %v7800
      %8336 = vmatpush2.bf16.msra.mxu0 %v7799
      %8337 = vmatprep.subr.bf16.mxu0 %v7797
      %8338 = vmatpush2.bf16.msra.mxu0 %v7796
      %8339 = vmatprep.subr.bf16.mxu0 %v7794
      %8340 = vmatpush2.bf16.msra.mxu0 %v7793
      %8341 = vmatprep.subr.bf16.mxu0 %v7791
      %8342 = vmatpush2.bf16.msra.mxu0 %v7790
      %8343 = vmatprep.subr.bf16.mxu0 %v7788
      %8344 = vmatpush2.bf16.msra.mxu0 %v7787
      %8345 = vmatprep.subr.bf16.mxu0 %v7785
      %8346 = vmatpush2.bf16.msra.mxu0 %v7784
      %8347 = vmatprep.mubr.bf16.mxu0 %v6250
      %8348 = vmatmul.mubr.bf16.gmra.mxu0 %v6249
      %v8349 = vpop.f32.mrf.mxu0
      %v8350 = vadd.f32 %v8309, %v8349
      %v8351 = vpop.f32.mrf.mxu0
      %v8352 = vadd.f32 %v8311, %v8351
      %v8353 = vpop.f32.mrf.mxu0
      %v8354 = vpop.f32.mrf.mxu0
      %8355 = vdwg.mxu0
      %8356 = vmatprep.subr.bf16.mxu0 %v7830
      %8357 = vmatpush1.bf16.msra.mxu0 %v7829
      %8358 = vmatprep.subr.bf16.mxu0 %v7827
      %8359 = vmatpush1.bf16.msra.mxu0 %v7826
      %8360 = vmatprep.subr.bf16.mxu0 %v7824
      %8361 = vmatpush1.bf16.msra.mxu0 %v7823
      %8362 = vmatprep.subr.bf16.mxu0 %v7821
      %8363 = vmatpush1.bf16.msra.mxu0 %v7820
      %8364 = vmatprep.subr.bf16.mxu0 %v7818
      %8365 = vmatpush1.bf16.msra.mxu0 %v7817
      %8366 = vmatprep.subr.bf16.mxu0 %v7815
      %8367 = vmatpush1.bf16.msra.mxu0 %v7814
      %8368 = vmatprep.subr.bf16.mxu0 %v7812
      %8369 = vmatpush1.bf16.msra.mxu0 %v7811
      %8370 = vmatprep.subr.bf16.mxu0 %v7809
      %8371 = vmatpush1.bf16.msra.mxu0 %v7808
      %8372 = vmatprep.subr.bf16.mxu0 %v7854
      %8373 = vmatpush2.bf16.msra.mxu0 %v7853
      %8374 = vmatprep.subr.bf16.mxu0 %v7851
      %8375 = vmatpush2.bf16.msra.mxu0 %v7850
      %8376 = vmatprep.subr.bf16.mxu0 %v7848
      %8377 = vmatpush2.bf16.msra.mxu0 %v7847
      %8378 = vmatprep.subr.bf16.mxu0 %v7845
      %8379 = vmatpush2.bf16.msra.mxu0 %v7844
      %8380 = vmatprep.subr.bf16.mxu0 %v7842
      %8381 = vmatpush2.bf16.msra.mxu0 %v7841
      %8382 = vmatprep.subr.bf16.mxu0 %v7839
      %8383 = vmatpush2.bf16.msra.mxu0 %v7838
      %8384 = vmatprep.subr.bf16.mxu0 %v7836
      %8385 = vmatpush2.bf16.msra.mxu0 %v7835
      %8386 = vmatprep.subr.bf16.mxu0 %v7833
      %8387 = vmatpush2.bf16.msra.mxu0 %v7832
      %8388 = vmatprep.mubr.bf16.mxu0 %v6252
      %8389 = vmatmul.mubr.bf16.gmra.mxu0 %v6251
      %v8390 = vpop.f32.mrf.mxu0
      %v8391 = vadd.f32 %v8350, %v8390
      %v8392 = vpop.f32.mrf.mxu0
      %v8393 = vadd.f32 %v8352, %v8392
      %v8394 = vpop.f32.mrf.mxu0
      %v8395 = vpop.f32.mrf.mxu0
      %8396 = vdwg.mxu0
      %8397 = vmatprep.subr.bf16.mxu0 %v7878
      %8398 = vmatpush1.bf16.msra.mxu0 %v7877
      %8399 = vmatprep.subr.bf16.mxu0 %v7875
      %8400 = vmatpush1.bf16.msra.mxu0 %v7874
      %8401 = vmatprep.subr.bf16.mxu0 %v7872
      %8402 = vmatpush1.bf16.msra.mxu0 %v7871
      %8403 = vmatprep.subr.bf16.mxu0 %v7869
      %8404 = vmatpush1.bf16.msra.mxu0 %v7868
      %8405 = vmatprep.subr.bf16.mxu0 %v7866
      %8406 = vmatpush1.bf16.msra.mxu0 %v7865
      %8407 = vmatprep.subr.bf16.mxu0 %v7863
      %8408 = vmatpush1.bf16.msra.mxu0 %v7862
      %8409 = vmatprep.subr.bf16.mxu0 %v7860
      %8410 = vmatpush1.bf16.msra.mxu0 %v7859
      %8411 = vmatprep.subr.bf16.mxu0 %v7857
      %8412 = vmatpush1.bf16.msra.mxu0 %v7856
      %8413 = vmatprep.subr.bf16.mxu0 %v7902
      %8414 = vmatpush2.bf16.msra.mxu0 %v7901
      %8415 = vmatprep.subr.bf16.mxu0 %v7899
      %8416 = vmatpush2.bf16.msra.mxu0 %v7898
      %8417 = vmatprep.subr.bf16.mxu0 %v7896
      %8418 = vmatpush2.bf16.msra.mxu0 %v7895
      %8419 = vmatprep.subr.bf16.mxu0 %v7893
      %8420 = vmatpush2.bf16.msra.mxu0 %v7892
      %8421 = vmatprep.subr.bf16.mxu0 %v7890
      %8422 = vmatpush2.bf16.msra.mxu0 %v7889
      %8423 = vmatprep.subr.bf16.mxu0 %v7887
      %8424 = vmatpush2.bf16.msra.mxu0 %v7886
      %8425 = vmatprep.subr.bf16.mxu0 %v7884
      %8426 = vmatpush2.bf16.msra.mxu0 %v7883
      %8427 = vmatprep.subr.bf16.mxu0 %v7881
      %8428 = vmatpush2.bf16.msra.mxu0 %v7880
      %8429 = vmatprep.mubr.bf16.mxu0 %v6254
      %8430 = vmatmul.mubr.bf16.gmra.mxu0 %v6253
      %v8431 = vpop.f32.mrf.mxu0
      %v8432 = vadd.f32 %v8391, %v8431
      %v8433 = vpop.f32.mrf.mxu0
      %v8434 = vadd.f32 %v8393, %v8433
      %v8435 = vpop.f32.mrf.mxu0
      %v8436 = vpop.f32.mrf.mxu0
      %8437 = vdwg.mxu0
      %8438 = vmatprep.subr.bf16.mxu0 0
      %8439 = vmatpush1.bf16.msra.mxu0 %v7639
      %8440 = vmatprep.subr.bf16.mxu0 0
      %8441 = vmatpush1.bf16.msra.mxu0 %v7636
      %8442 = vmatprep.subr.bf16.mxu0 0
      %8443 = vmatpush1.bf16.msra.mxu0 %v7633
      %8444 = vmatprep.subr.bf16.mxu0 0
      %8445 = vmatpush1.bf16.msra.mxu0 %v7630
      %8446 = vmatprep.subr.bf16.mxu0 0
      %8447 = vmatpush1.bf16.msra.mxu0 %v7627
      %8448 = vmatprep.subr.bf16.mxu0 0
      %8449 = vmatpush1.bf16.msra.mxu0 %v7624
      %8450 = vmatprep.subr.bf16.mxu0 0
      %8451 = vmatpush1.bf16.msra.mxu0 %v7621
      %8452 = vmatprep.subr.bf16.mxu0 0
      %8453 = vmatpush1.bf16.msra.mxu0 %v7618
      %8454 = vmatprep.subr.bf16.mxu0 0
      %8455 = vmatpush2.bf16.msra.mxu0 %v7663
      %8456 = vmatprep.subr.bf16.mxu0 0
      %8457 = vmatpush2.bf16.msra.mxu0 %v7660
      %8458 = vmatprep.subr.bf16.mxu0 0
      %8459 = vmatpush2.bf16.msra.mxu0 %v7657
      %8460 = vmatprep.subr.bf16.mxu0 0
      %8461 = vmatpush2.bf16.msra.mxu0 %v7654
      %8462 = vmatprep.subr.bf16.mxu0 0
      %8463 = vmatpush2.bf16.msra.mxu0 %v7651
      %8464 = vmatprep.subr.bf16.mxu0 0
      %8465 = vmatpush2.bf16.msra.mxu0 %v7648
      %8466 = vmatprep.subr.bf16.mxu0 0
      %8467 = vmatpush2.bf16.msra.mxu0 %v7645
      %8468 = vmatprep.subr.bf16.mxu0 0
      %8469 = vmatpush2.bf16.msra.mxu0 %v7642
      %8470 = vmatprep.mubr.bf16.mxu0 %v6244
      %8471 = vmatmul.mubr.bf16.gmra.mxu0 %v6243
      %v8472 = vpop.f32.mrf.mxu0
      %v8473 = vadd.f32 %v6652, %v8472
      %v8474 = vpop.f32.mrf.mxu0
      %v8475 = vpop.f32.mrf.mxu0
      %v8476 = vpop.f32.mrf.mxu0
      %8477 = vdwg.mxu0
      %8478 = vmatprep.subr.bf16.mxu0 0
      %8479 = vmatpush1.bf16.msra.mxu0 %v7687
      %8480 = vmatprep.subr.bf16.mxu0 0
      %8481 = vmatpush1.bf16.msra.mxu0 %v7684
      %8482 = vmatprep.subr.bf16.mxu0 0
      %8483 = vmatpush1.bf16.msra.mxu0 %v7681
      %8484 = vmatprep.subr.bf16.mxu0 0
      %8485 = vmatpush1.bf16.msra.mxu0 %v7678
      %8486 = vmatprep.subr.bf16.mxu0 0
      %8487 = vmatpush1.bf16.msra.mxu0 %v7675
      %8488 = vmatprep.subr.bf16.mxu0 0
      %8489 = vmatpush1.bf16.msra.mxu0 %v7672
      %8490 = vmatprep.subr.bf16.mxu0 0
      %8491 = vmatpush1.bf16.msra.mxu0 %v7669
      %8492 = vmatprep.subr.bf16.mxu0 0
      %8493 = vmatpush1.bf16.msra.mxu0 %v7666
      %8494 = vmatprep.subr.bf16.mxu0 0
      %8495 = vmatpush2.bf16.msra.mxu0 %v7711
      %8496 = vmatprep.subr.bf16.mxu0 0
      %8497 = vmatpush2.bf16.msra.mxu0 %v7708
      %8498 = vmatprep.subr.bf16.mxu0 0
      %8499 = vmatpush2.bf16.msra.mxu0 %v7705
      %8500 = vmatprep.subr.bf16.mxu0 0
      %8501 = vmatpush2.bf16.msra.mxu0 %v7702
      %8502 = vmatprep.subr.bf16.mxu0 0
      %8503 = vmatpush2.bf16.msra.mxu0 %v7699
      %8504 = vmatprep.subr.bf16.mxu0 0
      %8505 = vmatpush2.bf16.msra.mxu0 %v7696
      %8506 = vmatprep.subr.bf16.mxu0 0
      %8507 = vmatpush2.bf16.msra.mxu0 %v7693
      %8508 = vmatprep.subr.bf16.mxu0 0
      %8509 = vmatpush2.bf16.msra.mxu0 %v7690
      %8510 = vmatprep.mubr.bf16.mxu0 %v6246
      %8511 = vmatmul.mubr.bf16.gmra.mxu0 %v6245
      %v8512 = vpop.f32.mrf.mxu0
      %v8513 = vadd.f32 %v8473, %v8512
      %v8514 = vpop.f32.mrf.mxu0
      %v8515 = vpop.f32.mrf.mxu0
      %v8516 = vpop.f32.mrf.mxu0
      %8517 = vdwg.mxu0
      %8518 = vmatprep.subr.bf16.mxu0 0
      %8519 = vmatpush1.bf16.msra.mxu0 %v7735
      %8520 = vmatprep.subr.bf16.mxu0 0
      %8521 = vmatpush1.bf16.msra.mxu0 %v7732
      %8522 = vmatprep.subr.bf16.mxu0 0
      %8523 = vmatpush1.bf16.msra.mxu0 %v7729
      %8524 = vmatprep.subr.bf16.mxu0 0
      %8525 = vmatpush1.bf16.msra.mxu0 %v7726
      %8526 = vmatprep.subr.bf16.mxu0 0
      %8527 = vmatpush1.bf16.msra.mxu0 %v7723
      %8528 = vmatprep.subr.bf16.mxu0 0
      %8529 = vmatpush1.bf16.msra.mxu0 %v7720
      %8530 = vmatprep.subr.bf16.mxu0 0
      %8531 = vmatpush1.bf16.msra.mxu0 %v7717
      %8532 = vmatprep.subr.bf16.mxu0 0
      %8533 = vmatpush1.bf16.msra.mxu0 %v7714
      %8534 = vmatprep.subr.bf16.mxu0 0
      %8535 = vmatpush2.bf16.msra.mxu0 %v7759
      %8536 = vmatprep.subr.bf16.mxu0 0
      %8537 = vmatpush2.bf16.msra.mxu0 %v7756
      %8538 = vmatprep.subr.bf16.mxu0 0
      %8539 = vmatpush2.bf16.msra.mxu0 %v7753
      %8540 = vmatprep.subr.bf16.mxu0 0
      %8541 = vmatpush2.bf16.msra.mxu0 %v7750
      %8542 = vmatprep.subr.bf16.mxu0 0
      %8543 = vmatpush2.bf16.msra.mxu0 %v7747
      %8544 = vmatprep.subr.bf16.mxu0 0
      %8545 = vmatpush2.bf16.msra.mxu0 %v7744
      %8546 = vmatprep.subr.bf16.mxu0 0
      %8547 = vmatpush2.bf16.msra.mxu0 %v7741
      %8548 = vmatprep.subr.bf16.mxu0 0
      %8549 = vmatpush2.bf16.msra.mxu0 %v7738
      %8550 = vmatprep.mubr.bf16.mxu0 %v6248
      %8551 = vmatmul.mubr.bf16.gmra.mxu0 %v6247
      %v8552 = vpop.f32.mrf.mxu0
      %v8553 = vadd.f32 %v8513, %v8552
      %v8554 = vpop.f32.mrf.mxu0
      %v8555 = vpop.f32.mrf.mxu0
      %v8556 = vpop.f32.mrf.mxu0
      %8557 = vdwg.mxu0
      %8558 = vmatprep.subr.bf16.mxu0 0
      %8559 = vmatpush1.bf16.msra.mxu0 %v7783
      %8560 = vmatprep.subr.bf16.mxu0 0
      %8561 = vmatpush1.bf16.msra.mxu0 %v7780
      %8562 = vmatprep.subr.bf16.mxu0 0
      %8563 = vmatpush1.bf16.msra.mxu0 %v7777
      %8564 = vmatprep.subr.bf16.mxu0 0
      %8565 = vmatpush1.bf16.msra.mxu0 %v7774
      %8566 = vmatprep.subr.bf16.mxu0 0
      %8567 = vmatpush1.bf16.msra.mxu0 %v7771
      %8568 = vmatprep.subr.bf16.mxu0 0
      %8569 = vmatpush1.bf16.msra.mxu0 %v7768
      %8570 = vmatprep.subr.bf16.mxu0 0
      %8571 = vmatpush1.bf16.msra.mxu0 %v7765
      %8572 = vmatprep.subr.bf16.mxu0 0
      %8573 = vmatpush1.bf16.msra.mxu0 %v7762
      %8574 = vmatprep.subr.bf16.mxu0 0
      %8575 = vmatpush2.bf16.msra.mxu0 %v7807
      %8576 = vmatprep.subr.bf16.mxu0 0
      %8577 = vmatpush2.bf16.msra.mxu0 %v7804
      %8578 = vmatprep.subr.bf16.mxu0 0
      %8579 = vmatpush2.bf16.msra.mxu0 %v7801
      %8580 = vmatprep.subr.bf16.mxu0 0
      %8581 = vmatpush2.bf16.msra.mxu0 %v7798
      %8582 = vmatprep.subr.bf16.mxu0 0
      %8583 = vmatpush2.bf16.msra.mxu0 %v7795
      %8584 = vmatprep.subr.bf16.mxu0 0
      %8585 = vmatpush2.bf16.msra.mxu0 %v7792
      %8586 = vmatprep.subr.bf16.mxu0 0
      %8587 = vmatpush2.bf16.msra.mxu0 %v7789
      %8588 = vmatprep.subr.bf16.mxu0 0
      %8589 = vmatpush2.bf16.msra.mxu0 %v7786
      %8590 = vmatprep.mubr.bf16.mxu0 %v6250
      %8591 = vmatmul.mubr.bf16.gmra.mxu0 %v6249
      %v8592 = vpop.f32.mrf.mxu0
      %v8593 = vadd.f32 %v8553, %v8592
      %v8594 = vpop.f32.mrf.mxu0
      %v8595 = vpop.f32.mrf.mxu0
      %v8596 = vpop.f32.mrf.mxu0
      %8597 = vdwg.mxu0
      %8598 = vmatprep.subr.bf16.mxu0 0
      %8599 = vmatpush1.bf16.msra.mxu0 %v7831
      %8600 = vmatprep.subr.bf16.mxu0 0
      %8601 = vmatpush1.bf16.msra.mxu0 %v7828
      %8602 = vmatprep.subr.bf16.mxu0 0
      %8603 = vmatpush1.bf16.msra.mxu0 %v7825
      %8604 = vmatprep.subr.bf16.mxu0 0
      %8605 = vmatpush1.bf16.msra.mxu0 %v7822
      %8606 = vmatprep.subr.bf16.mxu0 0
      %8607 = vmatpush1.bf16.msra.mxu0 %v7819
      %8608 = vmatprep.subr.bf16.mxu0 0
      %8609 = vmatpush1.bf16.msra.mxu0 %v7816
      %8610 = vmatprep.subr.bf16.mxu0 0
      %8611 = vmatpush1.bf16.msra.mxu0 %v7813
      %8612 = vmatprep.subr.bf16.mxu0 0
      %8613 = vmatpush1.bf16.msra.mxu0 %v7810
      %8614 = vmatprep.subr.bf16.mxu0 0
      %8615 = vmatpush2.bf16.msra.mxu0 %v7855
      %8616 = vmatprep.subr.bf16.mxu0 0
      %8617 = vmatpush2.bf16.msra.mxu0 %v7852
      %8618 = vmatprep.subr.bf16.mxu0 0
      %8619 = vmatpush2.bf16.msra.mxu0 %v7849
      %8620 = vmatprep.subr.bf16.mxu0 0
      %8621 = vmatpush2.bf16.msra.mxu0 %v7846
      %8622 = vmatprep.subr.bf16.mxu0 0
      %8623 = vmatpush2.bf16.msra.mxu0 %v7843
      %8624 = vmatprep.subr.bf16.mxu0 0
      %8625 = vmatpush2.bf16.msra.mxu0 %v7840
      %8626 = vmatprep.subr.bf16.mxu0 0
      %8627 = vmatpush2.bf16.msra.mxu0 %v7837
      %8628 = vmatprep.subr.bf16.mxu0 0
      %8629 = vmatpush2.bf16.msra.mxu0 %v7834
      %8630 = vmatprep.mubr.bf16.mxu0 %v6252
      %8631 = vmatmul.mubr.bf16.gmra.mxu0 %v6251
      %v8632 = vpop.f32.mrf.mxu0
      %v8633 = vadd.f32 %v8593, %v8632
      %v8634 = vpop.f32.mrf.mxu0
      %v8635 = vpop.f32.mrf.mxu0
      %v8636 = vpop.f32.mrf.mxu0
      %8637 = vdwg.mxu0
      %8638 = vmatprep.subr.bf16.mxu0 0
      %8639 = vmatpush1.bf16.msra.mxu0 %v7879
      %8640 = vmatprep.subr.bf16.mxu0 0
      %8641 = vmatpush1.bf16.msra.mxu0 %v7876
      %8642 = vmatprep.subr.bf16.mxu0 0
      %8643 = vmatpush1.bf16.msra.mxu0 %v7873
      %8644 = vmatprep.subr.bf16.mxu0 0
      %8645 = vmatpush1.bf16.msra.mxu0 %v7870
      %8646 = vmatprep.subr.bf16.mxu0 0
      %8647 = vmatpush1.bf16.msra.mxu0 %v7867
      %8648 = vmatprep.subr.bf16.mxu0 0
      %8649 = vmatpush1.bf16.msra.mxu0 %v7864
      %8650 = vmatprep.subr.bf16.mxu0 0
      %8651 = vmatpush1.bf16.msra.mxu0 %v7861
      %8652 = vmatprep.subr.bf16.mxu0 0
      %8653 = vmatpush1.bf16.msra.mxu0 %v7858
      %8654 = vmatprep.subr.bf16.mxu0 0
      %8655 = vmatpush2.bf16.msra.mxu0 %v7903
      %8656 = vmatprep.subr.bf16.mxu0 0
      %8657 = vmatpush2.bf16.msra.mxu0 %v7900
      %8658 = vmatprep.subr.bf16.mxu0 0
      %8659 = vmatpush2.bf16.msra.mxu0 %v7897
      %8660 = vmatprep.subr.bf16.mxu0 0
      %8661 = vmatpush2.bf16.msra.mxu0 %v7894
      %8662 = vmatprep.subr.bf16.mxu0 0
      %8663 = vmatpush2.bf16.msra.mxu0 %v7891
      %8664 = vmatprep.subr.bf16.mxu0 0
      %8665 = vmatpush2.bf16.msra.mxu0 %v7888
      %8666 = vmatprep.subr.bf16.mxu0 0
      %8667 = vmatpush2.bf16.msra.mxu0 %v7885
      %8668 = vmatprep.subr.bf16.mxu0 0
      %8669 = vmatpush2.bf16.msra.mxu0 %v7882
      %8670 = vmatprep.mubr.bf16.mxu0 %v6254
      %8671 = vmatmul.mubr.bf16.gmra.mxu0 %v6253
      %v8672 = vpop.f32.mrf.mxu0
      %v8673 = vadd.f32 %v8633, %v8672
      %v8674 = vpop.f32.mrf.mxu0
      %v8675 = vpop.f32.mrf.mxu0
      %v8676 = vpop.f32.mrf.mxu0
      %8677 = vdwg.mxu0
      %v8678 = vld [vmem:[%s14] sm:$0x7]
      %v8680 = vlaneseq
      %v8681 = vshrl.u32 %v8680, 7
      %v8682 = vsub.s32 0, %v8681
      %v8683 = vrot.slane %v8678, %v8682
      %v8684 = vlaneseq
      %v8685 = vshrl.u32 %v8684, 7
      %v8686 = vsub.s32 1, %v8685
      %v8687 = vrot.slane %v8678, %v8686
      %v8688 = vlaneseq
      %v8689 = vshrl.u32 %v8688, 7
      %v8690 = vsub.s32 2, %v8689
      %v8691 = vrot.slane %v8678, %v8690
      %v8695 = vmul.f32 %v8683, %v8432
      %v8696 = vmul.f32 %v8687, %v8434
      %v8697 = vmul.f32 %v8691, %v8673
      %v8698 = vadd.f32 %v3784, %v8695
      %v8699 = vadd.f32 %v3785, %v8696
      %v8700 = vadd.f32 %v3786, %v8697
      %8701 = vst [vmem:[%s494] sm:$0xff] %v8698
      %8702 = vst [vmem:[%s494 + $0x8] sm:$0xff] %v8699
      %8703 = vst [vmem:[%s494 + $0x10] sm:$0xff] %v8700
      %p8704 = scmp.lt.s32.totalorder %s26, 1
      %s8705 = scalar_select %p8704, %s26, 1
      %s8706 = smul.addr %s8705, 3
      %s8707 = smul.addr %s8706, 8
      %s8708 = scalar_lea.vmem %s15, %s8707
      // Predicated region
      $region81: #{encoder_forward.15} parent=79 // pred_check
        %p8709 = pneg %p364
      $region82: #{encoder_forward.15} parent=79 // pred_check_branch
        %8711 = sbr.rel (%p8709) target = $region84
      $region83: #{encoder_forward.15} parent=79 // pred_region
        _
      $region84: #{encoder_forward.15} parent=79 // pred_fallthru
        _
    $region80: #{encoder_forward.15} parent=5 // pred_fallthru
      _
    %p8712 = scmp.le.s32.totalorder 2, %s21
    // Predicated region
    $region85: #{encoder_forward.15} parent=5 // pred_check
      %p8713 = pneg %p8712
    $region86: #{encoder_forward.15} parent=5 // pred_check_branch
      %8715 = sbr.rel (%p8713) target = $region88
    $region87: #{encoder_forward.15} parent=5 // pred_region
      %s8716 = ssub.s32 %s21, 2
      // Predicated region
      $region89: #{encoder_forward.15} parent=87 // pred_check
        %p8717 = pneg %p370
      $region90: #{encoder_forward.15} parent=87 // pred_check_branch
        %8719 = sbr.rel (%p8717) target = $region92
      $region91: #{encoder_forward.15} parent=87 // pred_region
        %p8720 = scmp.lt.s32.totalorder %s27, 1
        %s8721 = scalar_select %p8720, %s27, 1
        %s8722 = smul.addr %s8721, 3
        %s8723 = smul.addr %s8722, 8
        %s8724 = scalar_lea.vmem %s15, %s8723
      $region92: #{encoder_forward.15} parent=87 // pred_fallthru
        _
    $region88: #{encoder_forward.15} parent=5 // pred_fallthru
      _
  $region6: #{encoder_forward.15} parent=0 // loop_footer
    %s25 = sadd.s32 1, %s21
  $region7: #{encoder_forward.15} parent=0 // loop_footer_branch
    %20 = sbr.rel target = $region3
  $region8: #{encoder_forward.15} parent=0 // loop_exit
    _

</llo_original>
